<compile_context>
chip_gen: v7x
topology: tpu7x:2x2x1
jax: 0.10.0
libtpu: 0.0.40
codegen_flags: <defaults>
</compile_context>

<pallas_src>
import functools

import jax
import jax.numpy as jnp
from jax.experimental import pallas as pl
from jax.experimental.pallas import tpu as pltpu


# ----------------------------- fused Pallas kernel -----------------------------

def _fused_kernel(x_ref, w1_ref, b1_ref, w2_ref, b2_ref, w3_ref, b3_ref,
                  wf_ref, bf_ref, fac_ref, o_ref, *, H, W, C, num_heads):
    """Full NextAttentionImplZ forward for one batch element, entirely in VMEM."""
    dh = C // num_heads
    C3 = 3 * C
    f32 = jnp.float32

    # ---- q1: 1x1 conv == (H*W, C) @ (C, 3C) + b1 ----
    x2d = x_ref[0]                                                   # (H*W, C)
    y = jnp.dot(x2d, w1_ref[...], preferred_element_type=f32)
    y = (y + b1_ref[...]).reshape(H, W, C3)

    # ---- q2/q3: depthwise 3x3 convs (padding=1), value-level zero halo ----
    def dw3x3(val, w_ref_, b_ref_):
        zrow = jnp.zeros((1, W, C3), f32)
        vp = jnp.concatenate([zrow, val, zrow], axis=0)              # (H+2, W,   3C)
        zcol = jnp.zeros((H + 2, 1, C3), f32)
        vp = jnp.concatenate([zcol, vp, zcol], axis=1)               # (H+2, W+2, 3C)
        acc = jnp.zeros((H, W, C3), f32)
        for ky in range(3):
            for kx in range(3):
                acc = acc + vp[ky:ky + H, kx:kx + W, :] * w_ref_[ky * 3 + kx]
        return acc + b_ref_[...]

    z = dw3x3(y, w2_ref, b2_ref)
    z = dw3x3(z, w3_ref, b3_ref)                                     # (H, W, 3C)

    # ---- attention: per head, each H row attends over the W (key) axis ----
    fac = fac_ref[0]
    eps2 = 1e-24                                                     # (eps=1e-12)^2
    head_outs = []
    for hd in range(num_heads):
        lo = hd * dh
        q = z[:, :, lo:lo + dh]                                      # (H, W, dh)
        k = z[:, :, C + lo:C + lo + dh]
        v = z[:, :, 2 * C + lo:2 * C + lo + dh]
        qn = q * jax.lax.rsqrt(
            jnp.maximum(jnp.sum(q * q, axis=-1, keepdims=True), eps2))
        kn = k * jax.lax.rsqrt(
            jnp.maximum(jnp.sum(k * k, axis=-1, keepdims=True), eps2))
        s = jnp.einsum("hqd,hkd->hqk", qn, kn,
                       preferred_element_type=f32) * fac             # (H, W, W)
        s = s - jnp.max(s, axis=-1, keepdims=True)
        p = jnp.exp(s)
        p = p * pl.reciprocal(jnp.sum(p, axis=-1, keepdims=True), approx=True)
        head_outs.append(
            jnp.einsum("hqk,hkd->hqd", p, v, preferred_element_type=f32))
    r = jnp.concatenate(head_outs, axis=-1)                          # (H, W, C)

    # ---- fin: 1x1 conv computed transposed -> lane-dense (C, H*W), NCHW-ordered ----
    r2d = r.reshape(H * W, C)
    out = jnp.einsum("ok,mk->om", wf_ref[...], r2d,
                     preferred_element_type=f32) + bf_ref[...]       # (C, H*W)
    o_ref[0] = out


# ------------------------------ module wrapper ------------------------------

def prepare_params(params):
    """One-time weight re-layout (kept outside the jitted forward)."""
    C = params["fin_b"].shape[0]
    C3 = params["q1_b"].shape[0]
    f32 = jnp.float32
    return {
        "w1": params["q1_w"][:, :, 0, 0].T.astype(f32),                   # (C, 3C)
        "b1": params["q1_b"].reshape(1, C3).astype(f32),
        "w2": jnp.transpose(params["q2_w"], (2, 3, 1, 0)).reshape(9, C3).astype(f32),
        "b2": params["q2_b"].reshape(1, C3).astype(f32),
        "w3": jnp.transpose(params["q3_w"], (2, 3, 1, 0)).reshape(9, C3).astype(f32),
        "b3": params["q3_b"].reshape(1, C3).astype(f32),
        "wf": params["fin_w"][:, :, 0, 0].astype(f32),                    # (Cout, Cin)
        "bf": params["fin_b"].reshape(C, 1).astype(f32),
        "fac": params["fac"].reshape(1).astype(f32),
    }


def next_attention_z(x_nchw, prep, num_heads):
    """Fused Pallas forward of NextAttentionImplZ (input/output NCHW)."""
    N, C, H, W = x_nchw.shape
    C3 = 3 * C
    # Single tiny boundary transpose; the trailing reshape is free.
    x = jnp.transpose(x_nchw, (0, 2, 3, 1)).reshape(N, H * W, C).astype(jnp.float32)

    kernel = functools.partial(_fused_kernel, H=H, W=W, C=C, num_heads=num_heads)
    # TODO(synk): tile the H axis (with a 1-row halo) when the per-batch working
    # set would exceed the per-core VMEM budget (notably v7x's 64 MiB).
    out = pl.pallas_call(
        kernel,
        out_shape=jax.ShapeDtypeStruct((N, C, H * W), jnp.float32),
        grid=(N,),
        in_specs=[
            pl.BlockSpec((1, H * W, C), lambda n: (n, 0, 0)),            # x
            pl.BlockSpec((C, C3), lambda n: (0, 0)),                     # w1
            pl.BlockSpec((1, C3), lambda n: (0, 0)),                     # b1
            pl.BlockSpec((9, C3), lambda n: (0, 0)),                     # w2 (flattened taps)
            pl.BlockSpec((1, C3), lambda n: (0, 0)),                     # b2
            pl.BlockSpec((9, C3), lambda n: (0, 0)),                     # w3
            pl.BlockSpec((1, C3), lambda n: (0, 0)),                     # b3
            pl.BlockSpec((C, C), lambda n: (0, 0)),                      # wf
            pl.BlockSpec((C, 1), lambda n: (0, 0)),                      # bf
            pl.BlockSpec(memory_space=pltpu.MemorySpace.SMEM),           # fac (scalar)
        ],
        out_specs=pl.BlockSpec((1, C, H * W), lambda n: (n, 0, 0)),
        compiler_params=pltpu.CompilerParams(dimension_semantics=("parallel",)),
    )(x, prep["w1"], prep["b1"], prep["w2"], prep["b2"], prep["w3"], prep["b3"],
      prep["wf"], prep["bf"], prep["fac"])

    return out.reshape(N, C, H, W)                                       # already NCHW


# ------------------------------ params / reference ------------------------------

def init_params(key, num_dims):
    c = num_dims
    ks = jax.random.split(key, 8)

    def nrm(k, shape, scale=0.1):
        return scale * jax.random.normal(k, shape, jnp.float32)

    return {
        "q1_w": nrm(ks[0], (3 * c, c, 1, 1)),
        "q1_b": nrm(ks[1], (3 * c,)),
        "q2_w": nrm(ks[2], (3 * c, 1, 3, 3)),
        "q2_b": nrm(ks[3], (3 * c,)),
        "q3_w": nrm(ks[4], (3 * c, 1, 3, 3)),
        "q3_b": nrm(ks[5], (3 * c,)),
        "fac": jnp.ones((1,), jnp.float32),
        "fin_w": nrm(ks[6], (c, c, 1, 1)),
        "fin_b": nrm(ks[7], (c,)),
    }


def ref_forward(x, params, num_heads):
    """Pure-JAX reference mirroring the PyTorch forward (NCHW)."""
    N, C, H, W = x.shape
    dh = C // num_heads

    def conv(t, w, b, pad, groups):
        y = jax.lax.conv_general_dilated(
            t, w, (1, 1), [(pad, pad), (pad, pad)],
            dimension_numbers=("NCHW", "OIHW", "NCHW"),
            feature_group_count=groups)
        return y + b[None, :, None, None]

    qkv = conv(x, params["q1_w"], params["q1_b"], 0, 1)
    qkv = conv(qkv, params["q2_w"], params["q2_b"], 1, 3 * C)
    qkv = conv(qkv, params["q3_w"], params["q3_b"], 1, 3 * C)
    q, k, v = jnp.split(qkv, 3, axis=1)

    def resh(t):
        t = t.reshape(N, num_heads, dh, H, W)
        return jnp.transpose(t, (0, 1, 3, 4, 2)).reshape(N * num_heads * H, W, dh)

    q, k, v = map(resh, (q, k, v))

    def l2n(t):
        return t / jnp.maximum(jnp.linalg.norm(t, axis=-1, keepdims=True), 1e-12)

    q, k = l2n(q), l2n(k)
    s = jnp.einsum("bwd,bvd->bwv", q, k) * params["fac"][0]
    p = jax.nn.softmax(s, axis=-1)
    r = jnp.einsum("bwv,bvd->bwd", p, v)
    r = r.reshape(N, num_heads, H, W, dh)
    r = jnp.transpose(r, (0, 1, 4, 2, 3)).reshape(N, C, H, W)
    return conv(r, params["fin_w"], params["fin_b"], 0, 1)


# ------------------------------------ main ------------------------------------

if __name__ == "__main__":
    key = jax.random.PRNGKey(0)
    k_x, k_p = jax.random.split(key)

    N, C, H, W = 2, 8, 16, 16
    num_heads = 2

    x = jax.random.normal(k_x, (N, C, H, W), jnp.float32)
    params = init_params(k_p, C)
    prep = prepare_params(params)          # one-time weight re-layout, outside jit

    fwd = jax.jit(functools.partial(next_attention_z, num_heads=num_heads))
    out = jax.block_until_ready(fwd(x, prep))

    ref = ref_forward(x, params, num_heads)
    assert out.shape == (N, C, H, W)
    assert jnp.allclose(out, ref, atol=5e-3, rtol=5e-3), float(
        jnp.max(jnp.abs(out - ref)))

    print("KERNEL_OK")
</pallas_src>

<mosaic_0001>
module attributes {stable_mosaic.version = 11 : i64} {
  func.func @_fused_kernel(%arg0: i32, %arg1: memref<1x256x8xf32, #tpu.memory_space<vmem>>, %arg2: memref<8x24xf32, #tpu.memory_space<vmem>>, %arg3: memref<1x24xf32, #tpu.memory_space<vmem>>, %arg4: memref<9x24xf32, #tpu.memory_space<vmem>>, %arg5: memref<1x24xf32, #tpu.memory_space<vmem>>, %arg6: memref<9x24xf32, #tpu.memory_space<vmem>>, %arg7: memref<1x24xf32, #tpu.memory_space<vmem>>, %arg8: memref<8x8xf32, #tpu.memory_space<vmem>>, %arg9: memref<8x1xf32, #tpu.memory_space<vmem>>, %arg10: memref<1xf32, #tpu.memory_space<smem>>, %arg11: memref<1x8x256xf32, #tpu.memory_space<vmem>>) attributes {dimension_semantics = [#tpu.dimension_semantics<parallel>], iteration_bounds = array<i64: 2>, scalar_prefetch = 0 : i64, scratch_operands = 0 : i64, tpu.core_type = #tpu.core_type<tc>, window_params = [{transform_indices = @transform_0, window_bounds = array<i64: 1, 256, 8>}, {pipeline_mode = #tpu.pipeline_mode<synchronous>, transform_indices = @transform_1, window_bounds = array<i64: 8, 24>}, {pipeline_mode = #tpu.pipeline_mode<synchronous>, transform_indices = @transform_2, window_bounds = array<i64: 1, 24>}, {pipeline_mode = #tpu.pipeline_mode<synchronous>, transform_indices = @transform_3, window_bounds = array<i64: 9, 24>}, {pipeline_mode = #tpu.pipeline_mode<synchronous>, transform_indices = @transform_4, window_bounds = array<i64: 1, 24>}, {pipeline_mode = #tpu.pipeline_mode<synchronous>, transform_indices = @transform_5, window_bounds = array<i64: 9, 24>}, {pipeline_mode = #tpu.pipeline_mode<synchronous>, transform_indices = @transform_6, window_bounds = array<i64: 1, 24>}, {pipeline_mode = #tpu.pipeline_mode<synchronous>, transform_indices = @transform_7, window_bounds = array<i64: 8, 8>}, {pipeline_mode = #tpu.pipeline_mode<synchronous>, transform_indices = @transform_8, window_bounds = array<i64: 8, 1>}, {transform_indices = @transform_9, window_bounds = array<i64: 1>}, {transform_indices = @transform_10, window_bounds = array<i64: 1, 8, 256>}]} {
    %c0 = arith.constant 0 : index
    %c0_0 = arith.constant 0 : index
    %c0_1 = arith.constant 0 : index
    %0 = vector.load %arg1[%c0, %c0_0, %c0_1] : memref<1x256x8xf32, #tpu.memory_space<vmem>>, vector<1x256x8xf32>
    %1 = vector.shape_cast %0 : vector<1x256x8xf32> to vector<256x8xf32>
    %c0_2 = arith.constant 0 : index
    %c0_3 = arith.constant 0 : index
    %2 = vector.load %arg2[%c0_2, %c0_3] : memref<8x24xf32, #tpu.memory_space<vmem>>, vector<8x24xf32>
    %cst = arith.constant dense<0.000000e+00> : vector<256x24xf32>
    %3 = tpu.matmul %1, %2, %cst {dimension_numbers = #tpu.dot_dimension_numbers<[1], [0], [0], [1], [0, 0, 1, 1], [], []>} : vector<256x8xf32>, vector<8x24xf32>, vector<256x24xf32> -> vector<256x24xf32>
    %c0_4 = arith.constant 0 : index
    %c0_5 = arith.constant 0 : index
    %4 = vector.load %arg3[%c0_4, %c0_5] : memref<1x24xf32, #tpu.memory_space<vmem>>, vector<1x24xf32>
    %5 = vector.broadcast %4 : vector<1x24xf32> to vector<256x24xf32>
    %6 = arith.addf %3, %5 : vector<256x24xf32>
    %7 = vector.shape_cast %6 : vector<256x24xf32> to vector<16x16x24xf32>
    %cst_6 = arith.constant 0.000000e+00 : f32
    %8 = vector.broadcast %cst_6 : f32 to vector<1x16x24xf32>
    %9 = tpu.concatenate %8, %7, %8 in 0 : vector<1x16x24xf32>, vector<16x16x24xf32>, vector<1x16x24xf32> -> vector<18x16x24xf32>
    %cst_7 = arith.constant 0.000000e+00 : f32
    %10 = vector.broadcast %cst_7 : f32 to vector<18x1x24xf32>
    %11 = tpu.concatenate %10, %9, %10 in 1 : vector<18x1x24xf32>, vector<18x16x24xf32>, vector<18x1x24xf32> -> vector<18x18x24xf32>
    %cst_8 = arith.constant 0.000000e+00 : f32
    %12 = vector.broadcast %cst_8 : f32 to vector<16x16x24xf32>
    %13 = vector.extract_strided_slice %11 {offsets = [0, 0, 0], sizes = [16, 16, 24], strides = [1, 1, 1]} : vector<18x18x24xf32> to vector<16x16x24xf32>
    %c0_9 = arith.constant 0 : index
    %c0_10 = arith.constant 0 : index
    %14 = vector.load %arg4[%c0_9, %c0_10] : memref<9x24xf32, #tpu.memory_space<vmem>>, vector<1x24xf32>
    %15 = vector.shape_cast %14 : vector<1x24xf32> to vector<24xf32>
    %16 = vector.shape_cast %15 : vector<24xf32> to vector<1x1x24xf32>
    %17 = vector.broadcast %16 : vector<1x1x24xf32> to vector<16x16x24xf32>
    %18 = arith.mulf %13, %17 : vector<16x16x24xf32>
    %19 = arith.addf %12, %18 : vector<16x16x24xf32>
    %20 = vector.extract_strided_slice %11 {offsets = [0, 1, 0], sizes = [16, 16, 24], strides = [1, 1, 1]} : vector<18x18x24xf32> to vector<16x16x24xf32>
    %c1 = arith.constant 1 : index
    %c0_11 = arith.constant 0 : index
    %21 = vector.load %arg4[%c1, %c0_11] : memref<9x24xf32, #tpu.memory_space<vmem>>, vector<1x24xf32>
    %22 = vector.shape_cast %21 : vector<1x24xf32> to vector<24xf32>
    %23 = vector.shape_cast %22 : vector<24xf32> to vector<1x1x24xf32>
    %24 = vector.broadcast %23 : vector<1x1x24xf32> to vector<16x16x24xf32>
    %25 = arith.mulf %20, %24 : vector<16x16x24xf32>
    %26 = arith.addf %19, %25 : vector<16x16x24xf32>
    %27 = vector.extract_strided_slice %11 {offsets = [0, 2, 0], sizes = [16, 16, 24], strides = [1, 1, 1]} : vector<18x18x24xf32> to vector<16x16x24xf32>
    %c2 = arith.constant 2 : index
    %c0_12 = arith.constant 0 : index
    %28 = vector.load %arg4[%c2, %c0_12] : memref<9x24xf32, #tpu.memory_space<vmem>>, vector<1x24xf32>
    %29 = vector.shape_cast %28 : vector<1x24xf32> to vector<24xf32>
    %30 = vector.shape_cast %29 : vector<24xf32> to vector<1x1x24xf32>
    %31 = vector.broadcast %30 : vector<1x1x24xf32> to vector<16x16x24xf32>
    %32 = arith.mulf %27, %31 : vector<16x16x24xf32>
    %33 = arith.addf %26, %32 : vector<16x16x24xf32>
    %34 = vector.extract_strided_slice %11 {offsets = [1, 0, 0], sizes = [16, 16, 24], strides = [1, 1, 1]} : vector<18x18x24xf32> to vector<16x16x24xf32>
    %c3 = arith.constant 3 : index
    %c0_13 = arith.constant 0 : index
    %35 = vector.load %arg4[%c3, %c0_13] : memref<9x24xf32, #tpu.memory_space<vmem>>, vector<1x24xf32>
    %36 = vector.shape_cast %35 : vector<1x24xf32> to vector<24xf32>
    %37 = vector.shape_cast %36 : vector<24xf32> to vector<1x1x24xf32>
    %38 = vector.broadcast %37 : vector<1x1x24xf32> to vector<16x16x24xf32>
    %39 = arith.mulf %34, %38 : vector<16x16x24xf32>
    %40 = arith.addf %33, %39 : vector<16x16x24xf32>
    %41 = vector.extract_strided_slice %11 {offsets = [1, 1, 0], sizes = [16, 16, 24], strides = [1, 1, 1]} : vector<18x18x24xf32> to vector<16x16x24xf32>
    %c4 = arith.constant 4 : index
    %c0_14 = arith.constant 0 : index
    %42 = vector.load %arg4[%c4, %c0_14] : memref<9x24xf32, #tpu.memory_space<vmem>>, vector<1x24xf32>
    %43 = vector.shape_cast %42 : vector<1x24xf32> to vector<24xf32>
    %44 = vector.shape_cast %43 : vector<24xf32> to vector<1x1x24xf32>
    %45 = vector.broadcast %44 : vector<1x1x24xf32> to vector<16x16x24xf32>
    %46 = arith.mulf %41, %45 : vector<16x16x24xf32>
    %47 = arith.addf %40, %46 : vector<16x16x24xf32>
    %48 = vector.extract_strided_slice %11 {offsets = [1, 2, 0], sizes = [16, 16, 24], strides = [1, 1, 1]} : vector<18x18x24xf32> to vector<16x16x24xf32>
    %c5 = arith.constant 5 : index
    %c0_15 = arith.constant 0 : index
    %49 = vector.load %arg4[%c5, %c0_15] : memref<9x24xf32, #tpu.memory_space<vmem>>, vector<1x24xf32>
    %50 = vector.shape_cast %49 : vector<1x24xf32> to vector<24xf32>
    %51 = vector.shape_cast %50 : vector<24xf32> to vector<1x1x24xf32>
    %52 = vector.broadcast %51 : vector<1x1x24xf32> to vector<16x16x24xf32>
    %53 = arith.mulf %48, %52 : vector<16x16x24xf32>
    %54 = arith.addf %47, %53 : vector<16x16x24xf32>
    %55 = vector.extract_strided_slice %11 {offsets = [2, 0, 0], sizes = [16, 16, 24], strides = [1, 1, 1]} : vector<18x18x24xf32> to vector<16x16x24xf32>
    %c6 = arith.constant 6 : index
    %c0_16 = arith.constant 0 : index
    %56 = vector.load %arg4[%c6, %c0_16] : memref<9x24xf32, #tpu.memory_space<vmem>>, vector<1x24xf32>
    %57 = vector.shape_cast %56 : vector<1x24xf32> to vector<24xf32>
    %58 = vector.shape_cast %57 : vector<24xf32> to vector<1x1x24xf32>
    %59 = vector.broadcast %58 : vector<1x1x24xf32> to vector<16x16x24xf32>
    %60 = arith.mulf %55, %59 : vector<16x16x24xf32>
    %61 = arith.addf %54, %60 : vector<16x16x24xf32>
    %62 = vector.extract_strided_slice %11 {offsets = [2, 1, 0], sizes = [16, 16, 24], strides = [1, 1, 1]} : vector<18x18x24xf32> to vector<16x16x24xf32>
    %c7 = arith.constant 7 : index
    %c0_17 = arith.constant 0 : index
    %63 = vector.load %arg4[%c7, %c0_17] : memref<9x24xf32, #tpu.memory_space<vmem>>, vector<1x24xf32>
    %64 = vector.shape_cast %63 : vector<1x24xf32> to vector<24xf32>
    %65 = vector.shape_cast %64 : vector<24xf32> to vector<1x1x24xf32>
    %66 = vector.broadcast %65 : vector<1x1x24xf32> to vector<16x16x24xf32>
    %67 = arith.mulf %62, %66 : vector<16x16x24xf32>
    %68 = arith.addf %61, %67 : vector<16x16x24xf32>
    %69 = vector.extract_strided_slice %11 {offsets = [2, 2, 0], sizes = [16, 16, 24], strides = [1, 1, 1]} : vector<18x18x24xf32> to vector<16x16x24xf32>
    %c8 = arith.constant 8 : index
    %c0_18 = arith.constant 0 : index
    %70 = vector.load %arg4[%c8, %c0_18] : memref<9x24xf32, #tpu.memory_space<vmem>>, vector<1x24xf32>
    %71 = vector.shape_cast %70 : vector<1x24xf32> to vector<24xf32>
    %72 = vector.shape_cast %71 : vector<24xf32> to vector<1x1x24xf32>
    %73 = vector.broadcast %72 : vector<1x1x24xf32> to vector<16x16x24xf32>
    %74 = arith.mulf %69, %73 : vector<16x16x24xf32>
    %75 = arith.addf %68, %74 : vector<16x16x24xf32>
    %c0_19 = arith.constant 0 : index
    %c0_20 = arith.constant 0 : index
    %76 = vector.load %arg5[%c0_19, %c0_20] : memref<1x24xf32, #tpu.memory_space<vmem>>, vector<1x24xf32>
    %77 = vector.shape_cast %76 : vector<1x24xf32> to vector<1x1x24xf32>
    %78 = vector.broadcast %77 : vector<1x1x24xf32> to vector<16x16x24xf32>
    %79 = arith.addf %75, %78 : vector<16x16x24xf32>
    %cst_21 = arith.constant 0.000000e+00 : f32
    %80 = vector.broadcast %cst_21 : f32 to vector<1x16x24xf32>
    %81 = tpu.concatenate %80, %79, %80 in 0 : vector<1x16x24xf32>, vector<16x16x24xf32>, vector<1x16x24xf32> -> vector<18x16x24xf32>
    %cst_22 = arith.constant 0.000000e+00 : f32
    %82 = vector.broadcast %cst_22 : f32 to vector<18x1x24xf32>
    %83 = tpu.concatenate %82, %81, %82 in 1 : vector<18x1x24xf32>, vector<18x16x24xf32>, vector<18x1x24xf32> -> vector<18x18x24xf32>
    %cst_23 = arith.constant 0.000000e+00 : f32
    %84 = vector.broadcast %cst_23 : f32 to vector<16x16x24xf32>
    %85 = vector.extract_strided_slice %83 {offsets = [0, 0, 0], sizes = [16, 16, 24], strides = [1, 1, 1]} : vector<18x18x24xf32> to vector<16x16x24xf32>
    %c0_24 = arith.constant 0 : index
    %c0_25 = arith.constant 0 : index
    %86 = vector.load %arg6[%c0_24, %c0_25] : memref<9x24xf32, #tpu.memory_space<vmem>>, vector<1x24xf32>
    %87 = vector.shape_cast %86 : vector<1x24xf32> to vector<24xf32>
    %88 = vector.shape_cast %87 : vector<24xf32> to vector<1x1x24xf32>
    %89 = vector.broadcast %88 : vector<1x1x24xf32> to vector<16x16x24xf32>
    %90 = arith.mulf %85, %89 : vector<16x16x24xf32>
    %91 = arith.addf %84, %90 : vector<16x16x24xf32>
    %92 = vector.extract_strided_slice %83 {offsets = [0, 1, 0], sizes = [16, 16, 24], strides = [1, 1, 1]} : vector<18x18x24xf32> to vector<16x16x24xf32>
    %c1_26 = arith.constant 1 : index
    %c0_27 = arith.constant 0 : index
    %93 = vector.load %arg6[%c1_26, %c0_27] : memref<9x24xf32, #tpu.memory_space<vmem>>, vector<1x24xf32>
    %94 = vector.shape_cast %93 : vector<1x24xf32> to vector<24xf32>
    %95 = vector.shape_cast %94 : vector<24xf32> to vector<1x1x24xf32>
    %96 = vector.broadcast %95 : vector<1x1x24xf32> to vector<16x16x24xf32>
    %97 = arith.mulf %92, %96 : vector<16x16x24xf32>
    %98 = arith.addf %91, %97 : vector<16x16x24xf32>
    %99 = vector.extract_strided_slice %83 {offsets = [0, 2, 0], sizes = [16, 16, 24], strides = [1, 1, 1]} : vector<18x18x24xf32> to vector<16x16x24xf32>
    %c2_28 = arith.constant 2 : index
    %c0_29 = arith.constant 0 : index
    %100 = vector.load %arg6[%c2_28, %c0_29] : memref<9x24xf32, #tpu.memory_space<vmem>>, vector<1x24xf32>
    %101 = vector.shape_cast %100 : vector<1x24xf32> to vector<24xf32>
    %102 = vector.shape_cast %101 : vector<24xf32> to vector<1x1x24xf32>
    %103 = vector.broadcast %102 : vector<1x1x24xf32> to vector<16x16x24xf32>
    %104 = arith.mulf %99, %103 : vector<16x16x24xf32>
    %105 = arith.addf %98, %104 : vector<16x16x24xf32>
    %106 = vector.extract_strided_slice %83 {offsets = [1, 0, 0], sizes = [16, 16, 24], strides = [1, 1, 1]} : vector<18x18x24xf32> to vector<16x16x24xf32>
    %c3_30 = arith.constant 3 : index
    %c0_31 = arith.constant 0 : index
    %107 = vector.load %arg6[%c3_30, %c0_31] : memref<9x24xf32, #tpu.memory_space<vmem>>, vector<1x24xf32>
    %108 = vector.shape_cast %107 : vector<1x24xf32> to vector<24xf32>
    %109 = vector.shape_cast %108 : vector<24xf32> to vector<1x1x24xf32>
    %110 = vector.broadcast %109 : vector<1x1x24xf32> to vector<16x16x24xf32>
    %111 = arith.mulf %106, %110 : vector<16x16x24xf32>
    %112 = arith.addf %105, %111 : vector<16x16x24xf32>
    %113 = vector.extract_strided_slice %83 {offsets = [1, 1, 0], sizes = [16, 16, 24], strides = [1, 1, 1]} : vector<18x18x24xf32> to vector<16x16x24xf32>
    %c4_32 = arith.constant 4 : index
    %c0_33 = arith.constant 0 : index
    %114 = vector.load %arg6[%c4_32, %c0_33] : memref<9x24xf32, #tpu.memory_space<vmem>>, vector<1x24xf32>
    %115 = vector.shape_cast %114 : vector<1x24xf32> to vector<24xf32>
    %116 = vector.shape_cast %115 : vector<24xf32> to vector<1x1x24xf32>
    %117 = vector.broadcast %116 : vector<1x1x24xf32> to vector<16x16x24xf32>
    %118 = arith.mulf %113, %117 : vector<16x16x24xf32>
    %119 = arith.addf %112, %118 : vector<16x16x24xf32>
    %120 = vector.extract_strided_slice %83 {offsets = [1, 2, 0], sizes = [16, 16, 24], strides = [1, 1, 1]} : vector<18x18x24xf32> to vector<16x16x24xf32>
    %c5_34 = arith.constant 5 : index
    %c0_35 = arith.constant 0 : index
    %121 = vector.load %arg6[%c5_34, %c0_35] : memref<9x24xf32, #tpu.memory_space<vmem>>, vector<1x24xf32>
    %122 = vector.shape_cast %121 : vector<1x24xf32> to vector<24xf32>
    %123 = vector.shape_cast %122 : vector<24xf32> to vector<1x1x24xf32>
    %124 = vector.broadcast %123 : vector<1x1x24xf32> to vector<16x16x24xf32>
    %125 = arith.mulf %120, %124 : vector<16x16x24xf32>
    %126 = arith.addf %119, %125 : vector<16x16x24xf32>
    %127 = vector.extract_strided_slice %83 {offsets = [2, 0, 0], sizes = [16, 16, 24], strides = [1, 1, 1]} : vector<18x18x24xf32> to vector<16x16x24xf32>
    %c6_36 = arith.constant 6 : index
    %c0_37 = arith.constant 0 : index
    %128 = vector.load %arg6[%c6_36, %c0_37] : memref<9x24xf32, #tpu.memory_space<vmem>>, vector<1x24xf32>
    %129 = vector.shape_cast %128 : vector<1x24xf32> to vector<24xf32>
    %130 = vector.shape_cast %129 : vector<24xf32> to vector<1x1x24xf32>
    %131 = vector.broadcast %130 : vector<1x1x24xf32> to vector<16x16x24xf32>
    %132 = arith.mulf %127, %131 : vector<16x16x24xf32>
    %133 = arith.addf %126, %132 : vector<16x16x24xf32>
    %134 = vector.extract_strided_slice %83 {offsets = [2, 1, 0], sizes = [16, 16, 24], strides = [1, 1, 1]} : vector<18x18x24xf32> to vector<16x16x24xf32>
    %c7_38 = arith.constant 7 : index
    %c0_39 = arith.constant 0 : index
    %135 = vector.load %arg6[%c7_38, %c0_39] : memref<9x24xf32, #tpu.memory_space<vmem>>, vector<1x24xf32>
    %136 = vector.shape_cast %135 : vector<1x24xf32> to vector<24xf32>
    %137 = vector.shape_cast %136 : vector<24xf32> to vector<1x1x24xf32>
    %138 = vector.broadcast %137 : vector<1x1x24xf32> to vector<16x16x24xf32>
    %139 = arith.mulf %134, %138 : vector<16x16x24xf32>
    %140 = arith.addf %133, %139 : vector<16x16x24xf32>
    %141 = vector.extract_strided_slice %83 {offsets = [2, 2, 0], sizes = [16, 16, 24], strides = [1, 1, 1]} : vector<18x18x24xf32> to vector<16x16x24xf32>
    %c8_40 = arith.constant 8 : index
    %c0_41 = arith.constant 0 : index
    %142 = vector.load %arg6[%c8_40, %c0_41] : memref<9x24xf32, #tpu.memory_space<vmem>>, vector<1x24xf32>
    %143 = vector.shape_cast %142 : vector<1x24xf32> to vector<24xf32>
    %144 = vector.shape_cast %143 : vector<24xf32> to vector<1x1x24xf32>
    %145 = vector.broadcast %144 : vector<1x1x24xf32> to vector<16x16x24xf32>
    %146 = arith.mulf %141, %145 : vector<16x16x24xf32>
    %147 = arith.addf %140, %146 : vector<16x16x24xf32>
    %c0_42 = arith.constant 0 : index
    %c0_43 = arith.constant 0 : index
    %148 = vector.load %arg7[%c0_42, %c0_43] : memref<1x24xf32, #tpu.memory_space<vmem>>, vector<1x24xf32>
    %149 = vector.shape_cast %148 : vector<1x24xf32> to vector<1x1x24xf32>
    %150 = vector.broadcast %149 : vector<1x1x24xf32> to vector<16x16x24xf32>
    %151 = arith.addf %147, %150 : vector<16x16x24xf32>
    %c0_44 = arith.constant 0 : index
    %152 = memref.load %arg10[%c0_44] : memref<1xf32, #tpu.memory_space<smem>>
    %153 = vector.extract_strided_slice %151 {offsets = [0, 0, 0], sizes = [16, 16, 4], strides = [1, 1, 1]} : vector<16x16x24xf32> to vector<16x16x4xf32>
    %154 = vector.extract_strided_slice %151 {offsets = [0, 0, 8], sizes = [16, 16, 4], strides = [1, 1, 1]} : vector<16x16x24xf32> to vector<16x16x4xf32>
    %155 = vector.extract_strided_slice %151 {offsets = [0, 0, 16], sizes = [16, 16, 4], strides = [1, 1, 1]} : vector<16x16x24xf32> to vector<16x16x4xf32>
    %156 = arith.mulf %153, %153 : vector<16x16x4xf32>
    %cst_45 = arith.constant dense<0.000000e+00> : vector<16x16xf32>
    %157 = vector.multi_reduction <add>, %156, %cst_45 [2] : vector<16x16x4xf32> to vector<16x16xf32>
    %158 = vector.shape_cast %157 : vector<16x16xf32> to vector<16x16x1xf32>
    %cst_46 = arith.constant 1.000000e-24 : f32
    %159 = vector.broadcast %cst_46 : f32 to vector<16x16x1xf32>
    %160 = arith.maximumf %158, %159 : vector<16x16x1xf32>
    %161 = math.rsqrt %160 : vector<16x16x1xf32>
    %162 = vector.broadcast %161 : vector<16x16x1xf32> to vector<16x16x4xf32>
    %163 = arith.mulf %153, %162 : vector<16x16x4xf32>
    %164 = arith.mulf %154, %154 : vector<16x16x4xf32>
    %cst_47 = arith.constant dense<0.000000e+00> : vector<16x16xf32>
    %165 = vector.multi_reduction <add>, %164, %cst_47 [2] : vector<16x16x4xf32> to vector<16x16xf32>
    %166 = vector.shape_cast %165 : vector<16x16xf32> to vector<16x16x1xf32>
    %cst_48 = arith.constant 1.000000e-24 : f32
    %167 = vector.broadcast %cst_48 : f32 to vector<16x16x1xf32>
    %168 = arith.maximumf %166, %167 : vector<16x16x1xf32>
    %169 = math.rsqrt %168 : vector<16x16x1xf32>
    %170 = vector.broadcast %169 : vector<16x16x1xf32> to vector<16x16x4xf32>
    %171 = arith.mulf %154, %170 : vector<16x16x4xf32>
    "tpu.trace_start"() <{level = 10 : i32, message = "hqd,hkd->hqk"}> : () -> ()
    %cst_49 = arith.constant dense<0.000000e+00> : vector<16x16x16xf32>
    %172 = tpu.matmul %163, %171, %cst_49 {dimension_numbers = #tpu.dot_dimension_numbers<[2], [2], [1], [1], [0, 0, 0, 1, 1, 1], [0], [0]>} : vector<16x16x4xf32>, vector<16x16x4xf32>, vector<16x16x16xf32> -> vector<16x16x16xf32>
    "tpu.trace_stop"() : () -> ()
    %173 = vector.broadcast %152 : f32 to vector<16x16x16xf32>
    %174 = arith.mulf %172, %173 : vector<16x16x16xf32>
    %cst_50 = arith.constant dense<0xFF800000> : vector<16x16xf32>
    %175 = vector.multi_reduction <maximumf>, %174, %cst_50 [2] : vector<16x16x16xf32> to vector<16x16xf32>
    %176 = vector.shape_cast %175 : vector<16x16xf32> to vector<16x16x1xf32>
    %177 = vector.broadcast %176 : vector<16x16x1xf32> to vector<16x16x16xf32>
    %178 = arith.subf %174, %177 : vector<16x16x16xf32>
    %179 = math.exp %178 : vector<16x16x16xf32>
    %cst_51 = arith.constant dense<0.000000e+00> : vector<16x16xf32>
    %180 = vector.multi_reduction <add>, %179, %cst_51 [2] : vector<16x16x16xf32> to vector<16x16xf32>
    %181 = vector.shape_cast %180 : vector<16x16xf32> to vector<16x16x1xf32>
    %182 = tpu.reciprocal %181 {approx = true} : vector<16x16x1xf32> -> vector<16x16x1xf32>
    %183 = vector.broadcast %182 : vector<16x16x1xf32> to vector<16x16x16xf32>
    %184 = arith.mulf %179, %183 : vector<16x16x16xf32>
    "tpu.trace_start"() <{level = 10 : i32, message = "hqk,hkd->hqd"}> : () -> ()
    %cst_52 = arith.constant dense<0.000000e+00> : vector<16x16x4xf32>
    %185 = tpu.matmul %184, %155, %cst_52 {dimension_numbers = #tpu.dot_dimension_numbers<[2], [1], [1], [2], [0, 0, 0, 1, 1, 2], [0], [0]>} : vector<16x16x16xf32>, vector<16x16x4xf32>, vector<16x16x4xf32> -> vector<16x16x4xf32>
    "tpu.trace_stop"() : () -> ()
    %186 = vector.extract_strided_slice %151 {offsets = [0, 0, 4], sizes = [16, 16, 4], strides = [1, 1, 1]} : vector<16x16x24xf32> to vector<16x16x4xf32>
    %187 = vector.extract_strided_slice %151 {offsets = [0, 0, 12], sizes = [16, 16, 4], strides = [1, 1, 1]} : vector<16x16x24xf32> to vector<16x16x4xf32>
    %188 = vector.extract_strided_slice %151 {offsets = [0, 0, 20], sizes = [16, 16, 4], strides = [1, 1, 1]} : vector<16x16x24xf32> to vector<16x16x4xf32>
    %189 = arith.mulf %186, %186 : vector<16x16x4xf32>
    %cst_53 = arith.constant dense<0.000000e+00> : vector<16x16xf32>
    %190 = vector.multi_reduction <add>, %189, %cst_53 [2] : vector<16x16x4xf32> to vector<16x16xf32>
    %191 = vector.shape_cast %190 : vector<16x16xf32> to vector<16x16x1xf32>
    %cst_54 = arith.constant 1.000000e-24 : f32
    %192 = vector.broadcast %cst_54 : f32 to vector<16x16x1xf32>
    %193 = arith.maximumf %191, %192 : vector<16x16x1xf32>
    %194 = math.rsqrt %193 : vector<16x16x1xf32>
    %195 = vector.broadcast %194 : vector<16x16x1xf32> to vector<16x16x4xf32>
    %196 = arith.mulf %186, %195 : vector<16x16x4xf32>
    %197 = arith.mulf %187, %187 : vector<16x16x4xf32>
    %cst_55 = arith.constant dense<0.000000e+00> : vector<16x16xf32>
    %198 = vector.multi_reduction <add>, %197, %cst_55 [2] : vector<16x16x4xf32> to vector<16x16xf32>
    %199 = vector.shape_cast %198 : vector<16x16xf32> to vector<16x16x1xf32>
    %cst_56 = arith.constant 1.000000e-24 : f32
    %200 = vector.broadcast %cst_56 : f32 to vector<16x16x1xf32>
    %201 = arith.maximumf %199, %200 : vector<16x16x1xf32>
    %202 = math.rsqrt %201 : vector<16x16x1xf32>
    %203 = vector.broadcast %202 : vector<16x16x1xf32> to vector<16x16x4xf32>
    %204 = arith.mulf %187, %203 : vector<16x16x4xf32>
    "tpu.trace_start"() <{level = 10 : i32, message = "hqd,hkd->hqk"}> : () -> ()
    %cst_57 = arith.constant dense<0.000000e+00> : vector<16x16x16xf32>
    %205 = tpu.matmul %196, %204, %cst_57 {dimension_numbers = #tpu.dot_dimension_numbers<[2], [2], [1], [1], [0, 0, 0, 1, 1, 1], [0], [0]>} : vector<16x16x4xf32>, vector<16x16x4xf32>, vector<16x16x16xf32> -> vector<16x16x16xf32>
    "tpu.trace_stop"() : () -> ()
    %206 = vector.broadcast %152 : f32 to vector<16x16x16xf32>
    %207 = arith.mulf %205, %206 : vector<16x16x16xf32>
    %cst_58 = arith.constant dense<0xFF800000> : vector<16x16xf32>
    %208 = vector.multi_reduction <maximumf>, %207, %cst_58 [2] : vector<16x16x16xf32> to vector<16x16xf32>
    %209 = vector.shape_cast %208 : vector<16x16xf32> to vector<16x16x1xf32>
    %210 = vector.broadcast %209 : vector<16x16x1xf32> to vector<16x16x16xf32>
    %211 = arith.subf %207, %210 : vector<16x16x16xf32>
    %212 = math.exp %211 : vector<16x16x16xf32>
    %cst_59 = arith.constant dense<0.000000e+00> : vector<16x16xf32>
    %213 = vector.multi_reduction <add>, %212, %cst_59 [2] : vector<16x16x16xf32> to vector<16x16xf32>
    %214 = vector.shape_cast %213 : vector<16x16xf32> to vector<16x16x1xf32>
    %215 = tpu.reciprocal %214 {approx = true} : vector<16x16x1xf32> -> vector<16x16x1xf32>
    %216 = vector.broadcast %215 : vector<16x16x1xf32> to vector<16x16x16xf32>
    %217 = arith.mulf %212, %216 : vector<16x16x16xf32>
    "tpu.trace_start"() <{level = 10 : i32, message = "hqk,hkd->hqd"}> : () -> ()
    %cst_60 = arith.constant dense<0.000000e+00> : vector<16x16x4xf32>
    %218 = tpu.matmul %217, %188, %cst_60 {dimension_numbers = #tpu.dot_dimension_numbers<[2], [1], [1], [2], [0, 0, 0, 1, 1, 2], [0], [0]>} : vector<16x16x16xf32>, vector<16x16x4xf32>, vector<16x16x4xf32> -> vector<16x16x4xf32>
    "tpu.trace_stop"() : () -> ()
    %219 = tpu.concatenate %185, %218 in 2 : vector<16x16x4xf32>, vector<16x16x4xf32> -> vector<16x16x8xf32>
    %220 = vector.shape_cast %219 : vector<16x16x8xf32> to vector<256x8xf32>
    %c0_61 = arith.constant 0 : index
    %c0_62 = arith.constant 0 : index
    %221 = vector.load %arg8[%c0_61, %c0_62] : memref<8x8xf32, #tpu.memory_space<vmem>>, vector<8x8xf32>
    "tpu.trace_start"() <{level = 10 : i32, message = "ok,mk->om"}> : () -> ()
    %cst_63 = arith.constant dense<0.000000e+00> : vector<8x256xf32>
    %222 = tpu.matmul %221, %220, %cst_63 {dimension_numbers = #tpu.dot_dimension_numbers<[1], [1], [0], [0], [0, 0, 1, 0], [], []>} : vector<8x8xf32>, vector<256x8xf32>, vector<8x256xf32> -> vector<8x256xf32>
    "tpu.trace_stop"() : () -> ()
    %c0_64 = arith.constant 0 : index
    %c0_65 = arith.constant 0 : index
    %223 = vector.load %arg9[%c0_64, %c0_65] : memref<8x1xf32, #tpu.memory_space<vmem>>, vector<8x1xf32>
    %224 = vector.broadcast %223 : vector<8x1xf32> to vector<8x256xf32>
    %225 = arith.addf %222, %224 : vector<8x256xf32>
    %c0_66 = arith.constant 0 : index
    %c0_67 = arith.constant 0 : index
    %c0_68 = arith.constant 0 : index
    %226 = vector.load %arg11[%c0_66, %c0_67, %c0_68] : memref<1x8x256xf32, #tpu.memory_space<vmem>>, vector<1x8x256xf32>
    %227 = vector.shape_cast %226 : vector<1x8x256xf32> to vector<8x256xf32>
    %228 = vector.shape_cast %225 : vector<8x256xf32> to vector<1x8x256xf32>
    tpu.vector_store %arg11[%c0_66, %c0_67, %c0_68], %228 {strides = array<i32>} : memref<1x8x256xf32, #tpu.memory_space<vmem>>, vector<1x8x256xf32>,
    return
  }
  func.func @transform_0(%arg0: i32) -> (i32, i32, i32) {
    %c0_i32 = arith.constant 0 : i32
    %c0_i32_0 = arith.constant 0 : i32
    %c0_i32_1 = arith.constant 0 : i32
    return %arg0, %c0_i32, %c0_i32_0 : i32, i32, i32
  }
  func.func @transform_1(%arg0: i32) -> (i32, i32) {
    %c0_i32 = arith.constant 0 : i32
    %c0_i32_0 = arith.constant 0 : i32
    %c0_i32_1 = arith.constant 0 : i32
    return %c0_i32, %c0_i32_0 : i32, i32
  }
  func.func @transform_2(%arg0: i32) -> (i32, i32) {
    %c0_i32 = arith.constant 0 : i32
    %c0_i32_0 = arith.constant 0 : i32
    %c0_i32_1 = arith.constant 0 : i32
    return %c0_i32, %c0_i32_0 : i32, i32
  }
  func.func @transform_3(%arg0: i32) -> (i32, i32) {
    %c0_i32 = arith.constant 0 : i32
    %c0_i32_0 = arith.constant 0 : i32
    %c0_i32_1 = arith.constant 0 : i32
    return %c0_i32, %c0_i32_0 : i32, i32
  }
  func.func @transform_4(%arg0: i32) -> (i32, i32) {
    %c0_i32 = arith.constant 0 : i32
    %c0_i32_0 = arith.constant 0 : i32
    %c0_i32_1 = arith.constant 0 : i32
    return %c0_i32, %c0_i32_0 : i32, i32
  }
  func.func @transform_5(%arg0: i32) -> (i32, i32) {
    %c0_i32 = arith.constant 0 : i32
    %c0_i32_0 = arith.constant 0 : i32
    %c0_i32_1 = arith.constant 0 : i32
    return %c0_i32, %c0_i32_0 : i32, i32
  }
  func.func @transform_6(%arg0: i32) -> (i32, i32) {
    %c0_i32 = arith.constant 0 : i32
    %c0_i32_0 = arith.constant 0 : i32
    %c0_i32_1 = arith.constant 0 : i32
    return %c0_i32, %c0_i32_0 : i32, i32
  }
  func.func @transform_7(%arg0: i32) -> (i32, i32) {
    %c0_i32 = arith.constant 0 : i32
    %c0_i32_0 = arith.constant 0 : i32
    %c0_i32_1 = arith.constant 0 : i32
    return %c0_i32, %c0_i32_0 : i32, i32
  }
  func.func @transform_8(%arg0: i32) -> (i32, i32) {
    %c0_i32 = arith.constant 0 : i32
    %c0_i32_0 = arith.constant 0 : i32
    %c0_i32_1 = arith.constant 0 : i32
    return %c0_i32, %c0_i32_0 : i32, i32
  }
  func.func @transform_9(%arg0: i32) -> i32 {
    %c0_i32 = arith.constant 0 : i32
    %c0_i32_0 = arith.constant 0 : i32
    return %c0_i32 : i32
  }
  func.func @transform_10(%arg0: i32) -> (i32, i32, i32) {
    %c0_i32 = arith.constant 0 : i32
    %c0_i32_0 = arith.constant 0 : i32
    %c0_i32_1 = arith.constant 0 : i32
    return %arg0, %c0_i32, %c0_i32_0 : i32, i32, i32
  }
}

</mosaic_0001>

<llo_original>
// kernel: next_attention_z.1
$region0: #{next_attention_z.1}
  #allocation0 [shape = 'u32[]', space=smem, size = 0x4, offset = 0x4, fixed_abs, tag = 'smem constant byte address 0x4 - core index']
  #allocation1 [shape = 'u32[144,128]{1,0:T(1,128)}', space=vmem, size = 0x12000, scoped, tag = 'internal scratch']
  #allocation2 [shape = 'f32[1]{0:T(128)S(6)}', space=smem, size = 0x200, scoped, tag = 'scoped memory for next_attention_z.1']
  %s0 = inlined_call_operand.vmem [shape: f32[2,256,8], index: 0, kind: input, shape index: {}]
  %s1 = inlined_call_operand.vmem [shape: f32[8,24], index: 1, kind: input, shape index: {}]
  %s2 = inlined_call_operand.vmem [shape: f32[1,24], index: 2, kind: input, shape index: {}]
  %s3 = inlined_call_operand.vmem [shape: f32[9,24], index: 3, kind: input, shape index: {}]
  %s4 = inlined_call_operand.vmem [shape: f32[1,24], index: 4, kind: input, shape index: {}]
  %s5 = inlined_call_operand.vmem [shape: f32[9,24], index: 5, kind: input, shape index: {}]
  %s6 = inlined_call_operand.vmem [shape: f32[1,24], index: 6, kind: input, shape index: {}]
  %s7 = inlined_call_operand.vmem [shape: f32[8,8], index: 7, kind: input, shape index: {}]
  %s8 = inlined_call_operand.vmem [shape: f32[8,1], index: 8, kind: input, shape index: {}]
  %s9 = inlined_call_operand.<no memory space> [shape: f32[1], index: 9, kind: input, shape index: {}]
  %s10 = inlined_call_operand.vmem [shape: f32[2,8,256], index: 10, kind: output, shape index: {}]
  %s11 = sld [smem:[#allocation0]]
  $region73: #{next_attention_z.1} parent=0
    _
  %s13 = ssub.s32 1, %s11
  %s14 = scalar_select 0, %s13, %s11
  %15 = sst [smem:[#allocation2]] %s9
  loop: start=0, step=1, limit=4
  $region2: #{next_attention_z.1} parent=0 // loop_pre_header
    _
  $region3: #{next_attention_z.1} parent=0 // loop_header
    %s17 = sphi 0, %s21
    %p18 = scmp.ge.s32.totalorder %s17, 4
    %s27 = sphi 0, %s29
    %s30 = sphi 0, %s27
    %s31 = sphi 0, %s30
    %s47 = sphi 0, %s31
    %s51 = sphi 0, %s51
    %s53 = sphi 0, %s51
    %s54 = sphi 0, %s53
    %s68 = sphi 0, %s54
    %s72 = sphi 0, %s72
    %s74 = sphi 0, %s72
    %s75 = sphi 0, %s74
    %s89 = sphi 0, %s75
    %s93 = sphi 0, %s93
    %s95 = sphi 0, %s93
    %s96 = sphi 0, %s95
    %s110 = sphi 0, %s96
    %s114 = sphi 0, %s114
    %s116 = sphi 0, %s114
    %s117 = sphi 0, %s116
    %s131 = sphi 0, %s117
    %s135 = sphi 0, %s135
    %s137 = sphi 0, %s135
    %s138 = sphi 0, %s137
    %s152 = sphi 0, %s138
    %s156 = sphi 0, %s156
    %s158 = sphi 0, %s156
    %s159 = sphi 0, %s158
    %s173 = sphi 0, %s159
    %s177 = sphi 0, %s177
    %s179 = sphi 0, %s177
    %s180 = sphi 0, %s179
    %s194 = sphi 0, %s180
    %s198 = sphi 0, %s198
    %s200 = sphi 0, %s198
    %s201 = sphi 0, %s200
    %s215 = sphi 0, %s201
    %s219 = sphi 0, %s219
    %s221 = sphi 0, %s219
    %s222 = sphi 0, %s221
    %s236 = sphi 0, %s222
    %s242 = sphi 0, %s244
    %s245 = sphi 0, %s242
    %s246 = sphi 0, %s245
    %s262 = sphi 0, %s246
  $region4: #{next_attention_z.1} parent=0 // loop_header_branch
    %20 = sbr.rel (%p18) target = $region8
  $region5: #{next_attention_z.1} parent=0 // loop_body
    %s22 = ssub.s32 %s17, 1
    %s23 = ssub.s32 %s17, 2
    %s24 = sadd.s32 %s17, 1
    %s25 = ssub.s32 %s17, %s24
    %p26 = scmp.eq.s32.totalorder %s25, 0
    %s28 = sadd.s32 %s27, 1
    %s29 = scalar_select %p26, %s27, %s28
    %p32 = pneg %p26
    %p33 = scmp.eq.s32.totalorder %s17, 1
    %p34 = por %p32, %p33
    %p35 = scmp.ne.s32.totalorder %s27, %s30
    %p36 = scmp.eq.s32.totalorder %s17, 0
    %p37 = por %p35, %p36
    %p38 = scmp.ne.s32.totalorder %s27, %s30
    %p39 = scmp.eq.s32.totalorder %s22, 1
    %p40 = por %p38, %p39
    %p41 = scmp.ne.s32.totalorder %s30, %s31
    %p42 = scmp.eq.s32.totalorder %s22, 0
    %p43 = por %p41, %p42
    %p44 = scmp.ne.s32.totalorder %s30, %s31
    %p45 = scmp.eq.s32.totalorder %s23, 1
    %p46 = por %p44, %p45
    %p48 = scmp.ne.s32.totalorder %s31, %s47
    %p49 = scmp.eq.s32.totalorder %s23, 0
    %p50 = por %p48, %p49
    %s52 = sadd.s32 %s51, 1
    %p55 = scmp.eq.s32.totalorder %s17, 1
    %p56 = scmp.ne.s32.totalorder %s51, %s53
    %p57 = scmp.eq.s32.totalorder %s17, 0
    %p58 = por %p56, %p57
    %p59 = scmp.ne.s32.totalorder %s51, %s53
    %p60 = scmp.eq.s32.totalorder %s22, 1
    %p61 = por %p59, %p60
    %p62 = scmp.ne.s32.totalorder %s53, %s54
    %p63 = scmp.eq.s32.totalorder %s22, 0
    %p64 = por %p62, %p63
    %p65 = scmp.ne.s32.totalorder %s53, %s54
    %p66 = scmp.eq.s32.totalorder %s23, 1
    %p67 = por %p65, %p66
    %p69 = scmp.ne.s32.totalorder %s54, %s68
    %p70 = scmp.eq.s32.totalorder %s23, 0
    %p71 = por %p69, %p70
    %s73 = sadd.s32 %s72, 1
    %p76 = scmp.eq.s32.totalorder %s17, 1
    %p77 = scmp.ne.s32.totalorder %s72, %s74
    %p78 = scmp.eq.s32.totalorder %s17, 0
    %p79 = por %p77, %p78
    %p80 = scmp.ne.s32.totalorder %s72, %s74
    %p81 = scmp.eq.s32.totalorder %s22, 1
    %p82 = por %p80, %p81
    %p83 = scmp.ne.s32.totalorder %s74, %s75
    %p84 = scmp.eq.s32.totalorder %s22, 0
    %p85 = por %p83, %p84
    %p86 = scmp.ne.s32.totalorder %s74, %s75
    %p87 = scmp.eq.s32.totalorder %s23, 1
    %p88 = por %p86, %p87
    %p90 = scmp.ne.s32.totalorder %s75, %s89
    %p91 = scmp.eq.s32.totalorder %s23, 0
    %p92 = por %p90, %p91
    %s94 = sadd.s32 %s93, 1
    %p97 = scmp.eq.s32.totalorder %s17, 1
    %p98 = scmp.ne.s32.totalorder %s93, %s95
    %p99 = scmp.eq.s32.totalorder %s17, 0
    %p100 = por %p98, %p99
    %p101 = scmp.ne.s32.totalorder %s93, %s95
    %p102 = scmp.eq.s32.totalorder %s22, 1
    %p103 = por %p101, %p102
    %p104 = scmp.ne.s32.totalorder %s95, %s96
    %p105 = scmp.eq.s32.totalorder %s22, 0
    %p106 = por %p104, %p105
    %p107 = scmp.ne.s32.totalorder %s95, %s96
    %p108 = scmp.eq.s32.totalorder %s23, 1
    %p109 = por %p107, %p108
    %p111 = scmp.ne.s32.totalorder %s96, %s110
    %p112 = scmp.eq.s32.totalorder %s23, 0
    %p113 = por %p111, %p112
    %s115 = sadd.s32 %s114, 1
    %p118 = scmp.eq.s32.totalorder %s17, 1
    %p119 = scmp.ne.s32.totalorder %s114, %s116
    %p120 = scmp.eq.s32.totalorder %s17, 0
    %p121 = por %p119, %p120
    %p122 = scmp.ne.s32.totalorder %s114, %s116
    %p123 = scmp.eq.s32.totalorder %s22, 1
    %p124 = por %p122, %p123
    %p125 = scmp.ne.s32.totalorder %s116, %s117
    %p126 = scmp.eq.s32.totalorder %s22, 0
    %p127 = por %p125, %p126
    %p128 = scmp.ne.s32.totalorder %s116, %s117
    %p129 = scmp.eq.s32.totalorder %s23, 1
    %p130 = por %p128, %p129
    %p132 = scmp.ne.s32.totalorder %s117, %s131
    %p133 = scmp.eq.s32.totalorder %s23, 0
    %p134 = por %p132, %p133
    %s136 = sadd.s32 %s135, 1
    %p139 = scmp.eq.s32.totalorder %s17, 1
    %p140 = scmp.ne.s32.totalorder %s135, %s137
    %p141 = scmp.eq.s32.totalorder %s17, 0
    %p142 = por %p140, %p141
    %p143 = scmp.ne.s32.totalorder %s135, %s137
    %p144 = scmp.eq.s32.totalorder %s22, 1
    %p145 = por %p143, %p144
    %p146 = scmp.ne.s32.totalorder %s137, %s138
    %p147 = scmp.eq.s32.totalorder %s22, 0
    %p148 = por %p146, %p147
    %p149 = scmp.ne.s32.totalorder %s137, %s138
    %p150 = scmp.eq.s32.totalorder %s23, 1
    %p151 = por %p149, %p150
    %p153 = scmp.ne.s32.totalorder %s138, %s152
    %p154 = scmp.eq.s32.totalorder %s23, 0
    %p155 = por %p153, %p154
    %s157 = sadd.s32 %s156, 1
    %p160 = scmp.eq.s32.totalorder %s17, 1
    %p161 = scmp.ne.s32.totalorder %s156, %s158
    %p162 = scmp.eq.s32.totalorder %s17, 0
    %p163 = por %p161, %p162
    %p164 = scmp.ne.s32.totalorder %s156, %s158
    %p165 = scmp.eq.s32.totalorder %s22, 1
    %p166 = por %p164, %p165
    %p167 = scmp.ne.s32.totalorder %s158, %s159
    %p168 = scmp.eq.s32.totalorder %s22, 0
    %p169 = por %p167, %p168
    %p170 = scmp.ne.s32.totalorder %s158, %s159
    %p171 = scmp.eq.s32.totalorder %s23, 1
    %p172 = por %p170, %p171
    %p174 = scmp.ne.s32.totalorder %s159, %s173
    %p175 = scmp.eq.s32.totalorder %s23, 0
    %p176 = por %p174, %p175
    %s178 = sadd.s32 %s177, 1
    %p181 = scmp.eq.s32.totalorder %s17, 1
    %p182 = scmp.ne.s32.totalorder %s177, %s179
    %p183 = scmp.eq.s32.totalorder %s17, 0
    %p184 = por %p182, %p183
    %p185 = scmp.ne.s32.totalorder %s177, %s179
    %p186 = scmp.eq.s32.totalorder %s22, 1
    %p187 = por %p185, %p186
    %p188 = scmp.ne.s32.totalorder %s179, %s180
    %p189 = scmp.eq.s32.totalorder %s22, 0
    %p190 = por %p188, %p189
    %p191 = scmp.ne.s32.totalorder %s179, %s180
    %p192 = scmp.eq.s32.totalorder %s23, 1
    %p193 = por %p191, %p192
    %p195 = scmp.ne.s32.totalorder %s180, %s194
    %p196 = scmp.eq.s32.totalorder %s23, 0
    %p197 = por %p195, %p196
    %s199 = sadd.s32 %s198, 1
    %p202 = scmp.eq.s32.totalorder %s17, 1
    %p203 = scmp.ne.s32.totalorder %s198, %s200
    %p204 = scmp.eq.s32.totalorder %s17, 0
    %p205 = por %p203, %p204
    %p206 = scmp.ne.s32.totalorder %s198, %s200
    %p207 = scmp.eq.s32.totalorder %s22, 1
    %p208 = por %p206, %p207
    %p209 = scmp.ne.s32.totalorder %s200, %s201
    %p210 = scmp.eq.s32.totalorder %s22, 0
    %p211 = por %p209, %p210
    %p212 = scmp.ne.s32.totalorder %s200, %s201
    %p213 = scmp.eq.s32.totalorder %s23, 1
    %p214 = por %p212, %p213
    %p216 = scmp.ne.s32.totalorder %s201, %s215
    %p217 = scmp.eq.s32.totalorder %s23, 0
    %p218 = por %p216, %p217
    %s220 = sadd.s32 %s219, 1
    %p223 = scmp.eq.s32.totalorder %s17, 1
    %p224 = scmp.ne.s32.totalorder %s219, %s221
    %p225 = scmp.eq.s32.totalorder %s17, 0
    %p226 = por %p224, %p225
    %p227 = scmp.ne.s32.totalorder %s219, %s221
    %p228 = scmp.eq.s32.totalorder %s22, 1
    %p229 = por %p227, %p228
    %p230 = scmp.ne.s32.totalorder %s221, %s222
    %p231 = scmp.eq.s32.totalorder %s22, 0
    %p232 = por %p230, %p231
    %p233 = scmp.ne.s32.totalorder %s221, %s222
    %p234 = scmp.eq.s32.totalorder %s23, 1
    %p235 = por %p233, %p234
    %p237 = scmp.ne.s32.totalorder %s222, %s236
    %p238 = scmp.eq.s32.totalorder %s23, 0
    %p239 = por %p237, %p238
    %s240 = ssub.s32 %s17, %s24
    %p241 = scmp.eq.s32.totalorder %s240, 0
    %s243 = sadd.s32 %s242, 1
    %s244 = scalar_select %p241, %s242, %s243
    %p247 = pneg %p241
    %p248 = scmp.eq.s32.totalorder %s17, 1
    %p249 = por %p247, %p248
    %p250 = scmp.ne.s32.totalorder %s242, %s245
    %p251 = scmp.eq.s32.totalorder %s17, 0
    %p252 = por %p250, %p251
    %p253 = scmp.ne.s32.totalorder %s242, %s245
    %p254 = scmp.eq.s32.totalorder %s22, 1
    %p255 = por %p253, %p254
    %p256 = scmp.ne.s32.totalorder %s245, %s246
    %p257 = scmp.eq.s32.totalorder %s22, 0
    %p258 = por %p256, %p257
    %p259 = scmp.ne.s32.totalorder %s245, %s246
    %p260 = scmp.eq.s32.totalorder %s23, 1
    %p261 = por %p259, %p260
    %p263 = scmp.ne.s32.totalorder %s246, %s262
    %p264 = scmp.eq.s32.totalorder %s23, 0
    %p265 = por %p263, %p264
    %p266 = scmp.le.s32.totalorder 1, %s17
    %p267 = scmp.lt.s32.totalorder %s17, 3
    %p268 = pnand %p266, %p267
    %p269 = pneg %p268
    // Predicated region
    $region9: #{next_attention_z.1} parent=5 // pred_check
      _
    $region10: #{next_attention_z.1} parent=5 // pred_check_branch
      %271 = sbr.rel (%p268) target = $region12
    $region11: #{next_attention_z.1} parent=5 // pred_region
      %s272 = ssub.s32 %s17, 1
      // Predicated region
      $region13: #{next_attention_z.1} parent=11 // pred_check
        %p273 = pneg %p64
      $region14: #{next_attention_z.1} parent=11 // pred_check_branch
        %275 = sbr.rel (%p273) target = $region16
      $region15: #{next_attention_z.1} parent=11 // pred_region
        _
      $region16: #{next_attention_z.1} parent=11 // pred_fallthru
        _
      // Predicated region
      $region17: #{next_attention_z.1} parent=11 // pred_check
        %p276 = pneg %p85
      $region18: #{next_attention_z.1} parent=11 // pred_check_branch
        %278 = sbr.rel (%p276) target = $region20
      $region19: #{next_attention_z.1} parent=11 // pred_region
        _
      $region20: #{next_attention_z.1} parent=11 // pred_fallthru
        _
      // Predicated region
      $region21: #{next_attention_z.1} parent=11 // pred_check
        %p279 = pneg %p106
      $region22: #{next_attention_z.1} parent=11 // pred_check_branch
        %281 = sbr.rel (%p279) target = $region24
      $region23: #{next_attention_z.1} parent=11 // pred_region
        _
      $region24: #{next_attention_z.1} parent=11 // pred_fallthru
        _
      // Predicated region
      $region25: #{next_attention_z.1} parent=11 // pred_check
        %p282 = pneg %p127
      $region26: #{next_attention_z.1} parent=11 // pred_check_branch
        %284 = sbr.rel (%p282) target = $region28
      $region27: #{next_attention_z.1} parent=11 // pred_region
        _
      $region28: #{next_attention_z.1} parent=11 // pred_fallthru
        _
      // Predicated region
      $region29: #{next_attention_z.1} parent=11 // pred_check
        %p285 = pneg %p148
      $region30: #{next_attention_z.1} parent=11 // pred_check_branch
        %287 = sbr.rel (%p285) target = $region32
      $region31: #{next_attention_z.1} parent=11 // pred_region
        _
      $region32: #{next_attention_z.1} parent=11 // pred_fallthru
        _
      // Predicated region
      $region33: #{next_attention_z.1} parent=11 // pred_check
        %p288 = pneg %p169
      $region34: #{next_attention_z.1} parent=11 // pred_check_branch
        %290 = sbr.rel (%p288) target = $region36
      $region35: #{next_attention_z.1} parent=11 // pred_region
        _
      $region36: #{next_attention_z.1} parent=11 // pred_fallthru
        _
      // Predicated region
      $region37: #{next_attention_z.1} parent=11 // pred_check
        %p291 = pneg %p190
      $region38: #{next_attention_z.1} parent=11 // pred_check_branch
        %293 = sbr.rel (%p291) target = $region40
      $region39: #{next_attention_z.1} parent=11 // pred_region
        _
      $region40: #{next_attention_z.1} parent=11 // pred_fallthru
        _
      // Predicated region
      $region41: #{next_attention_z.1} parent=11 // pred_check
        %p294 = pneg %p211
      $region42: #{next_attention_z.1} parent=11 // pred_check_branch
        %296 = sbr.rel (%p294) target = $region44
      $region43: #{next_attention_z.1} parent=11 // pred_region
        _
      $region44: #{next_attention_z.1} parent=11 // pred_fallthru
        _
      // Predicated region
      $region45: #{next_attention_z.1} parent=11 // pred_check
        %p297 = pneg %p232
      $region46: #{next_attention_z.1} parent=11 // pred_check_branch
        %299 = sbr.rel (%p297) target = $region48
      $region47: #{next_attention_z.1} parent=11 // pred_region
        _
      $region48: #{next_attention_z.1} parent=11 // pred_fallthru
        _
    $region12: #{next_attention_z.1} parent=5 // pred_fallthru
      _
    %p300 = scmp.lt.s32.totalorder %s17, 2
    // Predicated region
    $region49: #{next_attention_z.1} parent=5 // pred_check
      %p301 = pneg %p300
    $region50: #{next_attention_z.1} parent=5 // pred_check_branch
      %303 = sbr.rel (%p301) target = $region52
    $region51: #{next_attention_z.1} parent=5 // pred_region
      // Predicated region
      $region53: #{next_attention_z.1} parent=51 // pred_check
        %p304 = pneg %p37
      $region54: #{next_attention_z.1} parent=51 // pred_check_branch
        %306 = sbr.rel (%p304) target = $region56
      $region55: #{next_attention_z.1} parent=51 // pred_region
        %p307 = scmp.lt.s32.totalorder %s17, 1
        %s308 = scalar_select %p307, %s17, 1
        %s309 = smul.addr %s308, 32
        %s310 = smul.addr %s309, 8
        %s311 = scalar_lea.vmem %s0, %s310
      $region56: #{next_attention_z.1} parent=51 // pred_fallthru
        _
    $region52: #{next_attention_z.1} parent=5 // pred_fallthru
      _
    %p312 = scmp.le.s32.totalorder 1, %s17
    %p313 = scmp.lt.s32.totalorder %s17, 3
    %p314 = pnand %p312, %p313
    %p315 = pneg %p314
    // Predicated region
    $region57: #{next_attention_z.1} parent=5 // pred_check
      _
    $region58: #{next_attention_z.1} parent=5 // pred_check_branch
      %317 = sbr.rel (%p314) target = $region60
    $region59: #{next_attention_z.1} parent=5 // pred_region
      %s318 = ssub.s32 %s17, 1
      %p319 = scmp.lt.s32.totalorder %s22, 1
      %s320 = scalar_select %p319, %s22, 1
      %s321 = smul.addr %s320, 32
      %s322 = smul.addr %s321, 8
      %s323 = scalar_lea.vmem %s0, %s322
      %p324 = pneg %p43
      %p325 = pneg %p40
      %p326 = pneg %p64
      %p327 = pneg %p61
      %p328 = pneg %p85
      %p329 = pneg %p82
      %p330 = pneg %p106
      %p331 = pneg %p103
      %p332 = pneg %p127
      %p333 = pneg %p124
      %p334 = pneg %p148
      %p335 = pneg %p145
      %p336 = pneg %p169
      %p337 = pneg %p166
      %p338 = pneg %p190
      %p339 = pneg %p187
      %p340 = pneg %p211
      %p341 = pneg %p208
      %p342 = pneg %p232
      %p343 = pneg %p229
      %p344 = pneg %p258
      %p345 = pneg %p255
      %p346 = scmp.lt.s32.totalorder %s22, 1
      %s347 = scalar_select %p346, %s22, 1
      %s348 = smul.addr %s347, 2
      %s349 = smul.addr %s348, 8
      %s350 = scalar_lea.vmem %s10, %s349
      %p351 = scmp.lt.s32.totalorder %s22, 1
      %s352 = scalar_select %p351, %s22, 1
      %s353 = smul.addr %s352, 32
      %s354 = smul.addr %s353, 8
      %s355 = scalar_lea.vmem %s0, %s354
      %p356 = scmp.lt.s32.totalorder %s22, 1
      %s357 = scalar_select %p356, %s22, 1
      %s358 = smul.addr %s357, 2
      %s359 = smul.addr %s358, 8
      %s360 = scalar_lea.vmem %s10, %s359
      %v361 = vld [vmem:[%s355] sm:$0xff]
      %v362 = vld [vmem:[%s355 + $0x8] sm:$0xff]
      %v363 = vld [vmem:[%s355 + $0x10] sm:$0xff]
      %v364 = vld [vmem:[%s355 + $0x18] sm:$0xff]
      %v365 = vld [vmem:[%s355 + $0x20] sm:$0xff]
      %v366 = vld [vmem:[%s355 + $0x28] sm:$0xff]
      %v367 = vld [vmem:[%s355 + $0x30] sm:$0xff]
      %v368 = vld [vmem:[%s355 + $0x38] sm:$0xff]
      %v369 = vld [vmem:[%s355 + $0x40] sm:$0xff]
      %v370 = vld [vmem:[%s355 + $0x48] sm:$0xff]
      %v371 = vld [vmem:[%s355 + $0x50] sm:$0xff]
      %v372 = vld [vmem:[%s355 + $0x58] sm:$0xff]
      %v373 = vld [vmem:[%s355 + $0x60] sm:$0xff]
      %v374 = vld [vmem:[%s355 + $0x68] sm:$0xff]
      %v375 = vld [vmem:[%s355 + $0x70] sm:$0xff]
      %v376 = vld [vmem:[%s355 + $0x78] sm:$0xff]
      %v377 = vld [vmem:[%s355 + $0x80] sm:$0xff]
      %v378 = vld [vmem:[%s355 + $0x88] sm:$0xff]
      %v379 = vld [vmem:[%s355 + $0x90] sm:$0xff]
      %v380 = vld [vmem:[%s355 + $0x98] sm:$0xff]
      %v381 = vld [vmem:[%s355 + $0xa0] sm:$0xff]
      %v382 = vld [vmem:[%s355 + $0xa8] sm:$0xff]
      %v383 = vld [vmem:[%s355 + $0xb0] sm:$0xff]
      %v384 = vld [vmem:[%s355 + $0xb8] sm:$0xff]
      %v385 = vld [vmem:[%s355 + $0xc0] sm:$0xff]
      %v386 = vld [vmem:[%s355 + $0xc8] sm:$0xff]
      %v387 = vld [vmem:[%s355 + $0xd0] sm:$0xff]
      %v388 = vld [vmem:[%s355 + $0xd8] sm:$0xff]
      %v389 = vld [vmem:[%s355 + $0xe0] sm:$0xff]
      %v390 = vld [vmem:[%s355 + $0xe8] sm:$0xff]
      %v391 = vld [vmem:[%s355 + $0xf0] sm:$0xff]
      %v392 = vld [vmem:[%s355 + $0xf8] sm:$0xff]
      %v393 = vld [vmem:[%s1] sm:$0xff]
      %v394 = vld [vmem:[%s2] sm:$0x1]
      %v396 = vlaneseq
      %v397 = vshrl.u32 %v396, 7
      %v398 = vsub.s32 0, %v397
      %v399 = vrot.slane %v394, %v398
      %vm401 = vcmask 64512
      %v403 = vsel %vm401, %v361, 0
      %v406 = vsel %vm401, %v362, 0
      %v409 = vsel %vm401, %v363, 0
      %v412 = vsel %vm401, %v364, 0
      %v415 = vsel %vm401, %v365, 0
      %v418 = vsel %vm401, %v366, 0
      %v421 = vsel %vm401, %v367, 0
      %v424 = vsel %vm401, %v368, 0
      %v427 = vsel %vm401, %v369, 0
      %v430 = vsel %vm401, %v370, 0
      %v433 = vsel %vm401, %v371, 0
      %v436 = vsel %vm401, %v372, 0
      %v439 = vsel %vm401, %v373, 0
      %v442 = vsel %vm401, %v374, 0
      %v445 = vsel %vm401, %v375, 0
      %v448 = vsel %vm401, %v376, 0
      %v451 = vsel %vm401, %v377, 0
      %v454 = vsel %vm401, %v378, 0
      %v457 = vsel %vm401, %v379, 0
      %v460 = vsel %vm401, %v380, 0
      %v463 = vsel %vm401, %v381, 0
      %v466 = vsel %vm401, %v382, 0
      %v469 = vsel %vm401, %v383, 0
      %v472 = vsel %vm401, %v384, 0
      %v475 = vsel %vm401, %v385, 0
      %v478 = vsel %vm401, %v386, 0
      %v481 = vsel %vm401, %v387, 0
      %v484 = vsel %vm401, %v388, 0
      %v487 = vsel %vm401, %v389, 0
      %v490 = vsel %vm401, %v390, 0
      %v493 = vsel %vm401, %v391, 0
      %v496 = vsel %vm401, %v392, 0
      %498 = vmatprep.subr.mxu0 0.0
      %499 = vmatpush1.msra.mxu0 %v393
      %500 = vmatprep.subr.mxu0 0.0
      %501 = vmatpush1.msra.mxu0 0.0
      %502 = vmatprep.subr.mxu0 0.0
      %503 = vmatpush1.msra.mxu0 0.0
      %504 = vmatprep.subr.mxu0 0.0
      %505 = vmatpush1.msra.mxu0 0.0
      %506 = vmatprep.subr.mxu0 0.0
      %507 = vmatpush1.msra.mxu0 0.0
      %508 = vmatprep.subr.mxu0 0.0
      %509 = vmatpush1.msra.mxu0 0.0
      %510 = vmatprep.subr.mxu0 0.0
      %511 = vmatpush1.msra.mxu0 0.0
      %512 = vmatprep.subr.mxu0 0.0
      %513 = vmatpush1.msra.mxu0 0.0
      %514 = vmatprep.subr.mxu0 0.0
      %515 = vmatpush1.msra.mxu0 0.0
      %516 = vmatprep.subr.mxu0 0.0
      %517 = vmatpush1.msra.mxu0 0.0
      %518 = vmatprep.subr.mxu0 0.0
      %519 = vmatpush1.msra.mxu0 0.0
      %520 = vmatprep.subr.mxu0 0.0
      %521 = vmatpush1.msra.mxu0 0.0
      %522 = vmatprep.subr.mxu0 0.0
      %523 = vmatpush1.msra.mxu0 0.0
      %524 = vmatprep.subr.mxu0 0.0
      %525 = vmatpush1.msra.mxu0 0.0
      %526 = vmatprep.subr.mxu0 0.0
      %527 = vmatpush1.msra.mxu0 0.0
      %528 = vmatprep.subr.mxu0 0.0
      %529 = vmatpush1.msra.mxu0 0.0
      %530 = vmatprep.subr.mxu0 0.0
      %531 = vmatpush1.msra.mxu0 0.0
      %532 = vmatprep.subr.mxu0 0.0
      %533 = vmatpush1.msra.mxu0 0.0
      %534 = vmatprep.subr.mxu0 0.0
      %535 = vmatpush1.msra.mxu0 0.0
      %536 = vmatprep.subr.mxu0 0.0
      %537 = vmatpush1.msra.mxu0 0.0
      %538 = vmatprep.subr.mxu0 0.0
      %539 = vmatpush1.msra.mxu0 0.0
      %540 = vmatprep.subr.mxu0 0.0
      %541 = vmatpush1.msra.mxu0 0.0
      %542 = vmatprep.subr.mxu0 0.0
      %543 = vmatpush1.msra.mxu0 0.0
      %544 = vmatprep.subr.mxu0 0.0
      %545 = vmatpush1.msra.mxu0 0.0
      %546 = vmatprep.subr.mxu0 0.0
      %547 = vmatpush1.msra.mxu0 0.0
      %548 = vmatprep.subr.mxu0 0.0
      %549 = vmatpush1.msra.mxu0 0.0
      %550 = vmatprep.subr.mxu0 0.0
      %551 = vmatpush1.msra.mxu0 0.0
      %552 = vmatprep.subr.mxu0 0.0
      %553 = vmatpush1.msra.mxu0 0.0
      %554 = vmatprep.subr.mxu0 0.0
      %555 = vmatpush1.msra.mxu0 0.0
      %556 = vmatprep.subr.mxu0 0.0
      %557 = vmatpush1.msra.mxu0 0.0
      %558 = vmatprep.subr.mxu0 0.0
      %559 = vmatpush1.msra.mxu0 0.0
      %560 = vmatprep.subr.mxu0 0.0
      %561 = vmatpush1.msra.mxu0 0.0
      %562 = vmatprep.mubr.f32.mxu0 0.0
      %563 = vmatmul.mubr.f32.gmra.mrb[0].mxu0 %v403
      %v564 = vpop.f32.mrb[0].mxu0
      %v565 = vadd.f32 %v399, %v564
      %v566 = vpop.f32.mrb[0].mxu0
      %567 = vmatprep.mubr.f32.mxu0 0.0
      %568 = vmatmul.mubr.f32.gmra.mrb[0].mxu0 %v406
      %v569 = vpop.f32.mrb[0].mxu0
      %v570 = vadd.f32 %v399, %v569
      %v571 = vpop.f32.mrb[0].mxu0
      %572 = vmatprep.mubr.f32.mxu0 0.0
      %573 = vmatmul.mubr.f32.gmra.mrb[0].mxu0 %v409
      %v574 = vpop.f32.mrb[0].mxu0
      %v575 = vadd.f32 %v399, %v574
      %v576 = vpop.f32.mrb[0].mxu0
      %577 = vmatprep.mubr.f32.mxu0 0.0
      %578 = vmatmul.mubr.f32.gmra.mrb[0].mxu0 %v412
      %v579 = vpop.f32.mrb[0].mxu0
      %v580 = vadd.f32 %v399, %v579
      %v581 = vpop.f32.mrb[0].mxu0
      %582 = vmatprep.mubr.f32.mxu0 0.0
      %583 = vmatmul.mubr.f32.gmra.mrb[0].mxu0 %v415
      %v584 = vpop.f32.mrb[0].mxu0
      %v585 = vadd.f32 %v399, %v584
      %v586 = vpop.f32.mrb[0].mxu0
      %587 = vmatprep.mubr.f32.mxu0 0.0
      %588 = vmatmul.mubr.f32.gmra.mrb[0].mxu0 %v418
      %v589 = vpop.f32.mrb[0].mxu0
      %v590 = vadd.f32 %v399, %v589
      %v591 = vpop.f32.mrb[0].mxu0
      %592 = vmatprep.mubr.f32.mxu0 0.0
      %593 = vmatmul.mubr.f32.gmra.mrb[0].mxu0 %v421
      %v594 = vpop.f32.mrb[0].mxu0
      %v595 = vadd.f32 %v399, %v594
      %v596 = vpop.f32.mrb[0].mxu0
      %597 = vmatprep.mubr.f32.mxu0 0.0
      %598 = vmatmul.mubr.f32.gmra.mrb[0].mxu0 %v424
      %v599 = vpop.f32.mrb[0].mxu0
      %v600 = vadd.f32 %v399, %v599
      %v601 = vpop.f32.mrb[0].mxu0
      %602 = vmatprep.mubr.f32.mxu0 0.0
      %603 = vmatmul.mubr.f32.gmra.mrb[0].mxu0 %v427
      %v604 = vpop.f32.mrb[0].mxu0
      %v605 = vadd.f32 %v399, %v604
      %v606 = vpop.f32.mrb[0].mxu0
      %607 = vmatprep.mubr.f32.mxu0 0.0
      %608 = vmatmul.mubr.f32.gmra.mrb[0].mxu0 %v430
      %v609 = vpop.f32.mrb[0].mxu0
      %v610 = vadd.f32 %v399, %v609
      %v611 = vpop.f32.mrb[0].mxu0
      %612 = vmatprep.mubr.f32.mxu0 0.0
      %613 = vmatmul.mubr.f32.gmra.mrb[0].mxu0 %v433
      %v614 = vpop.f32.mrb[0].mxu0
      %v615 = vadd.f32 %v399, %v614
      %v616 = vpop.f32.mrb[0].mxu0
      %617 = vmatprep.mubr.f32.mxu0 0.0
      %618 = vmatmul.mubr.f32.gmra.mrb[0].mxu0 %v436
      %v619 = vpop.f32.mrb[0].mxu0
      %v620 = vadd.f32 %v399, %v619
      %v621 = vpop.f32.mrb[0].mxu0
      %622 = vmatprep.mubr.f32.mxu0 0.0
      %623 = vmatmul.mubr.f32.gmra.mrb[0].mxu0 %v439
      %v624 = vpop.f32.mrb[0].mxu0
      %v625 = vadd.f32 %v399, %v624
      %v626 = vpop.f32.mrb[0].mxu0
      %627 = vmatprep.mubr.f32.mxu0 0.0
      %628 = vmatmul.mubr.f32.gmra.mrb[0].mxu0 %v442
      %v629 = vpop.f32.mrb[0].mxu0
      %v630 = vadd.f32 %v399, %v629
      %v631 = vpop.f32.mrb[0].mxu0
      %632 = vmatprep.mubr.f32.mxu0 0.0
      %633 = vmatmul.mubr.f32.gmra.mrb[0].mxu0 %v445
      %v634 = vpop.f32.mrb[0].mxu0
      %v635 = vadd.f32 %v399, %v634
      %v636 = vpop.f32.mrb[0].mxu0
      %637 = vmatprep.mubr.f32.mxu0 0.0
      %638 = vmatmul.mubr.f32.gmra.mrb[0].mxu0 %v448
      %v639 = vpop.f32.mrb[0].mxu0
      %v640 = vadd.f32 %v399, %v639
      %v641 = vpop.f32.mrb[0].mxu0
      %642 = vmatprep.mubr.f32.mxu0 0.0
      %643 = vmatmul.mubr.f32.gmra.mrb[0].mxu0 %v451
      %v644 = vpop.f32.mrb[0].mxu0
      %v645 = vadd.f32 %v399, %v644
      %v646 = vpop.f32.mrb[0].mxu0
      %647 = vmatprep.mubr.f32.mxu0 0.0
      %648 = vmatmul.mubr.f32.gmra.mrb[0].mxu0 %v454
      %v649 = vpop.f32.mrb[0].mxu0
      %v650 = vadd.f32 %v399, %v649
      %v651 = vpop.f32.mrb[0].mxu0
      %652 = vmatprep.mubr.f32.mxu0 0.0
      %653 = vmatmul.mubr.f32.gmra.mrb[0].mxu0 %v457
      %v654 = vpop.f32.mrb[0].mxu0
      %v655 = vadd.f32 %v399, %v654
      %v656 = vpop.f32.mrb[0].mxu0
      %657 = vmatprep.mubr.f32.mxu0 0.0
      %658 = vmatmul.mubr.f32.gmra.mrb[0].mxu0 %v460
      %v659 = vpop.f32.mrb[0].mxu0
      %v660 = vadd.f32 %v399, %v659
      %v661 = vpop.f32.mrb[0].mxu0
      %662 = vmatprep.mubr.f32.mxu0 0.0
      %663 = vmatmul.mubr.f32.gmra.mrb[0].mxu0 %v463
      %v664 = vpop.f32.mrb[0].mxu0
      %v665 = vadd.f32 %v399, %v664
      %v666 = vpop.f32.mrb[0].mxu0
      %667 = vmatprep.mubr.f32.mxu0 0.0
      %668 = vmatmul.mubr.f32.gmra.mrb[0].mxu0 %v466
      %v669 = vpop.f32.mrb[0].mxu0
      %v670 = vadd.f32 %v399, %v669
      %v671 = vpop.f32.mrb[0].mxu0
      %672 = vmatprep.mubr.f32.mxu0 0.0
      %673 = vmatmul.mubr.f32.gmra.mrb[0].mxu0 %v469
      %v674 = vpop.f32.mrb[0].mxu0
      %v675 = vadd.f32 %v399, %v674
      %v676 = vpop.f32.mrb[0].mxu0
      %677 = vmatprep.mubr.f32.mxu0 0.0
      %678 = vmatmul.mubr.f32.gmra.mrb[0].mxu0 %v472
      %v679 = vpop.f32.mrb[0].mxu0
      %v680 = vadd.f32 %v399, %v679
      %v681 = vpop.f32.mrb[0].mxu0
      %682 = vmatprep.mubr.f32.mxu0 0.0
      %683 = vmatmul.mubr.f32.gmra.mrb[0].mxu0 %v475
      %v684 = vpop.f32.mrb[0].mxu0
      %v685 = vadd.f32 %v399, %v684
      %v686 = vpop.f32.mrb[0].mxu0
      %687 = vmatprep.mubr.f32.mxu0 0.0
      %688 = vmatmul.mubr.f32.gmra.mrb[0].mxu0 %v478
      %v689 = vpop.f32.mrb[0].mxu0
      %v690 = vadd.f32 %v399, %v689
      %v691 = vpop.f32.mrb[0].mxu0
      %692 = vmatprep.mubr.f32.mxu0 0.0
      %693 = vmatmul.mubr.f32.gmra.mrb[0].mxu0 %v481
      %v694 = vpop.f32.mrb[0].mxu0
      %v695 = vadd.f32 %v399, %v694
      %v696 = vpop.f32.mrb[0].mxu0
      %697 = vmatprep.mubr.f32.mxu0 0.0
      %698 = vmatmul.mubr.f32.gmra.mrb[0].mxu0 %v484
      %v699 = vpop.f32.mrb[0].mxu0
      %v700 = vadd.f32 %v399, %v699
      %v701 = vpop.f32.mrb[0].mxu0
      %702 = vmatprep.mubr.f32.mxu0 0.0
      %703 = vmatmul.mubr.f32.gmra.mrb[0].mxu0 %v487
      %v704 = vpop.f32.mrb[0].mxu0
      %v705 = vadd.f32 %v399, %v704
      %v706 = vpop.f32.mrb[0].mxu0
      %707 = vmatprep.mubr.f32.mxu0 0.0
      %708 = vmatmul.mubr.f32.gmra.mrb[0].mxu0 %v490
      %v709 = vpop.f32.mrb[0].mxu0
      %v710 = vadd.f32 %v399, %v709
      %v711 = vpop.f32.mrb[0].mxu0
      %712 = vmatprep.mubr.f32.mxu0 0.0
      %713 = vmatmul.mubr.f32.gmra.mrb[0].mxu0 %v493
      %v714 = vpop.f32.mrb[0].mxu0
      %v715 = vadd.f32 %v399, %v714
      %v716 = vpop.f32.mrb[0].mxu0
      %717 = vmatprep.mubr.f32.mxu0 0.0
      %718 = vmatmul.mubr.f32.gmra.mrb[0].mxu0 %v496
      %v719 = vpop.f32.mrb[0].mxu0
      %v720 = vadd.f32 %v399, %v719
      %v721 = vpop.f32.mrb[0].mxu0
      %722 = vdwg.mxu0
      %vm756 = vcmask 1040384
      %v757 = vrot.slane 0.0, 7
      %v758 = vsel %vm756, %v757, %v757
      %v759 = vrot.slane %v565, 7
      %v760 = vrot.slane %v570, 7
      %v761 = vsel %vm756, %v759, %v760
      %v762 = vrot.slane %v575, 7
      %v763 = vrot.slane %v580, 7
      %v764 = vsel %vm756, %v762, %v763
      %v765 = vrot.slane %v585, 7
      %v766 = vrot.slane %v590, 7
      %v767 = vsel %vm756, %v765, %v766
      %v768 = vrot.slane %v595, 7
      %v769 = vrot.slane %v600, 7
      %v770 = vsel %vm756, %v768, %v769
      %v771 = vrot.slane %v605, 7
      %v772 = vrot.slane %v610, 7
      %v773 = vsel %vm756, %v771, %v772
      %v774 = vrot.slane %v615, 7
      %v775 = vrot.slane %v620, 7
      %v776 = vsel %vm756, %v774, %v775
      %v777 = vrot.slane %v625, 7
      %v778 = vrot.slane %v630, 7
      %v779 = vsel %vm756, %v777, %v778
      %v780 = vrot.slane %v635, 7
      %v781 = vrot.slane %v640, 7
      %v782 = vsel %vm756, %v780, %v781
      %v783 = vrot.slane %v645, 7
      %v784 = vrot.slane %v650, 7
      %v785 = vsel %vm756, %v783, %v784
      %v786 = vrot.slane %v655, 7
      %v787 = vrot.slane %v660, 7
      %v788 = vsel %vm756, %v786, %v787
      %v789 = vrot.slane %v665, 7
      %v790 = vrot.slane %v670, 7
      %v791 = vsel %vm756, %v789, %v790
      %v792 = vrot.slane %v675, 7
      %v793 = vrot.slane %v680, 7
      %v794 = vsel %vm756, %v792, %v793
      %v795 = vrot.slane %v685, 7
      %v796 = vrot.slane %v690, 7
      %v797 = vsel %vm756, %v795, %v796
      %v798 = vrot.slane %v695, 7
      %v799 = vrot.slane %v700, 7
      %v800 = vsel %vm756, %v798, %v799
      %v801 = vrot.slane %v705, 7
      %v802 = vrot.slane %v710, 7
      %v803 = vsel %vm756, %v801, %v802
      %v804 = vrot.slane %v715, 7
      %v805 = vrot.slane %v720, 7
      %v806 = vsel %vm756, %v804, %v805
      %v857 = vsel %vm756, 0.0, %v757
      %v858 = vsel %vm756, 0.0, %v759
      %v859 = vsel %vm756, 0.0, %v762
      %v860 = vsel %vm756, 0.0, %v765
      %v861 = vsel %vm756, 0.0, %v768
      %v862 = vsel %vm756, 0.0, %v771
      %v863 = vsel %vm756, 0.0, %v774
      %v864 = vsel %vm756, 0.0, %v777
      %v865 = vsel %vm756, 0.0, %v780
      %v866 = vsel %vm756, 0.0, %v783
      %v867 = vsel %vm756, 0.0, %v786
      %v868 = vsel %vm756, 0.0, %v789
      %v869 = vsel %vm756, 0.0, %v792
      %v870 = vsel %vm756, 0.0, %v795
      %v871 = vsel %vm756, 0.0, %v798
      %v872 = vsel %vm756, 0.0, %v801
      %v873 = vsel %vm756, 0.0, %v804
      %v874 = vsel %vm756, %v757, 0.0
      %v875 = vsel %vm756, %v760, 0.0
      %v876 = vsel %vm756, %v763, 0.0
      %v877 = vsel %vm756, %v766, 0.0
      %v878 = vsel %vm756, %v769, 0.0
      %v879 = vsel %vm756, %v772, 0.0
      %v880 = vsel %vm756, %v775, 0.0
      %v881 = vsel %vm756, %v778, 0.0
      %v882 = vsel %vm756, %v781, 0.0
      %v883 = vsel %vm756, %v784, 0.0
      %v884 = vsel %vm756, %v787, 0.0
      %v885 = vsel %vm756, %v790, 0.0
      %v886 = vsel %vm756, %v793, 0.0
      %v887 = vsel %vm756, %v796, 0.0
      %v888 = vsel %vm756, %v799, 0.0
      %v889 = vsel %vm756, %v802, 0.0
      %v890 = vsel %vm756, %v805, 0.0
      %v891 = vld [vmem:[%s3] sm:$0x1]
      %v892 = vlaneseq
      %v893 = vshrl.u32 %v892, 7
      %v894 = vsub.s32 0, %v893
      %v895 = vrot.slane %v891, %v894
      %v896 = vmul.f32 %v857, %v895
      %v897 = vmul.f32 %v758, %v895
      %v898 = vmul.f32 %v858, %v895
      %v899 = vmul.f32 %v761, %v895
      %v900 = vmul.f32 %v859, %v895
      %v901 = vmul.f32 %v764, %v895
      %v902 = vmul.f32 %v860, %v895
      %v903 = vmul.f32 %v767, %v895
      %v904 = vmul.f32 %v861, %v895
      %v905 = vmul.f32 %v770, %v895
      %v906 = vmul.f32 %v862, %v895
      %v907 = vmul.f32 %v773, %v895
      %v908 = vmul.f32 %v863, %v895
      %v909 = vmul.f32 %v776, %v895
      %v910 = vmul.f32 %v864, %v895
      %v911 = vmul.f32 %v779, %v895
      %v912 = vmul.f32 %v865, %v895
      %v913 = vmul.f32 %v782, %v895
      %v914 = vmul.f32 %v866, %v895
      %v915 = vmul.f32 %v785, %v895
      %v916 = vmul.f32 %v867, %v895
      %v917 = vmul.f32 %v788, %v895
      %v918 = vmul.f32 %v868, %v895
      %v919 = vmul.f32 %v791, %v895
      %v920 = vmul.f32 %v869, %v895
      %v921 = vmul.f32 %v794, %v895
      %v922 = vmul.f32 %v870, %v895
      %v923 = vmul.f32 %v797, %v895
      %v924 = vmul.f32 %v871, %v895
      %v925 = vmul.f32 %v800, %v895
      %v926 = vmul.f32 %v872, %v895
      %v927 = vmul.f32 %v803, %v895
      %v928 = vadd.f32 %v896, 0.0
      %v929 = vadd.f32 %v897, 0.0
      %v930 = vadd.f32 %v898, 0.0
      %v931 = vadd.f32 %v899, 0.0
      %v932 = vadd.f32 %v900, 0.0
      %v933 = vadd.f32 %v901, 0.0
      %v934 = vadd.f32 %v902, 0.0
      %v935 = vadd.f32 %v903, 0.0
      %v936 = vadd.f32 %v904, 0.0
      %v937 = vadd.f32 %v905, 0.0
      %v938 = vadd.f32 %v906, 0.0
      %v939 = vadd.f32 %v907, 0.0
      %v940 = vadd.f32 %v908, 0.0
      %v941 = vadd.f32 %v909, 0.0
      %v942 = vadd.f32 %v910, 0.0
      %v943 = vadd.f32 %v911, 0.0
      %v944 = vadd.f32 %v912, 0.0
      %v945 = vadd.f32 %v913, 0.0
      %v946 = vadd.f32 %v914, 0.0
      %v947 = vadd.f32 %v915, 0.0
      %v948 = vadd.f32 %v916, 0.0
      %v949 = vadd.f32 %v917, 0.0
      %v950 = vadd.f32 %v918, 0.0
      %v951 = vadd.f32 %v919, 0.0
      %v952 = vadd.f32 %v920, 0.0
      %v953 = vadd.f32 %v921, 0.0
      %v954 = vadd.f32 %v922, 0.0
      %v955 = vadd.f32 %v923, 0.0
      %v956 = vadd.f32 %v924, 0.0
      %v957 = vadd.f32 %v925, 0.0
      %v958 = vadd.f32 %v926, 0.0
      %v959 = vadd.f32 %v927, 0.0
      %v960 = vld [vmem:[%s3 + $0x1] sm:$0x1]
      %v961 = vlaneseq
      %v962 = vshrl.u32 %v961, 7
      %v963 = vsub.s32 0, %v962
      %v964 = vrot.slane %v960, %v963
      %v965 = vmul.f32 %v857, %v964
      %v966 = vmul.f32 %v758, %v964
      %v967 = vmul.f32 %v874, %v964
      %v968 = vmul.f32 %v858, %v964
      %v969 = vmul.f32 %v761, %v964
      %v970 = vmul.f32 %v875, %v964
      %v971 = vmul.f32 %v859, %v964
      %v972 = vmul.f32 %v764, %v964
      %v973 = vmul.f32 %v876, %v964
      %v974 = vmul.f32 %v860, %v964
      %v975 = vmul.f32 %v767, %v964
      %v976 = vmul.f32 %v877, %v964
      %v977 = vmul.f32 %v861, %v964
      %v978 = vmul.f32 %v770, %v964
      %v979 = vmul.f32 %v878, %v964
      %v980 = vmul.f32 %v862, %v964
      %v981 = vmul.f32 %v773, %v964
      %v982 = vmul.f32 %v879, %v964
      %v983 = vmul.f32 %v863, %v964
      %v984 = vmul.f32 %v776, %v964
      %v985 = vmul.f32 %v880, %v964
      %v986 = vmul.f32 %v864, %v964
      %v987 = vmul.f32 %v779, %v964
      %v988 = vmul.f32 %v881, %v964
      %v989 = vmul.f32 %v865, %v964
      %v990 = vmul.f32 %v782, %v964
      %v991 = vmul.f32 %v882, %v964
      %v992 = vmul.f32 %v866, %v964
      %v993 = vmul.f32 %v785, %v964
      %v994 = vmul.f32 %v883, %v964
      %v995 = vmul.f32 %v867, %v964
      %v996 = vmul.f32 %v788, %v964
      %v997 = vmul.f32 %v884, %v964
      %v998 = vmul.f32 %v868, %v964
      %v999 = vmul.f32 %v791, %v964
      %v1000 = vmul.f32 %v885, %v964
      %v1001 = vmul.f32 %v869, %v964
      %v1002 = vmul.f32 %v794, %v964
      %v1003 = vmul.f32 %v886, %v964
      %v1004 = vmul.f32 %v870, %v964
      %v1005 = vmul.f32 %v797, %v964
      %v1006 = vmul.f32 %v887, %v964
      %v1007 = vmul.f32 %v871, %v964
      %v1008 = vmul.f32 %v800, %v964
      %v1009 = vmul.f32 %v888, %v964
      %v1010 = vmul.f32 %v872, %v964
      %v1011 = vmul.f32 %v803, %v964
      %v1012 = vmul.f32 %v889, %v964
      %vm1061 = vcmask 1046528
      %v1062 = vrot.slane %v965, 1
      %v1063 = vrot.slane %v966, 1
      %v1064 = vsel %vm1061, %v1062, %v1063
      %v1065 = vrot.slane %v967, 1
      %v1066 = vsel %vm1061, %v1063, %v1065
      %v1067 = vrot.slane %v968, 1
      %v1068 = vrot.slane %v969, 1
      %v1069 = vsel %vm1061, %v1067, %v1068
      %v1070 = vrot.slane %v970, 1
      %v1071 = vsel %vm1061, %v1068, %v1070
      %v1072 = vrot.slane %v971, 1
      %v1073 = vrot.slane %v972, 1
      %v1074 = vsel %vm1061, %v1072, %v1073
      %v1075 = vrot.slane %v973, 1
      %v1076 = vsel %vm1061, %v1073, %v1075
      %v1077 = vrot.slane %v974, 1
      %v1078 = vrot.slane %v975, 1
      %v1079 = vsel %vm1061, %v1077, %v1078
      %v1080 = vrot.slane %v976, 1
      %v1081 = vsel %vm1061, %v1078, %v1080
      %v1082 = vrot.slane %v977, 1
      %v1083 = vrot.slane %v978, 1
      %v1084 = vsel %vm1061, %v1082, %v1083
      %v1085 = vrot.slane %v979, 1
      %v1086 = vsel %vm1061, %v1083, %v1085
      %v1087 = vrot.slane %v980, 1
      %v1088 = vrot.slane %v981, 1
      %v1089 = vsel %vm1061, %v1087, %v1088
      %v1090 = vrot.slane %v982, 1
      %v1091 = vsel %vm1061, %v1088, %v1090
      %v1092 = vrot.slane %v983, 1
      %v1093 = vrot.slane %v984, 1
      %v1094 = vsel %vm1061, %v1092, %v1093
      %v1095 = vrot.slane %v985, 1
      %v1096 = vsel %vm1061, %v1093, %v1095
      %v1097 = vrot.slane %v986, 1
      %v1098 = vrot.slane %v987, 1
      %v1099 = vsel %vm1061, %v1097, %v1098
      %v1100 = vrot.slane %v988, 1
      %v1101 = vsel %vm1061, %v1098, %v1100
      %v1102 = vrot.slane %v989, 1
      %v1103 = vrot.slane %v990, 1
      %v1104 = vsel %vm1061, %v1102, %v1103
      %v1105 = vrot.slane %v991, 1
      %v1106 = vsel %vm1061, %v1103, %v1105
      %v1107 = vrot.slane %v992, 1
      %v1108 = vrot.slane %v993, 1
      %v1109 = vsel %vm1061, %v1107, %v1108
      %v1110 = vrot.slane %v994, 1
      %v1111 = vsel %vm1061, %v1108, %v1110
      %v1112 = vrot.slane %v995, 1
      %v1113 = vrot.slane %v996, 1
      %v1114 = vsel %vm1061, %v1112, %v1113
      %v1115 = vrot.slane %v997, 1
      %v1116 = vsel %vm1061, %v1113, %v1115
      %v1117 = vrot.slane %v998, 1
      %v1118 = vrot.slane %v999, 1
      %v1119 = vsel %vm1061, %v1117, %v1118
      %v1120 = vrot.slane %v1000, 1
      %v1121 = vsel %vm1061, %v1118, %v1120
      %v1122 = vrot.slane %v1001, 1
      %v1123 = vrot.slane %v1002, 1
      %v1124 = vsel %vm1061, %v1122, %v1123
      %v1125 = vrot.slane %v1003, 1
      %v1126 = vsel %vm1061, %v1123, %v1125
      %v1127 = vrot.slane %v1004, 1
      %v1128 = vrot.slane %v1005, 1
      %v1129 = vsel %vm1061, %v1127, %v1128
      %v1130 = vrot.slane %v1006, 1
      %v1131 = vsel %vm1061, %v1128, %v1130
      %v1132 = vrot.slane %v1007, 1
      %v1133 = vrot.slane %v1008, 1
      %v1134 = vsel %vm1061, %v1132, %v1133
      %v1135 = vrot.slane %v1009, 1
      %v1136 = vsel %vm1061, %v1133, %v1135
      %v1137 = vrot.slane %v1010, 1
      %v1138 = vrot.slane %v1011, 1
      %v1139 = vsel %vm1061, %v1137, %v1138
      %v1140 = vrot.slane %v1012, 1
      %v1141 = vsel %vm1061, %v1138, %v1140
      %v1174 = vadd.f32 %v928, %v1064
      %v1175 = vadd.f32 %v929, %v1066
      %v1176 = vadd.f32 %v930, %v1069
      %v1177 = vadd.f32 %v931, %v1071
      %v1178 = vadd.f32 %v932, %v1074
      %v1179 = vadd.f32 %v933, %v1076
      %v1180 = vadd.f32 %v934, %v1079
      %v1181 = vadd.f32 %v935, %v1081
      %v1182 = vadd.f32 %v936, %v1084
      %v1183 = vadd.f32 %v937, %v1086
      %v1184 = vadd.f32 %v938, %v1089
      %v1185 = vadd.f32 %v939, %v1091
      %v1186 = vadd.f32 %v940, %v1094
      %v1187 = vadd.f32 %v941, %v1096
      %v1188 = vadd.f32 %v942, %v1099
      %v1189 = vadd.f32 %v943, %v1101
      %v1190 = vadd.f32 %v944, %v1104
      %v1191 = vadd.f32 %v945, %v1106
      %v1192 = vadd.f32 %v946, %v1109
      %v1193 = vadd.f32 %v947, %v1111
      %v1194 = vadd.f32 %v948, %v1114
      %v1195 = vadd.f32 %v949, %v1116
      %v1196 = vadd.f32 %v950, %v1119
      %v1197 = vadd.f32 %v951, %v1121
      %v1198 = vadd.f32 %v952, %v1124
      %v1199 = vadd.f32 %v953, %v1126
      %v1200 = vadd.f32 %v954, %v1129
      %v1201 = vadd.f32 %v955, %v1131
      %v1202 = vadd.f32 %v956, %v1134
      %v1203 = vadd.f32 %v957, %v1136
      %v1204 = vadd.f32 %v958, %v1139
      %v1205 = vadd.f32 %v959, %v1141
      %v1206 = vld [vmem:[%s3 + $0x2] sm:$0x1]
      %v1207 = vlaneseq
      %v1208 = vshrl.u32 %v1207, 7
      %v1209 = vsub.s32 0, %v1208
      %v1210 = vrot.slane %v1206, %v1209
      %v1211 = vmul.f32 %v857, %v1210
      %v1212 = vmul.f32 %v758, %v1210
      %v1213 = vmul.f32 %v874, %v1210
      %v1214 = vmul.f32 %v858, %v1210
      %v1215 = vmul.f32 %v761, %v1210
      %v1216 = vmul.f32 %v875, %v1210
      %v1217 = vmul.f32 %v859, %v1210
      %v1218 = vmul.f32 %v764, %v1210
      %v1219 = vmul.f32 %v876, %v1210
      %v1220 = vmul.f32 %v860, %v1210
      %v1221 = vmul.f32 %v767, %v1210
      %v1222 = vmul.f32 %v877, %v1210
      %v1223 = vmul.f32 %v861, %v1210
      %v1224 = vmul.f32 %v770, %v1210
      %v1225 = vmul.f32 %v878, %v1210
      %v1226 = vmul.f32 %v862, %v1210
      %v1227 = vmul.f32 %v773, %v1210
      %v1228 = vmul.f32 %v879, %v1210
      %v1229 = vmul.f32 %v863, %v1210
      %v1230 = vmul.f32 %v776, %v1210
      %v1231 = vmul.f32 %v880, %v1210
      %v1232 = vmul.f32 %v864, %v1210
      %v1233 = vmul.f32 %v779, %v1210
      %v1234 = vmul.f32 %v881, %v1210
      %v1235 = vmul.f32 %v865, %v1210
      %v1236 = vmul.f32 %v782, %v1210
      %v1237 = vmul.f32 %v882, %v1210
      %v1238 = vmul.f32 %v866, %v1210
      %v1239 = vmul.f32 %v785, %v1210
      %v1240 = vmul.f32 %v883, %v1210
      %v1241 = vmul.f32 %v867, %v1210
      %v1242 = vmul.f32 %v788, %v1210
      %v1243 = vmul.f32 %v884, %v1210
      %v1244 = vmul.f32 %v868, %v1210
      %v1245 = vmul.f32 %v791, %v1210
      %v1246 = vmul.f32 %v885, %v1210
      %v1247 = vmul.f32 %v869, %v1210
      %v1248 = vmul.f32 %v794, %v1210
      %v1249 = vmul.f32 %v886, %v1210
      %v1250 = vmul.f32 %v870, %v1210
      %v1251 = vmul.f32 %v797, %v1210
      %v1252 = vmul.f32 %v887, %v1210
      %v1253 = vmul.f32 %v871, %v1210
      %v1254 = vmul.f32 %v800, %v1210
      %v1255 = vmul.f32 %v888, %v1210
      %v1256 = vmul.f32 %v872, %v1210
      %v1257 = vmul.f32 %v803, %v1210
      %v1258 = vmul.f32 %v889, %v1210
      %vm1307 = vcmask 1045504
      %v1308 = vrot.slane %v1211, 2
      %v1309 = vrot.slane %v1212, 2
      %v1310 = vsel %vm1307, %v1308, %v1309
      %v1311 = vrot.slane %v1213, 2
      %v1312 = vsel %vm1307, %v1309, %v1311
      %v1313 = vrot.slane %v1214, 2
      %v1314 = vrot.slane %v1215, 2
      %v1315 = vsel %vm1307, %v1313, %v1314
      %v1316 = vrot.slane %v1216, 2
      %v1317 = vsel %vm1307, %v1314, %v1316
      %v1318 = vrot.slane %v1217, 2
      %v1319 = vrot.slane %v1218, 2
      %v1320 = vsel %vm1307, %v1318, %v1319
      %v1321 = vrot.slane %v1219, 2
      %v1322 = vsel %vm1307, %v1319, %v1321
      %v1323 = vrot.slane %v1220, 2
      %v1324 = vrot.slane %v1221, 2
      %v1325 = vsel %vm1307, %v1323, %v1324
      %v1326 = vrot.slane %v1222, 2
      %v1327 = vsel %vm1307, %v1324, %v1326
      %v1328 = vrot.slane %v1223, 2
      %v1329 = vrot.slane %v1224, 2
      %v1330 = vsel %vm1307, %v1328, %v1329
      %v1331 = vrot.slane %v1225, 2
      %v1332 = vsel %vm1307, %v1329, %v1331
      %v1333 = vrot.slane %v1226, 2
      %v1334 = vrot.slane %v1227, 2
      %v1335 = vsel %vm1307, %v1333, %v1334
      %v1336 = vrot.slane %v1228, 2
      %v1337 = vsel %vm1307, %v1334, %v1336
      %v1338 = vrot.slane %v1229, 2
      %v1339 = vrot.slane %v1230, 2
      %v1340 = vsel %vm1307, %v1338, %v1339
      %v1341 = vrot.slane %v1231, 2
      %v1342 = vsel %vm1307, %v1339, %v1341
      %v1343 = vrot.slane %v1232, 2
      %v1344 = vrot.slane %v1233, 2
      %v1345 = vsel %vm1307, %v1343, %v1344
      %v1346 = vrot.slane %v1234, 2
      %v1347 = vsel %vm1307, %v1344, %v1346
      %v1348 = vrot.slane %v1235, 2
      %v1349 = vrot.slane %v1236, 2
      %v1350 = vsel %vm1307, %v1348, %v1349
      %v1351 = vrot.slane %v1237, 2
      %v1352 = vsel %vm1307, %v1349, %v1351
      %v1353 = vrot.slane %v1238, 2
      %v1354 = vrot.slane %v1239, 2
      %v1355 = vsel %vm1307, %v1353, %v1354
      %v1356 = vrot.slane %v1240, 2
      %v1357 = vsel %vm1307, %v1354, %v1356
      %v1358 = vrot.slane %v1241, 2
      %v1359 = vrot.slane %v1242, 2
      %v1360 = vsel %vm1307, %v1358, %v1359
      %v1361 = vrot.slane %v1243, 2
      %v1362 = vsel %vm1307, %v1359, %v1361
      %v1363 = vrot.slane %v1244, 2
      %v1364 = vrot.slane %v1245, 2
      %v1365 = vsel %vm1307, %v1363, %v1364
      %v1366 = vrot.slane %v1246, 2
      %v1367 = vsel %vm1307, %v1364, %v1366
      %v1368 = vrot.slane %v1247, 2
      %v1369 = vrot.slane %v1248, 2
      %v1370 = vsel %vm1307, %v1368, %v1369
      %v1371 = vrot.slane %v1249, 2
      %v1372 = vsel %vm1307, %v1369, %v1371
      %v1373 = vrot.slane %v1250, 2
      %v1374 = vrot.slane %v1251, 2
      %v1375 = vsel %vm1307, %v1373, %v1374
      %v1376 = vrot.slane %v1252, 2
      %v1377 = vsel %vm1307, %v1374, %v1376
      %v1378 = vrot.slane %v1253, 2
      %v1379 = vrot.slane %v1254, 2
      %v1380 = vsel %vm1307, %v1378, %v1379
      %v1381 = vrot.slane %v1255, 2
      %v1382 = vsel %vm1307, %v1379, %v1381
      %v1383 = vrot.slane %v1256, 2
      %v1384 = vrot.slane %v1257, 2
      %v1385 = vsel %vm1307, %v1383, %v1384
      %v1386 = vrot.slane %v1258, 2
      %v1387 = vsel %vm1307, %v1384, %v1386
      %v1420 = vadd.f32 %v1174, %v1310
      %v1421 = vadd.f32 %v1175, %v1312
      %v1422 = vadd.f32 %v1176, %v1315
      %v1423 = vadd.f32 %v1177, %v1317
      %v1424 = vadd.f32 %v1178, %v1320
      %v1425 = vadd.f32 %v1179, %v1322
      %v1426 = vadd.f32 %v1180, %v1325
      %v1427 = vadd.f32 %v1181, %v1327
      %v1428 = vadd.f32 %v1182, %v1330
      %v1429 = vadd.f32 %v1183, %v1332
      %v1430 = vadd.f32 %v1184, %v1335
      %v1431 = vadd.f32 %v1185, %v1337
      %v1432 = vadd.f32 %v1186, %v1340
      %v1433 = vadd.f32 %v1187, %v1342
      %v1434 = vadd.f32 %v1188, %v1345
      %v1435 = vadd.f32 %v1189, %v1347
      %v1436 = vadd.f32 %v1190, %v1350
      %v1437 = vadd.f32 %v1191, %v1352
      %v1438 = vadd.f32 %v1192, %v1355
      %v1439 = vadd.f32 %v1193, %v1357
      %v1440 = vadd.f32 %v1194, %v1360
      %v1441 = vadd.f32 %v1195, %v1362
      %v1442 = vadd.f32 %v1196, %v1365
      %v1443 = vadd.f32 %v1197, %v1367
      %v1444 = vadd.f32 %v1198, %v1370
      %v1445 = vadd.f32 %v1199, %v1372
      %v1446 = vadd.f32 %v1200, %v1375
      %v1447 = vadd.f32 %v1201, %v1377
      %v1448 = vadd.f32 %v1202, %v1380
      %v1449 = vadd.f32 %v1203, %v1382
      %v1450 = vadd.f32 %v1204, %v1385
      %v1451 = vadd.f32 %v1205, %v1387
      %v1452 = vld [vmem:[%s3 + $0x3] sm:$0x1]
      %v1453 = vlaneseq
      %v1454 = vshrl.u32 %v1453, 7
      %v1455 = vsub.s32 0, %v1454
      %v1456 = vrot.slane %v1452, %v1455
      %v1457 = vmul.f32 %v858, %v1456
      %v1458 = vmul.f32 %v761, %v1456
      %v1459 = vmul.f32 %v859, %v1456
      %v1460 = vmul.f32 %v764, %v1456
      %v1461 = vmul.f32 %v860, %v1456
      %v1462 = vmul.f32 %v767, %v1456
      %v1463 = vmul.f32 %v861, %v1456
      %v1464 = vmul.f32 %v770, %v1456
      %v1465 = vmul.f32 %v862, %v1456
      %v1466 = vmul.f32 %v773, %v1456
      %v1467 = vmul.f32 %v863, %v1456
      %v1468 = vmul.f32 %v776, %v1456
      %v1469 = vmul.f32 %v864, %v1456
      %v1470 = vmul.f32 %v779, %v1456
      %v1471 = vmul.f32 %v865, %v1456
      %v1472 = vmul.f32 %v782, %v1456
      %v1473 = vmul.f32 %v866, %v1456
      %v1474 = vmul.f32 %v785, %v1456
      %v1475 = vmul.f32 %v867, %v1456
      %v1476 = vmul.f32 %v788, %v1456
      %v1477 = vmul.f32 %v868, %v1456
      %v1478 = vmul.f32 %v791, %v1456
      %v1479 = vmul.f32 %v869, %v1456
      %v1480 = vmul.f32 %v794, %v1456
      %v1481 = vmul.f32 %v870, %v1456
      %v1482 = vmul.f32 %v797, %v1456
      %v1483 = vmul.f32 %v871, %v1456
      %v1484 = vmul.f32 %v800, %v1456
      %v1485 = vmul.f32 %v872, %v1456
      %v1486 = vmul.f32 %v803, %v1456
      %v1487 = vmul.f32 %v873, %v1456
      %v1488 = vmul.f32 %v806, %v1456
      %v1489 = vadd.f32 %v1420, %v1457
      %v1490 = vadd.f32 %v1421, %v1458
      %v1491 = vadd.f32 %v1422, %v1459
      %v1492 = vadd.f32 %v1423, %v1460
      %v1493 = vadd.f32 %v1424, %v1461
      %v1494 = vadd.f32 %v1425, %v1462
      %v1495 = vadd.f32 %v1426, %v1463
      %v1496 = vadd.f32 %v1427, %v1464
      %v1497 = vadd.f32 %v1428, %v1465
      %v1498 = vadd.f32 %v1429, %v1466
      %v1499 = vadd.f32 %v1430, %v1467
      %v1500 = vadd.f32 %v1431, %v1468
      %v1501 = vadd.f32 %v1432, %v1469
      %v1502 = vadd.f32 %v1433, %v1470
      %v1503 = vadd.f32 %v1434, %v1471
      %v1504 = vadd.f32 %v1435, %v1472
      %v1505 = vadd.f32 %v1436, %v1473
      %v1506 = vadd.f32 %v1437, %v1474
      %v1507 = vadd.f32 %v1438, %v1475
      %v1508 = vadd.f32 %v1439, %v1476
      %v1509 = vadd.f32 %v1440, %v1477
      %v1510 = vadd.f32 %v1441, %v1478
      %v1511 = vadd.f32 %v1442, %v1479
      %v1512 = vadd.f32 %v1443, %v1480
      %v1513 = vadd.f32 %v1444, %v1481
      %v1514 = vadd.f32 %v1445, %v1482
      %v1515 = vadd.f32 %v1446, %v1483
      %v1516 = vadd.f32 %v1447, %v1484
      %v1517 = vadd.f32 %v1448, %v1485
      %v1518 = vadd.f32 %v1449, %v1486
      %v1519 = vadd.f32 %v1450, %v1487
      %v1520 = vadd.f32 %v1451, %v1488
      %v1521 = vld [vmem:[%s3 + $0x4] sm:$0x1]
      %v1522 = vlaneseq
      %v1523 = vshrl.u32 %v1522, 7
      %v1524 = vsub.s32 0, %v1523
      %v1525 = vrot.slane %v1521, %v1524
      %v1526 = vmul.f32 %v858, %v1525
      %v1527 = vmul.f32 %v761, %v1525
      %v1528 = vmul.f32 %v875, %v1525
      %v1529 = vmul.f32 %v859, %v1525
      %v1530 = vmul.f32 %v764, %v1525
      %v1531 = vmul.f32 %v876, %v1525
      %v1532 = vmul.f32 %v860, %v1525
      %v1533 = vmul.f32 %v767, %v1525
      %v1534 = vmul.f32 %v877, %v1525
      %v1535 = vmul.f32 %v861, %v1525
      %v1536 = vmul.f32 %v770, %v1525
      %v1537 = vmul.f32 %v878, %v1525
      %v1538 = vmul.f32 %v862, %v1525
      %v1539 = vmul.f32 %v773, %v1525
      %v1540 = vmul.f32 %v879, %v1525
      %v1541 = vmul.f32 %v863, %v1525
      %v1542 = vmul.f32 %v776, %v1525
      %v1543 = vmul.f32 %v880, %v1525
      %v1544 = vmul.f32 %v864, %v1525
      %v1545 = vmul.f32 %v779, %v1525
      %v1546 = vmul.f32 %v881, %v1525
      %v1547 = vmul.f32 %v865, %v1525
      %v1548 = vmul.f32 %v782, %v1525
      %v1549 = vmul.f32 %v882, %v1525
      %v1550 = vmul.f32 %v866, %v1525
      %v1551 = vmul.f32 %v785, %v1525
      %v1552 = vmul.f32 %v883, %v1525
      %v1553 = vmul.f32 %v867, %v1525
      %v1554 = vmul.f32 %v788, %v1525
      %v1555 = vmul.f32 %v884, %v1525
      %v1556 = vmul.f32 %v868, %v1525
      %v1557 = vmul.f32 %v791, %v1525
      %v1558 = vmul.f32 %v885, %v1525
      %v1559 = vmul.f32 %v869, %v1525
      %v1560 = vmul.f32 %v794, %v1525
      %v1561 = vmul.f32 %v886, %v1525
      %v1562 = vmul.f32 %v870, %v1525
      %v1563 = vmul.f32 %v797, %v1525
      %v1564 = vmul.f32 %v887, %v1525
      %v1565 = vmul.f32 %v871, %v1525
      %v1566 = vmul.f32 %v800, %v1525
      %v1567 = vmul.f32 %v888, %v1525
      %v1568 = vmul.f32 %v872, %v1525
      %v1569 = vmul.f32 %v803, %v1525
      %v1570 = vmul.f32 %v889, %v1525
      %v1571 = vmul.f32 %v873, %v1525
      %v1572 = vmul.f32 %v806, %v1525
      %v1573 = vmul.f32 %v890, %v1525
      %v1622 = vrot.slane %v1526, 1
      %v1623 = vrot.slane %v1527, 1
      %v1624 = vsel %vm1061, %v1622, %v1623
      %v1625 = vrot.slane %v1528, 1
      %v1626 = vsel %vm1061, %v1623, %v1625
      %v1627 = vrot.slane %v1529, 1
      %v1628 = vrot.slane %v1530, 1
      %v1629 = vsel %vm1061, %v1627, %v1628
      %v1630 = vrot.slane %v1531, 1
      %v1631 = vsel %vm1061, %v1628, %v1630
      %v1632 = vrot.slane %v1532, 1
      %v1633 = vrot.slane %v1533, 1
      %v1634 = vsel %vm1061, %v1632, %v1633
      %v1635 = vrot.slane %v1534, 1
      %v1636 = vsel %vm1061, %v1633, %v1635
      %v1637 = vrot.slane %v1535, 1
      %v1638 = vrot.slane %v1536, 1
      %v1639 = vsel %vm1061, %v1637, %v1638
      %v1640 = vrot.slane %v1537, 1
      %v1641 = vsel %vm1061, %v1638, %v1640
      %v1642 = vrot.slane %v1538, 1
      %v1643 = vrot.slane %v1539, 1
      %v1644 = vsel %vm1061, %v1642, %v1643
      %v1645 = vrot.slane %v1540, 1
      %v1646 = vsel %vm1061, %v1643, %v1645
      %v1647 = vrot.slane %v1541, 1
      %v1648 = vrot.slane %v1542, 1
      %v1649 = vsel %vm1061, %v1647, %v1648
      %v1650 = vrot.slane %v1543, 1
      %v1651 = vsel %vm1061, %v1648, %v1650
      %v1652 = vrot.slane %v1544, 1
      %v1653 = vrot.slane %v1545, 1
      %v1654 = vsel %vm1061, %v1652, %v1653
      %v1655 = vrot.slane %v1546, 1
      %v1656 = vsel %vm1061, %v1653, %v1655
      %v1657 = vrot.slane %v1547, 1
      %v1658 = vrot.slane %v1548, 1
      %v1659 = vsel %vm1061, %v1657, %v1658
      %v1660 = vrot.slane %v1549, 1
      %v1661 = vsel %vm1061, %v1658, %v1660
      %v1662 = vrot.slane %v1550, 1
      %v1663 = vrot.slane %v1551, 1
      %v1664 = vsel %vm1061, %v1662, %v1663
      %v1665 = vrot.slane %v1552, 1
      %v1666 = vsel %vm1061, %v1663, %v1665
      %v1667 = vrot.slane %v1553, 1
      %v1668 = vrot.slane %v1554, 1
      %v1669 = vsel %vm1061, %v1667, %v1668
      %v1670 = vrot.slane %v1555, 1
      %v1671 = vsel %vm1061, %v1668, %v1670
      %v1672 = vrot.slane %v1556, 1
      %v1673 = vrot.slane %v1557, 1
      %v1674 = vsel %vm1061, %v1672, %v1673
      %v1675 = vrot.slane %v1558, 1
      %v1676 = vsel %vm1061, %v1673, %v1675
      %v1677 = vrot.slane %v1559, 1
      %v1678 = vrot.slane %v1560, 1
      %v1679 = vsel %vm1061, %v1677, %v1678
      %v1680 = vrot.slane %v1561, 1
      %v1681 = vsel %vm1061, %v1678, %v1680
      %v1682 = vrot.slane %v1562, 1
      %v1683 = vrot.slane %v1563, 1
      %v1684 = vsel %vm1061, %v1682, %v1683
      %v1685 = vrot.slane %v1564, 1
      %v1686 = vsel %vm1061, %v1683, %v1685
      %v1687 = vrot.slane %v1565, 1
      %v1688 = vrot.slane %v1566, 1
      %v1689 = vsel %vm1061, %v1687, %v1688
      %v1690 = vrot.slane %v1567, 1
      %v1691 = vsel %vm1061, %v1688, %v1690
      %v1692 = vrot.slane %v1568, 1
      %v1693 = vrot.slane %v1569, 1
      %v1694 = vsel %vm1061, %v1692, %v1693
      %v1695 = vrot.slane %v1570, 1
      %v1696 = vsel %vm1061, %v1693, %v1695
      %v1697 = vrot.slane %v1571, 1
      %v1698 = vrot.slane %v1572, 1
      %v1699 = vsel %vm1061, %v1697, %v1698
      %v1700 = vrot.slane %v1573, 1
      %v1701 = vsel %vm1061, %v1698, %v1700
      %v1734 = vadd.f32 %v1489, %v1624
      %v1735 = vadd.f32 %v1490, %v1626
      %v1736 = vadd.f32 %v1491, %v1629
      %v1737 = vadd.f32 %v1492, %v1631
      %v1738 = vadd.f32 %v1493, %v1634
      %v1739 = vadd.f32 %v1494, %v1636
      %v1740 = vadd.f32 %v1495, %v1639
      %v1741 = vadd.f32 %v1496, %v1641
      %v1742 = vadd.f32 %v1497, %v1644
      %v1743 = vadd.f32 %v1498, %v1646
      %v1744 = vadd.f32 %v1499, %v1649
      %v1745 = vadd.f32 %v1500, %v1651
      %v1746 = vadd.f32 %v1501, %v1654
      %v1747 = vadd.f32 %v1502, %v1656
      %v1748 = vadd.f32 %v1503, %v1659
      %v1749 = vadd.f32 %v1504, %v1661
      %v1750 = vadd.f32 %v1505, %v1664
      %v1751 = vadd.f32 %v1506, %v1666
      %v1752 = vadd.f32 %v1507, %v1669
      %v1753 = vadd.f32 %v1508, %v1671
      %v1754 = vadd.f32 %v1509, %v1674
      %v1755 = vadd.f32 %v1510, %v1676
      %v1756 = vadd.f32 %v1511, %v1679
      %v1757 = vadd.f32 %v1512, %v1681
      %v1758 = vadd.f32 %v1513, %v1684
      %v1759 = vadd.f32 %v1514, %v1686
      %v1760 = vadd.f32 %v1515, %v1689
      %v1761 = vadd.f32 %v1516, %v1691
      %v1762 = vadd.f32 %v1517, %v1694
      %v1763 = vadd.f32 %v1518, %v1696
      %v1764 = vadd.f32 %v1519, %v1699
      %v1765 = vadd.f32 %v1520, %v1701
      %v1766 = vld [vmem:[%s3 + $0x5] sm:$0x1]
      %v1767 = vlaneseq
      %v1768 = vshrl.u32 %v1767, 7
      %v1769 = vsub.s32 0, %v1768
      %v1770 = vrot.slane %v1766, %v1769
      %v1771 = vmul.f32 %v858, %v1770
      %v1772 = vmul.f32 %v761, %v1770
      %v1773 = vmul.f32 %v875, %v1770
      %v1774 = vmul.f32 %v859, %v1770
      %v1775 = vmul.f32 %v764, %v1770
      %v1776 = vmul.f32 %v876, %v1770
      %v1777 = vmul.f32 %v860, %v1770
      %v1778 = vmul.f32 %v767, %v1770
      %v1779 = vmul.f32 %v877, %v1770
      %v1780 = vmul.f32 %v861, %v1770
      %v1781 = vmul.f32 %v770, %v1770
      %v1782 = vmul.f32 %v878, %v1770
      %v1783 = vmul.f32 %v862, %v1770
      %v1784 = vmul.f32 %v773, %v1770
      %v1785 = vmul.f32 %v879, %v1770
      %v1786 = vmul.f32 %v863, %v1770
      %v1787 = vmul.f32 %v776, %v1770
      %v1788 = vmul.f32 %v880, %v1770
      %v1789 = vmul.f32 %v864, %v1770
      %v1790 = vmul.f32 %v779, %v1770
      %v1791 = vmul.f32 %v881, %v1770
      %v1792 = vmul.f32 %v865, %v1770
      %v1793 = vmul.f32 %v782, %v1770
      %v1794 = vmul.f32 %v882, %v1770
      %v1795 = vmul.f32 %v866, %v1770
      %v1796 = vmul.f32 %v785, %v1770
      %v1797 = vmul.f32 %v883, %v1770
      %v1798 = vmul.f32 %v867, %v1770
      %v1799 = vmul.f32 %v788, %v1770
      %v1800 = vmul.f32 %v884, %v1770
      %v1801 = vmul.f32 %v868, %v1770
      %v1802 = vmul.f32 %v791, %v1770
      %v1803 = vmul.f32 %v885, %v1770
      %v1804 = vmul.f32 %v869, %v1770
      %v1805 = vmul.f32 %v794, %v1770
      %v1806 = vmul.f32 %v886, %v1770
      %v1807 = vmul.f32 %v870, %v1770
      %v1808 = vmul.f32 %v797, %v1770
      %v1809 = vmul.f32 %v887, %v1770
      %v1810 = vmul.f32 %v871, %v1770
      %v1811 = vmul.f32 %v800, %v1770
      %v1812 = vmul.f32 %v888, %v1770
      %v1813 = vmul.f32 %v872, %v1770
      %v1814 = vmul.f32 %v803, %v1770
      %v1815 = vmul.f32 %v889, %v1770
      %v1816 = vmul.f32 %v873, %v1770
      %v1817 = vmul.f32 %v806, %v1770
      %v1818 = vmul.f32 %v890, %v1770
      %v1867 = vrot.slane %v1771, 2
      %v1868 = vrot.slane %v1772, 2
      %v1869 = vsel %vm1307, %v1867, %v1868
      %v1870 = vrot.slane %v1773, 2
      %v1871 = vsel %vm1307, %v1868, %v1870
      %v1872 = vrot.slane %v1774, 2
      %v1873 = vrot.slane %v1775, 2
      %v1874 = vsel %vm1307, %v1872, %v1873
      %v1875 = vrot.slane %v1776, 2
      %v1876 = vsel %vm1307, %v1873, %v1875
      %v1877 = vrot.slane %v1777, 2
      %v1878 = vrot.slane %v1778, 2
      %v1879 = vsel %vm1307, %v1877, %v1878
      %v1880 = vrot.slane %v1779, 2
      %v1881 = vsel %vm1307, %v1878, %v1880
      %v1882 = vrot.slane %v1780, 2
      %v1883 = vrot.slane %v1781, 2
      %v1884 = vsel %vm1307, %v1882, %v1883
      %v1885 = vrot.slane %v1782, 2
      %v1886 = vsel %vm1307, %v1883, %v1885
      %v1887 = vrot.slane %v1783, 2
      %v1888 = vrot.slane %v1784, 2
      %v1889 = vsel %vm1307, %v1887, %v1888
      %v1890 = vrot.slane %v1785, 2
      %v1891 = vsel %vm1307, %v1888, %v1890
      %v1892 = vrot.slane %v1786, 2
      %v1893 = vrot.slane %v1787, 2
      %v1894 = vsel %vm1307, %v1892, %v1893
      %v1895 = vrot.slane %v1788, 2
      %v1896 = vsel %vm1307, %v1893, %v1895
      %v1897 = vrot.slane %v1789, 2
      %v1898 = vrot.slane %v1790, 2
      %v1899 = vsel %vm1307, %v1897, %v1898
      %v1900 = vrot.slane %v1791, 2
      %v1901 = vsel %vm1307, %v1898, %v1900
      %v1902 = vrot.slane %v1792, 2
      %v1903 = vrot.slane %v1793, 2
      %v1904 = vsel %vm1307, %v1902, %v1903
      %v1905 = vrot.slane %v1794, 2
      %v1906 = vsel %vm1307, %v1903, %v1905
      %v1907 = vrot.slane %v1795, 2
      %v1908 = vrot.slane %v1796, 2
      %v1909 = vsel %vm1307, %v1907, %v1908
      %v1910 = vrot.slane %v1797, 2
      %v1911 = vsel %vm1307, %v1908, %v1910
      %v1912 = vrot.slane %v1798, 2
      %v1913 = vrot.slane %v1799, 2
      %v1914 = vsel %vm1307, %v1912, %v1913
      %v1915 = vrot.slane %v1800, 2
      %v1916 = vsel %vm1307, %v1913, %v1915
      %v1917 = vrot.slane %v1801, 2
      %v1918 = vrot.slane %v1802, 2
      %v1919 = vsel %vm1307, %v1917, %v1918
      %v1920 = vrot.slane %v1803, 2
      %v1921 = vsel %vm1307, %v1918, %v1920
      %v1922 = vrot.slane %v1804, 2
      %v1923 = vrot.slane %v1805, 2
      %v1924 = vsel %vm1307, %v1922, %v1923
      %v1925 = vrot.slane %v1806, 2
      %v1926 = vsel %vm1307, %v1923, %v1925
      %v1927 = vrot.slane %v1807, 2
      %v1928 = vrot.slane %v1808, 2
      %v1929 = vsel %vm1307, %v1927, %v1928
      %v1930 = vrot.slane %v1809, 2
      %v1931 = vsel %vm1307, %v1928, %v1930
      %v1932 = vrot.slane %v1810, 2
      %v1933 = vrot.slane %v1811, 2
      %v1934 = vsel %vm1307, %v1932, %v1933
      %v1935 = vrot.slane %v1812, 2
      %v1936 = vsel %vm1307, %v1933, %v1935
      %v1937 = vrot.slane %v1813, 2
      %v1938 = vrot.slane %v1814, 2
      %v1939 = vsel %vm1307, %v1937, %v1938
      %v1940 = vrot.slane %v1815, 2
      %v1941 = vsel %vm1307, %v1938, %v1940
      %v1942 = vrot.slane %v1816, 2
      %v1943 = vrot.slane %v1817, 2
      %v1944 = vsel %vm1307, %v1942, %v1943
      %v1945 = vrot.slane %v1818, 2
      %v1946 = vsel %vm1307, %v1943, %v1945
      %v1979 = vadd.f32 %v1734, %v1869
      %v1980 = vadd.f32 %v1735, %v1871
      %v1981 = vadd.f32 %v1736, %v1874
      %v1982 = vadd.f32 %v1737, %v1876
      %v1983 = vadd.f32 %v1738, %v1879
      %v1984 = vadd.f32 %v1739, %v1881
      %v1985 = vadd.f32 %v1740, %v1884
      %v1986 = vadd.f32 %v1741, %v1886
      %v1987 = vadd.f32 %v1742, %v1889
      %v1988 = vadd.f32 %v1743, %v1891
      %v1989 = vadd.f32 %v1744, %v1894
      %v1990 = vadd.f32 %v1745, %v1896
      %v1991 = vadd.f32 %v1746, %v1899
      %v1992 = vadd.f32 %v1747, %v1901
      %v1993 = vadd.f32 %v1748, %v1904
      %v1994 = vadd.f32 %v1749, %v1906
      %v1995 = vadd.f32 %v1750, %v1909
      %v1996 = vadd.f32 %v1751, %v1911
      %v1997 = vadd.f32 %v1752, %v1914
      %v1998 = vadd.f32 %v1753, %v1916
      %v1999 = vadd.f32 %v1754, %v1919
      %v2000 = vadd.f32 %v1755, %v1921
      %v2001 = vadd.f32 %v1756, %v1924
      %v2002 = vadd.f32 %v1757, %v1926
      %v2003 = vadd.f32 %v1758, %v1929
      %v2004 = vadd.f32 %v1759, %v1931
      %v2005 = vadd.f32 %v1760, %v1934
      %v2006 = vadd.f32 %v1761, %v1936
      %v2007 = vadd.f32 %v1762, %v1939
      %v2008 = vadd.f32 %v1763, %v1941
      %v2009 = vadd.f32 %v1764, %v1944
      %v2010 = vadd.f32 %v1765, %v1946
      %v2011 = vld [vmem:[%s3 + $0x6] sm:$0x1]
      %v2012 = vlaneseq
      %v2013 = vshrl.u32 %v2012, 7
      %v2014 = vsub.s32 0, %v2013
      %v2015 = vrot.slane %v2011, %v2014
      %v2016 = vmul.f32 %v859, %v2015
      %v2017 = vmul.f32 %v764, %v2015
      %v2018 = vmul.f32 %v860, %v2015
      %v2019 = vmul.f32 %v767, %v2015
      %v2020 = vmul.f32 %v861, %v2015
      %v2021 = vmul.f32 %v770, %v2015
      %v2022 = vmul.f32 %v862, %v2015
      %v2023 = vmul.f32 %v773, %v2015
      %v2024 = vmul.f32 %v863, %v2015
      %v2025 = vmul.f32 %v776, %v2015
      %v2026 = vmul.f32 %v864, %v2015
      %v2027 = vmul.f32 %v779, %v2015
      %v2028 = vmul.f32 %v865, %v2015
      %v2029 = vmul.f32 %v782, %v2015
      %v2030 = vmul.f32 %v866, %v2015
      %v2031 = vmul.f32 %v785, %v2015
      %v2032 = vmul.f32 %v867, %v2015
      %v2033 = vmul.f32 %v788, %v2015
      %v2034 = vmul.f32 %v868, %v2015
      %v2035 = vmul.f32 %v791, %v2015
      %v2036 = vmul.f32 %v869, %v2015
      %v2037 = vmul.f32 %v794, %v2015
      %v2038 = vmul.f32 %v870, %v2015
      %v2039 = vmul.f32 %v797, %v2015
      %v2040 = vmul.f32 %v871, %v2015
      %v2041 = vmul.f32 %v800, %v2015
      %v2042 = vmul.f32 %v872, %v2015
      %v2043 = vmul.f32 %v803, %v2015
      %v2044 = vmul.f32 %v873, %v2015
      %v2045 = vmul.f32 %v806, %v2015
      %v2046 = vmul.f32 %v857, %v2015
      %v2047 = vmul.f32 %v758, %v2015
      %v2048 = vadd.f32 %v1979, %v2016
      %v2049 = vadd.f32 %v1980, %v2017
      %v2050 = vadd.f32 %v1981, %v2018
      %v2051 = vadd.f32 %v1982, %v2019
      %v2052 = vadd.f32 %v1983, %v2020
      %v2053 = vadd.f32 %v1984, %v2021
      %v2054 = vadd.f32 %v1985, %v2022
      %v2055 = vadd.f32 %v1986, %v2023
      %v2056 = vadd.f32 %v1987, %v2024
      %v2057 = vadd.f32 %v1988, %v2025
      %v2058 = vadd.f32 %v1989, %v2026
      %v2059 = vadd.f32 %v1990, %v2027
      %v2060 = vadd.f32 %v1991, %v2028
      %v2061 = vadd.f32 %v1992, %v2029
      %v2062 = vadd.f32 %v1993, %v2030
      %v2063 = vadd.f32 %v1994, %v2031
      %v2064 = vadd.f32 %v1995, %v2032
      %v2065 = vadd.f32 %v1996, %v2033
      %v2066 = vadd.f32 %v1997, %v2034
      %v2067 = vadd.f32 %v1998, %v2035
      %v2068 = vadd.f32 %v1999, %v2036
      %v2069 = vadd.f32 %v2000, %v2037
      %v2070 = vadd.f32 %v2001, %v2038
      %v2071 = vadd.f32 %v2002, %v2039
      %v2072 = vadd.f32 %v2003, %v2040
      %v2073 = vadd.f32 %v2004, %v2041
      %v2074 = vadd.f32 %v2005, %v2042
      %v2075 = vadd.f32 %v2006, %v2043
      %v2076 = vadd.f32 %v2007, %v2044
      %v2077 = vadd.f32 %v2008, %v2045
      %v2078 = vadd.f32 %v2009, %v2046
      %v2079 = vadd.f32 %v2010, %v2047
      %v2080 = vld [vmem:[%s3 + $0x7] sm:$0x1]
      %v2081 = vlaneseq
      %v2082 = vshrl.u32 %v2081, 7
      %v2083 = vsub.s32 0, %v2082
      %v2084 = vrot.slane %v2080, %v2083
      %v2085 = vmul.f32 %v859, %v2084
      %v2086 = vmul.f32 %v764, %v2084
      %v2087 = vmul.f32 %v876, %v2084
      %v2088 = vmul.f32 %v860, %v2084
      %v2089 = vmul.f32 %v767, %v2084
      %v2090 = vmul.f32 %v877, %v2084
      %v2091 = vmul.f32 %v861, %v2084
      %v2092 = vmul.f32 %v770, %v2084
      %v2093 = vmul.f32 %v878, %v2084
      %v2094 = vmul.f32 %v862, %v2084
      %v2095 = vmul.f32 %v773, %v2084
      %v2096 = vmul.f32 %v879, %v2084
      %v2097 = vmul.f32 %v863, %v2084
      %v2098 = vmul.f32 %v776, %v2084
      %v2099 = vmul.f32 %v880, %v2084
      %v2100 = vmul.f32 %v864, %v2084
      %v2101 = vmul.f32 %v779, %v2084
      %v2102 = vmul.f32 %v881, %v2084
      %v2103 = vmul.f32 %v865, %v2084
      %v2104 = vmul.f32 %v782, %v2084
      %v2105 = vmul.f32 %v882, %v2084
      %v2106 = vmul.f32 %v866, %v2084
      %v2107 = vmul.f32 %v785, %v2084
      %v2108 = vmul.f32 %v883, %v2084
      %v2109 = vmul.f32 %v867, %v2084
      %v2110 = vmul.f32 %v788, %v2084
      %v2111 = vmul.f32 %v884, %v2084
      %v2112 = vmul.f32 %v868, %v2084
      %v2113 = vmul.f32 %v791, %v2084
      %v2114 = vmul.f32 %v885, %v2084
      %v2115 = vmul.f32 %v869, %v2084
      %v2116 = vmul.f32 %v794, %v2084
      %v2117 = vmul.f32 %v886, %v2084
      %v2118 = vmul.f32 %v870, %v2084
      %v2119 = vmul.f32 %v797, %v2084
      %v2120 = vmul.f32 %v887, %v2084
      %v2121 = vmul.f32 %v871, %v2084
      %v2122 = vmul.f32 %v800, %v2084
      %v2123 = vmul.f32 %v888, %v2084
      %v2124 = vmul.f32 %v872, %v2084
      %v2125 = vmul.f32 %v803, %v2084
      %v2126 = vmul.f32 %v889, %v2084
      %v2127 = vmul.f32 %v873, %v2084
      %v2128 = vmul.f32 %v806, %v2084
      %v2129 = vmul.f32 %v890, %v2084
      %v2130 = vmul.f32 %v857, %v2084
      %v2131 = vmul.f32 %v758, %v2084
      %v2132 = vmul.f32 %v874, %v2084
      %v2181 = vrot.slane %v2085, 1
      %v2182 = vrot.slane %v2086, 1
      %v2183 = vsel %vm1061, %v2181, %v2182
      %v2184 = vrot.slane %v2087, 1
      %v2185 = vsel %vm1061, %v2182, %v2184
      %v2186 = vrot.slane %v2088, 1
      %v2187 = vrot.slane %v2089, 1
      %v2188 = vsel %vm1061, %v2186, %v2187
      %v2189 = vrot.slane %v2090, 1
      %v2190 = vsel %vm1061, %v2187, %v2189
      %v2191 = vrot.slane %v2091, 1
      %v2192 = vrot.slane %v2092, 1
      %v2193 = vsel %vm1061, %v2191, %v2192
      %v2194 = vrot.slane %v2093, 1
      %v2195 = vsel %vm1061, %v2192, %v2194
      %v2196 = vrot.slane %v2094, 1
      %v2197 = vrot.slane %v2095, 1
      %v2198 = vsel %vm1061, %v2196, %v2197
      %v2199 = vrot.slane %v2096, 1
      %v2200 = vsel %vm1061, %v2197, %v2199
      %v2201 = vrot.slane %v2097, 1
      %v2202 = vrot.slane %v2098, 1
      %v2203 = vsel %vm1061, %v2201, %v2202
      %v2204 = vrot.slane %v2099, 1
      %v2205 = vsel %vm1061, %v2202, %v2204
      %v2206 = vrot.slane %v2100, 1
      %v2207 = vrot.slane %v2101, 1
      %v2208 = vsel %vm1061, %v2206, %v2207
      %v2209 = vrot.slane %v2102, 1
      %v2210 = vsel %vm1061, %v2207, %v2209
      %v2211 = vrot.slane %v2103, 1
      %v2212 = vrot.slane %v2104, 1
      %v2213 = vsel %vm1061, %v2211, %v2212
      %v2214 = vrot.slane %v2105, 1
      %v2215 = vsel %vm1061, %v2212, %v2214
      %v2216 = vrot.slane %v2106, 1
      %v2217 = vrot.slane %v2107, 1
      %v2218 = vsel %vm1061, %v2216, %v2217
      %v2219 = vrot.slane %v2108, 1
      %v2220 = vsel %vm1061, %v2217, %v2219
      %v2221 = vrot.slane %v2109, 1
      %v2222 = vrot.slane %v2110, 1
      %v2223 = vsel %vm1061, %v2221, %v2222
      %v2224 = vrot.slane %v2111, 1
      %v2225 = vsel %vm1061, %v2222, %v2224
      %v2226 = vrot.slane %v2112, 1
      %v2227 = vrot.slane %v2113, 1
      %v2228 = vsel %vm1061, %v2226, %v2227
      %v2229 = vrot.slane %v2114, 1
      %v2230 = vsel %vm1061, %v2227, %v2229
      %v2231 = vrot.slane %v2115, 1
      %v2232 = vrot.slane %v2116, 1
      %v2233 = vsel %vm1061, %v2231, %v2232
      %v2234 = vrot.slane %v2117, 1
      %v2235 = vsel %vm1061, %v2232, %v2234
      %v2236 = vrot.slane %v2118, 1
      %v2237 = vrot.slane %v2119, 1
      %v2238 = vsel %vm1061, %v2236, %v2237
      %v2239 = vrot.slane %v2120, 1
      %v2240 = vsel %vm1061, %v2237, %v2239
      %v2241 = vrot.slane %v2121, 1
      %v2242 = vrot.slane %v2122, 1
      %v2243 = vsel %vm1061, %v2241, %v2242
      %v2244 = vrot.slane %v2123, 1
      %v2245 = vsel %vm1061, %v2242, %v2244
      %v2246 = vrot.slane %v2124, 1
      %v2247 = vrot.slane %v2125, 1
      %v2248 = vsel %vm1061, %v2246, %v2247
      %v2249 = vrot.slane %v2126, 1
      %v2250 = vsel %vm1061, %v2247, %v2249
      %v2251 = vrot.slane %v2127, 1
      %v2252 = vrot.slane %v2128, 1
      %v2253 = vsel %vm1061, %v2251, %v2252
      %v2254 = vrot.slane %v2129, 1
      %v2255 = vsel %vm1061, %v2252, %v2254
      %v2256 = vrot.slane %v2130, 1
      %v2257 = vrot.slane %v2131, 1
      %v2258 = vsel %vm1061, %v2256, %v2257
      %v2259 = vrot.slane %v2132, 1
      %v2260 = vsel %vm1061, %v2257, %v2259
      %v2293 = vadd.f32 %v2048, %v2183
      %v2294 = vadd.f32 %v2049, %v2185
      %v2295 = vadd.f32 %v2050, %v2188
      %v2296 = vadd.f32 %v2051, %v2190
      %v2297 = vadd.f32 %v2052, %v2193
      %v2298 = vadd.f32 %v2053, %v2195
      %v2299 = vadd.f32 %v2054, %v2198
      %v2300 = vadd.f32 %v2055, %v2200
      %v2301 = vadd.f32 %v2056, %v2203
      %v2302 = vadd.f32 %v2057, %v2205
      %v2303 = vadd.f32 %v2058, %v2208
      %v2304 = vadd.f32 %v2059, %v2210
      %v2305 = vadd.f32 %v2060, %v2213
      %v2306 = vadd.f32 %v2061, %v2215
      %v2307 = vadd.f32 %v2062, %v2218
      %v2308 = vadd.f32 %v2063, %v2220
      %v2309 = vadd.f32 %v2064, %v2223
      %v2310 = vadd.f32 %v2065, %v2225
      %v2311 = vadd.f32 %v2066, %v2228
      %v2312 = vadd.f32 %v2067, %v2230
      %v2313 = vadd.f32 %v2068, %v2233
      %v2314 = vadd.f32 %v2069, %v2235
      %v2315 = vadd.f32 %v2070, %v2238
      %v2316 = vadd.f32 %v2071, %v2240
      %v2317 = vadd.f32 %v2072, %v2243
      %v2318 = vadd.f32 %v2073, %v2245
      %v2319 = vadd.f32 %v2074, %v2248
      %v2320 = vadd.f32 %v2075, %v2250
      %v2321 = vadd.f32 %v2076, %v2253
      %v2322 = vadd.f32 %v2077, %v2255
      %v2323 = vadd.f32 %v2078, %v2258
      %v2324 = vadd.f32 %v2079, %v2260
      %v2325 = vld [vmem:[%s3 + $0x8] sm:$0x1]
      %v2326 = vlaneseq
      %v2327 = vshrl.u32 %v2326, 7
      %v2328 = vsub.s32 0, %v2327
      %v2329 = vrot.slane %v2325, %v2328
      %v2330 = vmul.f32 %v859, %v2329
      %v2331 = vmul.f32 %v764, %v2329
      %v2332 = vmul.f32 %v876, %v2329
      %v2333 = vmul.f32 %v860, %v2329
      %v2334 = vmul.f32 %v767, %v2329
      %v2335 = vmul.f32 %v877, %v2329
      %v2336 = vmul.f32 %v861, %v2329
      %v2337 = vmul.f32 %v770, %v2329
      %v2338 = vmul.f32 %v878, %v2329
      %v2339 = vmul.f32 %v862, %v2329
      %v2340 = vmul.f32 %v773, %v2329
      %v2341 = vmul.f32 %v879, %v2329
      %v2342 = vmul.f32 %v863, %v2329
      %v2343 = vmul.f32 %v776, %v2329
      %v2344 = vmul.f32 %v880, %v2329
      %v2345 = vmul.f32 %v864, %v2329
      %v2346 = vmul.f32 %v779, %v2329
      %v2347 = vmul.f32 %v881, %v2329
      %v2348 = vmul.f32 %v865, %v2329
      %v2349 = vmul.f32 %v782, %v2329
      %v2350 = vmul.f32 %v882, %v2329
      %v2351 = vmul.f32 %v866, %v2329
      %v2352 = vmul.f32 %v785, %v2329
      %v2353 = vmul.f32 %v883, %v2329
      %v2354 = vmul.f32 %v867, %v2329
      %v2355 = vmul.f32 %v788, %v2329
      %v2356 = vmul.f32 %v884, %v2329
      %v2357 = vmul.f32 %v868, %v2329
      %v2358 = vmul.f32 %v791, %v2329
      %v2359 = vmul.f32 %v885, %v2329
      %v2360 = vmul.f32 %v869, %v2329
      %v2361 = vmul.f32 %v794, %v2329
      %v2362 = vmul.f32 %v886, %v2329
      %v2363 = vmul.f32 %v870, %v2329
      %v2364 = vmul.f32 %v797, %v2329
      %v2365 = vmul.f32 %v887, %v2329
      %v2366 = vmul.f32 %v871, %v2329
      %v2367 = vmul.f32 %v800, %v2329
      %v2368 = vmul.f32 %v888, %v2329
      %v2369 = vmul.f32 %v872, %v2329
      %v2370 = vmul.f32 %v803, %v2329
      %v2371 = vmul.f32 %v889, %v2329
      %v2372 = vmul.f32 %v873, %v2329
      %v2373 = vmul.f32 %v806, %v2329
      %v2374 = vmul.f32 %v890, %v2329
      %v2375 = vmul.f32 %v857, %v2329
      %v2376 = vmul.f32 %v758, %v2329
      %v2377 = vmul.f32 %v874, %v2329
      %v2426 = vrot.slane %v2330, 2
      %v2427 = vrot.slane %v2331, 2
      %v2428 = vsel %vm1307, %v2426, %v2427
      %v2429 = vrot.slane %v2332, 2
      %v2430 = vsel %vm1307, %v2427, %v2429
      %v2431 = vrot.slane %v2333, 2
      %v2432 = vrot.slane %v2334, 2
      %v2433 = vsel %vm1307, %v2431, %v2432
      %v2434 = vrot.slane %v2335, 2
      %v2435 = vsel %vm1307, %v2432, %v2434
      %v2436 = vrot.slane %v2336, 2
      %v2437 = vrot.slane %v2337, 2
      %v2438 = vsel %vm1307, %v2436, %v2437
      %v2439 = vrot.slane %v2338, 2
      %v2440 = vsel %vm1307, %v2437, %v2439
      %v2441 = vrot.slane %v2339, 2
      %v2442 = vrot.slane %v2340, 2
      %v2443 = vsel %vm1307, %v2441, %v2442
      %v2444 = vrot.slane %v2341, 2
      %v2445 = vsel %vm1307, %v2442, %v2444
      %v2446 = vrot.slane %v2342, 2
      %v2447 = vrot.slane %v2343, 2
      %v2448 = vsel %vm1307, %v2446, %v2447
      %v2449 = vrot.slane %v2344, 2
      %v2450 = vsel %vm1307, %v2447, %v2449
      %v2451 = vrot.slane %v2345, 2
      %v2452 = vrot.slane %v2346, 2
      %v2453 = vsel %vm1307, %v2451, %v2452
      %v2454 = vrot.slane %v2347, 2
      %v2455 = vsel %vm1307, %v2452, %v2454
      %v2456 = vrot.slane %v2348, 2
      %v2457 = vrot.slane %v2349, 2
      %v2458 = vsel %vm1307, %v2456, %v2457
      %v2459 = vrot.slane %v2350, 2
      %v2460 = vsel %vm1307, %v2457, %v2459
      %v2461 = vrot.slane %v2351, 2
      %v2462 = vrot.slane %v2352, 2
      %v2463 = vsel %vm1307, %v2461, %v2462
      %v2464 = vrot.slane %v2353, 2
      %v2465 = vsel %vm1307, %v2462, %v2464
      %v2466 = vrot.slane %v2354, 2
      %v2467 = vrot.slane %v2355, 2
      %v2468 = vsel %vm1307, %v2466, %v2467
      %v2469 = vrot.slane %v2356, 2
      %v2470 = vsel %vm1307, %v2467, %v2469
      %v2471 = vrot.slane %v2357, 2
      %v2472 = vrot.slane %v2358, 2
      %v2473 = vsel %vm1307, %v2471, %v2472
      %v2474 = vrot.slane %v2359, 2
      %v2475 = vsel %vm1307, %v2472, %v2474
      %v2476 = vrot.slane %v2360, 2
      %v2477 = vrot.slane %v2361, 2
      %v2478 = vsel %vm1307, %v2476, %v2477
      %v2479 = vrot.slane %v2362, 2
      %v2480 = vsel %vm1307, %v2477, %v2479
      %v2481 = vrot.slane %v2363, 2
      %v2482 = vrot.slane %v2364, 2
      %v2483 = vsel %vm1307, %v2481, %v2482
      %v2484 = vrot.slane %v2365, 2
      %v2485 = vsel %vm1307, %v2482, %v2484
      %v2486 = vrot.slane %v2366, 2
      %v2487 = vrot.slane %v2367, 2
      %v2488 = vsel %vm1307, %v2486, %v2487
      %v2489 = vrot.slane %v2368, 2
      %v2490 = vsel %vm1307, %v2487, %v2489
      %v2491 = vrot.slane %v2369, 2
      %v2492 = vrot.slane %v2370, 2
      %v2493 = vsel %vm1307, %v2491, %v2492
      %v2494 = vrot.slane %v2371, 2
      %v2495 = vsel %vm1307, %v2492, %v2494
      %v2496 = vrot.slane %v2372, 2
      %v2497 = vrot.slane %v2373, 2
      %v2498 = vsel %vm1307, %v2496, %v2497
      %v2499 = vrot.slane %v2374, 2
      %v2500 = vsel %vm1307, %v2497, %v2499
      %v2501 = vrot.slane %v2375, 2
      %v2502 = vrot.slane %v2376, 2
      %v2503 = vsel %vm1307, %v2501, %v2502
      %v2504 = vrot.slane %v2377, 2
      %v2505 = vsel %vm1307, %v2502, %v2504
      %v2538 = vadd.f32 %v2293, %v2428
      %v2539 = vadd.f32 %v2294, %v2430
      %v2540 = vadd.f32 %v2295, %v2433
      %v2541 = vadd.f32 %v2296, %v2435
      %v2542 = vadd.f32 %v2297, %v2438
      %v2543 = vadd.f32 %v2298, %v2440
      %v2544 = vadd.f32 %v2299, %v2443
      %v2545 = vadd.f32 %v2300, %v2445
      %v2546 = vadd.f32 %v2301, %v2448
      %v2547 = vadd.f32 %v2302, %v2450
      %v2548 = vadd.f32 %v2303, %v2453
      %v2549 = vadd.f32 %v2304, %v2455
      %v2550 = vadd.f32 %v2305, %v2458
      %v2551 = vadd.f32 %v2306, %v2460
      %v2552 = vadd.f32 %v2307, %v2463
      %v2553 = vadd.f32 %v2308, %v2465
      %v2554 = vadd.f32 %v2309, %v2468
      %v2555 = vadd.f32 %v2310, %v2470
      %v2556 = vadd.f32 %v2311, %v2473
      %v2557 = vadd.f32 %v2312, %v2475
      %v2558 = vadd.f32 %v2313, %v2478
      %v2559 = vadd.f32 %v2314, %v2480
      %v2560 = vadd.f32 %v2315, %v2483
      %v2561 = vadd.f32 %v2316, %v2485
      %v2562 = vadd.f32 %v2317, %v2488
      %v2563 = vadd.f32 %v2318, %v2490
      %v2564 = vadd.f32 %v2319, %v2493
      %v2565 = vadd.f32 %v2320, %v2495
      %v2566 = vadd.f32 %v2321, %v2498
      %v2567 = vadd.f32 %v2322, %v2500
      %v2568 = vadd.f32 %v2323, %v2503
      %v2569 = vadd.f32 %v2324, %v2505
      %v2570 = vld [vmem:[%s4] sm:$0x1]
      %v2572 = vlaneseq
      %v2573 = vshrl.u32 %v2572, 7
      %v2574 = vsub.s32 0, %v2573
      %v2575 = vrot.slane %v2570, %v2574
      %v2577 = vadd.f32 %v2538, %v2575
      %v2578 = vadd.f32 %v2539, %v2575
      %v2579 = vadd.f32 %v2540, %v2575
      %v2580 = vadd.f32 %v2541, %v2575
      %v2581 = vadd.f32 %v2542, %v2575
      %v2582 = vadd.f32 %v2543, %v2575
      %v2583 = vadd.f32 %v2544, %v2575
      %v2584 = vadd.f32 %v2545, %v2575
      %v2585 = vadd.f32 %v2546, %v2575
      %v2586 = vadd.f32 %v2547, %v2575
      %v2587 = vadd.f32 %v2548, %v2575
      %v2588 = vadd.f32 %v2549, %v2575
      %v2589 = vadd.f32 %v2550, %v2575
      %v2590 = vadd.f32 %v2551, %v2575
      %v2591 = vadd.f32 %v2552, %v2575
      %v2592 = vadd.f32 %v2553, %v2575
      %v2593 = vadd.f32 %v2554, %v2575
      %v2594 = vadd.f32 %v2555, %v2575
      %v2595 = vadd.f32 %v2556, %v2575
      %v2596 = vadd.f32 %v2557, %v2575
      %v2597 = vadd.f32 %v2558, %v2575
      %v2598 = vadd.f32 %v2559, %v2575
      %v2599 = vadd.f32 %v2560, %v2575
      %v2600 = vadd.f32 %v2561, %v2575
      %v2601 = vadd.f32 %v2562, %v2575
      %v2602 = vadd.f32 %v2563, %v2575
      %v2603 = vadd.f32 %v2564, %v2575
      %v2604 = vadd.f32 %v2565, %v2575
      %v2605 = vadd.f32 %v2566, %v2575
      %v2606 = vadd.f32 %v2567, %v2575
      %v2607 = vadd.f32 %v2568, %v2575
      %v2608 = vadd.f32 %v2569, %v2575
      %v2641 = vrot.slane %v2577, 7
      %v2642 = vrot.slane %v2578, 7
      %v2643 = vsel %vm756, %v2641, %v2642
      %v2644 = vrot.slane %v2579, 7
      %v2645 = vrot.slane %v2580, 7
      %v2646 = vsel %vm756, %v2644, %v2645
      %v2647 = vrot.slane %v2581, 7
      %v2648 = vrot.slane %v2582, 7
      %v2649 = vsel %vm756, %v2647, %v2648
      %v2650 = vrot.slane %v2583, 7
      %v2651 = vrot.slane %v2584, 7
      %v2652 = vsel %vm756, %v2650, %v2651
      %v2653 = vrot.slane %v2585, 7
      %v2654 = vrot.slane %v2586, 7
      %v2655 = vsel %vm756, %v2653, %v2654
      %v2656 = vrot.slane %v2587, 7
      %v2657 = vrot.slane %v2588, 7
      %v2658 = vsel %vm756, %v2656, %v2657
      %v2659 = vrot.slane %v2589, 7
      %v2660 = vrot.slane %v2590, 7
      %v2661 = vsel %vm756, %v2659, %v2660
      %v2662 = vrot.slane %v2591, 7
      %v2663 = vrot.slane %v2592, 7
      %v2664 = vsel %vm756, %v2662, %v2663
      %v2665 = vrot.slane %v2593, 7
      %v2666 = vrot.slane %v2594, 7
      %v2667 = vsel %vm756, %v2665, %v2666
      %v2668 = vrot.slane %v2595, 7
      %v2669 = vrot.slane %v2596, 7
      %v2670 = vsel %vm756, %v2668, %v2669
      %v2671 = vrot.slane %v2597, 7
      %v2672 = vrot.slane %v2598, 7
      %v2673 = vsel %vm756, %v2671, %v2672
      %v2674 = vrot.slane %v2599, 7
      %v2675 = vrot.slane %v2600, 7
      %v2676 = vsel %vm756, %v2674, %v2675
      %v2677 = vrot.slane %v2601, 7
      %v2678 = vrot.slane %v2602, 7
      %v2679 = vsel %vm756, %v2677, %v2678
      %v2680 = vrot.slane %v2603, 7
      %v2681 = vrot.slane %v2604, 7
      %v2682 = vsel %vm756, %v2680, %v2681
      %v2683 = vrot.slane %v2605, 7
      %v2684 = vrot.slane %v2606, 7
      %v2685 = vsel %vm756, %v2683, %v2684
      %v2686 = vrot.slane %v2607, 7
      %v2687 = vrot.slane %v2608, 7
      %v2688 = vsel %vm756, %v2686, %v2687
      %v2737 = vsel %vm756, 0.0, %v2641
      %v2738 = vsel %vm756, 0.0, %v2644
      %v2739 = vsel %vm756, 0.0, %v2647
      %v2740 = vsel %vm756, 0.0, %v2650
      %v2741 = vsel %vm756, 0.0, %v2653
      %v2742 = vsel %vm756, 0.0, %v2656
      %v2743 = vsel %vm756, 0.0, %v2659
      %v2744 = vsel %vm756, 0.0, %v2662
      %v2745 = vsel %vm756, 0.0, %v2665
      %v2746 = vsel %vm756, 0.0, %v2668
      %v2747 = vsel %vm756, 0.0, %v2671
      %v2748 = vsel %vm756, 0.0, %v2674
      %v2749 = vsel %vm756, 0.0, %v2677
      %v2750 = vsel %vm756, 0.0, %v2680
      %v2751 = vsel %vm756, 0.0, %v2683
      %v2752 = vsel %vm756, 0.0, %v2686
      %v2753 = vsel %vm756, %v2642, 0.0
      %v2754 = vsel %vm756, %v2645, 0.0
      %v2755 = vsel %vm756, %v2648, 0.0
      %v2756 = vsel %vm756, %v2651, 0.0
      %v2757 = vsel %vm756, %v2654, 0.0
      %v2758 = vsel %vm756, %v2657, 0.0
      %v2759 = vsel %vm756, %v2660, 0.0
      %v2760 = vsel %vm756, %v2663, 0.0
      %v2761 = vsel %vm756, %v2666, 0.0
      %v2762 = vsel %vm756, %v2669, 0.0
      %v2763 = vsel %vm756, %v2672, 0.0
      %v2764 = vsel %vm756, %v2675, 0.0
      %v2765 = vsel %vm756, %v2678, 0.0
      %v2766 = vsel %vm756, %v2681, 0.0
      %v2767 = vsel %vm756, %v2684, 0.0
      %v2768 = vsel %vm756, %v2687, 0.0
      %v2769 = vld [vmem:[%s5] sm:$0x1]
      %v2770 = vlaneseq
      %v2771 = vshrl.u32 %v2770, 7
      %v2772 = vsub.s32 0, %v2771
      %v2773 = vrot.slane %v2769, %v2772
      %v2774 = vmul.f32 %v857, %v2773
      %v2775 = vmul.f32 %v758, %v2773
      %v2776 = vmul.f32 %v2737, %v2773
      %v2777 = vmul.f32 %v2643, %v2773
      %v2778 = vmul.f32 %v2738, %v2773
      %v2779 = vmul.f32 %v2646, %v2773
      %v2780 = vmul.f32 %v2739, %v2773
      %v2781 = vmul.f32 %v2649, %v2773
      %v2782 = vmul.f32 %v2740, %v2773
      %v2783 = vmul.f32 %v2652, %v2773
      %v2784 = vmul.f32 %v2741, %v2773
      %v2785 = vmul.f32 %v2655, %v2773
      %v2786 = vmul.f32 %v2742, %v2773
      %v2787 = vmul.f32 %v2658, %v2773
      %v2788 = vmul.f32 %v2743, %v2773
      %v2789 = vmul.f32 %v2661, %v2773
      %v2790 = vmul.f32 %v2744, %v2773
      %v2791 = vmul.f32 %v2664, %v2773
      %v2792 = vmul.f32 %v2745, %v2773
      %v2793 = vmul.f32 %v2667, %v2773
      %v2794 = vmul.f32 %v2746, %v2773
      %v2795 = vmul.f32 %v2670, %v2773
      %v2796 = vmul.f32 %v2747, %v2773
      %v2797 = vmul.f32 %v2673, %v2773
      %v2798 = vmul.f32 %v2748, %v2773
      %v2799 = vmul.f32 %v2676, %v2773
      %v2800 = vmul.f32 %v2749, %v2773
      %v2801 = vmul.f32 %v2679, %v2773
      %v2802 = vmul.f32 %v2750, %v2773
      %v2803 = vmul.f32 %v2682, %v2773
      %v2804 = vmul.f32 %v2751, %v2773
      %v2805 = vmul.f32 %v2685, %v2773
      %v2806 = vadd.f32 %v2774, 0.0
      %v2807 = vadd.f32 %v2775, 0.0
      %v2808 = vadd.f32 %v2776, 0.0
      %v2809 = vadd.f32 %v2777, 0.0
      %v2810 = vadd.f32 %v2778, 0.0
      %v2811 = vadd.f32 %v2779, 0.0
      %v2812 = vadd.f32 %v2780, 0.0
      %v2813 = vadd.f32 %v2781, 0.0
      %v2814 = vadd.f32 %v2782, 0.0
      %v2815 = vadd.f32 %v2783, 0.0
      %v2816 = vadd.f32 %v2784, 0.0
      %v2817 = vadd.f32 %v2785, 0.0
      %v2818 = vadd.f32 %v2786, 0.0
      %v2819 = vadd.f32 %v2787, 0.0
      %v2820 = vadd.f32 %v2788, 0.0
      %v2821 = vadd.f32 %v2789, 0.0
      %v2822 = vadd.f32 %v2790, 0.0
      %v2823 = vadd.f32 %v2791, 0.0
      %v2824 = vadd.f32 %v2792, 0.0
      %v2825 = vadd.f32 %v2793, 0.0
      %v2826 = vadd.f32 %v2794, 0.0
      %v2827 = vadd.f32 %v2795, 0.0
      %v2828 = vadd.f32 %v2796, 0.0
      %v2829 = vadd.f32 %v2797, 0.0
      %v2830 = vadd.f32 %v2798, 0.0
      %v2831 = vadd.f32 %v2799, 0.0
      %v2832 = vadd.f32 %v2800, 0.0
      %v2833 = vadd.f32 %v2801, 0.0
      %v2834 = vadd.f32 %v2802, 0.0
      %v2835 = vadd.f32 %v2803, 0.0
      %v2836 = vadd.f32 %v2804, 0.0
      %v2837 = vadd.f32 %v2805, 0.0
      %v2838 = vld [vmem:[%s5 + $0x1] sm:$0x1]
      %v2839 = vlaneseq
      %v2840 = vshrl.u32 %v2839, 7
      %v2841 = vsub.s32 0, %v2840
      %v2842 = vrot.slane %v2838, %v2841
      %v2843 = vmul.f32 %v857, %v2842
      %v2844 = vmul.f32 %v758, %v2842
      %v2845 = vmul.f32 %v874, %v2842
      %v2846 = vmul.f32 %v2737, %v2842
      %v2847 = vmul.f32 %v2643, %v2842
      %v2848 = vmul.f32 %v2753, %v2842
      %v2849 = vmul.f32 %v2738, %v2842
      %v2850 = vmul.f32 %v2646, %v2842
      %v2851 = vmul.f32 %v2754, %v2842
      %v2852 = vmul.f32 %v2739, %v2842
      %v2853 = vmul.f32 %v2649, %v2842
      %v2854 = vmul.f32 %v2755, %v2842
      %v2855 = vmul.f32 %v2740, %v2842
      %v2856 = vmul.f32 %v2652, %v2842
      %v2857 = vmul.f32 %v2756, %v2842
      %v2858 = vmul.f32 %v2741, %v2842
      %v2859 = vmul.f32 %v2655, %v2842
      %v2860 = vmul.f32 %v2757, %v2842
      %v2861 = vmul.f32 %v2742, %v2842
      %v2862 = vmul.f32 %v2658, %v2842
      %v2863 = vmul.f32 %v2758, %v2842
      %v2864 = vmul.f32 %v2743, %v2842
      %v2865 = vmul.f32 %v2661, %v2842
      %v2866 = vmul.f32 %v2759, %v2842
      %v2867 = vmul.f32 %v2744, %v2842
      %v2868 = vmul.f32 %v2664, %v2842
      %v2869 = vmul.f32 %v2760, %v2842
      %v2870 = vmul.f32 %v2745, %v2842
      %v2871 = vmul.f32 %v2667, %v2842
      %v2872 = vmul.f32 %v2761, %v2842
      %v2873 = vmul.f32 %v2746, %v2842
      %v2874 = vmul.f32 %v2670, %v2842
      %v2875 = vmul.f32 %v2762, %v2842
      %v2876 = vmul.f32 %v2747, %v2842
      %v2877 = vmul.f32 %v2673, %v2842
      %v2878 = vmul.f32 %v2763, %v2842
      %v2879 = vmul.f32 %v2748, %v2842
      %v2880 = vmul.f32 %v2676, %v2842
      %v2881 = vmul.f32 %v2764, %v2842
      %v2882 = vmul.f32 %v2749, %v2842
      %v2883 = vmul.f32 %v2679, %v2842
      %v2884 = vmul.f32 %v2765, %v2842
      %v2885 = vmul.f32 %v2750, %v2842
      %v2886 = vmul.f32 %v2682, %v2842
      %v2887 = vmul.f32 %v2766, %v2842
      %v2888 = vmul.f32 %v2751, %v2842
      %v2889 = vmul.f32 %v2685, %v2842
      %v2890 = vmul.f32 %v2767, %v2842
      %v2939 = vrot.slane %v2843, 1
      %v2940 = vrot.slane %v2844, 1
      %v2941 = vsel %vm1061, %v2939, %v2940
      %v2942 = vrot.slane %v2845, 1
      %v2943 = vsel %vm1061, %v2940, %v2942
      %v2944 = vrot.slane %v2846, 1
      %v2945 = vrot.slane %v2847, 1
      %v2946 = vsel %vm1061, %v2944, %v2945
      %v2947 = vrot.slane %v2848, 1
      %v2948 = vsel %vm1061, %v2945, %v2947
      %v2949 = vrot.slane %v2849, 1
      %v2950 = vrot.slane %v2850, 1
      %v2951 = vsel %vm1061, %v2949, %v2950
      %v2952 = vrot.slane %v2851, 1
      %v2953 = vsel %vm1061, %v2950, %v2952
      %v2954 = vrot.slane %v2852, 1
      %v2955 = vrot.slane %v2853, 1
      %v2956 = vsel %vm1061, %v2954, %v2955
      %v2957 = vrot.slane %v2854, 1
      %v2958 = vsel %vm1061, %v2955, %v2957
      %v2959 = vrot.slane %v2855, 1
      %v2960 = vrot.slane %v2856, 1
      %v2961 = vsel %vm1061, %v2959, %v2960
      %v2962 = vrot.slane %v2857, 1
      %v2963 = vsel %vm1061, %v2960, %v2962
      %v2964 = vrot.slane %v2858, 1
      %v2965 = vrot.slane %v2859, 1
      %v2966 = vsel %vm1061, %v2964, %v2965
      %v2967 = vrot.slane %v2860, 1
      %v2968 = vsel %vm1061, %v2965, %v2967
      %v2969 = vrot.slane %v2861, 1
      %v2970 = vrot.slane %v2862, 1
      %v2971 = vsel %vm1061, %v2969, %v2970
      %v2972 = vrot.slane %v2863, 1
      %v2973 = vsel %vm1061, %v2970, %v2972
      %v2974 = vrot.slane %v2864, 1
      %v2975 = vrot.slane %v2865, 1
      %v2976 = vsel %vm1061, %v2974, %v2975
      %v2977 = vrot.slane %v2866, 1
      %v2978 = vsel %vm1061, %v2975, %v2977
      %v2979 = vrot.slane %v2867, 1
      %v2980 = vrot.slane %v2868, 1
      %v2981 = vsel %vm1061, %v2979, %v2980
      %v2982 = vrot.slane %v2869, 1
      %v2983 = vsel %vm1061, %v2980, %v2982
      %v2984 = vrot.slane %v2870, 1
      %v2985 = vrot.slane %v2871, 1
      %v2986 = vsel %vm1061, %v2984, %v2985
      %v2987 = vrot.slane %v2872, 1
      %v2988 = vsel %vm1061, %v2985, %v2987
      %v2989 = vrot.slane %v2873, 1
      %v2990 = vrot.slane %v2874, 1
      %v2991 = vsel %vm1061, %v2989, %v2990
      %v2992 = vrot.slane %v2875, 1
      %v2993 = vsel %vm1061, %v2990, %v2992
      %v2994 = vrot.slane %v2876, 1
      %v2995 = vrot.slane %v2877, 1
      %v2996 = vsel %vm1061, %v2994, %v2995
      %v2997 = vrot.slane %v2878, 1
      %v2998 = vsel %vm1061, %v2995, %v2997
      %v2999 = vrot.slane %v2879, 1
      %v3000 = vrot.slane %v2880, 1
      %v3001 = vsel %vm1061, %v2999, %v3000
      %v3002 = vrot.slane %v2881, 1
      %v3003 = vsel %vm1061, %v3000, %v3002
      %v3004 = vrot.slane %v2882, 1
      %v3005 = vrot.slane %v2883, 1
      %v3006 = vsel %vm1061, %v3004, %v3005
      %v3007 = vrot.slane %v2884, 1
      %v3008 = vsel %vm1061, %v3005, %v3007
      %v3009 = vrot.slane %v2885, 1
      %v3010 = vrot.slane %v2886, 1
      %v3011 = vsel %vm1061, %v3009, %v3010
      %v3012 = vrot.slane %v2887, 1
      %v3013 = vsel %vm1061, %v3010, %v3012
      %v3014 = vrot.slane %v2888, 1
      %v3015 = vrot.slane %v2889, 1
      %v3016 = vsel %vm1061, %v3014, %v3015
      %v3017 = vrot.slane %v2890, 1
      %v3018 = vsel %vm1061, %v3015, %v3017
      %v3051 = vadd.f32 %v2806, %v2941
      %v3052 = vadd.f32 %v2807, %v2943
      %v3053 = vadd.f32 %v2808, %v2946
      %v3054 = vadd.f32 %v2809, %v2948
      %v3055 = vadd.f32 %v2810, %v2951
      %v3056 = vadd.f32 %v2811, %v2953
      %v3057 = vadd.f32 %v2812, %v2956
      %v3058 = vadd.f32 %v2813, %v2958
      %v3059 = vadd.f32 %v2814, %v2961
      %v3060 = vadd.f32 %v2815, %v2963
      %v3061 = vadd.f32 %v2816, %v2966
      %v3062 = vadd.f32 %v2817, %v2968
      %v3063 = vadd.f32 %v2818, %v2971
      %v3064 = vadd.f32 %v2819, %v2973
      %v3065 = vadd.f32 %v2820, %v2976
      %v3066 = vadd.f32 %v2821, %v2978
      %v3067 = vadd.f32 %v2822, %v2981
      %v3068 = vadd.f32 %v2823, %v2983
      %v3069 = vadd.f32 %v2824, %v2986
      %v3070 = vadd.f32 %v2825, %v2988
      %v3071 = vadd.f32 %v2826, %v2991
      %v3072 = vadd.f32 %v2827, %v2993
      %v3073 = vadd.f32 %v2828, %v2996
      %v3074 = vadd.f32 %v2829, %v2998
      %v3075 = vadd.f32 %v2830, %v3001
      %v3076 = vadd.f32 %v2831, %v3003
      %v3077 = vadd.f32 %v2832, %v3006
      %v3078 = vadd.f32 %v2833, %v3008
      %v3079 = vadd.f32 %v2834, %v3011
      %v3080 = vadd.f32 %v2835, %v3013
      %v3081 = vadd.f32 %v2836, %v3016
      %v3082 = vadd.f32 %v2837, %v3018
      %v3083 = vld [vmem:[%s5 + $0x2] sm:$0x1]
      %v3084 = vlaneseq
      %v3085 = vshrl.u32 %v3084, 7
      %v3086 = vsub.s32 0, %v3085
      %v3087 = vrot.slane %v3083, %v3086
      %v3088 = vmul.f32 %v857, %v3087
      %v3089 = vmul.f32 %v758, %v3087
      %v3090 = vmul.f32 %v874, %v3087
      %v3091 = vmul.f32 %v2737, %v3087
      %v3092 = vmul.f32 %v2643, %v3087
      %v3093 = vmul.f32 %v2753, %v3087
      %v3094 = vmul.f32 %v2738, %v3087
      %v3095 = vmul.f32 %v2646, %v3087
      %v3096 = vmul.f32 %v2754, %v3087
      %v3097 = vmul.f32 %v2739, %v3087
      %v3098 = vmul.f32 %v2649, %v3087
      %v3099 = vmul.f32 %v2755, %v3087
      %v3100 = vmul.f32 %v2740, %v3087
      %v3101 = vmul.f32 %v2652, %v3087
      %v3102 = vmul.f32 %v2756, %v3087
      %v3103 = vmul.f32 %v2741, %v3087
      %v3104 = vmul.f32 %v2655, %v3087
      %v3105 = vmul.f32 %v2757, %v3087
      %v3106 = vmul.f32 %v2742, %v3087
      %v3107 = vmul.f32 %v2658, %v3087
      %v3108 = vmul.f32 %v2758, %v3087
      %v3109 = vmul.f32 %v2743, %v3087
      %v3110 = vmul.f32 %v2661, %v3087
      %v3111 = vmul.f32 %v2759, %v3087
      %v3112 = vmul.f32 %v2744, %v3087
      %v3113 = vmul.f32 %v2664, %v3087
      %v3114 = vmul.f32 %v2760, %v3087
      %v3115 = vmul.f32 %v2745, %v3087
      %v3116 = vmul.f32 %v2667, %v3087
      %v3117 = vmul.f32 %v2761, %v3087
      %v3118 = vmul.f32 %v2746, %v3087
      %v3119 = vmul.f32 %v2670, %v3087
      %v3120 = vmul.f32 %v2762, %v3087
      %v3121 = vmul.f32 %v2747, %v3087
      %v3122 = vmul.f32 %v2673, %v3087
      %v3123 = vmul.f32 %v2763, %v3087
      %v3124 = vmul.f32 %v2748, %v3087
      %v3125 = vmul.f32 %v2676, %v3087
      %v3126 = vmul.f32 %v2764, %v3087
      %v3127 = vmul.f32 %v2749, %v3087
      %v3128 = vmul.f32 %v2679, %v3087
      %v3129 = vmul.f32 %v2765, %v3087
      %v3130 = vmul.f32 %v2750, %v3087
      %v3131 = vmul.f32 %v2682, %v3087
      %v3132 = vmul.f32 %v2766, %v3087
      %v3133 = vmul.f32 %v2751, %v3087
      %v3134 = vmul.f32 %v2685, %v3087
      %v3135 = vmul.f32 %v2767, %v3087
      %v3184 = vrot.slane %v3088, 2
      %v3185 = vrot.slane %v3089, 2
      %v3186 = vsel %vm1307, %v3184, %v3185
      %v3187 = vrot.slane %v3090, 2
      %v3188 = vsel %vm1307, %v3185, %v3187
      %v3189 = vrot.slane %v3091, 2
      %v3190 = vrot.slane %v3092, 2
      %v3191 = vsel %vm1307, %v3189, %v3190
      %v3192 = vrot.slane %v3093, 2
      %v3193 = vsel %vm1307, %v3190, %v3192
      %v3194 = vrot.slane %v3094, 2
      %v3195 = vrot.slane %v3095, 2
      %v3196 = vsel %vm1307, %v3194, %v3195
      %v3197 = vrot.slane %v3096, 2
      %v3198 = vsel %vm1307, %v3195, %v3197
      %v3199 = vrot.slane %v3097, 2
      %v3200 = vrot.slane %v3098, 2
      %v3201 = vsel %vm1307, %v3199, %v3200
      %v3202 = vrot.slane %v3099, 2
      %v3203 = vsel %vm1307, %v3200, %v3202
      %v3204 = vrot.slane %v3100, 2
      %v3205 = vrot.slane %v3101, 2
      %v3206 = vsel %vm1307, %v3204, %v3205
      %v3207 = vrot.slane %v3102, 2
      %v3208 = vsel %vm1307, %v3205, %v3207
      %v3209 = vrot.slane %v3103, 2
      %v3210 = vrot.slane %v3104, 2
      %v3211 = vsel %vm1307, %v3209, %v3210
      %v3212 = vrot.slane %v3105, 2
      %v3213 = vsel %vm1307, %v3210, %v3212
      %v3214 = vrot.slane %v3106, 2
      %v3215 = vrot.slane %v3107, 2
      %v3216 = vsel %vm1307, %v3214, %v3215
      %v3217 = vrot.slane %v3108, 2
      %v3218 = vsel %vm1307, %v3215, %v3217
      %v3219 = vrot.slane %v3109, 2
      %v3220 = vrot.slane %v3110, 2
      %v3221 = vsel %vm1307, %v3219, %v3220
      %v3222 = vrot.slane %v3111, 2
      %v3223 = vsel %vm1307, %v3220, %v3222
      %v3224 = vrot.slane %v3112, 2
      %v3225 = vrot.slane %v3113, 2
      %v3226 = vsel %vm1307, %v3224, %v3225
      %v3227 = vrot.slane %v3114, 2
      %v3228 = vsel %vm1307, %v3225, %v3227
      %v3229 = vrot.slane %v3115, 2
      %v3230 = vrot.slane %v3116, 2
      %v3231 = vsel %vm1307, %v3229, %v3230
      %v3232 = vrot.slane %v3117, 2
      %v3233 = vsel %vm1307, %v3230, %v3232
      %v3234 = vrot.slane %v3118, 2
      %v3235 = vrot.slane %v3119, 2
      %v3236 = vsel %vm1307, %v3234, %v3235
      %v3237 = vrot.slane %v3120, 2
      %v3238 = vsel %vm1307, %v3235, %v3237
      %v3239 = vrot.slane %v3121, 2
      %v3240 = vrot.slane %v3122, 2
      %v3241 = vsel %vm1307, %v3239, %v3240
      %v3242 = vrot.slane %v3123, 2
      %v3243 = vsel %vm1307, %v3240, %v3242
      %v3244 = vrot.slane %v3124, 2
      %v3245 = vrot.slane %v3125, 2
      %v3246 = vsel %vm1307, %v3244, %v3245
      %v3247 = vrot.slane %v3126, 2
      %v3248 = vsel %vm1307, %v3245, %v3247
      %v3249 = vrot.slane %v3127, 2
      %v3250 = vrot.slane %v3128, 2
      %v3251 = vsel %vm1307, %v3249, %v3250
      %v3252 = vrot.slane %v3129, 2
      %v3253 = vsel %vm1307, %v3250, %v3252
      %v3254 = vrot.slane %v3130, 2
      %v3255 = vrot.slane %v3131, 2
      %v3256 = vsel %vm1307, %v3254, %v3255
      %v3257 = vrot.slane %v3132, 2
      %v3258 = vsel %vm1307, %v3255, %v3257
      %v3259 = vrot.slane %v3133, 2
      %v3260 = vrot.slane %v3134, 2
      %v3261 = vsel %vm1307, %v3259, %v3260
      %v3262 = vrot.slane %v3135, 2
      %v3263 = vsel %vm1307, %v3260, %v3262
      %v3296 = vadd.f32 %v3051, %v3186
      %v3297 = vadd.f32 %v3052, %v3188
      %v3298 = vadd.f32 %v3053, %v3191
      %v3299 = vadd.f32 %v3054, %v3193
      %v3300 = vadd.f32 %v3055, %v3196
      %v3301 = vadd.f32 %v3056, %v3198
      %v3302 = vadd.f32 %v3057, %v3201
      %v3303 = vadd.f32 %v3058, %v3203
      %v3304 = vadd.f32 %v3059, %v3206
      %v3305 = vadd.f32 %v3060, %v3208
      %v3306 = vadd.f32 %v3061, %v3211
      %v3307 = vadd.f32 %v3062, %v3213
      %v3308 = vadd.f32 %v3063, %v3216
      %v3309 = vadd.f32 %v3064, %v3218
      %v3310 = vadd.f32 %v3065, %v3221
      %v3311 = vadd.f32 %v3066, %v3223
      %v3312 = vadd.f32 %v3067, %v3226
      %v3313 = vadd.f32 %v3068, %v3228
      %v3314 = vadd.f32 %v3069, %v3231
      %v3315 = vadd.f32 %v3070, %v3233
      %v3316 = vadd.f32 %v3071, %v3236
      %v3317 = vadd.f32 %v3072, %v3238
      %v3318 = vadd.f32 %v3073, %v3241
      %v3319 = vadd.f32 %v3074, %v3243
      %v3320 = vadd.f32 %v3075, %v3246
      %v3321 = vadd.f32 %v3076, %v3248
      %v3322 = vadd.f32 %v3077, %v3251
      %v3323 = vadd.f32 %v3078, %v3253
      %v3324 = vadd.f32 %v3079, %v3256
      %v3325 = vadd.f32 %v3080, %v3258
      %v3326 = vadd.f32 %v3081, %v3261
      %v3327 = vadd.f32 %v3082, %v3263
      %v3328 = vld [vmem:[%s5 + $0x3] sm:$0x1]
      %v3329 = vlaneseq
      %v3330 = vshrl.u32 %v3329, 7
      %v3331 = vsub.s32 0, %v3330
      %v3332 = vrot.slane %v3328, %v3331
      %v3333 = vmul.f32 %v2737, %v3332
      %v3334 = vmul.f32 %v2643, %v3332
      %v3335 = vmul.f32 %v2738, %v3332
      %v3336 = vmul.f32 %v2646, %v3332
      %v3337 = vmul.f32 %v2739, %v3332
      %v3338 = vmul.f32 %v2649, %v3332
      %v3339 = vmul.f32 %v2740, %v3332
      %v3340 = vmul.f32 %v2652, %v3332
      %v3341 = vmul.f32 %v2741, %v3332
      %v3342 = vmul.f32 %v2655, %v3332
      %v3343 = vmul.f32 %v2742, %v3332
      %v3344 = vmul.f32 %v2658, %v3332
      %v3345 = vmul.f32 %v2743, %v3332
      %v3346 = vmul.f32 %v2661, %v3332
      %v3347 = vmul.f32 %v2744, %v3332
      %v3348 = vmul.f32 %v2664, %v3332
      %v3349 = vmul.f32 %v2745, %v3332
      %v3350 = vmul.f32 %v2667, %v3332
      %v3351 = vmul.f32 %v2746, %v3332
      %v3352 = vmul.f32 %v2670, %v3332
      %v3353 = vmul.f32 %v2747, %v3332
      %v3354 = vmul.f32 %v2673, %v3332
      %v3355 = vmul.f32 %v2748, %v3332
      %v3356 = vmul.f32 %v2676, %v3332
      %v3357 = vmul.f32 %v2749, %v3332
      %v3358 = vmul.f32 %v2679, %v3332
      %v3359 = vmul.f32 %v2750, %v3332
      %v3360 = vmul.f32 %v2682, %v3332
      %v3361 = vmul.f32 %v2751, %v3332
      %v3362 = vmul.f32 %v2685, %v3332
      %v3363 = vmul.f32 %v2752, %v3332
      %v3364 = vmul.f32 %v2688, %v3332
      %v3365 = vadd.f32 %v3296, %v3333
      %v3366 = vadd.f32 %v3297, %v3334
      %v3367 = vadd.f32 %v3298, %v3335
      %v3368 = vadd.f32 %v3299, %v3336
      %v3369 = vadd.f32 %v3300, %v3337
      %v3370 = vadd.f32 %v3301, %v3338
      %v3371 = vadd.f32 %v3302, %v3339
      %v3372 = vadd.f32 %v3303, %v3340
      %v3373 = vadd.f32 %v3304, %v3341
      %v3374 = vadd.f32 %v3305, %v3342
      %v3375 = vadd.f32 %v3306, %v3343
      %v3376 = vadd.f32 %v3307, %v3344
      %v3377 = vadd.f32 %v3308, %v3345
      %v3378 = vadd.f32 %v3309, %v3346
      %v3379 = vadd.f32 %v3310, %v3347
      %v3380 = vadd.f32 %v3311, %v3348
      %v3381 = vadd.f32 %v3312, %v3349
      %v3382 = vadd.f32 %v3313, %v3350
      %v3383 = vadd.f32 %v3314, %v3351
      %v3384 = vadd.f32 %v3315, %v3352
      %v3385 = vadd.f32 %v3316, %v3353
      %v3386 = vadd.f32 %v3317, %v3354
      %v3387 = vadd.f32 %v3318, %v3355
      %v3388 = vadd.f32 %v3319, %v3356
      %v3389 = vadd.f32 %v3320, %v3357
      %v3390 = vadd.f32 %v3321, %v3358
      %v3391 = vadd.f32 %v3322, %v3359
      %v3392 = vadd.f32 %v3323, %v3360
      %v3393 = vadd.f32 %v3324, %v3361
      %v3394 = vadd.f32 %v3325, %v3362
      %v3395 = vadd.f32 %v3326, %v3363
      %v3396 = vadd.f32 %v3327, %v3364
      %v3397 = vld [vmem:[%s5 + $0x4] sm:$0x1]
      %v3398 = vlaneseq
      %v3399 = vshrl.u32 %v3398, 7
      %v3400 = vsub.s32 0, %v3399
      %v3401 = vrot.slane %v3397, %v3400
      %v3402 = vmul.f32 %v2737, %v3401
      %v3403 = vmul.f32 %v2643, %v3401
      %v3404 = vmul.f32 %v2753, %v3401
      %v3405 = vmul.f32 %v2738, %v3401
      %v3406 = vmul.f32 %v2646, %v3401
      %v3407 = vmul.f32 %v2754, %v3401
      %v3408 = vmul.f32 %v2739, %v3401
      %v3409 = vmul.f32 %v2649, %v3401
      %v3410 = vmul.f32 %v2755, %v3401
      %v3411 = vmul.f32 %v2740, %v3401
      %v3412 = vmul.f32 %v2652, %v3401
      %v3413 = vmul.f32 %v2756, %v3401
      %v3414 = vmul.f32 %v2741, %v3401
      %v3415 = vmul.f32 %v2655, %v3401
      %v3416 = vmul.f32 %v2757, %v3401
      %v3417 = vmul.f32 %v2742, %v3401
      %v3418 = vmul.f32 %v2658, %v3401
      %v3419 = vmul.f32 %v2758, %v3401
      %v3420 = vmul.f32 %v2743, %v3401
      %v3421 = vmul.f32 %v2661, %v3401
      %v3422 = vmul.f32 %v2759, %v3401
      %v3423 = vmul.f32 %v2744, %v3401
      %v3424 = vmul.f32 %v2664, %v3401
      %v3425 = vmul.f32 %v2760, %v3401
      %v3426 = vmul.f32 %v2745, %v3401
      %v3427 = vmul.f32 %v2667, %v3401
      %v3428 = vmul.f32 %v2761, %v3401
      %v3429 = vmul.f32 %v2746, %v3401
      %v3430 = vmul.f32 %v2670, %v3401
      %v3431 = vmul.f32 %v2762, %v3401
      %v3432 = vmul.f32 %v2747, %v3401
      %v3433 = vmul.f32 %v2673, %v3401
      %v3434 = vmul.f32 %v2763, %v3401
      %v3435 = vmul.f32 %v2748, %v3401
      %v3436 = vmul.f32 %v2676, %v3401
      %v3437 = vmul.f32 %v2764, %v3401
      %v3438 = vmul.f32 %v2749, %v3401
      %v3439 = vmul.f32 %v2679, %v3401
      %v3440 = vmul.f32 %v2765, %v3401
      %v3441 = vmul.f32 %v2750, %v3401
      %v3442 = vmul.f32 %v2682, %v3401
      %v3443 = vmul.f32 %v2766, %v3401
      %v3444 = vmul.f32 %v2751, %v3401
      %v3445 = vmul.f32 %v2685, %v3401
      %v3446 = vmul.f32 %v2767, %v3401
      %v3447 = vmul.f32 %v2752, %v3401
      %v3448 = vmul.f32 %v2688, %v3401
      %v3449 = vmul.f32 %v2768, %v3401
      %v3498 = vrot.slane %v3402, 1
      %v3499 = vrot.slane %v3403, 1
      %v3500 = vsel %vm1061, %v3498, %v3499
      %v3501 = vrot.slane %v3404, 1
      %v3502 = vsel %vm1061, %v3499, %v3501
      %v3503 = vrot.slane %v3405, 1
      %v3504 = vrot.slane %v3406, 1
      %v3505 = vsel %vm1061, %v3503, %v3504
      %v3506 = vrot.slane %v3407, 1
      %v3507 = vsel %vm1061, %v3504, %v3506
      %v3508 = vrot.slane %v3408, 1
      %v3509 = vrot.slane %v3409, 1
      %v3510 = vsel %vm1061, %v3508, %v3509
      %v3511 = vrot.slane %v3410, 1
      %v3512 = vsel %vm1061, %v3509, %v3511
      %v3513 = vrot.slane %v3411, 1
      %v3514 = vrot.slane %v3412, 1
      %v3515 = vsel %vm1061, %v3513, %v3514
      %v3516 = vrot.slane %v3413, 1
      %v3517 = vsel %vm1061, %v3514, %v3516
      %v3518 = vrot.slane %v3414, 1
      %v3519 = vrot.slane %v3415, 1
      %v3520 = vsel %vm1061, %v3518, %v3519
      %v3521 = vrot.slane %v3416, 1
      %v3522 = vsel %vm1061, %v3519, %v3521
      %v3523 = vrot.slane %v3417, 1
      %v3524 = vrot.slane %v3418, 1
      %v3525 = vsel %vm1061, %v3523, %v3524
      %v3526 = vrot.slane %v3419, 1
      %v3527 = vsel %vm1061, %v3524, %v3526
      %v3528 = vrot.slane %v3420, 1
      %v3529 = vrot.slane %v3421, 1
      %v3530 = vsel %vm1061, %v3528, %v3529
      %v3531 = vrot.slane %v3422, 1
      %v3532 = vsel %vm1061, %v3529, %v3531
      %v3533 = vrot.slane %v3423, 1
      %v3534 = vrot.slane %v3424, 1
      %v3535 = vsel %vm1061, %v3533, %v3534
      %v3536 = vrot.slane %v3425, 1
      %v3537 = vsel %vm1061, %v3534, %v3536
      %v3538 = vrot.slane %v3426, 1
      %v3539 = vrot.slane %v3427, 1
      %v3540 = vsel %vm1061, %v3538, %v3539
      %v3541 = vrot.slane %v3428, 1
      %v3542 = vsel %vm1061, %v3539, %v3541
      %v3543 = vrot.slane %v3429, 1
      %v3544 = vrot.slane %v3430, 1
      %v3545 = vsel %vm1061, %v3543, %v3544
      %v3546 = vrot.slane %v3431, 1
      %v3547 = vsel %vm1061, %v3544, %v3546
      %v3548 = vrot.slane %v3432, 1
      %v3549 = vrot.slane %v3433, 1
      %v3550 = vsel %vm1061, %v3548, %v3549
      %v3551 = vrot.slane %v3434, 1
      %v3552 = vsel %vm1061, %v3549, %v3551
      %v3553 = vrot.slane %v3435, 1
      %v3554 = vrot.slane %v3436, 1
      %v3555 = vsel %vm1061, %v3553, %v3554
      %v3556 = vrot.slane %v3437, 1
      %v3557 = vsel %vm1061, %v3554, %v3556
      %v3558 = vrot.slane %v3438, 1
      %v3559 = vrot.slane %v3439, 1
      %v3560 = vsel %vm1061, %v3558, %v3559
      %v3561 = vrot.slane %v3440, 1
      %v3562 = vsel %vm1061, %v3559, %v3561
      %v3563 = vrot.slane %v3441, 1
      %v3564 = vrot.slane %v3442, 1
      %v3565 = vsel %vm1061, %v3563, %v3564
      %v3566 = vrot.slane %v3443, 1
      %v3567 = vsel %vm1061, %v3564, %v3566
      %v3568 = vrot.slane %v3444, 1
      %v3569 = vrot.slane %v3445, 1
      %v3570 = vsel %vm1061, %v3568, %v3569
      %v3571 = vrot.slane %v3446, 1
      %v3572 = vsel %vm1061, %v3569, %v3571
      %v3573 = vrot.slane %v3447, 1
      %v3574 = vrot.slane %v3448, 1
      %v3575 = vsel %vm1061, %v3573, %v3574
      %v3576 = vrot.slane %v3449, 1
      %v3577 = vsel %vm1061, %v3574, %v3576
      %v3610 = vadd.f32 %v3365, %v3500
      %v3611 = vadd.f32 %v3366, %v3502
      %v3612 = vadd.f32 %v3367, %v3505
      %v3613 = vadd.f32 %v3368, %v3507
      %v3614 = vadd.f32 %v3369, %v3510
      %v3615 = vadd.f32 %v3370, %v3512
      %v3616 = vadd.f32 %v3371, %v3515
      %v3617 = vadd.f32 %v3372, %v3517
      %v3618 = vadd.f32 %v3373, %v3520
      %v3619 = vadd.f32 %v3374, %v3522
      %v3620 = vadd.f32 %v3375, %v3525
      %v3621 = vadd.f32 %v3376, %v3527
      %v3622 = vadd.f32 %v3377, %v3530
      %v3623 = vadd.f32 %v3378, %v3532
      %v3624 = vadd.f32 %v3379, %v3535
      %v3625 = vadd.f32 %v3380, %v3537
      %v3626 = vadd.f32 %v3381, %v3540
      %v3627 = vadd.f32 %v3382, %v3542
      %v3628 = vadd.f32 %v3383, %v3545
      %v3629 = vadd.f32 %v3384, %v3547
      %v3630 = vadd.f32 %v3385, %v3550
      %v3631 = vadd.f32 %v3386, %v3552
      %v3632 = vadd.f32 %v3387, %v3555
      %v3633 = vadd.f32 %v3388, %v3557
      %v3634 = vadd.f32 %v3389, %v3560
      %v3635 = vadd.f32 %v3390, %v3562
      %v3636 = vadd.f32 %v3391, %v3565
      %v3637 = vadd.f32 %v3392, %v3567
      %v3638 = vadd.f32 %v3393, %v3570
      %v3639 = vadd.f32 %v3394, %v3572
      %v3640 = vadd.f32 %v3395, %v3575
      %v3641 = vadd.f32 %v3396, %v3577
      %v3642 = vld [vmem:[%s5 + $0x5] sm:$0x1]
      %v3643 = vlaneseq
      %v3644 = vshrl.u32 %v3643, 7
      %v3645 = vsub.s32 0, %v3644
      %v3646 = vrot.slane %v3642, %v3645
      %v3647 = vmul.f32 %v2737, %v3646
      %v3648 = vmul.f32 %v2643, %v3646
      %v3649 = vmul.f32 %v2753, %v3646
      %v3650 = vmul.f32 %v2738, %v3646
      %v3651 = vmul.f32 %v2646, %v3646
      %v3652 = vmul.f32 %v2754, %v3646
      %v3653 = vmul.f32 %v2739, %v3646
      %v3654 = vmul.f32 %v2649, %v3646
      %v3655 = vmul.f32 %v2755, %v3646
      %v3656 = vmul.f32 %v2740, %v3646
      %v3657 = vmul.f32 %v2652, %v3646
      %v3658 = vmul.f32 %v2756, %v3646
      %v3659 = vmul.f32 %v2741, %v3646
      %v3660 = vmul.f32 %v2655, %v3646
      %v3661 = vmul.f32 %v2757, %v3646
      %v3662 = vmul.f32 %v2742, %v3646
      %v3663 = vmul.f32 %v2658, %v3646
      %v3664 = vmul.f32 %v2758, %v3646
      %v3665 = vmul.f32 %v2743, %v3646
      %v3666 = vmul.f32 %v2661, %v3646
      %v3667 = vmul.f32 %v2759, %v3646
      %v3668 = vmul.f32 %v2744, %v3646
      %v3669 = vmul.f32 %v2664, %v3646
      %v3670 = vmul.f32 %v2760, %v3646
      %v3671 = vmul.f32 %v2745, %v3646
      %v3672 = vmul.f32 %v2667, %v3646
      %v3673 = vmul.f32 %v2761, %v3646
      %v3674 = vmul.f32 %v2746, %v3646
      %v3675 = vmul.f32 %v2670, %v3646
      %v3676 = vmul.f32 %v2762, %v3646
      %v3677 = vmul.f32 %v2747, %v3646
      %v3678 = vmul.f32 %v2673, %v3646
      %v3679 = vmul.f32 %v2763, %v3646
      %v3680 = vmul.f32 %v2748, %v3646
      %v3681 = vmul.f32 %v2676, %v3646
      %v3682 = vmul.f32 %v2764, %v3646
      %v3683 = vmul.f32 %v2749, %v3646
      %v3684 = vmul.f32 %v2679, %v3646
      %v3685 = vmul.f32 %v2765, %v3646
      %v3686 = vmul.f32 %v2750, %v3646
      %v3687 = vmul.f32 %v2682, %v3646
      %v3688 = vmul.f32 %v2766, %v3646
      %v3689 = vmul.f32 %v2751, %v3646
      %v3690 = vmul.f32 %v2685, %v3646
      %v3691 = vmul.f32 %v2767, %v3646
      %v3692 = vmul.f32 %v2752, %v3646
      %v3693 = vmul.f32 %v2688, %v3646
      %v3694 = vmul.f32 %v2768, %v3646
      %v3743 = vrot.slane %v3647, 2
      %v3744 = vrot.slane %v3648, 2
      %v3745 = vsel %vm1307, %v3743, %v3744
      %v3746 = vrot.slane %v3649, 2
      %v3747 = vsel %vm1307, %v3744, %v3746
      %v3748 = vrot.slane %v3650, 2
      %v3749 = vrot.slane %v3651, 2
      %v3750 = vsel %vm1307, %v3748, %v3749
      %v3751 = vrot.slane %v3652, 2
      %v3752 = vsel %vm1307, %v3749, %v3751
      %v3753 = vrot.slane %v3653, 2
      %v3754 = vrot.slane %v3654, 2
      %v3755 = vsel %vm1307, %v3753, %v3754
      %v3756 = vrot.slane %v3655, 2
      %v3757 = vsel %vm1307, %v3754, %v3756
      %v3758 = vrot.slane %v3656, 2
      %v3759 = vrot.slane %v3657, 2
      %v3760 = vsel %vm1307, %v3758, %v3759
      %v3761 = vrot.slane %v3658, 2
      %v3762 = vsel %vm1307, %v3759, %v3761
      %v3763 = vrot.slane %v3659, 2
      %v3764 = vrot.slane %v3660, 2
      %v3765 = vsel %vm1307, %v3763, %v3764
      %v3766 = vrot.slane %v3661, 2
      %v3767 = vsel %vm1307, %v3764, %v3766
      %v3768 = vrot.slane %v3662, 2
      %v3769 = vrot.slane %v3663, 2
      %v3770 = vsel %vm1307, %v3768, %v3769
      %v3771 = vrot.slane %v3664, 2
      %v3772 = vsel %vm1307, %v3769, %v3771
      %v3773 = vrot.slane %v3665, 2
      %v3774 = vrot.slane %v3666, 2
      %v3775 = vsel %vm1307, %v3773, %v3774
      %v3776 = vrot.slane %v3667, 2
      %v3777 = vsel %vm1307, %v3774, %v3776
      %v3778 = vrot.slane %v3668, 2
      %v3779 = vrot.slane %v3669, 2
      %v3780 = vsel %vm1307, %v3778, %v3779
      %v3781 = vrot.slane %v3670, 2
      %v3782 = vsel %vm1307, %v3779, %v3781
      %v3783 = vrot.slane %v3671, 2
      %v3784 = vrot.slane %v3672, 2
      %v3785 = vsel %vm1307, %v3783, %v3784
      %v3786 = vrot.slane %v3673, 2
      %v3787 = vsel %vm1307, %v3784, %v3786
      %v3788 = vrot.slane %v3674, 2
      %v3789 = vrot.slane %v3675, 2
      %v3790 = vsel %vm1307, %v3788, %v3789
      %v3791 = vrot.slane %v3676, 2
      %v3792 = vsel %vm1307, %v3789, %v3791
      %v3793 = vrot.slane %v3677, 2
      %v3794 = vrot.slane %v3678, 2
      %v3795 = vsel %vm1307, %v3793, %v3794
      %v3796 = vrot.slane %v3679, 2
      %v3797 = vsel %vm1307, %v3794, %v3796
      %v3798 = vrot.slane %v3680, 2
      %v3799 = vrot.slane %v3681, 2
      %v3800 = vsel %vm1307, %v3798, %v3799
      %v3801 = vrot.slane %v3682, 2
      %v3802 = vsel %vm1307, %v3799, %v3801
      %v3803 = vrot.slane %v3683, 2
      %v3804 = vrot.slane %v3684, 2
      %v3805 = vsel %vm1307, %v3803, %v3804
      %v3806 = vrot.slane %v3685, 2
      %v3807 = vsel %vm1307, %v3804, %v3806
      %v3808 = vrot.slane %v3686, 2
      %v3809 = vrot.slane %v3687, 2
      %v3810 = vsel %vm1307, %v3808, %v3809
      %v3811 = vrot.slane %v3688, 2
      %v3812 = vsel %vm1307, %v3809, %v3811
      %v3813 = vrot.slane %v3689, 2
      %v3814 = vrot.slane %v3690, 2
      %v3815 = vsel %vm1307, %v3813, %v3814
      %v3816 = vrot.slane %v3691, 2
      %v3817 = vsel %vm1307, %v3814, %v3816
      %v3818 = vrot.slane %v3692, 2
      %v3819 = vrot.slane %v3693, 2
      %v3820 = vsel %vm1307, %v3818, %v3819
      %v3821 = vrot.slane %v3694, 2
      %v3822 = vsel %vm1307, %v3819, %v3821
      %v3855 = vadd.f32 %v3610, %v3745
      %v3856 = vadd.f32 %v3611, %v3747
      %v3857 = vadd.f32 %v3612, %v3750
      %v3858 = vadd.f32 %v3613, %v3752
      %v3859 = vadd.f32 %v3614, %v3755
      %v3860 = vadd.f32 %v3615, %v3757
      %v3861 = vadd.f32 %v3616, %v3760
      %v3862 = vadd.f32 %v3617, %v3762
      %v3863 = vadd.f32 %v3618, %v3765
      %v3864 = vadd.f32 %v3619, %v3767
      %v3865 = vadd.f32 %v3620, %v3770
      %v3866 = vadd.f32 %v3621, %v3772
      %v3867 = vadd.f32 %v3622, %v3775
      %v3868 = vadd.f32 %v3623, %v3777
      %v3869 = vadd.f32 %v3624, %v3780
      %v3870 = vadd.f32 %v3625, %v3782
      %v3871 = vadd.f32 %v3626, %v3785
      %v3872 = vadd.f32 %v3627, %v3787
      %v3873 = vadd.f32 %v3628, %v3790
      %v3874 = vadd.f32 %v3629, %v3792
      %v3875 = vadd.f32 %v3630, %v3795
      %v3876 = vadd.f32 %v3631, %v3797
      %v3877 = vadd.f32 %v3632, %v3800
      %v3878 = vadd.f32 %v3633, %v3802
      %v3879 = vadd.f32 %v3634, %v3805
      %v3880 = vadd.f32 %v3635, %v3807
      %v3881 = vadd.f32 %v3636, %v3810
      %v3882 = vadd.f32 %v3637, %v3812
      %v3883 = vadd.f32 %v3638, %v3815
      %v3884 = vadd.f32 %v3639, %v3817
      %v3885 = vadd.f32 %v3640, %v3820
      %v3886 = vadd.f32 %v3641, %v3822
      %v3887 = vld [vmem:[%s5 + $0x6] sm:$0x1]
      %v3888 = vlaneseq
      %v3889 = vshrl.u32 %v3888, 7
      %v3890 = vsub.s32 0, %v3889
      %v3891 = vrot.slane %v3887, %v3890
      %v3892 = vmul.f32 %v2738, %v3891
      %v3893 = vmul.f32 %v2646, %v3891
      %v3894 = vmul.f32 %v2739, %v3891
      %v3895 = vmul.f32 %v2649, %v3891
      %v3896 = vmul.f32 %v2740, %v3891
      %v3897 = vmul.f32 %v2652, %v3891
      %v3898 = vmul.f32 %v2741, %v3891
      %v3899 = vmul.f32 %v2655, %v3891
      %v3900 = vmul.f32 %v2742, %v3891
      %v3901 = vmul.f32 %v2658, %v3891
      %v3902 = vmul.f32 %v2743, %v3891
      %v3903 = vmul.f32 %v2661, %v3891
      %v3904 = vmul.f32 %v2744, %v3891
      %v3905 = vmul.f32 %v2664, %v3891
      %v3906 = vmul.f32 %v2745, %v3891
      %v3907 = vmul.f32 %v2667, %v3891
      %v3908 = vmul.f32 %v2746, %v3891
      %v3909 = vmul.f32 %v2670, %v3891
      %v3910 = vmul.f32 %v2747, %v3891
      %v3911 = vmul.f32 %v2673, %v3891
      %v3912 = vmul.f32 %v2748, %v3891
      %v3913 = vmul.f32 %v2676, %v3891
      %v3914 = vmul.f32 %v2749, %v3891
      %v3915 = vmul.f32 %v2679, %v3891
      %v3916 = vmul.f32 %v2750, %v3891
      %v3917 = vmul.f32 %v2682, %v3891
      %v3918 = vmul.f32 %v2751, %v3891
      %v3919 = vmul.f32 %v2685, %v3891
      %v3920 = vmul.f32 %v2752, %v3891
      %v3921 = vmul.f32 %v2688, %v3891
      %v3922 = vmul.f32 %v857, %v3891
      %v3923 = vmul.f32 %v758, %v3891
      %v3924 = vadd.f32 %v3855, %v3892
      %v3925 = vadd.f32 %v3856, %v3893
      %v3926 = vadd.f32 %v3857, %v3894
      %v3927 = vadd.f32 %v3858, %v3895
      %v3928 = vadd.f32 %v3859, %v3896
      %v3929 = vadd.f32 %v3860, %v3897
      %v3930 = vadd.f32 %v3861, %v3898
      %v3931 = vadd.f32 %v3862, %v3899
      %v3932 = vadd.f32 %v3863, %v3900
      %v3933 = vadd.f32 %v3864, %v3901
      %v3934 = vadd.f32 %v3865, %v3902
      %v3935 = vadd.f32 %v3866, %v3903
      %v3936 = vadd.f32 %v3867, %v3904
      %v3937 = vadd.f32 %v3868, %v3905
      %v3938 = vadd.f32 %v3869, %v3906
      %v3939 = vadd.f32 %v3870, %v3907
      %v3940 = vadd.f32 %v3871, %v3908
      %v3941 = vadd.f32 %v3872, %v3909
      %v3942 = vadd.f32 %v3873, %v3910
      %v3943 = vadd.f32 %v3874, %v3911
      %v3944 = vadd.f32 %v3875, %v3912
      %v3945 = vadd.f32 %v3876, %v3913
      %v3946 = vadd.f32 %v3877, %v3914
      %v3947 = vadd.f32 %v3878, %v3915
      %v3948 = vadd.f32 %v3879, %v3916
      %v3949 = vadd.f32 %v3880, %v3917
      %v3950 = vadd.f32 %v3881, %v3918
      %v3951 = vadd.f32 %v3882, %v3919
      %v3952 = vadd.f32 %v3883, %v3920
      %v3953 = vadd.f32 %v3884, %v3921
      %v3954 = vadd.f32 %v3885, %v3922
      %v3955 = vadd.f32 %v3886, %v3923
      %v3956 = vld [vmem:[%s5 + $0x7] sm:$0x1]
      %v3957 = vlaneseq
      %v3958 = vshrl.u32 %v3957, 7
      %v3959 = vsub.s32 0, %v3958
      %v3960 = vrot.slane %v3956, %v3959
      %v3961 = vmul.f32 %v2738, %v3960
      %v3962 = vmul.f32 %v2646, %v3960
      %v3963 = vmul.f32 %v2754, %v3960
      %v3964 = vmul.f32 %v2739, %v3960
      %v3965 = vmul.f32 %v2649, %v3960
      %v3966 = vmul.f32 %v2755, %v3960
      %v3967 = vmul.f32 %v2740, %v3960
      %v3968 = vmul.f32 %v2652, %v3960
      %v3969 = vmul.f32 %v2756, %v3960
      %v3970 = vmul.f32 %v2741, %v3960
      %v3971 = vmul.f32 %v2655, %v3960
      %v3972 = vmul.f32 %v2757, %v3960
      %v3973 = vmul.f32 %v2742, %v3960
      %v3974 = vmul.f32 %v2658, %v3960
      %v3975 = vmul.f32 %v2758, %v3960
      %v3976 = vmul.f32 %v2743, %v3960
      %v3977 = vmul.f32 %v2661, %v3960
      %v3978 = vmul.f32 %v2759, %v3960
      %v3979 = vmul.f32 %v2744, %v3960
      %v3980 = vmul.f32 %v2664, %v3960
      %v3981 = vmul.f32 %v2760, %v3960
      %v3982 = vmul.f32 %v2745, %v3960
      %v3983 = vmul.f32 %v2667, %v3960
      %v3984 = vmul.f32 %v2761, %v3960
      %v3985 = vmul.f32 %v2746, %v3960
      %v3986 = vmul.f32 %v2670, %v3960
      %v3987 = vmul.f32 %v2762, %v3960
      %v3988 = vmul.f32 %v2747, %v3960
      %v3989 = vmul.f32 %v2673, %v3960
      %v3990 = vmul.f32 %v2763, %v3960
      %v3991 = vmul.f32 %v2748, %v3960
      %v3992 = vmul.f32 %v2676, %v3960
      %v3993 = vmul.f32 %v2764, %v3960
      %v3994 = vmul.f32 %v2749, %v3960
      %v3995 = vmul.f32 %v2679, %v3960
      %v3996 = vmul.f32 %v2765, %v3960
      %v3997 = vmul.f32 %v2750, %v3960
      %v3998 = vmul.f32 %v2682, %v3960
      %v3999 = vmul.f32 %v2766, %v3960
      %v4000 = vmul.f32 %v2751, %v3960
      %v4001 = vmul.f32 %v2685, %v3960
      %v4002 = vmul.f32 %v2767, %v3960
      %v4003 = vmul.f32 %v2752, %v3960
      %v4004 = vmul.f32 %v2688, %v3960
      %v4005 = vmul.f32 %v2768, %v3960
      %v4006 = vmul.f32 %v857, %v3960
      %v4007 = vmul.f32 %v758, %v3960
      %v4008 = vmul.f32 %v874, %v3960
      %v4057 = vrot.slane %v3961, 1
      %v4058 = vrot.slane %v3962, 1
      %v4059 = vsel %vm1061, %v4057, %v4058
      %v4060 = vrot.slane %v3963, 1
      %v4061 = vsel %vm1061, %v4058, %v4060
      %v4062 = vrot.slane %v3964, 1
      %v4063 = vrot.slane %v3965, 1
      %v4064 = vsel %vm1061, %v4062, %v4063
      %v4065 = vrot.slane %v3966, 1
      %v4066 = vsel %vm1061, %v4063, %v4065
      %v4067 = vrot.slane %v3967, 1
      %v4068 = vrot.slane %v3968, 1
      %v4069 = vsel %vm1061, %v4067, %v4068
      %v4070 = vrot.slane %v3969, 1
      %v4071 = vsel %vm1061, %v4068, %v4070
      %v4072 = vrot.slane %v3970, 1
      %v4073 = vrot.slane %v3971, 1
      %v4074 = vsel %vm1061, %v4072, %v4073
      %v4075 = vrot.slane %v3972, 1
      %v4076 = vsel %vm1061, %v4073, %v4075
      %v4077 = vrot.slane %v3973, 1
      %v4078 = vrot.slane %v3974, 1
      %v4079 = vsel %vm1061, %v4077, %v4078
      %v4080 = vrot.slane %v3975, 1
      %v4081 = vsel %vm1061, %v4078, %v4080
      %v4082 = vrot.slane %v3976, 1
      %v4083 = vrot.slane %v3977, 1
      %v4084 = vsel %vm1061, %v4082, %v4083
      %v4085 = vrot.slane %v3978, 1
      %v4086 = vsel %vm1061, %v4083, %v4085
      %v4087 = vrot.slane %v3979, 1
      %v4088 = vrot.slane %v3980, 1
      %v4089 = vsel %vm1061, %v4087, %v4088
      %v4090 = vrot.slane %v3981, 1
      %v4091 = vsel %vm1061, %v4088, %v4090
      %v4092 = vrot.slane %v3982, 1
      %v4093 = vrot.slane %v3983, 1
      %v4094 = vsel %vm1061, %v4092, %v4093
      %v4095 = vrot.slane %v3984, 1
      %v4096 = vsel %vm1061, %v4093, %v4095
      %v4097 = vrot.slane %v3985, 1
      %v4098 = vrot.slane %v3986, 1
      %v4099 = vsel %vm1061, %v4097, %v4098
      %v4100 = vrot.slane %v3987, 1
      %v4101 = vsel %vm1061, %v4098, %v4100
      %v4102 = vrot.slane %v3988, 1
      %v4103 = vrot.slane %v3989, 1
      %v4104 = vsel %vm1061, %v4102, %v4103
      %v4105 = vrot.slane %v3990, 1
      %v4106 = vsel %vm1061, %v4103, %v4105
      %v4107 = vrot.slane %v3991, 1
      %v4108 = vrot.slane %v3992, 1
      %v4109 = vsel %vm1061, %v4107, %v4108
      %v4110 = vrot.slane %v3993, 1
      %v4111 = vsel %vm1061, %v4108, %v4110
      %v4112 = vrot.slane %v3994, 1
      %v4113 = vrot.slane %v3995, 1
      %v4114 = vsel %vm1061, %v4112, %v4113
      %v4115 = vrot.slane %v3996, 1
      %v4116 = vsel %vm1061, %v4113, %v4115
      %v4117 = vrot.slane %v3997, 1
      %v4118 = vrot.slane %v3998, 1
      %v4119 = vsel %vm1061, %v4117, %v4118
      %v4120 = vrot.slane %v3999, 1
      %v4121 = vsel %vm1061, %v4118, %v4120
      %v4122 = vrot.slane %v4000, 1
      %v4123 = vrot.slane %v4001, 1
      %v4124 = vsel %vm1061, %v4122, %v4123
      %v4125 = vrot.slane %v4002, 1
      %v4126 = vsel %vm1061, %v4123, %v4125
      %v4127 = vrot.slane %v4003, 1
      %v4128 = vrot.slane %v4004, 1
      %v4129 = vsel %vm1061, %v4127, %v4128
      %v4130 = vrot.slane %v4005, 1
      %v4131 = vsel %vm1061, %v4128, %v4130
      %v4132 = vrot.slane %v4006, 1
      %v4133 = vrot.slane %v4007, 1
      %v4134 = vsel %vm1061, %v4132, %v4133
      %v4135 = vrot.slane %v4008, 1
      %v4136 = vsel %vm1061, %v4133, %v4135
      %v4169 = vadd.f32 %v3924, %v4059
      %v4170 = vadd.f32 %v3925, %v4061
      %v4171 = vadd.f32 %v3926, %v4064
      %v4172 = vadd.f32 %v3927, %v4066
      %v4173 = vadd.f32 %v3928, %v4069
      %v4174 = vadd.f32 %v3929, %v4071
      %v4175 = vadd.f32 %v3930, %v4074
      %v4176 = vadd.f32 %v3931, %v4076
      %v4177 = vadd.f32 %v3932, %v4079
      %v4178 = vadd.f32 %v3933, %v4081
      %v4179 = vadd.f32 %v3934, %v4084
      %v4180 = vadd.f32 %v3935, %v4086
      %v4181 = vadd.f32 %v3936, %v4089
      %v4182 = vadd.f32 %v3937, %v4091
      %v4183 = vadd.f32 %v3938, %v4094
      %v4184 = vadd.f32 %v3939, %v4096
      %v4185 = vadd.f32 %v3940, %v4099
      %v4186 = vadd.f32 %v3941, %v4101
      %v4187 = vadd.f32 %v3942, %v4104
      %v4188 = vadd.f32 %v3943, %v4106
      %v4189 = vadd.f32 %v3944, %v4109
      %v4190 = vadd.f32 %v3945, %v4111
      %v4191 = vadd.f32 %v3946, %v4114
      %v4192 = vadd.f32 %v3947, %v4116
      %v4193 = vadd.f32 %v3948, %v4119
      %v4194 = vadd.f32 %v3949, %v4121
      %v4195 = vadd.f32 %v3950, %v4124
      %v4196 = vadd.f32 %v3951, %v4126
      %v4197 = vadd.f32 %v3952, %v4129
      %v4198 = vadd.f32 %v3953, %v4131
      %v4199 = vadd.f32 %v3954, %v4134
      %v4200 = vadd.f32 %v3955, %v4136
      %v4201 = vld [vmem:[%s5 + $0x8] sm:$0x1]
      %v4202 = vlaneseq
      %v4203 = vshrl.u32 %v4202, 7
      %v4204 = vsub.s32 0, %v4203
      %v4205 = vrot.slane %v4201, %v4204
      %v4206 = vmul.f32 %v2738, %v4205
      %v4207 = vmul.f32 %v2646, %v4205
      %v4208 = vmul.f32 %v2754, %v4205
      %v4209 = vmul.f32 %v2739, %v4205
      %v4210 = vmul.f32 %v2649, %v4205
      %v4211 = vmul.f32 %v2755, %v4205
      %v4212 = vmul.f32 %v2740, %v4205
      %v4213 = vmul.f32 %v2652, %v4205
      %v4214 = vmul.f32 %v2756, %v4205
      %v4215 = vmul.f32 %v2741, %v4205
      %v4216 = vmul.f32 %v2655, %v4205
      %v4217 = vmul.f32 %v2757, %v4205
      %v4218 = vmul.f32 %v2742, %v4205
      %v4219 = vmul.f32 %v2658, %v4205
      %v4220 = vmul.f32 %v2758, %v4205
      %v4221 = vmul.f32 %v2743, %v4205
      %v4222 = vmul.f32 %v2661, %v4205
      %v4223 = vmul.f32 %v2759, %v4205
      %v4224 = vmul.f32 %v2744, %v4205
      %v4225 = vmul.f32 %v2664, %v4205
      %v4226 = vmul.f32 %v2760, %v4205
      %v4227 = vmul.f32 %v2745, %v4205
      %v4228 = vmul.f32 %v2667, %v4205
      %v4229 = vmul.f32 %v2761, %v4205
      %v4230 = vmul.f32 %v2746, %v4205
      %v4231 = vmul.f32 %v2670, %v4205
      %v4232 = vmul.f32 %v2762, %v4205
      %v4233 = vmul.f32 %v2747, %v4205
      %v4234 = vmul.f32 %v2673, %v4205
      %v4235 = vmul.f32 %v2763, %v4205
      %v4236 = vmul.f32 %v2748, %v4205
      %v4237 = vmul.f32 %v2676, %v4205
      %v4238 = vmul.f32 %v2764, %v4205
      %v4239 = vmul.f32 %v2749, %v4205
      %v4240 = vmul.f32 %v2679, %v4205
      %v4241 = vmul.f32 %v2765, %v4205
      %v4242 = vmul.f32 %v2750, %v4205
      %v4243 = vmul.f32 %v2682, %v4205
      %v4244 = vmul.f32 %v2766, %v4205
      %v4245 = vmul.f32 %v2751, %v4205
      %v4246 = vmul.f32 %v2685, %v4205
      %v4247 = vmul.f32 %v2767, %v4205
      %v4248 = vmul.f32 %v2752, %v4205
      %v4249 = vmul.f32 %v2688, %v4205
      %v4250 = vmul.f32 %v2768, %v4205
      %v4251 = vmul.f32 %v857, %v4205
      %v4252 = vmul.f32 %v758, %v4205
      %v4253 = vmul.f32 %v874, %v4205
      %v4302 = vrot.slane %v4206, 2
      %v4303 = vrot.slane %v4207, 2
      %v4304 = vsel %vm1307, %v4302, %v4303
      %v4305 = vrot.slane %v4208, 2
      %v4306 = vsel %vm1307, %v4303, %v4305
      %v4307 = vrot.slane %v4209, 2
      %v4308 = vrot.slane %v4210, 2
      %v4309 = vsel %vm1307, %v4307, %v4308
      %v4310 = vrot.slane %v4211, 2
      %v4311 = vsel %vm1307, %v4308, %v4310
      %v4312 = vrot.slane %v4212, 2
      %v4313 = vrot.slane %v4213, 2
      %v4314 = vsel %vm1307, %v4312, %v4313
      %v4315 = vrot.slane %v4214, 2
      %v4316 = vsel %vm1307, %v4313, %v4315
      %v4317 = vrot.slane %v4215, 2
      %v4318 = vrot.slane %v4216, 2
      %v4319 = vsel %vm1307, %v4317, %v4318
      %v4320 = vrot.slane %v4217, 2
      %v4321 = vsel %vm1307, %v4318, %v4320
      %v4322 = vrot.slane %v4218, 2
      %v4323 = vrot.slane %v4219, 2
      %v4324 = vsel %vm1307, %v4322, %v4323
      %v4325 = vrot.slane %v4220, 2
      %v4326 = vsel %vm1307, %v4323, %v4325
      %v4327 = vrot.slane %v4221, 2
      %v4328 = vrot.slane %v4222, 2
      %v4329 = vsel %vm1307, %v4327, %v4328
      %v4330 = vrot.slane %v4223, 2
      %v4331 = vsel %vm1307, %v4328, %v4330
      %v4332 = vrot.slane %v4224, 2
      %v4333 = vrot.slane %v4225, 2
      %v4334 = vsel %vm1307, %v4332, %v4333
      %v4335 = vrot.slane %v4226, 2
      %v4336 = vsel %vm1307, %v4333, %v4335
      %v4337 = vrot.slane %v4227, 2
      %v4338 = vrot.slane %v4228, 2
      %v4339 = vsel %vm1307, %v4337, %v4338
      %v4340 = vrot.slane %v4229, 2
      %v4341 = vsel %vm1307, %v4338, %v4340
      %v4342 = vrot.slane %v4230, 2
      %v4343 = vrot.slane %v4231, 2
      %v4344 = vsel %vm1307, %v4342, %v4343
      %v4345 = vrot.slane %v4232, 2
      %v4346 = vsel %vm1307, %v4343, %v4345
      %v4347 = vrot.slane %v4233, 2
      %v4348 = vrot.slane %v4234, 2
      %v4349 = vsel %vm1307, %v4347, %v4348
      %v4350 = vrot.slane %v4235, 2
      %v4351 = vsel %vm1307, %v4348, %v4350
      %v4352 = vrot.slane %v4236, 2
      %v4353 = vrot.slane %v4237, 2
      %v4354 = vsel %vm1307, %v4352, %v4353
      %v4355 = vrot.slane %v4238, 2
      %v4356 = vsel %vm1307, %v4353, %v4355
      %v4357 = vrot.slane %v4239, 2
      %v4358 = vrot.slane %v4240, 2
      %v4359 = vsel %vm1307, %v4357, %v4358
      %v4360 = vrot.slane %v4241, 2
      %v4361 = vsel %vm1307, %v4358, %v4360
      %v4362 = vrot.slane %v4242, 2
      %v4363 = vrot.slane %v4243, 2
      %v4364 = vsel %vm1307, %v4362, %v4363
      %v4365 = vrot.slane %v4244, 2
      %v4366 = vsel %vm1307, %v4363, %v4365
      %v4367 = vrot.slane %v4245, 2
      %v4368 = vrot.slane %v4246, 2
      %v4369 = vsel %vm1307, %v4367, %v4368
      %v4370 = vrot.slane %v4247, 2
      %v4371 = vsel %vm1307, %v4368, %v4370
      %v4372 = vrot.slane %v4248, 2
      %v4373 = vrot.slane %v4249, 2
      %v4374 = vsel %vm1307, %v4372, %v4373
      %v4375 = vrot.slane %v4250, 2
      %v4376 = vsel %vm1307, %v4373, %v4375
      %v4377 = vrot.slane %v4251, 2
      %v4378 = vrot.slane %v4252, 2
      %v4379 = vsel %vm1307, %v4377, %v4378
      %v4380 = vrot.slane %v4253, 2
      %v4381 = vsel %vm1307, %v4378, %v4380
      %v4414 = vadd.f32 %v4169, %v4304
      %v4415 = vadd.f32 %v4170, %v4306
      %v4416 = vadd.f32 %v4171, %v4309
      %v4417 = vadd.f32 %v4172, %v4311
      %v4418 = vadd.f32 %v4173, %v4314
      %v4419 = vadd.f32 %v4174, %v4316
      %v4420 = vadd.f32 %v4175, %v4319
      %v4421 = vadd.f32 %v4176, %v4321
      %v4422 = vadd.f32 %v4177, %v4324
      %v4423 = vadd.f32 %v4178, %v4326
      %v4424 = vadd.f32 %v4179, %v4329
      %v4425 = vadd.f32 %v4180, %v4331
      %v4426 = vadd.f32 %v4181, %v4334
      %v4427 = vadd.f32 %v4182, %v4336
      %v4428 = vadd.f32 %v4183, %v4339
      %v4429 = vadd.f32 %v4184, %v4341
      %v4430 = vadd.f32 %v4185, %v4344
      %v4431 = vadd.f32 %v4186, %v4346
      %v4432 = vadd.f32 %v4187, %v4349
      %v4433 = vadd.f32 %v4188, %v4351
      %v4434 = vadd.f32 %v4189, %v4354
      %v4435 = vadd.f32 %v4190, %v4356
      %v4436 = vadd.f32 %v4191, %v4359
      %v4437 = vadd.f32 %v4192, %v4361
      %v4438 = vadd.f32 %v4193, %v4364
      %v4439 = vadd.f32 %v4194, %v4366
      %v4440 = vadd.f32 %v4195, %v4369
      %v4441 = vadd.f32 %v4196, %v4371
      %v4442 = vadd.f32 %v4197, %v4374
      %v4443 = vadd.f32 %v4198, %v4376
      %v4444 = vadd.f32 %v4199, %v4379
      %v4445 = vadd.f32 %v4200, %v4381
      %v4446 = vld [vmem:[%s6] sm:$0x1]
      %v4448 = vlaneseq
      %v4449 = vshrl.u32 %v4448, 7
      %v4450 = vsub.s32 0, %v4449
      %v4451 = vrot.slane %v4446, %v4450
      %v4453 = vadd.f32 %v4414, %v4451
      %v4454 = vadd.f32 %v4415, %v4451
      %v4455 = vadd.f32 %v4416, %v4451
      %v4456 = vadd.f32 %v4417, %v4451
      %v4457 = vadd.f32 %v4418, %v4451
      %v4458 = vadd.f32 %v4419, %v4451
      %v4459 = vadd.f32 %v4420, %v4451
      %v4460 = vadd.f32 %v4421, %v4451
      %v4461 = vadd.f32 %v4422, %v4451
      %v4462 = vadd.f32 %v4423, %v4451
      %v4463 = vadd.f32 %v4424, %v4451
      %v4464 = vadd.f32 %v4425, %v4451
      %v4465 = vadd.f32 %v4426, %v4451
      %v4466 = vadd.f32 %v4427, %v4451
      %v4467 = vadd.f32 %v4428, %v4451
      %v4468 = vadd.f32 %v4429, %v4451
      %v4469 = vadd.f32 %v4430, %v4451
      %v4470 = vadd.f32 %v4431, %v4451
      %v4471 = vadd.f32 %v4432, %v4451
      %v4472 = vadd.f32 %v4433, %v4451
      %v4473 = vadd.f32 %v4434, %v4451
      %v4474 = vadd.f32 %v4435, %v4451
      %v4475 = vadd.f32 %v4436, %v4451
      %v4476 = vadd.f32 %v4437, %v4451
      %v4477 = vadd.f32 %v4438, %v4451
      %v4478 = vadd.f32 %v4439, %v4451
      %v4479 = vadd.f32 %v4440, %v4451
      %v4480 = vadd.f32 %v4441, %v4451
      %v4481 = vadd.f32 %v4442, %v4451
      %v4482 = vadd.f32 %v4443, %v4451
      %v4483 = vadd.f32 %v4444, %v4451
      %v4484 = vadd.f32 %v4445, %v4451
      %s4485 = sld [smem:[#allocation2]]
      %v4486 = vmul.f32 %v4453, %v4453
      %v4487 = vmul.f32 %v4454, %v4454
      %v4488 = vmul.f32 %v4455, %v4455
      %v4489 = vmul.f32 %v4456, %v4456
      %v4490 = vmul.f32 %v4457, %v4457
      %v4491 = vmul.f32 %v4458, %v4458
      %v4492 = vmul.f32 %v4459, %v4459
      %v4493 = vmul.f32 %v4460, %v4460
      %v4494 = vmul.f32 %v4461, %v4461
      %v4495 = vmul.f32 %v4462, %v4462
      %v4496 = vmul.f32 %v4463, %v4463
      %v4497 = vmul.f32 %v4464, %v4464
      %v4498 = vmul.f32 %v4465, %v4465
      %v4499 = vmul.f32 %v4466, %v4466
      %v4500 = vmul.f32 %v4467, %v4467
      %v4501 = vmul.f32 %v4468, %v4468
      %v4502 = vmul.f32 %v4469, %v4469
      %v4503 = vmul.f32 %v4470, %v4470
      %v4504 = vmul.f32 %v4471, %v4471
      %v4505 = vmul.f32 %v4472, %v4472
      %v4506 = vmul.f32 %v4473, %v4473
      %v4507 = vmul.f32 %v4474, %v4474
      %v4508 = vmul.f32 %v4475, %v4475
      %v4509 = vmul.f32 %v4476, %v4476
      %v4510 = vmul.f32 %v4477, %v4477
      %v4511 = vmul.f32 %v4478, %v4478
      %v4512 = vmul.f32 %v4479, %v4479
      %v4513 = vmul.f32 %v4480, %v4480
      %v4514 = vmul.f32 %v4481, %v4481
      %v4515 = vmul.f32 %v4482, %v4482
      %v4516 = vmul.f32 %v4483, %v4483
      %v4517 = vmul.f32 %v4484, %v4484
      %vm4518 = vcmask 31744
      %v4519 = vsel %vm4518, %v4486, 0.0
      %4520 = vadd.xlane.f32.xlu0 %v4519
      %v4521 = vpop.xlane.xlu0 %4520
      %v4522 = vsel %vm4518, %v4487, 0.0
      %4523 = vadd.xlane.f32.xlu0 %v4522
      %v4524 = vpop.xlane.xlu0 %4523
      %v4525 = vsel %vm4518, %v4488, 0.0
      %4526 = vadd.xlane.f32.xlu0 %v4525
      %v4527 = vpop.xlane.xlu0 %4526
      %v4528 = vsel %vm4518, %v4489, 0.0
      %4529 = vadd.xlane.f32.xlu0 %v4528
      %v4530 = vpop.xlane.xlu0 %4529
      %v4531 = vsel %vm4518, %v4490, 0.0
      %4532 = vadd.xlane.f32.xlu0 %v4531
      %v4533 = vpop.xlane.xlu0 %4532
      %v4534 = vsel %vm4518, %v4491, 0.0
      %4535 = vadd.xlane.f32.xlu0 %v4534
      %v4536 = vpop.xlane.xlu0 %4535
      %v4537 = vsel %vm4518, %v4492, 0.0
      %4538 = vadd.xlane.f32.xlu0 %v4537
      %v4539 = vpop.xlane.xlu0 %4538
      %v4540 = vsel %vm4518, %v4493, 0.0
      %4541 = vadd.xlane.f32.xlu0 %v4540
      %v4542 = vpop.xlane.xlu0 %4541
      %v4543 = vsel %vm4518, %v4494, 0.0
      %4544 = vadd.xlane.f32.xlu0 %v4543
      %v4545 = vpop.xlane.xlu0 %4544
      %v4546 = vsel %vm4518, %v4495, 0.0
      %4547 = vadd.xlane.f32.xlu0 %v4546
      %v4548 = vpop.xlane.xlu0 %4547
      %v4549 = vsel %vm4518, %v4496, 0.0
      %4550 = vadd.xlane.f32.xlu0 %v4549
      %v4551 = vpop.xlane.xlu0 %4550
      %v4552 = vsel %vm4518, %v4497, 0.0
      %4553 = vadd.xlane.f32.xlu0 %v4552
      %v4554 = vpop.xlane.xlu0 %4553
      %v4555 = vsel %vm4518, %v4498, 0.0
      %4556 = vadd.xlane.f32.xlu0 %v4555
      %v4557 = vpop.xlane.xlu0 %4556
      %v4558 = vsel %vm4518, %v4499, 0.0
      %4559 = vadd.xlane.f32.xlu0 %v4558
      %v4560 = vpop.xlane.xlu0 %4559
      %v4561 = vsel %vm4518, %v4500, 0.0
      %4562 = vadd.xlane.f32.xlu0 %v4561
      %v4563 = vpop.xlane.xlu0 %4562
      %v4564 = vsel %vm4518, %v4501, 0.0
      %4565 = vadd.xlane.f32.xlu0 %v4564
      %v4566 = vpop.xlane.xlu0 %4565
      %v4567 = vsel %vm4518, %v4502, 0.0
      %4568 = vadd.xlane.f32.xlu0 %v4567
      %v4569 = vpop.xlane.xlu0 %4568
      %v4570 = vsel %vm4518, %v4503, 0.0
      %4571 = vadd.xlane.f32.xlu0 %v4570
      %v4572 = vpop.xlane.xlu0 %4571
      %v4573 = vsel %vm4518, %v4504, 0.0
      %4574 = vadd.xlane.f32.xlu0 %v4573
      %v4575 = vpop.xlane.xlu0 %4574
      %v4576 = vsel %vm4518, %v4505, 0.0
      %4577 = vadd.xlane.f32.xlu0 %v4576
      %v4578 = vpop.xlane.xlu0 %4577
      %v4579 = vsel %vm4518, %v4506, 0.0
      %4580 = vadd.xlane.f32.xlu0 %v4579
      %v4581 = vpop.xlane.xlu0 %4580
      %v4582 = vsel %vm4518, %v4507, 0.0
      %4583 = vadd.xlane.f32.xlu0 %v4582
      %v4584 = vpop.xlane.xlu0 %4583
      %v4585 = vsel %vm4518, %v4508, 0.0
      %4586 = vadd.xlane.f32.xlu0 %v4585
      %v4587 = vpop.xlane.xlu0 %4586
      %v4588 = vsel %vm4518, %v4509, 0.0
      %4589 = vadd.xlane.f32.xlu0 %v4588
      %v4590 = vpop.xlane.xlu0 %4589
      %v4591 = vsel %vm4518, %v4510, 0.0
      %4592 = vadd.xlane.f32.xlu0 %v4591
      %v4593 = vpop.xlane.xlu0 %4592
      %v4594 = vsel %vm4518, %v4511, 0.0
      %4595 = vadd.xlane.f32.xlu0 %v4594
      %v4596 = vpop.xlane.xlu0 %4595
      %v4597 = vsel %vm4518, %v4512, 0.0
      %4598 = vadd.xlane.f32.xlu0 %v4597
      %v4599 = vpop.xlane.xlu0 %4598
      %v4600 = vsel %vm4518, %v4513, 0.0
      %4601 = vadd.xlane.f32.xlu0 %v4600
      %v4602 = vpop.xlane.xlu0 %4601
      %v4603 = vsel %vm4518, %v4514, 0.0
      %4604 = vadd.xlane.f32.xlu0 %v4603
      %v4605 = vpop.xlane.xlu0 %4604
      %v4606 = vsel %vm4518, %v4515, 0.0
      %4607 = vadd.xlane.f32.xlu0 %v4606
      %v4608 = vpop.xlane.xlu0 %4607
      %v4609 = vsel %vm4518, %v4516, 0.0
      %4610 = vadd.xlane.f32.xlu0 %v4609
      %v4611 = vpop.xlane.xlu0 %4610
      %v4612 = vsel %vm4518, %v4517, 0.0
      %4613 = vadd.xlane.f32.xlu0 %v4612
      %v4614 = vpop.xlane.xlu0 %4613
      %v4615 = vmax.f32 %v4521, 1e-24
      %v4616 = vmax.f32 %v4524, 1e-24
      %v4617 = vmax.f32 %v4527, 1e-24
      %v4618 = vmax.f32 %v4530, 1e-24
      %v4619 = vmax.f32 %v4533, 1e-24
      %v4620 = vmax.f32 %v4536, 1e-24
      %v4621 = vmax.f32 %v4539, 1e-24
      %v4622 = vmax.f32 %v4542, 1e-24
      %v4623 = vmax.f32 %v4545, 1e-24
      %v4624 = vmax.f32 %v4548, 1e-24
      %v4625 = vmax.f32 %v4551, 1e-24
      %v4626 = vmax.f32 %v4554, 1e-24
      %v4627 = vmax.f32 %v4557, 1e-24
      %v4628 = vmax.f32 %v4560, 1e-24
      %v4629 = vmax.f32 %v4563, 1e-24
      %v4630 = vmax.f32 %v4566, 1e-24
      %v4631 = vmax.f32 %v4569, 1e-24
      %v4632 = vmax.f32 %v4572, 1e-24
      %v4633 = vmax.f32 %v4575, 1e-24
      %v4634 = vmax.f32 %v4578, 1e-24
      %v4635 = vmax.f32 %v4581, 1e-24
      %v4636 = vmax.f32 %v4584, 1e-24
      %v4637 = vmax.f32 %v4587, 1e-24
      %v4638 = vmax.f32 %v4590, 1e-24
      %v4639 = vmax.f32 %v4593, 1e-24
      %v4640 = vmax.f32 %v4596, 1e-24
      %v4641 = vmax.f32 %v4599, 1e-24
      %v4642 = vmax.f32 %v4602, 1e-24
      %v4643 = vmax.f32 %v4605, 1e-24
      %v4644 = vmax.f32 %v4608, 1e-24
      %v4645 = vmax.f32 %v4611, 1e-24
      %v4646 = vmax.f32 %v4614, 1e-24
      %v4647 = vrsqrt.pop %v4615
      %v4648 = vrsqrt.pop %v4616
      %v4649 = vrsqrt.pop %v4617
      %v4650 = vrsqrt.pop %v4618
      %v4651 = vrsqrt.pop %v4619
      %v4652 = vrsqrt.pop %v4620
      %v4653 = vrsqrt.pop %v4621
      %v4654 = vrsqrt.pop %v4622
      %v4655 = vrsqrt.pop %v4623
      %v4656 = vrsqrt.pop %v4624
      %v4657 = vrsqrt.pop %v4625
      %v4658 = vrsqrt.pop %v4626
      %v4659 = vrsqrt.pop %v4627
      %v4660 = vrsqrt.pop %v4628
      %v4661 = vrsqrt.pop %v4629
      %v4662 = vrsqrt.pop %v4630
      %v4663 = vrsqrt.pop %v4631
      %v4664 = vrsqrt.pop %v4632
      %v4665 = vrsqrt.pop %v4633
      %v4666 = vrsqrt.pop %v4634
      %v4667 = vrsqrt.pop %v4635
      %v4668 = vrsqrt.pop %v4636
      %v4669 = vrsqrt.pop %v4637
      %v4670 = vrsqrt.pop %v4638
      %v4671 = vrsqrt.pop %v4639
      %v4672 = vrsqrt.pop %v4640
      %v4673 = vrsqrt.pop %v4641
      %v4674 = vrsqrt.pop %v4642
      %v4675 = vrsqrt.pop %v4643
      %v4676 = vrsqrt.pop %v4644
      %v4677 = vrsqrt.pop %v4645
      %v4678 = vrsqrt.pop %v4646
      %v4679 = vmul.f32 %v4453, %v4647
      %v4680 = vmul.f32 %v4454, %v4648
      %v4681 = vmul.f32 %v4455, %v4649
      %v4682 = vmul.f32 %v4456, %v4650
      %v4683 = vmul.f32 %v4457, %v4651
      %v4684 = vmul.f32 %v4458, %v4652
      %v4685 = vmul.f32 %v4459, %v4653
      %v4686 = vmul.f32 %v4460, %v4654
      %v4687 = vmul.f32 %v4461, %v4655
      %v4688 = vmul.f32 %v4462, %v4656
      %v4689 = vmul.f32 %v4463, %v4657
      %v4690 = vmul.f32 %v4464, %v4658
      %v4691 = vmul.f32 %v4465, %v4659
      %v4692 = vmul.f32 %v4466, %v4660
      %v4693 = vmul.f32 %v4467, %v4661
      %v4694 = vmul.f32 %v4468, %v4662
      %v4695 = vmul.f32 %v4469, %v4663
      %v4696 = vmul.f32 %v4470, %v4664
      %v4697 = vmul.f32 %v4471, %v4665
      %v4698 = vmul.f32 %v4472, %v4666
      %v4699 = vmul.f32 %v4473, %v4667
      %v4700 = vmul.f32 %v4474, %v4668
      %v4701 = vmul.f32 %v4475, %v4669
      %v4702 = vmul.f32 %v4476, %v4670
      %v4703 = vmul.f32 %v4477, %v4671
      %v4704 = vmul.f32 %v4478, %v4672
      %v4705 = vmul.f32 %v4479, %v4673
      %v4706 = vmul.f32 %v4480, %v4674
      %v4707 = vmul.f32 %v4481, %v4675
      %v4708 = vmul.f32 %v4482, %v4676
      %v4709 = vmul.f32 %v4483, %v4677
      %v4710 = vmul.f32 %v4484, %v4678
      %4743 = vrot.lane.b32.xlu0 %v4486, 120
      %v4744 = vpop.permute.xlu0 %4743
      %4745 = vrot.lane.b32.xlu0 %v4487, 120
      %v4746 = vpop.permute.xlu0 %4745
      %4747 = vrot.lane.b32.xlu0 %v4488, 120
      %v4748 = vpop.permute.xlu0 %4747
      %4749 = vrot.lane.b32.xlu0 %v4489, 120
      %v4750 = vpop.permute.xlu0 %4749
      %4751 = vrot.lane.b32.xlu0 %v4490, 120
      %v4752 = vpop.permute.xlu0 %4751
      %4753 = vrot.lane.b32.xlu0 %v4491, 120
      %v4754 = vpop.permute.xlu0 %4753
      %4755 = vrot.lane.b32.xlu0 %v4492, 120
      %v4756 = vpop.permute.xlu0 %4755
      %4757 = vrot.lane.b32.xlu0 %v4493, 120
      %v4758 = vpop.permute.xlu0 %4757
      %4759 = vrot.lane.b32.xlu0 %v4494, 120
      %v4760 = vpop.permute.xlu0 %4759
      %4761 = vrot.lane.b32.xlu0 %v4495, 120
      %v4762 = vpop.permute.xlu0 %4761
      %4763 = vrot.lane.b32.xlu0 %v4496, 120
      %v4764 = vpop.permute.xlu0 %4763
      %4765 = vrot.lane.b32.xlu0 %v4497, 120
      %v4766 = vpop.permute.xlu0 %4765
      %4767 = vrot.lane.b32.xlu0 %v4498, 120
      %v4768 = vpop.permute.xlu0 %4767
      %4769 = vrot.lane.b32.xlu0 %v4499, 120
      %v4770 = vpop.permute.xlu0 %4769
      %4771 = vrot.lane.b32.xlu0 %v4500, 120
      %v4772 = vpop.permute.xlu0 %4771
      %4773 = vrot.lane.b32.xlu0 %v4501, 120
      %v4774 = vpop.permute.xlu0 %4773
      %4775 = vrot.lane.b32.xlu0 %v4502, 120
      %v4776 = vpop.permute.xlu0 %4775
      %4777 = vrot.lane.b32.xlu0 %v4503, 120
      %v4778 = vpop.permute.xlu0 %4777
      %4779 = vrot.lane.b32.xlu0 %v4504, 120
      %v4780 = vpop.permute.xlu0 %4779
      %4781 = vrot.lane.b32.xlu0 %v4505, 120
      %v4782 = vpop.permute.xlu0 %4781
      %4783 = vrot.lane.b32.xlu0 %v4506, 120
      %v4784 = vpop.permute.xlu0 %4783
      %4785 = vrot.lane.b32.xlu0 %v4507, 120
      %v4786 = vpop.permute.xlu0 %4785
      %4787 = vrot.lane.b32.xlu0 %v4508, 120
      %v4788 = vpop.permute.xlu0 %4787
      %4789 = vrot.lane.b32.xlu0 %v4509, 120
      %v4790 = vpop.permute.xlu0 %4789
      %4791 = vrot.lane.b32.xlu0 %v4510, 120
      %v4792 = vpop.permute.xlu0 %4791
      %4793 = vrot.lane.b32.xlu0 %v4511, 120
      %v4794 = vpop.permute.xlu0 %4793
      %4795 = vrot.lane.b32.xlu0 %v4512, 120
      %v4796 = vpop.permute.xlu0 %4795
      %4797 = vrot.lane.b32.xlu0 %v4513, 120
      %v4798 = vpop.permute.xlu0 %4797
      %4799 = vrot.lane.b32.xlu0 %v4514, 120
      %v4800 = vpop.permute.xlu0 %4799
      %4801 = vrot.lane.b32.xlu0 %v4515, 120
      %v4802 = vpop.permute.xlu0 %4801
      %4803 = vrot.lane.b32.xlu0 %v4516, 120
      %v4804 = vpop.permute.xlu0 %4803
      %4805 = vrot.lane.b32.xlu0 %v4517, 120
      %v4806 = vpop.permute.xlu0 %4805
      %v4839 = vsel %vm4518, %v4744, 0.0
      %4840 = vadd.xlane.f32.xlu0 %v4839
      %v4841 = vpop.xlane.xlu0 %4840
      %v4842 = vsel %vm4518, %v4746, 0.0
      %4843 = vadd.xlane.f32.xlu0 %v4842
      %v4844 = vpop.xlane.xlu0 %4843
      %v4845 = vsel %vm4518, %v4748, 0.0
      %4846 = vadd.xlane.f32.xlu0 %v4845
      %v4847 = vpop.xlane.xlu0 %4846
      %v4848 = vsel %vm4518, %v4750, 0.0
      %4849 = vadd.xlane.f32.xlu0 %v4848
      %v4850 = vpop.xlane.xlu0 %4849
      %v4851 = vsel %vm4518, %v4752, 0.0
      %4852 = vadd.xlane.f32.xlu0 %v4851
      %v4853 = vpop.xlane.xlu0 %4852
      %v4854 = vsel %vm4518, %v4754, 0.0
      %4855 = vadd.xlane.f32.xlu0 %v4854
      %v4856 = vpop.xlane.xlu0 %4855
      %v4857 = vsel %vm4518, %v4756, 0.0
      %4858 = vadd.xlane.f32.xlu0 %v4857
      %v4859 = vpop.xlane.xlu0 %4858
      %v4860 = vsel %vm4518, %v4758, 0.0
      %4861 = vadd.xlane.f32.xlu0 %v4860
      %v4862 = vpop.xlane.xlu0 %4861
      %v4863 = vsel %vm4518, %v4760, 0.0
      %4864 = vadd.xlane.f32.xlu0 %v4863
      %v4865 = vpop.xlane.xlu0 %4864
      %v4866 = vsel %vm4518, %v4762, 0.0
      %4867 = vadd.xlane.f32.xlu0 %v4866
      %v4868 = vpop.xlane.xlu0 %4867
      %v4869 = vsel %vm4518, %v4764, 0.0
      %4870 = vadd.xlane.f32.xlu0 %v4869
      %v4871 = vpop.xlane.xlu0 %4870
      %v4872 = vsel %vm4518, %v4766, 0.0
      %4873 = vadd.xlane.f32.xlu0 %v4872
      %v4874 = vpop.xlane.xlu0 %4873
      %v4875 = vsel %vm4518, %v4768, 0.0
      %4876 = vadd.xlane.f32.xlu0 %v4875
      %v4877 = vpop.xlane.xlu0 %4876
      %v4878 = vsel %vm4518, %v4770, 0.0
      %4879 = vadd.xlane.f32.xlu0 %v4878
      %v4880 = vpop.xlane.xlu0 %4879
      %v4881 = vsel %vm4518, %v4772, 0.0
      %4882 = vadd.xlane.f32.xlu0 %v4881
      %v4883 = vpop.xlane.xlu0 %4882
      %v4884 = vsel %vm4518, %v4774, 0.0
      %4885 = vadd.xlane.f32.xlu0 %v4884
      %v4886 = vpop.xlane.xlu0 %4885
      %v4887 = vsel %vm4518, %v4776, 0.0
      %4888 = vadd.xlane.f32.xlu0 %v4887
      %v4889 = vpop.xlane.xlu0 %4888
      %v4890 = vsel %vm4518, %v4778, 0.0
      %4891 = vadd.xlane.f32.xlu0 %v4890
      %v4892 = vpop.xlane.xlu0 %4891
      %v4893 = vsel %vm4518, %v4780, 0.0
      %4894 = vadd.xlane.f32.xlu0 %v4893
      %v4895 = vpop.xlane.xlu0 %4894
      %v4896 = vsel %vm4518, %v4782, 0.0
      %4897 = vadd.xlane.f32.xlu0 %v4896
      %v4898 = vpop.xlane.xlu0 %4897
      %v4899 = vsel %vm4518, %v4784, 0.0
      %4900 = vadd.xlane.f32.xlu0 %v4899
      %v4901 = vpop.xlane.xlu0 %4900
      %v4902 = vsel %vm4518, %v4786, 0.0
      %4903 = vadd.xlane.f32.xlu0 %v4902
      %v4904 = vpop.xlane.xlu0 %4903
      %v4905 = vsel %vm4518, %v4788, 0.0
      %4906 = vadd.xlane.f32.xlu0 %v4905
      %v4907 = vpop.xlane.xlu0 %4906
      %v4908 = vsel %vm4518, %v4790, 0.0
      %4909 = vadd.xlane.f32.xlu0 %v4908
      %v4910 = vpop.xlane.xlu0 %4909
      %v4911 = vsel %vm4518, %v4792, 0.0
      %4912 = vadd.xlane.f32.xlu0 %v4911
      %v4913 = vpop.xlane.xlu0 %4912
      %v4914 = vsel %vm4518, %v4794, 0.0
      %4915 = vadd.xlane.f32.xlu0 %v4914
      %v4916 = vpop.xlane.xlu0 %4915
      %v4917 = vsel %vm4518, %v4796, 0.0
      %4918 = vadd.xlane.f32.xlu0 %v4917
      %v4919 = vpop.xlane.xlu0 %4918
      %v4920 = vsel %vm4518, %v4798, 0.0
      %4921 = vadd.xlane.f32.xlu0 %v4920
      %v4922 = vpop.xlane.xlu0 %4921
      %v4923 = vsel %vm4518, %v4800, 0.0
      %4924 = vadd.xlane.f32.xlu0 %v4923
      %v4925 = vpop.xlane.xlu0 %4924
      %v4926 = vsel %vm4518, %v4802, 0.0
      %4927 = vadd.xlane.f32.xlu0 %v4926
      %v4928 = vpop.xlane.xlu0 %4927
      %v4929 = vsel %vm4518, %v4804, 0.0
      %4930 = vadd.xlane.f32.xlu0 %v4929
      %v4931 = vpop.xlane.xlu0 %4930
      %v4932 = vsel %vm4518, %v4806, 0.0
      %4933 = vadd.xlane.f32.xlu0 %v4932
      %v4934 = vpop.xlane.xlu0 %4933
      %v4935 = vmax.f32 %v4841, 1e-24
      %v4936 = vmax.f32 %v4844, 1e-24
      %v4937 = vmax.f32 %v4847, 1e-24
      %v4938 = vmax.f32 %v4850, 1e-24
      %v4939 = vmax.f32 %v4853, 1e-24
      %v4940 = vmax.f32 %v4856, 1e-24
      %v4941 = vmax.f32 %v4859, 1e-24
      %v4942 = vmax.f32 %v4862, 1e-24
      %v4943 = vmax.f32 %v4865, 1e-24
      %v4944 = vmax.f32 %v4868, 1e-24
      %v4945 = vmax.f32 %v4871, 1e-24
      %v4946 = vmax.f32 %v4874, 1e-24
      %v4947 = vmax.f32 %v4877, 1e-24
      %v4948 = vmax.f32 %v4880, 1e-24
      %v4949 = vmax.f32 %v4883, 1e-24
      %v4950 = vmax.f32 %v4886, 1e-24
      %v4951 = vmax.f32 %v4889, 1e-24
      %v4952 = vmax.f32 %v4892, 1e-24
      %v4953 = vmax.f32 %v4895, 1e-24
      %v4954 = vmax.f32 %v4898, 1e-24
      %v4955 = vmax.f32 %v4901, 1e-24
      %v4956 = vmax.f32 %v4904, 1e-24
      %v4957 = vmax.f32 %v4907, 1e-24
      %v4958 = vmax.f32 %v4910, 1e-24
      %v4959 = vmax.f32 %v4913, 1e-24
      %v4960 = vmax.f32 %v4916, 1e-24
      %v4961 = vmax.f32 %v4919, 1e-24
      %v4962 = vmax.f32 %v4922, 1e-24
      %v4963 = vmax.f32 %v4925, 1e-24
      %v4964 = vmax.f32 %v4928, 1e-24
      %v4965 = vmax.f32 %v4931, 1e-24
      %v4966 = vmax.f32 %v4934, 1e-24
      %v4967 = vrsqrt.pop %v4935
      %v4968 = vrsqrt.pop %v4936
      %v4969 = vrsqrt.pop %v4937
      %v4970 = vrsqrt.pop %v4938
      %v4971 = vrsqrt.pop %v4939
      %v4972 = vrsqrt.pop %v4940
      %v4973 = vrsqrt.pop %v4941
      %v4974 = vrsqrt.pop %v4942
      %v4975 = vrsqrt.pop %v4943
      %v4976 = vrsqrt.pop %v4944
      %v4977 = vrsqrt.pop %v4945
      %v4978 = vrsqrt.pop %v4946
      %v4979 = vrsqrt.pop %v4947
      %v4980 = vrsqrt.pop %v4948
      %v4981 = vrsqrt.pop %v4949
      %v4982 = vrsqrt.pop %v4950
      %v4983 = vrsqrt.pop %v4951
      %v4984 = vrsqrt.pop %v4952
      %v4985 = vrsqrt.pop %v4953
      %v4986 = vrsqrt.pop %v4954
      %v4987 = vrsqrt.pop %v4955
      %v4988 = vrsqrt.pop %v4956
      %v4989 = vrsqrt.pop %v4957
      %v4990 = vrsqrt.pop %v4958
      %v4991 = vrsqrt.pop %v4959
      %v4992 = vrsqrt.pop %v4960
      %v4993 = vrsqrt.pop %v4961
      %v4994 = vrsqrt.pop %v4962
      %v4995 = vrsqrt.pop %v4963
      %v4996 = vrsqrt.pop %v4964
      %v4997 = vrsqrt.pop %v4965
      %v4998 = vrsqrt.pop %v4966
      %v4999 = vmul.f32 %v4453, %v4967
      %v5000 = vmul.f32 %v4454, %v4968
      %v5001 = vmul.f32 %v4455, %v4969
      %v5002 = vmul.f32 %v4456, %v4970
      %v5003 = vmul.f32 %v4457, %v4971
      %v5004 = vmul.f32 %v4458, %v4972
      %v5005 = vmul.f32 %v4459, %v4973
      %v5006 = vmul.f32 %v4460, %v4974
      %v5007 = vmul.f32 %v4461, %v4975
      %v5008 = vmul.f32 %v4462, %v4976
      %v5009 = vmul.f32 %v4463, %v4977
      %v5010 = vmul.f32 %v4464, %v4978
      %v5011 = vmul.f32 %v4465, %v4979
      %v5012 = vmul.f32 %v4466, %v4980
      %v5013 = vmul.f32 %v4467, %v4981
      %v5014 = vmul.f32 %v4468, %v4982
      %v5015 = vmul.f32 %v4469, %v4983
      %v5016 = vmul.f32 %v4470, %v4984
      %v5017 = vmul.f32 %v4471, %v4985
      %v5018 = vmul.f32 %v4472, %v4986
      %v5019 = vmul.f32 %v4473, %v4987
      %v5020 = vmul.f32 %v4474, %v4988
      %v5021 = vmul.f32 %v4475, %v4989
      %v5022 = vmul.f32 %v4476, %v4990
      %v5023 = vmul.f32 %v4477, %v4991
      %v5024 = vmul.f32 %v4478, %v4992
      %v5025 = vmul.f32 %v4479, %v4993
      %v5026 = vmul.f32 %v4480, %v4994
      %v5027 = vmul.f32 %v4481, %v4995
      %v5028 = vmul.f32 %v4482, %v4996
      %v5029 = vmul.f32 %v4483, %v4997
      %v5030 = vmul.f32 %v4484, %v4998
      %5033 = vrot.lane.b32.xlu0 %v4999, 120
      %v5034 = vpop.permute.xlu0 %5033
      %5035 = vrot.lane.b32.xlu0 %v5000, 120
      %v5036 = vpop.permute.xlu0 %5035
      %v5038 = vsel %vm4518, %v4679, 0
      %v5041 = vsel %vm4518, %v4680, 0
      %v5043 = vsel %vm4518, %v5034, 0
      %v5045 = vsel %vm4518, %v5036, 0
      %5047 = vmatprep.subr.mxu0 0.0
      %5048 = vmatpush1.xpose.msra.mxu0 %v5043
      %5049 = vmatprep.subr.mxu0 0.0
      %5050 = vmatpush1.xpose.msra.mxu0 %v5045
      %5051 = vmatprep.subr.mxu0 0.0
      %5052 = vmatpush1.xpose.msra.mxu0 0.0
      %5053 = vmatprep.subr.mxu0 0.0
      %5054 = vmatpush1.xpose.msra.mxu0 0.0
      %5055 = vmatprep.subr.mxu0 0.0
      %5056 = vmatpush1.xpose.msra.mxu0 0.0
      %5057 = vmatprep.subr.mxu0 0.0
      %5058 = vmatpush1.xpose.msra.mxu0 0.0
      %5059 = vmatprep.subr.mxu0 0.0
      %5060 = vmatpush1.xpose.msra.mxu0 0.0
      %5061 = vmatprep.subr.mxu0 0.0
      %5062 = vmatpush1.xpose.msra.mxu0 0.0
      %5063 = vmatprep.subr.mxu0 0.0
      %5064 = vmatpush1.xpose.msra.mxu0 0.0
      %5065 = vmatprep.subr.mxu0 0.0
      %5066 = vmatpush1.xpose.msra.mxu0 0.0
      %5067 = vmatprep.subr.mxu0 0.0
      %5068 = vmatpush1.xpose.msra.mxu0 0.0
      %5069 = vmatprep.subr.mxu0 0.0
      %5070 = vmatpush1.xpose.msra.mxu0 0.0
      %5071 = vmatprep.subr.mxu0 0.0
      %5072 = vmatpush1.xpose.msra.mxu0 0.0
      %5073 = vmatprep.subr.mxu0 0.0
      %5074 = vmatpush1.xpose.msra.mxu0 0.0
      %5075 = vmatprep.subr.mxu0 0.0
      %5076 = vmatpush1.xpose.msra.mxu0 0.0
      %5077 = vmatprep.subr.mxu0 0.0
      %5078 = vmatpush1.xpose.msra.mxu0 0.0
      %5079 = vmatprep.subr.mxu0 0.0
      %5080 = vmatpush1.xpose.msra.mxu0 0.0
      %5081 = vmatprep.subr.mxu0 0.0
      %5082 = vmatpush1.xpose.msra.mxu0 0.0
      %5083 = vmatprep.subr.mxu0 0.0
      %5084 = vmatpush1.xpose.msra.mxu0 0.0
      %5085 = vmatprep.subr.mxu0 0.0
      %5086 = vmatpush1.xpose.msra.mxu0 0.0
      %5087 = vmatprep.subr.mxu0 0.0
      %5088 = vmatpush1.xpose.msra.mxu0 0.0
      %5089 = vmatprep.subr.mxu0 0.0
      %5090 = vmatpush1.xpose.msra.mxu0 0.0
      %5091 = vmatprep.subr.mxu0 0.0
      %5092 = vmatpush1.xpose.msra.mxu0 0.0
      %5093 = vmatprep.subr.mxu0 0.0
      %5094 = vmatpush1.xpose.msra.mxu0 0.0
      %5095 = vmatprep.subr.mxu0 0.0
      %5096 = vmatpush1.xpose.msra.mxu0 0.0
      %5097 = vmatprep.subr.mxu0 0.0
      %5098 = vmatpush1.xpose.msra.mxu0 0.0
      %5099 = vmatprep.subr.mxu0 0.0
      %5100 = vmatpush1.xpose.msra.mxu0 0.0
      %5101 = vmatprep.subr.mxu0 0.0
      %5102 = vmatpush1.xpose.msra.mxu0 0.0
      %5103 = vmatprep.subr.mxu0 0.0
      %5104 = vmatpush1.xpose.msra.mxu0 0.0
      %5105 = vmatprep.subr.mxu0 0.0
      %5106 = vmatpush1.xpose.msra.mxu0 0.0
      %5107 = vmatprep.subr.mxu0 0.0
      %5108 = vmatpush1.xpose.msra.mxu0 0.0
      %5109 = vmatprep.subr.mxu0 0.0
      %5110 = vmatpush1.xpose.msra.mxu0 0.0
      %5111 = vmatprep.mubr.f32.mxu0 0.0
      %5112 = vmatmul.mubr.f32.gmra.mrb[0].mxu0 %v5038
      %v5113 = vpop.f32.mrb[0].mxu0
      %v5114 = vadd.f32 0.0, %v5113
      %v5115 = vpop.f32.mrb[0].mxu0
      %5116 = vmatprep.mubr.f32.mxu0 0.0
      %5117 = vmatmul.mubr.f32.gmra.mrb[0].mxu0 %v5041
      %v5118 = vpop.f32.mrb[0].mxu0
      %v5119 = vadd.f32 0.0, %v5118
      %v5120 = vpop.f32.mrb[0].mxu0
      %5121 = vdwg.mxu0
      %5124 = vrot.lane.b32.xlu0 %v5001, 120
      %v5125 = vpop.permute.xlu0 %5124
      %5126 = vrot.lane.b32.xlu0 %v5002, 120
      %v5127 = vpop.permute.xlu0 %5126
      %v5129 = vsel %vm4518, %v4681, 0
      %v5132 = vsel %vm4518, %v4682, 0
      %v5134 = vsel %vm4518, %v5125, 0
      %v5136 = vsel %vm4518, %v5127, 0
      %5138 = vmatprep.subr.mxu0 0.0
      %5139 = vmatpush1.xpose.msra.mxu0 %v5134
      %5140 = vmatprep.subr.mxu0 0.0
      %5141 = vmatpush1.xpose.msra.mxu0 %v5136
      %5142 = vmatprep.subr.mxu0 0.0
      %5143 = vmatpush1.xpose.msra.mxu0 0.0
      %5144 = vmatprep.subr.mxu0 0.0
      %5145 = vmatpush1.xpose.msra.mxu0 0.0
      %5146 = vmatprep.subr.mxu0 0.0
      %5147 = vmatpush1.xpose.msra.mxu0 0.0
      %5148 = vmatprep.subr.mxu0 0.0
      %5149 = vmatpush1.xpose.msra.mxu0 0.0
      %5150 = vmatprep.subr.mxu0 0.0
      %5151 = vmatpush1.xpose.msra.mxu0 0.0
      %5152 = vmatprep.subr.mxu0 0.0
      %5153 = vmatpush1.xpose.msra.mxu0 0.0
      %5154 = vmatprep.subr.mxu0 0.0
      %5155 = vmatpush1.xpose.msra.mxu0 0.0
      %5156 = vmatprep.subr.mxu0 0.0
      %5157 = vmatpush1.xpose.msra.mxu0 0.0
      %5158 = vmatprep.subr.mxu0 0.0
      %5159 = vmatpush1.xpose.msra.mxu0 0.0
      %5160 = vmatprep.subr.mxu0 0.0
      %5161 = vmatpush1.xpose.msra.mxu0 0.0
      %5162 = vmatprep.subr.mxu0 0.0
      %5163 = vmatpush1.xpose.msra.mxu0 0.0
      %5164 = vmatprep.subr.mxu0 0.0
      %5165 = vmatpush1.xpose.msra.mxu0 0.0
      %5166 = vmatprep.subr.mxu0 0.0
      %5167 = vmatpush1.xpose.msra.mxu0 0.0
      %5168 = vmatprep.subr.mxu0 0.0
      %5169 = vmatpush1.xpose.msra.mxu0 0.0
      %5170 = vmatprep.subr.mxu0 0.0
      %5171 = vmatpush1.xpose.msra.mxu0 0.0
      %5172 = vmatprep.subr.mxu0 0.0
      %5173 = vmatpush1.xpose.msra.mxu0 0.0
      %5174 = vmatprep.subr.mxu0 0.0
      %5175 = vmatpush1.xpose.msra.mxu0 0.0
      %5176 = vmatprep.subr.mxu0 0.0
      %5177 = vmatpush1.xpose.msra.mxu0 0.0
      %5178 = vmatprep.subr.mxu0 0.0
      %5179 = vmatpush1.xpose.msra.mxu0 0.0
      %5180 = vmatprep.subr.mxu0 0.0
      %5181 = vmatpush1.xpose.msra.mxu0 0.0
      %5182 = vmatprep.subr.mxu0 0.0
      %5183 = vmatpush1.xpose.msra.mxu0 0.0
      %5184 = vmatprep.subr.mxu0 0.0
      %5185 = vmatpush1.xpose.msra.mxu0 0.0
      %5186 = vmatprep.subr.mxu0 0.0
      %5187 = vmatpush1.xpose.msra.mxu0 0.0
      %5188 = vmatprep.subr.mxu0 0.0
      %5189 = vmatpush1.xpose.msra.mxu0 0.0
      %5190 = vmatprep.subr.mxu0 0.0
      %5191 = vmatpush1.xpose.msra.mxu0 0.0
      %5192 = vmatprep.subr.mxu0 0.0
      %5193 = vmatpush1.xpose.msra.mxu0 0.0
      %5194 = vmatprep.subr.mxu0 0.0
      %5195 = vmatpush1.xpose.msra.mxu0 0.0
      %5196 = vmatprep.subr.mxu0 0.0
      %5197 = vmatpush1.xpose.msra.mxu0 0.0
      %5198 = vmatprep.subr.mxu0 0.0
      %5199 = vmatpush1.xpose.msra.mxu0 0.0
      %5200 = vmatprep.subr.mxu0 0.0
      %5201 = vmatpush1.xpose.msra.mxu0 0.0
      %5202 = vmatprep.mubr.f32.mxu0 0.0
      %5203 = vmatmul.mubr.f32.gmra.mrb[0].mxu0 %v5129
      %v5204 = vpop.f32.mrb[0].mxu0
      %v5205 = vadd.f32 0.0, %v5204
      %v5206 = vpop.f32.mrb[0].mxu0
      %5207 = vmatprep.mubr.f32.mxu0 0.0
      %5208 = vmatmul.mubr.f32.gmra.mrb[0].mxu0 %v5132
      %v5209 = vpop.f32.mrb[0].mxu0
      %v5210 = vadd.f32 0.0, %v5209
      %v5211 = vpop.f32.mrb[0].mxu0
      %5212 = vdwg.mxu0
      %5215 = vrot.lane.b32.xlu0 %v5003, 120
      %v5216 = vpop.permute.xlu0 %5215
      %5217 = vrot.lane.b32.xlu0 %v5004, 120
      %v5218 = vpop.permute.xlu0 %5217
      %v5220 = vsel %vm4518, %v4683, 0
      %v5223 = vsel %vm4518, %v4684, 0
      %v5225 = vsel %vm4518, %v5216, 0
      %v5227 = vsel %vm4518, %v5218, 0
      %5229 = vmatprep.subr.mxu0 0.0
      %5230 = vmatpush1.xpose.msra.mxu0 %v5225
      %5231 = vmatprep.subr.mxu0 0.0
      %5232 = vmatpush1.xpose.msra.mxu0 %v5227
      %5233 = vmatprep.subr.mxu0 0.0
      %5234 = vmatpush1.xpose.msra.mxu0 0.0
      %5235 = vmatprep.subr.mxu0 0.0
      %5236 = vmatpush1.xpose.msra.mxu0 0.0
      %5237 = vmatprep.subr.mxu0 0.0
      %5238 = vmatpush1.xpose.msra.mxu0 0.0
      %5239 = vmatprep.subr.mxu0 0.0
      %5240 = vmatpush1.xpose.msra.mxu0 0.0
      %5241 = vmatprep.subr.mxu0 0.0
      %5242 = vmatpush1.xpose.msra.mxu0 0.0
      %5243 = vmatprep.subr.mxu0 0.0
      %5244 = vmatpush1.xpose.msra.mxu0 0.0
      %5245 = vmatprep.subr.mxu0 0.0
      %5246 = vmatpush1.xpose.msra.mxu0 0.0
      %5247 = vmatprep.subr.mxu0 0.0
      %5248 = vmatpush1.xpose.msra.mxu0 0.0
      %5249 = vmatprep.subr.mxu0 0.0
      %5250 = vmatpush1.xpose.msra.mxu0 0.0
      %5251 = vmatprep.subr.mxu0 0.0
      %5252 = vmatpush1.xpose.msra.mxu0 0.0
      %5253 = vmatprep.subr.mxu0 0.0
      %5254 = vmatpush1.xpose.msra.mxu0 0.0
      %5255 = vmatprep.subr.mxu0 0.0
      %5256 = vmatpush1.xpose.msra.mxu0 0.0
      %5257 = vmatprep.subr.mxu0 0.0
      %5258 = vmatpush1.xpose.msra.mxu0 0.0
      %5259 = vmatprep.subr.mxu0 0.0
      %5260 = vmatpush1.xpose.msra.mxu0 0.0
      %5261 = vmatprep.subr.mxu0 0.0
      %5262 = vmatpush1.xpose.msra.mxu0 0.0
      %5263 = vmatprep.subr.mxu0 0.0
      %5264 = vmatpush1.xpose.msra.mxu0 0.0
      %5265 = vmatprep.subr.mxu0 0.0
      %5266 = vmatpush1.xpose.msra.mxu0 0.0
      %5267 = vmatprep.subr.mxu0 0.0
      %5268 = vmatpush1.xpose.msra.mxu0 0.0
      %5269 = vmatprep.subr.mxu0 0.0
      %5270 = vmatpush1.xpose.msra.mxu0 0.0
      %5271 = vmatprep.subr.mxu0 0.0
      %5272 = vmatpush1.xpose.msra.mxu0 0.0
      %5273 = vmatprep.subr.mxu0 0.0
      %5274 = vmatpush1.xpose.msra.mxu0 0.0
      %5275 = vmatprep.subr.mxu0 0.0
      %5276 = vmatpush1.xpose.msra.mxu0 0.0
      %5277 = vmatprep.subr.mxu0 0.0
      %5278 = vmatpush1.xpose.msra.mxu0 0.0
      %5279 = vmatprep.subr.mxu0 0.0
      %5280 = vmatpush1.xpose.msra.mxu0 0.0
      %5281 = vmatprep.subr.mxu0 0.0
      %5282 = vmatpush1.xpose.msra.mxu0 0.0
      %5283 = vmatprep.subr.mxu0 0.0
      %5284 = vmatpush1.xpose.msra.mxu0 0.0
      %5285 = vmatprep.subr.mxu0 0.0
      %5286 = vmatpush1.xpose.msra.mxu0 0.0
      %5287 = vmatprep.subr.mxu0 0.0
      %5288 = vmatpush1.xpose.msra.mxu0 0.0
      %5289 = vmatprep.subr.mxu0 0.0
      %5290 = vmatpush1.xpose.msra.mxu0 0.0
      %5291 = vmatprep.subr.mxu0 0.0
      %5292 = vmatpush1.xpose.msra.mxu0 0.0
      %5293 = vmatprep.mubr.f32.mxu0 0.0
      %5294 = vmatmul.mubr.f32.gmra.mrb[0].mxu0 %v5220
      %v5295 = vpop.f32.mrb[0].mxu0
      %v5296 = vadd.f32 0.0, %v5295
      %v5297 = vpop.f32.mrb[0].mxu0
      %5298 = vmatprep.mubr.f32.mxu0 0.0
      %5299 = vmatmul.mubr.f32.gmra.mrb[0].mxu0 %v5223
      %v5300 = vpop.f32.mrb[0].mxu0
      %v5301 = vadd.f32 0.0, %v5300
      %v5302 = vpop.f32.mrb[0].mxu0
      %5303 = vdwg.mxu0
      %5306 = vrot.lane.b32.xlu0 %v5005, 120
      %v5307 = vpop.permute.xlu0 %5306
      %5308 = vrot.lane.b32.xlu0 %v5006, 120
      %v5309 = vpop.permute.xlu0 %5308
      %v5311 = vsel %vm4518, %v4685, 0
      %v5314 = vsel %vm4518, %v4686, 0
      %v5316 = vsel %vm4518, %v5307, 0
      %v5318 = vsel %vm4518, %v5309, 0
      %5320 = vmatprep.subr.mxu0 0.0
      %5321 = vmatpush1.xpose.msra.mxu0 %v5316
      %5322 = vmatprep.subr.mxu0 0.0
      %5323 = vmatpush1.xpose.msra.mxu0 %v5318
      %5324 = vmatprep.subr.mxu0 0.0
      %5325 = vmatpush1.xpose.msra.mxu0 0.0
      %5326 = vmatprep.subr.mxu0 0.0
      %5327 = vmatpush1.xpose.msra.mxu0 0.0
      %5328 = vmatprep.subr.mxu0 0.0
      %5329 = vmatpush1.xpose.msra.mxu0 0.0
      %5330 = vmatprep.subr.mxu0 0.0
      %5331 = vmatpush1.xpose.msra.mxu0 0.0
      %5332 = vmatprep.subr.mxu0 0.0
      %5333 = vmatpush1.xpose.msra.mxu0 0.0
      %5334 = vmatprep.subr.mxu0 0.0
      %5335 = vmatpush1.xpose.msra.mxu0 0.0
      %5336 = vmatprep.subr.mxu0 0.0
      %5337 = vmatpush1.xpose.msra.mxu0 0.0
      %5338 = vmatprep.subr.mxu0 0.0
      %5339 = vmatpush1.xpose.msra.mxu0 0.0
      %5340 = vmatprep.subr.mxu0 0.0
      %5341 = vmatpush1.xpose.msra.mxu0 0.0
      %5342 = vmatprep.subr.mxu0 0.0
      %5343 = vmatpush1.xpose.msra.mxu0 0.0
      %5344 = vmatprep.subr.mxu0 0.0
      %5345 = vmatpush1.xpose.msra.mxu0 0.0
      %5346 = vmatprep.subr.mxu0 0.0
      %5347 = vmatpush1.xpose.msra.mxu0 0.0
      %5348 = vmatprep.subr.mxu0 0.0
      %5349 = vmatpush1.xpose.msra.mxu0 0.0
      %5350 = vmatprep.subr.mxu0 0.0
      %5351 = vmatpush1.xpose.msra.mxu0 0.0
      %5352 = vmatprep.subr.mxu0 0.0
      %5353 = vmatpush1.xpose.msra.mxu0 0.0
      %5354 = vmatprep.subr.mxu0 0.0
      %5355 = vmatpush1.xpose.msra.mxu0 0.0
      %5356 = vmatprep.subr.mxu0 0.0
      %5357 = vmatpush1.xpose.msra.mxu0 0.0
      %5358 = vmatprep.subr.mxu0 0.0
      %5359 = vmatpush1.xpose.msra.mxu0 0.0
      %5360 = vmatprep.subr.mxu0 0.0
      %5361 = vmatpush1.xpose.msra.mxu0 0.0
      %5362 = vmatprep.subr.mxu0 0.0
      %5363 = vmatpush1.xpose.msra.mxu0 0.0
      %5364 = vmatprep.subr.mxu0 0.0
      %5365 = vmatpush1.xpose.msra.mxu0 0.0
      %5366 = vmatprep.subr.mxu0 0.0
      %5367 = vmatpush1.xpose.msra.mxu0 0.0
      %5368 = vmatprep.subr.mxu0 0.0
      %5369 = vmatpush1.xpose.msra.mxu0 0.0
      %5370 = vmatprep.subr.mxu0 0.0
      %5371 = vmatpush1.xpose.msra.mxu0 0.0
      %5372 = vmatprep.subr.mxu0 0.0
      %5373 = vmatpush1.xpose.msra.mxu0 0.0
      %5374 = vmatprep.subr.mxu0 0.0
      %5375 = vmatpush1.xpose.msra.mxu0 0.0
      %5376 = vmatprep.subr.mxu0 0.0
      %5377 = vmatpush1.xpose.msra.mxu0 0.0
      %5378 = vmatprep.subr.mxu0 0.0
      %5379 = vmatpush1.xpose.msra.mxu0 0.0
      %5380 = vmatprep.subr.mxu0 0.0
      %5381 = vmatpush1.xpose.msra.mxu0 0.0
      %5382 = vmatprep.subr.mxu0 0.0
      %5383 = vmatpush1.xpose.msra.mxu0 0.0
      %5384 = vmatprep.mubr.f32.mxu0 0.0
      %5385 = vmatmul.mubr.f32.gmra.mrb[0].mxu0 %v5311
      %v5386 = vpop.f32.mrb[0].mxu0
      %v5387 = vadd.f32 0.0, %v5386
      %v5388 = vpop.f32.mrb[0].mxu0
      %5389 = vmatprep.mubr.f32.mxu0 0.0
      %5390 = vmatmul.mubr.f32.gmra.mrb[0].mxu0 %v5314
      %v5391 = vpop.f32.mrb[0].mxu0
      %v5392 = vadd.f32 0.0, %v5391
      %v5393 = vpop.f32.mrb[0].mxu0
      %5394 = vdwg.mxu0
      %5397 = vrot.lane.b32.xlu0 %v5007, 120
      %v5398 = vpop.permute.xlu0 %5397
      %5399 = vrot.lane.b32.xlu0 %v5008, 120
      %v5400 = vpop.permute.xlu0 %5399
      %v5402 = vsel %vm4518, %v4687, 0
      %v5405 = vsel %vm4518, %v4688, 0
      %v5407 = vsel %vm4518, %v5398, 0
      %v5409 = vsel %vm4518, %v5400, 0
      %5411 = vmatprep.subr.mxu0 0.0
      %5412 = vmatpush1.xpose.msra.mxu0 %v5407
      %5413 = vmatprep.subr.mxu0 0.0
      %5414 = vmatpush1.xpose.msra.mxu0 %v5409
      %5415 = vmatprep.subr.mxu0 0.0
      %5416 = vmatpush1.xpose.msra.mxu0 0.0
      %5417 = vmatprep.subr.mxu0 0.0
      %5418 = vmatpush1.xpose.msra.mxu0 0.0
      %5419 = vmatprep.subr.mxu0 0.0
      %5420 = vmatpush1.xpose.msra.mxu0 0.0
      %5421 = vmatprep.subr.mxu0 0.0
      %5422 = vmatpush1.xpose.msra.mxu0 0.0
      %5423 = vmatprep.subr.mxu0 0.0
      %5424 = vmatpush1.xpose.msra.mxu0 0.0
      %5425 = vmatprep.subr.mxu0 0.0
      %5426 = vmatpush1.xpose.msra.mxu0 0.0
      %5427 = vmatprep.subr.mxu0 0.0
      %5428 = vmatpush1.xpose.msra.mxu0 0.0
      %5429 = vmatprep.subr.mxu0 0.0
      %5430 = vmatpush1.xpose.msra.mxu0 0.0
      %5431 = vmatprep.subr.mxu0 0.0
      %5432 = vmatpush1.xpose.msra.mxu0 0.0
      %5433 = vmatprep.subr.mxu0 0.0
      %5434 = vmatpush1.xpose.msra.mxu0 0.0
      %5435 = vmatprep.subr.mxu0 0.0
      %5436 = vmatpush1.xpose.msra.mxu0 0.0
      %5437 = vmatprep.subr.mxu0 0.0
      %5438 = vmatpush1.xpose.msra.mxu0 0.0
      %5439 = vmatprep.subr.mxu0 0.0
      %5440 = vmatpush1.xpose.msra.mxu0 0.0
      %5441 = vmatprep.subr.mxu0 0.0
      %5442 = vmatpush1.xpose.msra.mxu0 0.0
      %5443 = vmatprep.subr.mxu0 0.0
      %5444 = vmatpush1.xpose.msra.mxu0 0.0
      %5445 = vmatprep.subr.mxu0 0.0
      %5446 = vmatpush1.xpose.msra.mxu0 0.0
      %5447 = vmatprep.subr.mxu0 0.0
      %5448 = vmatpush1.xpose.msra.mxu0 0.0
      %5449 = vmatprep.subr.mxu0 0.0
      %5450 = vmatpush1.xpose.msra.mxu0 0.0
      %5451 = vmatprep.subr.mxu0 0.0
      %5452 = vmatpush1.xpose.msra.mxu0 0.0
      %5453 = vmatprep.subr.mxu0 0.0
      %5454 = vmatpush1.xpose.msra.mxu0 0.0
      %5455 = vmatprep.subr.mxu0 0.0
      %5456 = vmatpush1.xpose.msra.mxu0 0.0
      %5457 = vmatprep.subr.mxu0 0.0
      %5458 = vmatpush1.xpose.msra.mxu0 0.0
      %5459 = vmatprep.subr.mxu0 0.0
      %5460 = vmatpush1.xpose.msra.mxu0 0.0
      %5461 = vmatprep.subr.mxu0 0.0
      %5462 = vmatpush1.xpose.msra.mxu0 0.0
      %5463 = vmatprep.subr.mxu0 0.0
      %5464 = vmatpush1.xpose.msra.mxu0 0.0
      %5465 = vmatprep.subr.mxu0 0.0
      %5466 = vmatpush1.xpose.msra.mxu0 0.0
      %5467 = vmatprep.subr.mxu0 0.0
      %5468 = vmatpush1.xpose.msra.mxu0 0.0
      %5469 = vmatprep.subr.mxu0 0.0
      %5470 = vmatpush1.xpose.msra.mxu0 0.0
      %5471 = vmatprep.subr.mxu0 0.0
      %5472 = vmatpush1.xpose.msra.mxu0 0.0
      %5473 = vmatprep.subr.mxu0 0.0
      %5474 = vmatpush1.xpose.msra.mxu0 0.0
      %5475 = vmatprep.mubr.f32.mxu0 0.0
      %5476 = vmatmul.mubr.f32.gmra.mrb[0].mxu0 %v5402
      %v5477 = vpop.f32.mrb[0].mxu0
      %v5478 = vadd.f32 0.0, %v5477
      %v5479 = vpop.f32.mrb[0].mxu0
      %5480 = vmatprep.mubr.f32.mxu0 0.0
      %5481 = vmatmul.mubr.f32.gmra.mrb[0].mxu0 %v5405
      %v5482 = vpop.f32.mrb[0].mxu0
      %v5483 = vadd.f32 0.0, %v5482
      %v5484 = vpop.f32.mrb[0].mxu0
      %5485 = vdwg.mxu0
      %5488 = vrot.lane.b32.xlu0 %v5009, 120
      %v5489 = vpop.permute.xlu0 %5488
      %5490 = vrot.lane.b32.xlu0 %v5010, 120
      %v5491 = vpop.permute.xlu0 %5490
      %v5493 = vsel %vm4518, %v4689, 0
      %v5496 = vsel %vm4518, %v4690, 0
      %v5498 = vsel %vm4518, %v5489, 0
      %v5500 = vsel %vm4518, %v5491, 0
      %5502 = vmatprep.subr.mxu0 0.0
      %5503 = vmatpush1.xpose.msra.mxu0 %v5498
      %5504 = vmatprep.subr.mxu0 0.0
      %5505 = vmatpush1.xpose.msra.mxu0 %v5500
      %5506 = vmatprep.subr.mxu0 0.0
      %5507 = vmatpush1.xpose.msra.mxu0 0.0
      %5508 = vmatprep.subr.mxu0 0.0
      %5509 = vmatpush1.xpose.msra.mxu0 0.0
      %5510 = vmatprep.subr.mxu0 0.0
      %5511 = vmatpush1.xpose.msra.mxu0 0.0
      %5512 = vmatprep.subr.mxu0 0.0
      %5513 = vmatpush1.xpose.msra.mxu0 0.0
      %5514 = vmatprep.subr.mxu0 0.0
      %5515 = vmatpush1.xpose.msra.mxu0 0.0
      %5516 = vmatprep.subr.mxu0 0.0
      %5517 = vmatpush1.xpose.msra.mxu0 0.0
      %5518 = vmatprep.subr.mxu0 0.0
      %5519 = vmatpush1.xpose.msra.mxu0 0.0
      %5520 = vmatprep.subr.mxu0 0.0
      %5521 = vmatpush1.xpose.msra.mxu0 0.0
      %5522 = vmatprep.subr.mxu0 0.0
      %5523 = vmatpush1.xpose.msra.mxu0 0.0
      %5524 = vmatprep.subr.mxu0 0.0
      %5525 = vmatpush1.xpose.msra.mxu0 0.0
      %5526 = vmatprep.subr.mxu0 0.0
      %5527 = vmatpush1.xpose.msra.mxu0 0.0
      %5528 = vmatprep.subr.mxu0 0.0
      %5529 = vmatpush1.xpose.msra.mxu0 0.0
      %5530 = vmatprep.subr.mxu0 0.0
      %5531 = vmatpush1.xpose.msra.mxu0 0.0
      %5532 = vmatprep.subr.mxu0 0.0
      %5533 = vmatpush1.xpose.msra.mxu0 0.0
      %5534 = vmatprep.subr.mxu0 0.0
      %5535 = vmatpush1.xpose.msra.mxu0 0.0
      %5536 = vmatprep.subr.mxu0 0.0
      %5537 = vmatpush1.xpose.msra.mxu0 0.0
      %5538 = vmatprep.subr.mxu0 0.0
      %5539 = vmatpush1.xpose.msra.mxu0 0.0
      %5540 = vmatprep.subr.mxu0 0.0
      %5541 = vmatpush1.xpose.msra.mxu0 0.0
      %5542 = vmatprep.subr.mxu0 0.0
      %5543 = vmatpush1.xpose.msra.mxu0 0.0
      %5544 = vmatprep.subr.mxu0 0.0
      %5545 = vmatpush1.xpose.msra.mxu0 0.0
      %5546 = vmatprep.subr.mxu0 0.0
      %5547 = vmatpush1.xpose.msra.mxu0 0.0
      %5548 = vmatprep.subr.mxu0 0.0
      %5549 = vmatpush1.xpose.msra.mxu0 0.0
      %5550 = vmatprep.subr.mxu0 0.0
      %5551 = vmatpush1.xpose.msra.mxu0 0.0
      %5552 = vmatprep.subr.mxu0 0.0
      %5553 = vmatpush1.xpose.msra.mxu0 0.0
      %5554 = vmatprep.subr.mxu0 0.0
      %5555 = vmatpush1.xpose.msra.mxu0 0.0
      %5556 = vmatprep.subr.mxu0 0.0
      %5557 = vmatpush1.xpose.msra.mxu0 0.0
      %5558 = vmatprep.subr.mxu0 0.0
      %5559 = vmatpush1.xpose.msra.mxu0 0.0
      %5560 = vmatprep.subr.mxu0 0.0
      %5561 = vmatpush1.xpose.msra.mxu0 0.0
      %5562 = vmatprep.subr.mxu0 0.0
      %5563 = vmatpush1.xpose.msra.mxu0 0.0
      %5564 = vmatprep.subr.mxu0 0.0
      %5565 = vmatpush1.xpose.msra.mxu0 0.0
      %5566 = vmatprep.mubr.f32.mxu0 0.0
      %5567 = vmatmul.mubr.f32.gmra.mrb[0].mxu0 %v5493
      %v5568 = vpop.f32.mrb[0].mxu0
      %v5569 = vadd.f32 0.0, %v5568
      %v5570 = vpop.f32.mrb[0].mxu0
      %5571 = vmatprep.mubr.f32.mxu0 0.0
      %5572 = vmatmul.mubr.f32.gmra.mrb[0].mxu0 %v5496
      %v5573 = vpop.f32.mrb[0].mxu0
      %v5574 = vadd.f32 0.0, %v5573
      %v5575 = vpop.f32.mrb[0].mxu0
      %5576 = vdwg.mxu0
      %5579 = vrot.lane.b32.xlu0 %v5011, 120
      %v5580 = vpop.permute.xlu0 %5579
      %5581 = vrot.lane.b32.xlu0 %v5012, 120
      %v5582 = vpop.permute.xlu0 %5581
      %v5584 = vsel %vm4518, %v4691, 0
      %v5587 = vsel %vm4518, %v4692, 0
      %v5589 = vsel %vm4518, %v5580, 0
      %v5591 = vsel %vm4518, %v5582, 0
      %5593 = vmatprep.subr.mxu0 0.0
      %5594 = vmatpush1.xpose.msra.mxu0 %v5589
      %5595 = vmatprep.subr.mxu0 0.0
      %5596 = vmatpush1.xpose.msra.mxu0 %v5591
      %5597 = vmatprep.subr.mxu0 0.0
      %5598 = vmatpush1.xpose.msra.mxu0 0.0
      %5599 = vmatprep.subr.mxu0 0.0
      %5600 = vmatpush1.xpose.msra.mxu0 0.0
      %5601 = vmatprep.subr.mxu0 0.0
      %5602 = vmatpush1.xpose.msra.mxu0 0.0
      %5603 = vmatprep.subr.mxu0 0.0
      %5604 = vmatpush1.xpose.msra.mxu0 0.0
      %5605 = vmatprep.subr.mxu0 0.0
      %5606 = vmatpush1.xpose.msra.mxu0 0.0
      %5607 = vmatprep.subr.mxu0 0.0
      %5608 = vmatpush1.xpose.msra.mxu0 0.0
      %5609 = vmatprep.subr.mxu0 0.0
      %5610 = vmatpush1.xpose.msra.mxu0 0.0
      %5611 = vmatprep.subr.mxu0 0.0
      %5612 = vmatpush1.xpose.msra.mxu0 0.0
      %5613 = vmatprep.subr.mxu0 0.0
      %5614 = vmatpush1.xpose.msra.mxu0 0.0
      %5615 = vmatprep.subr.mxu0 0.0
      %5616 = vmatpush1.xpose.msra.mxu0 0.0
      %5617 = vmatprep.subr.mxu0 0.0
      %5618 = vmatpush1.xpose.msra.mxu0 0.0
      %5619 = vmatprep.subr.mxu0 0.0
      %5620 = vmatpush1.xpose.msra.mxu0 0.0
      %5621 = vmatprep.subr.mxu0 0.0
      %5622 = vmatpush1.xpose.msra.mxu0 0.0
      %5623 = vmatprep.subr.mxu0 0.0
      %5624 = vmatpush1.xpose.msra.mxu0 0.0
      %5625 = vmatprep.subr.mxu0 0.0
      %5626 = vmatpush1.xpose.msra.mxu0 0.0
      %5627 = vmatprep.subr.mxu0 0.0
      %5628 = vmatpush1.xpose.msra.mxu0 0.0
      %5629 = vmatprep.subr.mxu0 0.0
      %5630 = vmatpush1.xpose.msra.mxu0 0.0
      %5631 = vmatprep.subr.mxu0 0.0
      %5632 = vmatpush1.xpose.msra.mxu0 0.0
      %5633 = vmatprep.subr.mxu0 0.0
      %5634 = vmatpush1.xpose.msra.mxu0 0.0
      %5635 = vmatprep.subr.mxu0 0.0
      %5636 = vmatpush1.xpose.msra.mxu0 0.0
      %5637 = vmatprep.subr.mxu0 0.0
      %5638 = vmatpush1.xpose.msra.mxu0 0.0
      %5639 = vmatprep.subr.mxu0 0.0
      %5640 = vmatpush1.xpose.msra.mxu0 0.0
      %5641 = vmatprep.subr.mxu0 0.0
      %5642 = vmatpush1.xpose.msra.mxu0 0.0
      %5643 = vmatprep.subr.mxu0 0.0
      %5644 = vmatpush1.xpose.msra.mxu0 0.0
      %5645 = vmatprep.subr.mxu0 0.0
      %5646 = vmatpush1.xpose.msra.mxu0 0.0
      %5647 = vmatprep.subr.mxu0 0.0
      %5648 = vmatpush1.xpose.msra.mxu0 0.0
      %5649 = vmatprep.subr.mxu0 0.0
      %5650 = vmatpush1.xpose.msra.mxu0 0.0
      %5651 = vmatprep.subr.mxu0 0.0
      %5652 = vmatpush1.xpose.msra.mxu0 0.0
      %5653 = vmatprep.subr.mxu0 0.0
      %5654 = vmatpush1.xpose.msra.mxu0 0.0
      %5655 = vmatprep.subr.mxu0 0.0
      %5656 = vmatpush1.xpose.msra.mxu0 0.0
      %5657 = vmatprep.mubr.f32.mxu0 0.0
      %5658 = vmatmul.mubr.f32.gmra.mrb[0].mxu0 %v5584
      %v5659 = vpop.f32.mrb[0].mxu0
      %v5660 = vadd.f32 0.0, %v5659
      %v5661 = vpop.f32.mrb[0].mxu0
      %5662 = vmatprep.mubr.f32.mxu0 0.0
      %5663 = vmatmul.mubr.f32.gmra.mrb[0].mxu0 %v5587
      %v5664 = vpop.f32.mrb[0].mxu0
      %v5665 = vadd.f32 0.0, %v5664
      %v5666 = vpop.f32.mrb[0].mxu0
      %5667 = vdwg.mxu0
      %5670 = vrot.lane.b32.xlu0 %v5013, 120
      %v5671 = vpop.permute.xlu0 %5670
      %5672 = vrot.lane.b32.xlu0 %v5014, 120
      %v5673 = vpop.permute.xlu0 %5672
      %v5675 = vsel %vm4518, %v4693, 0
      %v5678 = vsel %vm4518, %v4694, 0
      %v5680 = vsel %vm4518, %v5671, 0
      %v5682 = vsel %vm4518, %v5673, 0
      %5684 = vmatprep.subr.mxu0 0.0
      %5685 = vmatpush1.xpose.msra.mxu0 %v5680
      %5686 = vmatprep.subr.mxu0 0.0
      %5687 = vmatpush1.xpose.msra.mxu0 %v5682
      %5688 = vmatprep.subr.mxu0 0.0
      %5689 = vmatpush1.xpose.msra.mxu0 0.0
      %5690 = vmatprep.subr.mxu0 0.0
      %5691 = vmatpush1.xpose.msra.mxu0 0.0
      %5692 = vmatprep.subr.mxu0 0.0
      %5693 = vmatpush1.xpose.msra.mxu0 0.0
      %5694 = vmatprep.subr.mxu0 0.0
      %5695 = vmatpush1.xpose.msra.mxu0 0.0
      %5696 = vmatprep.subr.mxu0 0.0
      %5697 = vmatpush1.xpose.msra.mxu0 0.0
      %5698 = vmatprep.subr.mxu0 0.0
      %5699 = vmatpush1.xpose.msra.mxu0 0.0
      %5700 = vmatprep.subr.mxu0 0.0
      %5701 = vmatpush1.xpose.msra.mxu0 0.0
      %5702 = vmatprep.subr.mxu0 0.0
      %5703 = vmatpush1.xpose.msra.mxu0 0.0
      %5704 = vmatprep.subr.mxu0 0.0
      %5705 = vmatpush1.xpose.msra.mxu0 0.0
      %5706 = vmatprep.subr.mxu0 0.0
      %5707 = vmatpush1.xpose.msra.mxu0 0.0
      %5708 = vmatprep.subr.mxu0 0.0
      %5709 = vmatpush1.xpose.msra.mxu0 0.0
      %5710 = vmatprep.subr.mxu0 0.0
      %5711 = vmatpush1.xpose.msra.mxu0 0.0
      %5712 = vmatprep.subr.mxu0 0.0
      %5713 = vmatpush1.xpose.msra.mxu0 0.0
      %5714 = vmatprep.subr.mxu0 0.0
      %5715 = vmatpush1.xpose.msra.mxu0 0.0
      %5716 = vmatprep.subr.mxu0 0.0
      %5717 = vmatpush1.xpose.msra.mxu0 0.0
      %5718 = vmatprep.subr.mxu0 0.0
      %5719 = vmatpush1.xpose.msra.mxu0 0.0
      %5720 = vmatprep.subr.mxu0 0.0
      %5721 = vmatpush1.xpose.msra.mxu0 0.0
      %5722 = vmatprep.subr.mxu0 0.0
      %5723 = vmatpush1.xpose.msra.mxu0 0.0
      %5724 = vmatprep.subr.mxu0 0.0
      %5725 = vmatpush1.xpose.msra.mxu0 0.0
      %5726 = vmatprep.subr.mxu0 0.0
      %5727 = vmatpush1.xpose.msra.mxu0 0.0
      %5728 = vmatprep.subr.mxu0 0.0
      %5729 = vmatpush1.xpose.msra.mxu0 0.0
      %5730 = vmatprep.subr.mxu0 0.0
      %5731 = vmatpush1.xpose.msra.mxu0 0.0
      %5732 = vmatprep.subr.mxu0 0.0
      %5733 = vmatpush1.xpose.msra.mxu0 0.0
      %5734 = vmatprep.subr.mxu0 0.0
      %5735 = vmatpush1.xpose.msra.mxu0 0.0
      %5736 = vmatprep.subr.mxu0 0.0
      %5737 = vmatpush1.xpose.msra.mxu0 0.0
      %5738 = vmatprep.subr.mxu0 0.0
      %5739 = vmatpush1.xpose.msra.mxu0 0.0
      %5740 = vmatprep.subr.mxu0 0.0
      %5741 = vmatpush1.xpose.msra.mxu0 0.0
      %5742 = vmatprep.subr.mxu0 0.0
      %5743 = vmatpush1.xpose.msra.mxu0 0.0
      %5744 = vmatprep.subr.mxu0 0.0
      %5745 = vmatpush1.xpose.msra.mxu0 0.0
      %5746 = vmatprep.subr.mxu0 0.0
      %5747 = vmatpush1.xpose.msra.mxu0 0.0
      %5748 = vmatprep.mubr.f32.mxu0 0.0
      %5749 = vmatmul.mubr.f32.gmra.mrb[0].mxu0 %v5675
      %v5750 = vpop.f32.mrb[0].mxu0
      %v5751 = vadd.f32 0.0, %v5750
      %v5752 = vpop.f32.mrb[0].mxu0
      %5753 = vmatprep.mubr.f32.mxu0 0.0
      %5754 = vmatmul.mubr.f32.gmra.mrb[0].mxu0 %v5678
      %v5755 = vpop.f32.mrb[0].mxu0
      %v5756 = vadd.f32 0.0, %v5755
      %v5757 = vpop.f32.mrb[0].mxu0
      %5758 = vdwg.mxu0
      %5761 = vrot.lane.b32.xlu0 %v5015, 120
      %v5762 = vpop.permute.xlu0 %5761
      %5763 = vrot.lane.b32.xlu0 %v5016, 120
      %v5764 = vpop.permute.xlu0 %5763
      %v5766 = vsel %vm4518, %v4695, 0
      %v5769 = vsel %vm4518, %v4696, 0
      %v5771 = vsel %vm4518, %v5762, 0
      %v5773 = vsel %vm4518, %v5764, 0
      %5775 = vmatprep.subr.mxu0 0.0
      %5776 = vmatpush1.xpose.msra.mxu0 %v5771
      %5777 = vmatprep.subr.mxu0 0.0
      %5778 = vmatpush1.xpose.msra.mxu0 %v5773
      %5779 = vmatprep.subr.mxu0 0.0
      %5780 = vmatpush1.xpose.msra.mxu0 0.0
      %5781 = vmatprep.subr.mxu0 0.0
      %5782 = vmatpush1.xpose.msra.mxu0 0.0
      %5783 = vmatprep.subr.mxu0 0.0
      %5784 = vmatpush1.xpose.msra.mxu0 0.0
      %5785 = vmatprep.subr.mxu0 0.0
      %5786 = vmatpush1.xpose.msra.mxu0 0.0
      %5787 = vmatprep.subr.mxu0 0.0
      %5788 = vmatpush1.xpose.msra.mxu0 0.0
      %5789 = vmatprep.subr.mxu0 0.0
      %5790 = vmatpush1.xpose.msra.mxu0 0.0
      %5791 = vmatprep.subr.mxu0 0.0
      %5792 = vmatpush1.xpose.msra.mxu0 0.0
      %5793 = vmatprep.subr.mxu0 0.0
      %5794 = vmatpush1.xpose.msra.mxu0 0.0
      %5795 = vmatprep.subr.mxu0 0.0
      %5796 = vmatpush1.xpose.msra.mxu0 0.0
      %5797 = vmatprep.subr.mxu0 0.0
      %5798 = vmatpush1.xpose.msra.mxu0 0.0
      %5799 = vmatprep.subr.mxu0 0.0
      %5800 = vmatpush1.xpose.msra.mxu0 0.0
      %5801 = vmatprep.subr.mxu0 0.0
      %5802 = vmatpush1.xpose.msra.mxu0 0.0
      %5803 = vmatprep.subr.mxu0 0.0
      %5804 = vmatpush1.xpose.msra.mxu0 0.0
      %5805 = vmatprep.subr.mxu0 0.0
      %5806 = vmatpush1.xpose.msra.mxu0 0.0
      %5807 = vmatprep.subr.mxu0 0.0
      %5808 = vmatpush1.xpose.msra.mxu0 0.0
      %5809 = vmatprep.subr.mxu0 0.0
      %5810 = vmatpush1.xpose.msra.mxu0 0.0
      %5811 = vmatprep.subr.mxu0 0.0
      %5812 = vmatpush1.xpose.msra.mxu0 0.0
      %5813 = vmatprep.subr.mxu0 0.0
      %5814 = vmatpush1.xpose.msra.mxu0 0.0
      %5815 = vmatprep.subr.mxu0 0.0
      %5816 = vmatpush1.xpose.msra.mxu0 0.0
      %5817 = vmatprep.subr.mxu0 0.0
      %5818 = vmatpush1.xpose.msra.mxu0 0.0
      %5819 = vmatprep.subr.mxu0 0.0
      %5820 = vmatpush1.xpose.msra.mxu0 0.0
      %5821 = vmatprep.subr.mxu0 0.0
      %5822 = vmatpush1.xpose.msra.mxu0 0.0
      %5823 = vmatprep.subr.mxu0 0.0
      %5824 = vmatpush1.xpose.msra.mxu0 0.0
      %5825 = vmatprep.subr.mxu0 0.0
      %5826 = vmatpush1.xpose.msra.mxu0 0.0
      %5827 = vmatprep.subr.mxu0 0.0
      %5828 = vmatpush1.xpose.msra.mxu0 0.0
      %5829 = vmatprep.subr.mxu0 0.0
      %5830 = vmatpush1.xpose.msra.mxu0 0.0
      %5831 = vmatprep.subr.mxu0 0.0
      %5832 = vmatpush1.xpose.msra.mxu0 0.0
      %5833 = vmatprep.subr.mxu0 0.0
      %5834 = vmatpush1.xpose.msra.mxu0 0.0
      %5835 = vmatprep.subr.mxu0 0.0
      %5836 = vmatpush1.xpose.msra.mxu0 0.0
      %5837 = vmatprep.subr.mxu0 0.0
      %5838 = vmatpush1.xpose.msra.mxu0 0.0
      %5839 = vmatprep.mubr.f32.mxu0 0.0
      %5840 = vmatmul.mubr.f32.gmra.mrb[0].mxu0 %v5766
      %v5841 = vpop.f32.mrb[0].mxu0
      %v5842 = vadd.f32 0.0, %v5841
      %v5843 = vpop.f32.mrb[0].mxu0
      %5844 = vmatprep.mubr.f32.mxu0 0.0
      %5845 = vmatmul.mubr.f32.gmra.mrb[0].mxu0 %v5769
      %v5846 = vpop.f32.mrb[0].mxu0
      %v5847 = vadd.f32 0.0, %v5846
      %v5848 = vpop.f32.mrb[0].mxu0
      %5849 = vdwg.mxu0
      %5852 = vrot.lane.b32.xlu0 %v5017, 120
      %v5853 = vpop.permute.xlu0 %5852
      %5854 = vrot.lane.b32.xlu0 %v5018, 120
      %v5855 = vpop.permute.xlu0 %5854
      %v5857 = vsel %vm4518, %v4697, 0
      %v5860 = vsel %vm4518, %v4698, 0
      %v5862 = vsel %vm4518, %v5853, 0
      %v5864 = vsel %vm4518, %v5855, 0
      %5866 = vmatprep.subr.mxu0 0.0
      %5867 = vmatpush1.xpose.msra.mxu0 %v5862
      %5868 = vmatprep.subr.mxu0 0.0
      %5869 = vmatpush1.xpose.msra.mxu0 %v5864
      %5870 = vmatprep.subr.mxu0 0.0
      %5871 = vmatpush1.xpose.msra.mxu0 0.0
      %5872 = vmatprep.subr.mxu0 0.0
      %5873 = vmatpush1.xpose.msra.mxu0 0.0
      %5874 = vmatprep.subr.mxu0 0.0
      %5875 = vmatpush1.xpose.msra.mxu0 0.0
      %5876 = vmatprep.subr.mxu0 0.0
      %5877 = vmatpush1.xpose.msra.mxu0 0.0
      %5878 = vmatprep.subr.mxu0 0.0
      %5879 = vmatpush1.xpose.msra.mxu0 0.0
      %5880 = vmatprep.subr.mxu0 0.0
      %5881 = vmatpush1.xpose.msra.mxu0 0.0
      %5882 = vmatprep.subr.mxu0 0.0
      %5883 = vmatpush1.xpose.msra.mxu0 0.0
      %5884 = vmatprep.subr.mxu0 0.0
      %5885 = vmatpush1.xpose.msra.mxu0 0.0
      %5886 = vmatprep.subr.mxu0 0.0
      %5887 = vmatpush1.xpose.msra.mxu0 0.0
      %5888 = vmatprep.subr.mxu0 0.0
      %5889 = vmatpush1.xpose.msra.mxu0 0.0
      %5890 = vmatprep.subr.mxu0 0.0
      %5891 = vmatpush1.xpose.msra.mxu0 0.0
      %5892 = vmatprep.subr.mxu0 0.0
      %5893 = vmatpush1.xpose.msra.mxu0 0.0
      %5894 = vmatprep.subr.mxu0 0.0
      %5895 = vmatpush1.xpose.msra.mxu0 0.0
      %5896 = vmatprep.subr.mxu0 0.0
      %5897 = vmatpush1.xpose.msra.mxu0 0.0
      %5898 = vmatprep.subr.mxu0 0.0
      %5899 = vmatpush1.xpose.msra.mxu0 0.0
      %5900 = vmatprep.subr.mxu0 0.0
      %5901 = vmatpush1.xpose.msra.mxu0 0.0
      %5902 = vmatprep.subr.mxu0 0.0
      %5903 = vmatpush1.xpose.msra.mxu0 0.0
      %5904 = vmatprep.subr.mxu0 0.0
      %5905 = vmatpush1.xpose.msra.mxu0 0.0
      %5906 = vmatprep.subr.mxu0 0.0
      %5907 = vmatpush1.xpose.msra.mxu0 0.0
      %5908 = vmatprep.subr.mxu0 0.0
      %5909 = vmatpush1.xpose.msra.mxu0 0.0
      %5910 = vmatprep.subr.mxu0 0.0
      %5911 = vmatpush1.xpose.msra.mxu0 0.0
      %5912 = vmatprep.subr.mxu0 0.0
      %5913 = vmatpush1.xpose.msra.mxu0 0.0
      %5914 = vmatprep.subr.mxu0 0.0
      %5915 = vmatpush1.xpose.msra.mxu0 0.0
      %5916 = vmatprep.subr.mxu0 0.0
      %5917 = vmatpush1.xpose.msra.mxu0 0.0
      %5918 = vmatprep.subr.mxu0 0.0
      %5919 = vmatpush1.xpose.msra.mxu0 0.0
      %5920 = vmatprep.subr.mxu0 0.0
      %5921 = vmatpush1.xpose.msra.mxu0 0.0
      %5922 = vmatprep.subr.mxu0 0.0
      %5923 = vmatpush1.xpose.msra.mxu0 0.0
      %5924 = vmatprep.subr.mxu0 0.0
      %5925 = vmatpush1.xpose.msra.mxu0 0.0
      %5926 = vmatprep.subr.mxu0 0.0
      %5927 = vmatpush1.xpose.msra.mxu0 0.0
      %5928 = vmatprep.subr.mxu0 0.0
      %5929 = vmatpush1.xpose.msra.mxu0 0.0
      %5930 = vmatprep.mubr.f32.mxu0 0.0
      %5931 = vmatmul.mubr.f32.gmra.mrb[0].mxu0 %v5857
      %v5932 = vpop.f32.mrb[0].mxu0
      %v5933 = vadd.f32 0.0, %v5932
      %v5934 = vpop.f32.mrb[0].mxu0
      %5935 = vmatprep.mubr.f32.mxu0 0.0
      %5936 = vmatmul.mubr.f32.gmra.mrb[0].mxu0 %v5860
      %v5937 = vpop.f32.mrb[0].mxu0
      %v5938 = vadd.f32 0.0, %v5937
      %v5939 = vpop.f32.mrb[0].mxu0
      %5940 = vdwg.mxu0
      %5943 = vrot.lane.b32.xlu0 %v5019, 120
      %v5944 = vpop.permute.xlu0 %5943
      %5945 = vrot.lane.b32.xlu0 %v5020, 120
      %v5946 = vpop.permute.xlu0 %5945
      %v5948 = vsel %vm4518, %v4699, 0
      %v5951 = vsel %vm4518, %v4700, 0
      %v5953 = vsel %vm4518, %v5944, 0
      %v5955 = vsel %vm4518, %v5946, 0
      %5957 = vmatprep.subr.mxu0 0.0
      %5958 = vmatpush1.xpose.msra.mxu0 %v5953
      %5959 = vmatprep.subr.mxu0 0.0
      %5960 = vmatpush1.xpose.msra.mxu0 %v5955
      %5961 = vmatprep.subr.mxu0 0.0
      %5962 = vmatpush1.xpose.msra.mxu0 0.0
      %5963 = vmatprep.subr.mxu0 0.0
      %5964 = vmatpush1.xpose.msra.mxu0 0.0
      %5965 = vmatprep.subr.mxu0 0.0
      %5966 = vmatpush1.xpose.msra.mxu0 0.0
      %5967 = vmatprep.subr.mxu0 0.0
      %5968 = vmatpush1.xpose.msra.mxu0 0.0
      %5969 = vmatprep.subr.mxu0 0.0
      %5970 = vmatpush1.xpose.msra.mxu0 0.0
      %5971 = vmatprep.subr.mxu0 0.0
      %5972 = vmatpush1.xpose.msra.mxu0 0.0
      %5973 = vmatprep.subr.mxu0 0.0
      %5974 = vmatpush1.xpose.msra.mxu0 0.0
      %5975 = vmatprep.subr.mxu0 0.0
      %5976 = vmatpush1.xpose.msra.mxu0 0.0
      %5977 = vmatprep.subr.mxu0 0.0
      %5978 = vmatpush1.xpose.msra.mxu0 0.0
      %5979 = vmatprep.subr.mxu0 0.0
      %5980 = vmatpush1.xpose.msra.mxu0 0.0
      %5981 = vmatprep.subr.mxu0 0.0
      %5982 = vmatpush1.xpose.msra.mxu0 0.0
      %5983 = vmatprep.subr.mxu0 0.0
      %5984 = vmatpush1.xpose.msra.mxu0 0.0
      %5985 = vmatprep.subr.mxu0 0.0
      %5986 = vmatpush1.xpose.msra.mxu0 0.0
      %5987 = vmatprep.subr.mxu0 0.0
      %5988 = vmatpush1.xpose.msra.mxu0 0.0
      %5989 = vmatprep.subr.mxu0 0.0
      %5990 = vmatpush1.xpose.msra.mxu0 0.0
      %5991 = vmatprep.subr.mxu0 0.0
      %5992 = vmatpush1.xpose.msra.mxu0 0.0
      %5993 = vmatprep.subr.mxu0 0.0
      %5994 = vmatpush1.xpose.msra.mxu0 0.0
      %5995 = vmatprep.subr.mxu0 0.0
      %5996 = vmatpush1.xpose.msra.mxu0 0.0
      %5997 = vmatprep.subr.mxu0 0.0
      %5998 = vmatpush1.xpose.msra.mxu0 0.0
      %5999 = vmatprep.subr.mxu0 0.0
      %6000 = vmatpush1.xpose.msra.mxu0 0.0
      %6001 = vmatprep.subr.mxu0 0.0
      %6002 = vmatpush1.xpose.msra.mxu0 0.0
      %6003 = vmatprep.subr.mxu0 0.0
      %6004 = vmatpush1.xpose.msra.mxu0 0.0
      %6005 = vmatprep.subr.mxu0 0.0
      %6006 = vmatpush1.xpose.msra.mxu0 0.0
      %6007 = vmatprep.subr.mxu0 0.0
      %6008 = vmatpush1.xpose.msra.mxu0 0.0
      %6009 = vmatprep.subr.mxu0 0.0
      %6010 = vmatpush1.xpose.msra.mxu0 0.0
      %6011 = vmatprep.subr.mxu0 0.0
      %6012 = vmatpush1.xpose.msra.mxu0 0.0
      %6013 = vmatprep.subr.mxu0 0.0
      %6014 = vmatpush1.xpose.msra.mxu0 0.0
      %6015 = vmatprep.subr.mxu0 0.0
      %6016 = vmatpush1.xpose.msra.mxu0 0.0
      %6017 = vmatprep.subr.mxu0 0.0
      %6018 = vmatpush1.xpose.msra.mxu0 0.0
      %6019 = vmatprep.subr.mxu0 0.0
      %6020 = vmatpush1.xpose.msra.mxu0 0.0
      %6021 = vmatprep.mubr.f32.mxu0 0.0
      %6022 = vmatmul.mubr.f32.gmra.mrb[0].mxu0 %v5948
      %v6023 = vpop.f32.mrb[0].mxu0
      %v6024 = vadd.f32 0.0, %v6023
      %v6025 = vpop.f32.mrb[0].mxu0
      %6026 = vmatprep.mubr.f32.mxu0 0.0
      %6027 = vmatmul.mubr.f32.gmra.mrb[0].mxu0 %v5951
      %v6028 = vpop.f32.mrb[0].mxu0
      %v6029 = vadd.f32 0.0, %v6028
      %v6030 = vpop.f32.mrb[0].mxu0
      %6031 = vdwg.mxu0
      %6034 = vrot.lane.b32.xlu0 %v5021, 120
      %v6035 = vpop.permute.xlu0 %6034
      %6036 = vrot.lane.b32.xlu0 %v5022, 120
      %v6037 = vpop.permute.xlu0 %6036
      %v6039 = vsel %vm4518, %v4701, 0
      %v6042 = vsel %vm4518, %v4702, 0
      %v6044 = vsel %vm4518, %v6035, 0
      %v6046 = vsel %vm4518, %v6037, 0
      %6048 = vmatprep.subr.mxu0 0.0
      %6049 = vmatpush1.xpose.msra.mxu0 %v6044
      %6050 = vmatprep.subr.mxu0 0.0
      %6051 = vmatpush1.xpose.msra.mxu0 %v6046
      %6052 = vmatprep.subr.mxu0 0.0
      %6053 = vmatpush1.xpose.msra.mxu0 0.0
      %6054 = vmatprep.subr.mxu0 0.0
      %6055 = vmatpush1.xpose.msra.mxu0 0.0
      %6056 = vmatprep.subr.mxu0 0.0
      %6057 = vmatpush1.xpose.msra.mxu0 0.0
      %6058 = vmatprep.subr.mxu0 0.0
      %6059 = vmatpush1.xpose.msra.mxu0 0.0
      %6060 = vmatprep.subr.mxu0 0.0
      %6061 = vmatpush1.xpose.msra.mxu0 0.0
      %6062 = vmatprep.subr.mxu0 0.0
      %6063 = vmatpush1.xpose.msra.mxu0 0.0
      %6064 = vmatprep.subr.mxu0 0.0
      %6065 = vmatpush1.xpose.msra.mxu0 0.0
      %6066 = vmatprep.subr.mxu0 0.0
      %6067 = vmatpush1.xpose.msra.mxu0 0.0
      %6068 = vmatprep.subr.mxu0 0.0
      %6069 = vmatpush1.xpose.msra.mxu0 0.0
      %6070 = vmatprep.subr.mxu0 0.0
      %6071 = vmatpush1.xpose.msra.mxu0 0.0
      %6072 = vmatprep.subr.mxu0 0.0
      %6073 = vmatpush1.xpose.msra.mxu0 0.0
      %6074 = vmatprep.subr.mxu0 0.0
      %6075 = vmatpush1.xpose.msra.mxu0 0.0
      %6076 = vmatprep.subr.mxu0 0.0
      %6077 = vmatpush1.xpose.msra.mxu0 0.0
      %6078 = vmatprep.subr.mxu0 0.0
      %6079 = vmatpush1.xpose.msra.mxu0 0.0
      %6080 = vmatprep.subr.mxu0 0.0
      %6081 = vmatpush1.xpose.msra.mxu0 0.0
      %6082 = vmatprep.subr.mxu0 0.0
      %6083 = vmatpush1.xpose.msra.mxu0 0.0
      %6084 = vmatprep.subr.mxu0 0.0
      %6085 = vmatpush1.xpose.msra.mxu0 0.0
      %6086 = vmatprep.subr.mxu0 0.0
      %6087 = vmatpush1.xpose.msra.mxu0 0.0
      %6088 = vmatprep.subr.mxu0 0.0
      %6089 = vmatpush1.xpose.msra.mxu0 0.0
      %6090 = vmatprep.subr.mxu0 0.0
      %6091 = vmatpush1.xpose.msra.mxu0 0.0
      %6092 = vmatprep.subr.mxu0 0.0
      %6093 = vmatpush1.xpose.msra.mxu0 0.0
      %6094 = vmatprep.subr.mxu0 0.0
      %6095 = vmatpush1.xpose.msra.mxu0 0.0
      %6096 = vmatprep.subr.mxu0 0.0
      %6097 = vmatpush1.xpose.msra.mxu0 0.0
      %6098 = vmatprep.subr.mxu0 0.0
      %6099 = vmatpush1.xpose.msra.mxu0 0.0
      %6100 = vmatprep.subr.mxu0 0.0
      %6101 = vmatpush1.xpose.msra.mxu0 0.0
      %6102 = vmatprep.subr.mxu0 0.0
      %6103 = vmatpush1.xpose.msra.mxu0 0.0
      %6104 = vmatprep.subr.mxu0 0.0
      %6105 = vmatpush1.xpose.msra.mxu0 0.0
      %6106 = vmatprep.subr.mxu0 0.0
      %6107 = vmatpush1.xpose.msra.mxu0 0.0
      %6108 = vmatprep.subr.mxu0 0.0
      %6109 = vmatpush1.xpose.msra.mxu0 0.0
      %6110 = vmatprep.subr.mxu0 0.0
      %6111 = vmatpush1.xpose.msra.mxu0 0.0
      %6112 = vmatprep.mubr.f32.mxu0 0.0
      %6113 = vmatmul.mubr.f32.gmra.mrb[0].mxu0 %v6039
      %v6114 = vpop.f32.mrb[0].mxu0
      %v6115 = vadd.f32 0.0, %v6114
      %v6116 = vpop.f32.mrb[0].mxu0
      %6117 = vmatprep.mubr.f32.mxu0 0.0
      %6118 = vmatmul.mubr.f32.gmra.mrb[0].mxu0 %v6042
      %v6119 = vpop.f32.mrb[0].mxu0
      %v6120 = vadd.f32 0.0, %v6119
      %v6121 = vpop.f32.mrb[0].mxu0
      %6122 = vdwg.mxu0
      %6125 = vrot.lane.b32.xlu0 %v5023, 120
      %v6126 = vpop.permute.xlu0 %6125
      %6127 = vrot.lane.b32.xlu0 %v5024, 120
      %v6128 = vpop.permute.xlu0 %6127
      %v6130 = vsel %vm4518, %v4703, 0
      %v6133 = vsel %vm4518, %v4704, 0
      %v6135 = vsel %vm4518, %v6126, 0
      %v6137 = vsel %vm4518, %v6128, 0
      %6139 = vmatprep.subr.mxu0 0.0
      %6140 = vmatpush1.xpose.msra.mxu0 %v6135
      %6141 = vmatprep.subr.mxu0 0.0
      %6142 = vmatpush1.xpose.msra.mxu0 %v6137
      %6143 = vmatprep.subr.mxu0 0.0
      %6144 = vmatpush1.xpose.msra.mxu0 0.0
      %6145 = vmatprep.subr.mxu0 0.0
      %6146 = vmatpush1.xpose.msra.mxu0 0.0
      %6147 = vmatprep.subr.mxu0 0.0
      %6148 = vmatpush1.xpose.msra.mxu0 0.0
      %6149 = vmatprep.subr.mxu0 0.0
      %6150 = vmatpush1.xpose.msra.mxu0 0.0
      %6151 = vmatprep.subr.mxu0 0.0
      %6152 = vmatpush1.xpose.msra.mxu0 0.0
      %6153 = vmatprep.subr.mxu0 0.0
      %6154 = vmatpush1.xpose.msra.mxu0 0.0
      %6155 = vmatprep.subr.mxu0 0.0
      %6156 = vmatpush1.xpose.msra.mxu0 0.0
      %6157 = vmatprep.subr.mxu0 0.0
      %6158 = vmatpush1.xpose.msra.mxu0 0.0
      %6159 = vmatprep.subr.mxu0 0.0
      %6160 = vmatpush1.xpose.msra.mxu0 0.0
      %6161 = vmatprep.subr.mxu0 0.0
      %6162 = vmatpush1.xpose.msra.mxu0 0.0
      %6163 = vmatprep.subr.mxu0 0.0
      %6164 = vmatpush1.xpose.msra.mxu0 0.0
      %6165 = vmatprep.subr.mxu0 0.0
      %6166 = vmatpush1.xpose.msra.mxu0 0.0
      %6167 = vmatprep.subr.mxu0 0.0
      %6168 = vmatpush1.xpose.msra.mxu0 0.0
      %6169 = vmatprep.subr.mxu0 0.0
      %6170 = vmatpush1.xpose.msra.mxu0 0.0
      %6171 = vmatprep.subr.mxu0 0.0
      %6172 = vmatpush1.xpose.msra.mxu0 0.0
      %6173 = vmatprep.subr.mxu0 0.0
      %6174 = vmatpush1.xpose.msra.mxu0 0.0
      %6175 = vmatprep.subr.mxu0 0.0
      %6176 = vmatpush1.xpose.msra.mxu0 0.0
      %6177 = vmatprep.subr.mxu0 0.0
      %6178 = vmatpush1.xpose.msra.mxu0 0.0
      %6179 = vmatprep.subr.mxu0 0.0
      %6180 = vmatpush1.xpose.msra.mxu0 0.0
      %6181 = vmatprep.subr.mxu0 0.0
      %6182 = vmatpush1.xpose.msra.mxu0 0.0
      %6183 = vmatprep.subr.mxu0 0.0
      %6184 = vmatpush1.xpose.msra.mxu0 0.0
      %6185 = vmatprep.subr.mxu0 0.0
      %6186 = vmatpush1.xpose.msra.mxu0 0.0
      %6187 = vmatprep.subr.mxu0 0.0
      %6188 = vmatpush1.xpose.msra.mxu0 0.0
      %6189 = vmatprep.subr.mxu0 0.0
      %6190 = vmatpush1.xpose.msra.mxu0 0.0
      %6191 = vmatprep.subr.mxu0 0.0
      %6192 = vmatpush1.xpose.msra.mxu0 0.0
      %6193 = vmatprep.subr.mxu0 0.0
      %6194 = vmatpush1.xpose.msra.mxu0 0.0
      %6195 = vmatprep.subr.mxu0 0.0
      %6196 = vmatpush1.xpose.msra.mxu0 0.0
      %6197 = vmatprep.subr.mxu0 0.0
      %6198 = vmatpush1.xpose.msra.mxu0 0.0
      %6199 = vmatprep.subr.mxu0 0.0
      %6200 = vmatpush1.xpose.msra.mxu0 0.0
      %6201 = vmatprep.subr.mxu0 0.0
      %6202 = vmatpush1.xpose.msra.mxu0 0.0
      %6203 = vmatprep.mubr.f32.mxu0 0.0
      %6204 = vmatmul.mubr.f32.gmra.mrb[0].mxu0 %v6130
      %v6205 = vpop.f32.mrb[0].mxu0
      %v6206 = vadd.f32 0.0, %v6205
      %v6207 = vpop.f32.mrb[0].mxu0
      %6208 = vmatprep.mubr.f32.mxu0 0.0
      %6209 = vmatmul.mubr.f32.gmra.mrb[0].mxu0 %v6133
      %v6210 = vpop.f32.mrb[0].mxu0
      %v6211 = vadd.f32 0.0, %v6210
      %v6212 = vpop.f32.mrb[0].mxu0
      %6213 = vdwg.mxu0
      %6216 = vrot.lane.b32.xlu0 %v5025, 120
      %v6217 = vpop.permute.xlu0 %6216
      %6218 = vrot.lane.b32.xlu0 %v5026, 120
      %v6219 = vpop.permute.xlu0 %6218
      %v6221 = vsel %vm4518, %v4705, 0
      %v6224 = vsel %vm4518, %v4706, 0
      %v6226 = vsel %vm4518, %v6217, 0
      %v6228 = vsel %vm4518, %v6219, 0
      %6230 = vmatprep.subr.mxu0 0.0
      %6231 = vmatpush1.xpose.msra.mxu0 %v6226
      %6232 = vmatprep.subr.mxu0 0.0
      %6233 = vmatpush1.xpose.msra.mxu0 %v6228
      %6234 = vmatprep.subr.mxu0 0.0
      %6235 = vmatpush1.xpose.msra.mxu0 0.0
      %6236 = vmatprep.subr.mxu0 0.0
      %6237 = vmatpush1.xpose.msra.mxu0 0.0
      %6238 = vmatprep.subr.mxu0 0.0
      %6239 = vmatpush1.xpose.msra.mxu0 0.0
      %6240 = vmatprep.subr.mxu0 0.0
      %6241 = vmatpush1.xpose.msra.mxu0 0.0
      %6242 = vmatprep.subr.mxu0 0.0
      %6243 = vmatpush1.xpose.msra.mxu0 0.0
      %6244 = vmatprep.subr.mxu0 0.0
      %6245 = vmatpush1.xpose.msra.mxu0 0.0
      %6246 = vmatprep.subr.mxu0 0.0
      %6247 = vmatpush1.xpose.msra.mxu0 0.0
      %6248 = vmatprep.subr.mxu0 0.0
      %6249 = vmatpush1.xpose.msra.mxu0 0.0
      %6250 = vmatprep.subr.mxu0 0.0
      %6251 = vmatpush1.xpose.msra.mxu0 0.0
      %6252 = vmatprep.subr.mxu0 0.0
      %6253 = vmatpush1.xpose.msra.mxu0 0.0
      %6254 = vmatprep.subr.mxu0 0.0
      %6255 = vmatpush1.xpose.msra.mxu0 0.0
      %6256 = vmatprep.subr.mxu0 0.0
      %6257 = vmatpush1.xpose.msra.mxu0 0.0
      %6258 = vmatprep.subr.mxu0 0.0
      %6259 = vmatpush1.xpose.msra.mxu0 0.0
      %6260 = vmatprep.subr.mxu0 0.0
      %6261 = vmatpush1.xpose.msra.mxu0 0.0
      %6262 = vmatprep.subr.mxu0 0.0
      %6263 = vmatpush1.xpose.msra.mxu0 0.0
      %6264 = vmatprep.subr.mxu0 0.0
      %6265 = vmatpush1.xpose.msra.mxu0 0.0
      %6266 = vmatprep.subr.mxu0 0.0
      %6267 = vmatpush1.xpose.msra.mxu0 0.0
      %6268 = vmatprep.subr.mxu0 0.0
      %6269 = vmatpush1.xpose.msra.mxu0 0.0
      %6270 = vmatprep.subr.mxu0 0.0
      %6271 = vmatpush1.xpose.msra.mxu0 0.0
      %6272 = vmatprep.subr.mxu0 0.0
      %6273 = vmatpush1.xpose.msra.mxu0 0.0
      %6274 = vmatprep.subr.mxu0 0.0
      %6275 = vmatpush1.xpose.msra.mxu0 0.0
      %6276 = vmatprep.subr.mxu0 0.0
      %6277 = vmatpush1.xpose.msra.mxu0 0.0
      %6278 = vmatprep.subr.mxu0 0.0
      %6279 = vmatpush1.xpose.msra.mxu0 0.0
      %6280 = vmatprep.subr.mxu0 0.0
      %6281 = vmatpush1.xpose.msra.mxu0 0.0
      %6282 = vmatprep.subr.mxu0 0.0
      %6283 = vmatpush1.xpose.msra.mxu0 0.0
      %6284 = vmatprep.subr.mxu0 0.0
      %6285 = vmatpush1.xpose.msra.mxu0 0.0
      %6286 = vmatprep.subr.mxu0 0.0
      %6287 = vmatpush1.xpose.msra.mxu0 0.0
      %6288 = vmatprep.subr.mxu0 0.0
      %6289 = vmatpush1.xpose.msra.mxu0 0.0
      %6290 = vmatprep.subr.mxu0 0.0
      %6291 = vmatpush1.xpose.msra.mxu0 0.0
      %6292 = vmatprep.subr.mxu0 0.0
      %6293 = vmatpush1.xpose.msra.mxu0 0.0
      %6294 = vmatprep.mubr.f32.mxu0 0.0
      %6295 = vmatmul.mubr.f32.gmra.mrb[0].mxu0 %v6221
      %v6296 = vpop.f32.mrb[0].mxu0
      %v6297 = vadd.f32 0.0, %v6296
      %v6298 = vpop.f32.mrb[0].mxu0
      %6299 = vmatprep.mubr.f32.mxu0 0.0
      %6300 = vmatmul.mubr.f32.gmra.mrb[0].mxu0 %v6224
      %v6301 = vpop.f32.mrb[0].mxu0
      %v6302 = vadd.f32 0.0, %v6301
      %v6303 = vpop.f32.mrb[0].mxu0
      %6304 = vdwg.mxu0
      %6307 = vrot.lane.b32.xlu0 %v5027, 120
      %v6308 = vpop.permute.xlu0 %6307
      %6309 = vrot.lane.b32.xlu0 %v5028, 120
      %v6310 = vpop.permute.xlu0 %6309
      %v6312 = vsel %vm4518, %v4707, 0
      %v6315 = vsel %vm4518, %v4708, 0
      %v6317 = vsel %vm4518, %v6308, 0
      %v6319 = vsel %vm4518, %v6310, 0
      %6321 = vmatprep.subr.mxu0 0.0
      %6322 = vmatpush1.xpose.msra.mxu0 %v6317
      %6323 = vmatprep.subr.mxu0 0.0
      %6324 = vmatpush1.xpose.msra.mxu0 %v6319
      %6325 = vmatprep.subr.mxu0 0.0
      %6326 = vmatpush1.xpose.msra.mxu0 0.0
      %6327 = vmatprep.subr.mxu0 0.0
      %6328 = vmatpush1.xpose.msra.mxu0 0.0
      %6329 = vmatprep.subr.mxu0 0.0
      %6330 = vmatpush1.xpose.msra.mxu0 0.0
      %6331 = vmatprep.subr.mxu0 0.0
      %6332 = vmatpush1.xpose.msra.mxu0 0.0
      %6333 = vmatprep.subr.mxu0 0.0
      %6334 = vmatpush1.xpose.msra.mxu0 0.0
      %6335 = vmatprep.subr.mxu0 0.0
      %6336 = vmatpush1.xpose.msra.mxu0 0.0
      %6337 = vmatprep.subr.mxu0 0.0
      %6338 = vmatpush1.xpose.msra.mxu0 0.0
      %6339 = vmatprep.subr.mxu0 0.0
      %6340 = vmatpush1.xpose.msra.mxu0 0.0
      %6341 = vmatprep.subr.mxu0 0.0
      %6342 = vmatpush1.xpose.msra.mxu0 0.0
      %6343 = vmatprep.subr.mxu0 0.0
      %6344 = vmatpush1.xpose.msra.mxu0 0.0
      %6345 = vmatprep.subr.mxu0 0.0
      %6346 = vmatpush1.xpose.msra.mxu0 0.0
      %6347 = vmatprep.subr.mxu0 0.0
      %6348 = vmatpush1.xpose.msra.mxu0 0.0
      %6349 = vmatprep.subr.mxu0 0.0
      %6350 = vmatpush1.xpose.msra.mxu0 0.0
      %6351 = vmatprep.subr.mxu0 0.0
      %6352 = vmatpush1.xpose.msra.mxu0 0.0
      %6353 = vmatprep.subr.mxu0 0.0
      %6354 = vmatpush1.xpose.msra.mxu0 0.0
      %6355 = vmatprep.subr.mxu0 0.0
      %6356 = vmatpush1.xpose.msra.mxu0 0.0
      %6357 = vmatprep.subr.mxu0 0.0
      %6358 = vmatpush1.xpose.msra.mxu0 0.0
      %6359 = vmatprep.subr.mxu0 0.0
      %6360 = vmatpush1.xpose.msra.mxu0 0.0
      %6361 = vmatprep.subr.mxu0 0.0
      %6362 = vmatpush1.xpose.msra.mxu0 0.0
      %6363 = vmatprep.subr.mxu0 0.0
      %6364 = vmatpush1.xpose.msra.mxu0 0.0
      %6365 = vmatprep.subr.mxu0 0.0
      %6366 = vmatpush1.xpose.msra.mxu0 0.0
      %6367 = vmatprep.subr.mxu0 0.0
      %6368 = vmatpush1.xpose.msra.mxu0 0.0
      %6369 = vmatprep.subr.mxu0 0.0
      %6370 = vmatpush1.xpose.msra.mxu0 0.0
      %6371 = vmatprep.subr.mxu0 0.0
      %6372 = vmatpush1.xpose.msra.mxu0 0.0
      %6373 = vmatprep.subr.mxu0 0.0
      %6374 = vmatpush1.xpose.msra.mxu0 0.0
      %6375 = vmatprep.subr.mxu0 0.0
      %6376 = vmatpush1.xpose.msra.mxu0 0.0
      %6377 = vmatprep.subr.mxu0 0.0
      %6378 = vmatpush1.xpose.msra.mxu0 0.0
      %6379 = vmatprep.subr.mxu0 0.0
      %6380 = vmatpush1.xpose.msra.mxu0 0.0
      %6381 = vmatprep.subr.mxu0 0.0
      %6382 = vmatpush1.xpose.msra.mxu0 0.0
      %6383 = vmatprep.subr.mxu0 0.0
      %6384 = vmatpush1.xpose.msra.mxu0 0.0
      %6385 = vmatprep.mubr.f32.mxu0 0.0
      %6386 = vmatmul.mubr.f32.gmra.mrb[0].mxu0 %v6312
      %v6387 = vpop.f32.mrb[0].mxu0
      %v6388 = vadd.f32 0.0, %v6387
      %v6389 = vpop.f32.mrb[0].mxu0
      %6390 = vmatprep.mubr.f32.mxu0 0.0
      %6391 = vmatmul.mubr.f32.gmra.mrb[0].mxu0 %v6315
      %v6392 = vpop.f32.mrb[0].mxu0
      %v6393 = vadd.f32 0.0, %v6392
      %v6394 = vpop.f32.mrb[0].mxu0
      %6395 = vdwg.mxu0
      %6398 = vrot.lane.b32.xlu0 %v5029, 120
      %v6399 = vpop.permute.xlu0 %6398
      %6400 = vrot.lane.b32.xlu0 %v5030, 120
      %v6401 = vpop.permute.xlu0 %6400
      %v6403 = vsel %vm4518, %v4709, 0
      %v6406 = vsel %vm4518, %v4710, 0
      %v6408 = vsel %vm4518, %v6399, 0
      %v6410 = vsel %vm4518, %v6401, 0
      %6412 = vmatprep.subr.mxu0 0.0
      %6413 = vmatpush1.xpose.msra.mxu0 %v6408
      %6414 = vmatprep.subr.mxu0 0.0
      %6415 = vmatpush1.xpose.msra.mxu0 %v6410
      %6416 = vmatprep.subr.mxu0 0.0
      %6417 = vmatpush1.xpose.msra.mxu0 0.0
      %6418 = vmatprep.subr.mxu0 0.0
      %6419 = vmatpush1.xpose.msra.mxu0 0.0
      %6420 = vmatprep.subr.mxu0 0.0
      %6421 = vmatpush1.xpose.msra.mxu0 0.0
      %6422 = vmatprep.subr.mxu0 0.0
      %6423 = vmatpush1.xpose.msra.mxu0 0.0
      %6424 = vmatprep.subr.mxu0 0.0
      %6425 = vmatpush1.xpose.msra.mxu0 0.0
      %6426 = vmatprep.subr.mxu0 0.0
      %6427 = vmatpush1.xpose.msra.mxu0 0.0
      %6428 = vmatprep.subr.mxu0 0.0
      %6429 = vmatpush1.xpose.msra.mxu0 0.0
      %6430 = vmatprep.subr.mxu0 0.0
      %6431 = vmatpush1.xpose.msra.mxu0 0.0
      %6432 = vmatprep.subr.mxu0 0.0
      %6433 = vmatpush1.xpose.msra.mxu0 0.0
      %6434 = vmatprep.subr.mxu0 0.0
      %6435 = vmatpush1.xpose.msra.mxu0 0.0
      %6436 = vmatprep.subr.mxu0 0.0
      %6437 = vmatpush1.xpose.msra.mxu0 0.0
      %6438 = vmatprep.subr.mxu0 0.0
      %6439 = vmatpush1.xpose.msra.mxu0 0.0
      %6440 = vmatprep.subr.mxu0 0.0
      %6441 = vmatpush1.xpose.msra.mxu0 0.0
      %6442 = vmatprep.subr.mxu0 0.0
      %6443 = vmatpush1.xpose.msra.mxu0 0.0
      %6444 = vmatprep.subr.mxu0 0.0
      %6445 = vmatpush1.xpose.msra.mxu0 0.0
      %6446 = vmatprep.subr.mxu0 0.0
      %6447 = vmatpush1.xpose.msra.mxu0 0.0
      %6448 = vmatprep.subr.mxu0 0.0
      %6449 = vmatpush1.xpose.msra.mxu0 0.0
      %6450 = vmatprep.subr.mxu0 0.0
      %6451 = vmatpush1.xpose.msra.mxu0 0.0
      %6452 = vmatprep.subr.mxu0 0.0
      %6453 = vmatpush1.xpose.msra.mxu0 0.0
      %6454 = vmatprep.subr.mxu0 0.0
      %6455 = vmatpush1.xpose.msra.mxu0 0.0
      %6456 = vmatprep.subr.mxu0 0.0
      %6457 = vmatpush1.xpose.msra.mxu0 0.0
      %6458 = vmatprep.subr.mxu0 0.0
      %6459 = vmatpush1.xpose.msra.mxu0 0.0
      %6460 = vmatprep.subr.mxu0 0.0
      %6461 = vmatpush1.xpose.msra.mxu0 0.0
      %6462 = vmatprep.subr.mxu0 0.0
      %6463 = vmatpush1.xpose.msra.mxu0 0.0
      %6464 = vmatprep.subr.mxu0 0.0
      %6465 = vmatpush1.xpose.msra.mxu0 0.0
      %6466 = vmatprep.subr.mxu0 0.0
      %6467 = vmatpush1.xpose.msra.mxu0 0.0
      %6468 = vmatprep.subr.mxu0 0.0
      %6469 = vmatpush1.xpose.msra.mxu0 0.0
      %6470 = vmatprep.subr.mxu0 0.0
      %6471 = vmatpush1.xpose.msra.mxu0 0.0
      %6472 = vmatprep.subr.mxu0 0.0
      %6473 = vmatpush1.xpose.msra.mxu0 0.0
      %6474 = vmatprep.subr.mxu0 0.0
      %6475 = vmatpush1.xpose.msra.mxu0 0.0
      %6476 = vmatprep.mubr.f32.mxu0 0.0
      %6477 = vmatmul.mubr.f32.gmra.mrb[0].mxu0 %v6403
      %v6478 = vpop.f32.mrb[0].mxu0
      %v6479 = vadd.f32 0.0, %v6478
      %v6480 = vpop.f32.mrb[0].mxu0
      %6481 = vmatprep.mubr.f32.mxu0 0.0
      %6482 = vmatmul.mubr.f32.gmra.mrb[0].mxu0 %v6406
      %v6483 = vpop.f32.mrb[0].mxu0
      %v6484 = vadd.f32 0.0, %v6483
      %v6485 = vpop.f32.mrb[0].mxu0
      %6486 = vdwg.mxu0
      %v6487 = vstv %s4485
      %v6488 = vmul.f32 %v5114, %v6487
      %v6489 = vmul.f32 %v5119, %v6487
      %v6490 = vmul.f32 %v5205, %v6487
      %v6491 = vmul.f32 %v5210, %v6487
      %v6492 = vmul.f32 %v5296, %v6487
      %v6493 = vmul.f32 %v5301, %v6487
      %v6494 = vmul.f32 %v5387, %v6487
      %v6495 = vmul.f32 %v5392, %v6487
      %v6496 = vmul.f32 %v5478, %v6487
      %v6497 = vmul.f32 %v5483, %v6487
      %v6498 = vmul.f32 %v5569, %v6487
      %v6499 = vmul.f32 %v5574, %v6487
      %v6500 = vmul.f32 %v5660, %v6487
      %v6501 = vmul.f32 %v5665, %v6487
      %v6502 = vmul.f32 %v5751, %v6487
      %v6503 = vmul.f32 %v5756, %v6487
      %v6504 = vmul.f32 %v5842, %v6487
      %v6505 = vmul.f32 %v5847, %v6487
      %v6506 = vmul.f32 %v5933, %v6487
      %v6507 = vmul.f32 %v5938, %v6487
      %v6508 = vmul.f32 %v6024, %v6487
      %v6509 = vmul.f32 %v6029, %v6487
      %v6510 = vmul.f32 %v6115, %v6487
      %v6511 = vmul.f32 %v6120, %v6487
      %v6512 = vmul.f32 %v6206, %v6487
      %v6513 = vmul.f32 %v6211, %v6487
      %v6514 = vmul.f32 %v6297, %v6487
      %v6515 = vmul.f32 %v6302, %v6487
      %v6516 = vmul.f32 %v6388, %v6487
      %v6517 = vmul.f32 %v6393, %v6487
      %v6518 = vmul.f32 %v6479, %v6487
      %v6519 = vmul.f32 %v6484, %v6487
      %vm6520 = vcmask 130048
      %v6521 = vsel %vm6520, %v6488, -inf
      %6522 = vmax.xlane.f32.xlu0 %v6521
      %v6523 = vpop.xlane.xlu0 %6522
      %v6524 = vsel %vm6520, %v6489, -inf
      %6525 = vmax.xlane.f32.xlu0 %v6524
      %v6526 = vpop.xlane.xlu0 %6525
      %v6527 = vsel %vm6520, %v6490, -inf
      %6528 = vmax.xlane.f32.xlu0 %v6527
      %v6529 = vpop.xlane.xlu0 %6528
      %v6530 = vsel %vm6520, %v6491, -inf
      %6531 = vmax.xlane.f32.xlu0 %v6530
      %v6532 = vpop.xlane.xlu0 %6531
      %v6533 = vsel %vm6520, %v6492, -inf
      %6534 = vmax.xlane.f32.xlu0 %v6533
      %v6535 = vpop.xlane.xlu0 %6534
      %v6536 = vsel %vm6520, %v6493, -inf
      %6537 = vmax.xlane.f32.xlu0 %v6536
      %v6538 = vpop.xlane.xlu0 %6537
      %v6539 = vsel %vm6520, %v6494, -inf
      %6540 = vmax.xlane.f32.xlu0 %v6539
      %v6541 = vpop.xlane.xlu0 %6540
      %v6542 = vsel %vm6520, %v6495, -inf
      %6543 = vmax.xlane.f32.xlu0 %v6542
      %v6544 = vpop.xlane.xlu0 %6543
      %v6545 = vsel %vm6520, %v6496, -inf
      %6546 = vmax.xlane.f32.xlu0 %v6545
      %v6547 = vpop.xlane.xlu0 %6546
      %v6548 = vsel %vm6520, %v6497, -inf
      %6549 = vmax.xlane.f32.xlu0 %v6548
      %v6550 = vpop.xlane.xlu0 %6549
      %v6551 = vsel %vm6520, %v6498, -inf
      %6552 = vmax.xlane.f32.xlu0 %v6551
      %v6553 = vpop.xlane.xlu0 %6552
      %v6554 = vsel %vm6520, %v6499, -inf
      %6555 = vmax.xlane.f32.xlu0 %v6554
      %v6556 = vpop.xlane.xlu0 %6555
      %v6557 = vsel %vm6520, %v6500, -inf
      %6558 = vmax.xlane.f32.xlu0 %v6557
      %v6559 = vpop.xlane.xlu0 %6558
      %v6560 = vsel %vm6520, %v6501, -inf
      %6561 = vmax.xlane.f32.xlu0 %v6560
      %v6562 = vpop.xlane.xlu0 %6561
      %v6563 = vsel %vm6520, %v6502, -inf
      %6564 = vmax.xlane.f32.xlu0 %v6563
      %v6565 = vpop.xlane.xlu0 %6564
      %v6566 = vsel %vm6520, %v6503, -inf
      %6567 = vmax.xlane.f32.xlu0 %v6566
      %v6568 = vpop.xlane.xlu0 %6567
      %v6569 = vsel %vm6520, %v6504, -inf
      %6570 = vmax.xlane.f32.xlu0 %v6569
      %v6571 = vpop.xlane.xlu0 %6570
      %v6572 = vsel %vm6520, %v6505, -inf
      %6573 = vmax.xlane.f32.xlu0 %v6572
      %v6574 = vpop.xlane.xlu0 %6573
      %v6575 = vsel %vm6520, %v6506, -inf
      %6576 = vmax.xlane.f32.xlu0 %v6575
      %v6577 = vpop.xlane.xlu0 %6576
      %v6578 = vsel %vm6520, %v6507, -inf
      %6579 = vmax.xlane.f32.xlu0 %v6578
      %v6580 = vpop.xlane.xlu0 %6579
      %v6581 = vsel %vm6520, %v6508, -inf
      %6582 = vmax.xlane.f32.xlu0 %v6581
      %v6583 = vpop.xlane.xlu0 %6582
      %v6584 = vsel %vm6520, %v6509, -inf
      %6585 = vmax.xlane.f32.xlu0 %v6584
      %v6586 = vpop.xlane.xlu0 %6585
      %v6587 = vsel %vm6520, %v6510, -inf
      %6588 = vmax.xlane.f32.xlu0 %v6587
      %v6589 = vpop.xlane.xlu0 %6588
      %v6590 = vsel %vm6520, %v6511, -inf
      %6591 = vmax.xlane.f32.xlu0 %v6590
      %v6592 = vpop.xlane.xlu0 %6591
      %v6593 = vsel %vm6520, %v6512, -inf
      %6594 = vmax.xlane.f32.xlu0 %v6593
      %v6595 = vpop.xlane.xlu0 %6594
      %v6596 = vsel %vm6520, %v6513, -inf
      %6597 = vmax.xlane.f32.xlu0 %v6596
      %v6598 = vpop.xlane.xlu0 %6597
      %v6599 = vsel %vm6520, %v6514, -inf
      %6600 = vmax.xlane.f32.xlu0 %v6599
      %v6601 = vpop.xlane.xlu0 %6600
      %v6602 = vsel %vm6520, %v6515, -inf
      %6603 = vmax.xlane.f32.xlu0 %v6602
      %v6604 = vpop.xlane.xlu0 %6603
      %v6605 = vsel %vm6520, %v6516, -inf
      %6606 = vmax.xlane.f32.xlu0 %v6605
      %v6607 = vpop.xlane.xlu0 %6606
      %v6608 = vsel %vm6520, %v6517, -inf
      %6609 = vmax.xlane.f32.xlu0 %v6608
      %v6610 = vpop.xlane.xlu0 %6609
      %v6611 = vsel %vm6520, %v6518, -inf
      %6612 = vmax.xlane.f32.xlu0 %v6611
      %v6613 = vpop.xlane.xlu0 %6612
      %v6614 = vsel %vm6520, %v6519, -inf
      %6615 = vmax.xlane.f32.xlu0 %v6614
      %v6616 = vpop.xlane.xlu0 %6615
      %v6617 = vsub.f32 %v6488, %v6523
      %v6618 = vsub.f32 %v6489, %v6526
      %v6619 = vsub.f32 %v6490, %v6529
      %v6620 = vsub.f32 %v6491, %v6532
      %v6621 = vsub.f32 %v6492, %v6535
      %v6622 = vsub.f32 %v6493, %v6538
      %v6623 = vsub.f32 %v6494, %v6541
      %v6624 = vsub.f32 %v6495, %v6544
      %v6625 = vsub.f32 %v6496, %v6547
      %v6626 = vsub.f32 %v6497, %v6550
      %v6627 = vsub.f32 %v6498, %v6553
      %v6628 = vsub.f32 %v6499, %v6556
      %v6629 = vsub.f32 %v6500, %v6559
      %v6630 = vsub.f32 %v6501, %v6562
      %v6631 = vsub.f32 %v6502, %v6565
      %v6632 = vsub.f32 %v6503, %v6568
      %v6633 = vsub.f32 %v6504, %v6571
      %v6634 = vsub.f32 %v6505, %v6574
      %v6635 = vsub.f32 %v6506, %v6577
      %v6636 = vsub.f32 %v6507, %v6580
      %v6637 = vsub.f32 %v6508, %v6583
      %v6638 = vsub.f32 %v6509, %v6586
      %v6639 = vsub.f32 %v6510, %v6589
      %v6640 = vsub.f32 %v6511, %v6592
      %v6641 = vsub.f32 %v6512, %v6595
      %v6642 = vsub.f32 %v6513, %v6598
      %v6643 = vsub.f32 %v6514, %v6601
      %v6644 = vsub.f32 %v6515, %v6604
      %v6645 = vsub.f32 %v6516, %v6607
      %v6646 = vsub.f32 %v6517, %v6610
      %v6647 = vsub.f32 %v6518, %v6613
      %v6648 = vsub.f32 %v6519, %v6616
      %v6649 = vmul.f32 %v6617, 1.442695
      %v6650 = vpow.pop %v6649
      %v6651 = vmul.f32 %v6618, 1.442695
      %v6652 = vpow.pop %v6651
      %v6653 = vmul.f32 %v6619, 1.442695
      %v6654 = vpow.pop %v6653
      %v6655 = vmul.f32 %v6620, 1.442695
      %v6656 = vpow.pop %v6655
      %v6657 = vmul.f32 %v6621, 1.442695
      %v6658 = vpow.pop %v6657
      %v6659 = vmul.f32 %v6622, 1.442695
      %v6660 = vpow.pop %v6659
      %v6661 = vmul.f32 %v6623, 1.442695
      %v6662 = vpow.pop %v6661
      %v6663 = vmul.f32 %v6624, 1.442695
      %v6664 = vpow.pop %v6663
      %v6665 = vmul.f32 %v6625, 1.442695
      %v6666 = vpow.pop %v6665
      %v6667 = vmul.f32 %v6626, 1.442695
      %v6668 = vpow.pop %v6667
      %v6669 = vmul.f32 %v6627, 1.442695
      %v6670 = vpow.pop %v6669
      %v6671 = vmul.f32 %v6628, 1.442695
      %v6672 = vpow.pop %v6671
      %v6673 = vmul.f32 %v6629, 1.442695
      %v6674 = vpow.pop %v6673
      %v6675 = vmul.f32 %v6630, 1.442695
      %v6676 = vpow.pop %v6675
      %v6677 = vmul.f32 %v6631, 1.442695
      %v6678 = vpow.pop %v6677
      %v6679 = vmul.f32 %v6632, 1.442695
      %v6680 = vpow.pop %v6679
      %v6681 = vmul.f32 %v6633, 1.442695
      %v6682 = vpow.pop %v6681
      %v6683 = vmul.f32 %v6634, 1.442695
      %v6684 = vpow.pop %v6683
      %v6685 = vmul.f32 %v6635, 1.442695
      %v6686 = vpow.pop %v6685
      %v6687 = vmul.f32 %v6636, 1.442695
      %v6688 = vpow.pop %v6687
      %v6689 = vmul.f32 %v6637, 1.442695
      %v6690 = vpow.pop %v6689
      %v6691 = vmul.f32 %v6638, 1.442695
      %v6692 = vpow.pop %v6691
      %v6693 = vmul.f32 %v6639, 1.442695
      %v6694 = vpow.pop %v6693
      %v6695 = vmul.f32 %v6640, 1.442695
      %v6696 = vpow.pop %v6695
      %v6697 = vmul.f32 %v6641, 1.442695
      %v6698 = vpow.pop %v6697
      %v6699 = vmul.f32 %v6642, 1.442695
      %v6700 = vpow.pop %v6699
      %v6701 = vmul.f32 %v6643, 1.442695
      %v6702 = vpow.pop %v6701
      %v6703 = vmul.f32 %v6644, 1.442695
      %v6704 = vpow.pop %v6703
      %v6705 = vmul.f32 %v6645, 1.442695
      %v6706 = vpow.pop %v6705
      %v6707 = vmul.f32 %v6646, 1.442695
      %v6708 = vpow.pop %v6707
      %v6709 = vmul.f32 %v6647, 1.442695
      %v6710 = vpow.pop %v6709
      %v6711 = vmul.f32 %v6648, 1.442695
      %v6712 = vpow.pop %v6711
      %v6713 = vsel %vm6520, %v6650, 0.0
      %6714 = vadd.xlane.f32.xlu0 %v6713
      %v6715 = vpop.xlane.xlu0 %6714
      %v6716 = vsel %vm6520, %v6652, 0.0
      %6717 = vadd.xlane.f32.xlu0 %v6716
      %v6718 = vpop.xlane.xlu0 %6717
      %v6719 = vsel %vm6520, %v6654, 0.0
      %6720 = vadd.xlane.f32.xlu0 %v6719
      %v6721 = vpop.xlane.xlu0 %6720
      %v6722 = vsel %vm6520, %v6656, 0.0
      %6723 = vadd.xlane.f32.xlu0 %v6722
      %v6724 = vpop.xlane.xlu0 %6723
      %v6725 = vsel %vm6520, %v6658, 0.0
      %6726 = vadd.xlane.f32.xlu0 %v6725
      %v6727 = vpop.xlane.xlu0 %6726
      %v6728 = vsel %vm6520, %v6660, 0.0
      %6729 = vadd.xlane.f32.xlu0 %v6728
      %v6730 = vpop.xlane.xlu0 %6729
      %v6731 = vsel %vm6520, %v6662, 0.0
      %6732 = vadd.xlane.f32.xlu0 %v6731
      %v6733 = vpop.xlane.xlu0 %6732
      %v6734 = vsel %vm6520, %v6664, 0.0
      %6735 = vadd.xlane.f32.xlu0 %v6734
      %v6736 = vpop.xlane.xlu0 %6735
      %v6737 = vsel %vm6520, %v6666, 0.0
      %6738 = vadd.xlane.f32.xlu0 %v6737
      %v6739 = vpop.xlane.xlu0 %6738
      %v6740 = vsel %vm6520, %v6668, 0.0
      %6741 = vadd.xlane.f32.xlu0 %v6740
      %v6742 = vpop.xlane.xlu0 %6741
      %v6743 = vsel %vm6520, %v6670, 0.0
      %6744 = vadd.xlane.f32.xlu0 %v6743
      %v6745 = vpop.xlane.xlu0 %6744
      %v6746 = vsel %vm6520, %v6672, 0.0
      %6747 = vadd.xlane.f32.xlu0 %v6746
      %v6748 = vpop.xlane.xlu0 %6747
      %v6749 = vsel %vm6520, %v6674, 0.0
      %6750 = vadd.xlane.f32.xlu0 %v6749
      %v6751 = vpop.xlane.xlu0 %6750
      %v6752 = vsel %vm6520, %v6676, 0.0
      %6753 = vadd.xlane.f32.xlu0 %v6752
      %v6754 = vpop.xlane.xlu0 %6753
      %v6755 = vsel %vm6520, %v6678, 0.0
      %6756 = vadd.xlane.f32.xlu0 %v6755
      %v6757 = vpop.xlane.xlu0 %6756
      %v6758 = vsel %vm6520, %v6680, 0.0
      %6759 = vadd.xlane.f32.xlu0 %v6758
      %v6760 = vpop.xlane.xlu0 %6759
      %v6761 = vsel %vm6520, %v6682, 0.0
      %6762 = vadd.xlane.f32.xlu0 %v6761
      %v6763 = vpop.xlane.xlu0 %6762
      %v6764 = vsel %vm6520, %v6684, 0.0
      %6765 = vadd.xlane.f32.xlu0 %v6764
      %v6766 = vpop.xlane.xlu0 %6765
      %v6767 = vsel %vm6520, %v6686, 0.0
      %6768 = vadd.xlane.f32.xlu0 %v6767
      %v6769 = vpop.xlane.xlu0 %6768
      %v6770 = vsel %vm6520, %v6688, 0.0
      %6771 = vadd.xlane.f32.xlu0 %v6770
      %v6772 = vpop.xlane.xlu0 %6771
      %v6773 = vsel %vm6520, %v6690, 0.0
      %6774 = vadd.xlane.f32.xlu0 %v6773
      %v6775 = vpop.xlane.xlu0 %6774
      %v6776 = vsel %vm6520, %v6692, 0.0
      %6777 = vadd.xlane.f32.xlu0 %v6776
      %v6778 = vpop.xlane.xlu0 %6777
      %v6779 = vsel %vm6520, %v6694, 0.0
      %6780 = vadd.xlane.f32.xlu0 %v6779
      %v6781 = vpop.xlane.xlu0 %6780
      %v6782 = vsel %vm6520, %v6696, 0.0
      %6783 = vadd.xlane.f32.xlu0 %v6782
      %v6784 = vpop.xlane.xlu0 %6783
      %v6785 = vsel %vm6520, %v6698, 0.0
      %6786 = vadd.xlane.f32.xlu0 %v6785
      %v6787 = vpop.xlane.xlu0 %6786
      %v6788 = vsel %vm6520, %v6700, 0.0
      %6789 = vadd.xlane.f32.xlu0 %v6788
      %v6790 = vpop.xlane.xlu0 %6789
      %v6791 = vsel %vm6520, %v6702, 0.0
      %6792 = vadd.xlane.f32.xlu0 %v6791
      %v6793 = vpop.xlane.xlu0 %6792
      %v6794 = vsel %vm6520, %v6704, 0.0
      %6795 = vadd.xlane.f32.xlu0 %v6794
      %v6796 = vpop.xlane.xlu0 %6795
      %v6797 = vsel %vm6520, %v6706, 0.0
      %6798 = vadd.xlane.f32.xlu0 %v6797
      %v6799 = vpop.xlane.xlu0 %6798
      %v6800 = vsel %vm6520, %v6708, 0.0
      %6801 = vadd.xlane.f32.xlu0 %v6800
      %v6802 = vpop.xlane.xlu0 %6801
      %v6803 = vsel %vm6520, %v6710, 0.0
      %6804 = vadd.xlane.f32.xlu0 %v6803
      %v6805 = vpop.xlane.xlu0 %6804
      %v6806 = vsel %vm6520, %v6712, 0.0
      %6807 = vadd.xlane.f32.xlu0 %v6806
      %v6808 = vpop.xlane.xlu0 %6807
      %v6809 = vrcp.pop %v6715
      %v6810 = vrcp.pop %v6718
      %v6811 = vrcp.pop %v6721
      %v6812 = vrcp.pop %v6724
      %v6813 = vrcp.pop %v6727
      %v6814 = vrcp.pop %v6730
      %v6815 = vrcp.pop %v6733
      %v6816 = vrcp.pop %v6736
      %v6817 = vrcp.pop %v6739
      %v6818 = vrcp.pop %v6742
      %v6819 = vrcp.pop %v6745
      %v6820 = vrcp.pop %v6748
      %v6821 = vrcp.pop %v6751
      %v6822 = vrcp.pop %v6754
      %v6823 = vrcp.pop %v6757
      %v6824 = vrcp.pop %v6760
      %v6825 = vrcp.pop %v6763
      %v6826 = vrcp.pop %v6766
      %v6827 = vrcp.pop %v6769
      %v6828 = vrcp.pop %v6772
      %v6829 = vrcp.pop %v6775
      %v6830 = vrcp.pop %v6778
      %v6831 = vrcp.pop %v6781
      %v6832 = vrcp.pop %v6784
      %v6833 = vrcp.pop %v6787
      %v6834 = vrcp.pop %v6790
      %v6835 = vrcp.pop %v6793
      %v6836 = vrcp.pop %v6796
      %v6837 = vrcp.pop %v6799
      %v6838 = vrcp.pop %v6802
      %v6839 = vrcp.pop %v6805
      %v6840 = vrcp.pop %v6808
      %v6841 = vmul.f32 %v6650, %v6809
      %v6842 = vmul.f32 %v6652, %v6810
      %v6843 = vmul.f32 %v6654, %v6811
      %v6844 = vmul.f32 %v6656, %v6812
      %v6845 = vmul.f32 %v6658, %v6813
      %v6846 = vmul.f32 %v6660, %v6814
      %v6847 = vmul.f32 %v6662, %v6815
      %v6848 = vmul.f32 %v6664, %v6816
      %v6849 = vmul.f32 %v6666, %v6817
      %v6850 = vmul.f32 %v6668, %v6818
      %v6851 = vmul.f32 %v6670, %v6819
      %v6852 = vmul.f32 %v6672, %v6820
      %v6853 = vmul.f32 %v6674, %v6821
      %v6854 = vmul.f32 %v6676, %v6822
      %v6855 = vmul.f32 %v6678, %v6823
      %v6856 = vmul.f32 %v6680, %v6824
      %v6857 = vmul.f32 %v6682, %v6825
      %v6858 = vmul.f32 %v6684, %v6826
      %v6859 = vmul.f32 %v6686, %v6827
      %v6860 = vmul.f32 %v6688, %v6828
      %v6861 = vmul.f32 %v6690, %v6829
      %v6862 = vmul.f32 %v6692, %v6830
      %v6863 = vmul.f32 %v6694, %v6831
      %v6864 = vmul.f32 %v6696, %v6832
      %v6865 = vmul.f32 %v6698, %v6833
      %v6866 = vmul.f32 %v6700, %v6834
      %v6867 = vmul.f32 %v6702, %v6835
      %v6868 = vmul.f32 %v6704, %v6836
      %v6869 = vmul.f32 %v6706, %v6837
      %v6870 = vmul.f32 %v6708, %v6838
      %v6871 = vmul.f32 %v6710, %v6839
      %v6872 = vmul.f32 %v6712, %v6840
      %6875 = vrot.lane.b32.xlu0 %v4453, 112
      %v6876 = vpop.permute.xlu0 %6875
      %6877 = vrot.lane.b32.xlu0 %v4454, 112
      %v6878 = vpop.permute.xlu0 %6877
      %v6882 = vsel %vm6520, %v6841, 0
      %v6885 = vsel %vm6520, %v6842, 0
      %6887 = vmatprep.subr.mxu0 0.0
      %6888 = vmatpush1.msra.mxu0 %v6876
      %6889 = vmatprep.subr.mxu0 0.0
      %6890 = vmatpush1.msra.mxu0 %v6878
      %6891 = vmatprep.subr.mxu0 0.0
      %6892 = vmatpush1.msra.mxu0 0.0
      %6893 = vmatprep.subr.mxu0 0.0
      %6894 = vmatpush1.msra.mxu0 0.0
      %6895 = vmatprep.subr.mxu0 0.0
      %6896 = vmatpush1.msra.mxu0 0.0
      %6897 = vmatprep.subr.mxu0 0.0
      %6898 = vmatpush1.msra.mxu0 0.0
      %6899 = vmatprep.subr.mxu0 0.0
      %6900 = vmatpush1.msra.mxu0 0.0
      %6901 = vmatprep.subr.mxu0 0.0
      %6902 = vmatpush1.msra.mxu0 0.0
      %6903 = vmatprep.subr.mxu0 0.0
      %6904 = vmatpush1.msra.mxu0 0.0
      %6905 = vmatprep.subr.mxu0 0.0
      %6906 = vmatpush1.msra.mxu0 0.0
      %6907 = vmatprep.subr.mxu0 0.0
      %6908 = vmatpush1.msra.mxu0 0.0
      %6909 = vmatprep.subr.mxu0 0.0
      %6910 = vmatpush1.msra.mxu0 0.0
      %6911 = vmatprep.subr.mxu0 0.0
      %6912 = vmatpush1.msra.mxu0 0.0
      %6913 = vmatprep.subr.mxu0 0.0
      %6914 = vmatpush1.msra.mxu0 0.0
      %6915 = vmatprep.subr.mxu0 0.0
      %6916 = vmatpush1.msra.mxu0 0.0
      %6917 = vmatprep.subr.mxu0 0.0
      %6918 = vmatpush1.msra.mxu0 0.0
      %6919 = vmatprep.subr.mxu0 0.0
      %6920 = vmatpush1.msra.mxu0 0.0
      %6921 = vmatprep.subr.mxu0 0.0
      %6922 = vmatpush1.msra.mxu0 0.0
      %6923 = vmatprep.subr.mxu0 0.0
      %6924 = vmatpush1.msra.mxu0 0.0
      %6925 = vmatprep.subr.mxu0 0.0
      %6926 = vmatpush1.msra.mxu0 0.0
      %6927 = vmatprep.subr.mxu0 0.0
      %6928 = vmatpush1.msra.mxu0 0.0
      %6929 = vmatprep.subr.mxu0 0.0
      %6930 = vmatpush1.msra.mxu0 0.0
      %6931 = vmatprep.subr.mxu0 0.0
      %6932 = vmatpush1.msra.mxu0 0.0
      %6933 = vmatprep.subr.mxu0 0.0
      %6934 = vmatpush1.msra.mxu0 0.0
      %6935 = vmatprep.subr.mxu0 0.0
      %6936 = vmatpush1.msra.mxu0 0.0
      %6937 = vmatprep.subr.mxu0 0.0
      %6938 = vmatpush1.msra.mxu0 0.0
      %6939 = vmatprep.subr.mxu0 0.0
      %6940 = vmatpush1.msra.mxu0 0.0
      %6941 = vmatprep.subr.mxu0 0.0
      %6942 = vmatpush1.msra.mxu0 0.0
      %6943 = vmatprep.subr.mxu0 0.0
      %6944 = vmatpush1.msra.mxu0 0.0
      %6945 = vmatprep.subr.mxu0 0.0
      %6946 = vmatpush1.msra.mxu0 0.0
      %6947 = vmatprep.subr.mxu0 0.0
      %6948 = vmatpush1.msra.mxu0 0.0
      %6949 = vmatprep.subr.mxu0 0.0
      %6950 = vmatpush1.msra.mxu0 0.0
      %6951 = vmatprep.mubr.f32.mxu0 0.0
      %6952 = vmatmul.mubr.f32.gmra.mrb[0].mxu0 %v6882
      %v6953 = vpop.f32.mrb[0].mxu0
      %v6954 = vadd.f32 0.0, %v6953
      %v6955 = vpop.f32.mrb[0].mxu0
      %6956 = vmatprep.mubr.f32.mxu0 0.0
      %6957 = vmatmul.mubr.f32.gmra.mrb[0].mxu0 %v6885
      %v6958 = vpop.f32.mrb[0].mxu0
      %v6959 = vadd.f32 0.0, %v6958
      %v6960 = vpop.f32.mrb[0].mxu0
      %6961 = vdwg.mxu0
      %6964 = vrot.lane.b32.xlu0 %v4455, 112
      %v6965 = vpop.permute.xlu0 %6964
      %6966 = vrot.lane.b32.xlu0 %v4456, 112
      %v6967 = vpop.permute.xlu0 %6966
      %v6971 = vsel %vm6520, %v6843, 0
      %v6974 = vsel %vm6520, %v6844, 0
      %6976 = vmatprep.subr.mxu0 0.0
      %6977 = vmatpush1.msra.mxu0 %v6965
      %6978 = vmatprep.subr.mxu0 0.0
      %6979 = vmatpush1.msra.mxu0 %v6967
      %6980 = vmatprep.subr.mxu0 0.0
      %6981 = vmatpush1.msra.mxu0 0.0
      %6982 = vmatprep.subr.mxu0 0.0
      %6983 = vmatpush1.msra.mxu0 0.0
      %6984 = vmatprep.subr.mxu0 0.0
      %6985 = vmatpush1.msra.mxu0 0.0
      %6986 = vmatprep.subr.mxu0 0.0
      %6987 = vmatpush1.msra.mxu0 0.0
      %6988 = vmatprep.subr.mxu0 0.0
      %6989 = vmatpush1.msra.mxu0 0.0
      %6990 = vmatprep.subr.mxu0 0.0
      %6991 = vmatpush1.msra.mxu0 0.0
      %6992 = vmatprep.subr.mxu0 0.0
      %6993 = vmatpush1.msra.mxu0 0.0
      %6994 = vmatprep.subr.mxu0 0.0
      %6995 = vmatpush1.msra.mxu0 0.0
      %6996 = vmatprep.subr.mxu0 0.0
      %6997 = vmatpush1.msra.mxu0 0.0
      %6998 = vmatprep.subr.mxu0 0.0
      %6999 = vmatpush1.msra.mxu0 0.0
      %7000 = vmatprep.subr.mxu0 0.0
      %7001 = vmatpush1.msra.mxu0 0.0
      %7002 = vmatprep.subr.mxu0 0.0
      %7003 = vmatpush1.msra.mxu0 0.0
      %7004 = vmatprep.subr.mxu0 0.0
      %7005 = vmatpush1.msra.mxu0 0.0
      %7006 = vmatprep.subr.mxu0 0.0
      %7007 = vmatpush1.msra.mxu0 0.0
      %7008 = vmatprep.subr.mxu0 0.0
      %7009 = vmatpush1.msra.mxu0 0.0
      %7010 = vmatprep.subr.mxu0 0.0
      %7011 = vmatpush1.msra.mxu0 0.0
      %7012 = vmatprep.subr.mxu0 0.0
      %7013 = vmatpush1.msra.mxu0 0.0
      %7014 = vmatprep.subr.mxu0 0.0
      %7015 = vmatpush1.msra.mxu0 0.0
      %7016 = vmatprep.subr.mxu0 0.0
      %7017 = vmatpush1.msra.mxu0 0.0
      %7018 = vmatprep.subr.mxu0 0.0
      %7019 = vmatpush1.msra.mxu0 0.0
      %7020 = vmatprep.subr.mxu0 0.0
      %7021 = vmatpush1.msra.mxu0 0.0
      %7022 = vmatprep.subr.mxu0 0.0
      %7023 = vmatpush1.msra.mxu0 0.0
      %7024 = vmatprep.subr.mxu0 0.0
      %7025 = vmatpush1.msra.mxu0 0.0
      %7026 = vmatprep.subr.mxu0 0.0
      %7027 = vmatpush1.msra.mxu0 0.0
      %7028 = vmatprep.subr.mxu0 0.0
      %7029 = vmatpush1.msra.mxu0 0.0
      %7030 = vmatprep.subr.mxu0 0.0
      %7031 = vmatpush1.msra.mxu0 0.0
      %7032 = vmatprep.subr.mxu0 0.0
      %7033 = vmatpush1.msra.mxu0 0.0
      %7034 = vmatprep.subr.mxu0 0.0
      %7035 = vmatpush1.msra.mxu0 0.0
      %7036 = vmatprep.subr.mxu0 0.0
      %7037 = vmatpush1.msra.mxu0 0.0
      %7038 = vmatprep.subr.mxu0 0.0
      %7039 = vmatpush1.msra.mxu0 0.0
      %7040 = vmatprep.mubr.f32.mxu0 0.0
      %7041 = vmatmul.mubr.f32.gmra.mrb[0].mxu0 %v6971
      %v7042 = vpop.f32.mrb[0].mxu0
      %v7043 = vadd.f32 0.0, %v7042
      %v7044 = vpop.f32.mrb[0].mxu0
      %7045 = vmatprep.mubr.f32.mxu0 0.0
      %7046 = vmatmul.mubr.f32.gmra.mrb[0].mxu0 %v6974
      %v7047 = vpop.f32.mrb[0].mxu0
      %v7048 = vadd.f32 0.0, %v7047
      %v7049 = vpop.f32.mrb[0].mxu0
      %7050 = vdwg.mxu0
      %7053 = vrot.lane.b32.xlu0 %v4457, 112
      %v7054 = vpop.permute.xlu0 %7053
      %7055 = vrot.lane.b32.xlu0 %v4458, 112
      %v7056 = vpop.permute.xlu0 %7055
      %v7060 = vsel %vm6520, %v6845, 0
      %v7063 = vsel %vm6520, %v6846, 0
      %7065 = vmatprep.subr.mxu0 0.0
      %7066 = vmatpush1.msra.mxu0 %v7054
      %7067 = vmatprep.subr.mxu0 0.0
      %7068 = vmatpush1.msra.mxu0 %v7056
      %7069 = vmatprep.subr.mxu0 0.0
      %7070 = vmatpush1.msra.mxu0 0.0
      %7071 = vmatprep.subr.mxu0 0.0
      %7072 = vmatpush1.msra.mxu0 0.0
      %7073 = vmatprep.subr.mxu0 0.0
      %7074 = vmatpush1.msra.mxu0 0.0
      %7075 = vmatprep.subr.mxu0 0.0
      %7076 = vmatpush1.msra.mxu0 0.0
      %7077 = vmatprep.subr.mxu0 0.0
      %7078 = vmatpush1.msra.mxu0 0.0
      %7079 = vmatprep.subr.mxu0 0.0
      %7080 = vmatpush1.msra.mxu0 0.0
      %7081 = vmatprep.subr.mxu0 0.0
      %7082 = vmatpush1.msra.mxu0 0.0
      %7083 = vmatprep.subr.mxu0 0.0
      %7084 = vmatpush1.msra.mxu0 0.0
      %7085 = vmatprep.subr.mxu0 0.0
      %7086 = vmatpush1.msra.mxu0 0.0
      %7087 = vmatprep.subr.mxu0 0.0
      %7088 = vmatpush1.msra.mxu0 0.0
      %7089 = vmatprep.subr.mxu0 0.0
      %7090 = vmatpush1.msra.mxu0 0.0
      %7091 = vmatprep.subr.mxu0 0.0
      %7092 = vmatpush1.msra.mxu0 0.0
      %7093 = vmatprep.subr.mxu0 0.0
      %7094 = vmatpush1.msra.mxu0 0.0
      %7095 = vmatprep.subr.mxu0 0.0
      %7096 = vmatpush1.msra.mxu0 0.0
      %7097 = vmatprep.subr.mxu0 0.0
      %7098 = vmatpush1.msra.mxu0 0.0
      %7099 = vmatprep.subr.mxu0 0.0
      %7100 = vmatpush1.msra.mxu0 0.0
      %7101 = vmatprep.subr.mxu0 0.0
      %7102 = vmatpush1.msra.mxu0 0.0
      %7103 = vmatprep.subr.mxu0 0.0
      %7104 = vmatpush1.msra.mxu0 0.0
      %7105 = vmatprep.subr.mxu0 0.0
      %7106 = vmatpush1.msra.mxu0 0.0
      %7107 = vmatprep.subr.mxu0 0.0
      %7108 = vmatpush1.msra.mxu0 0.0
      %7109 = vmatprep.subr.mxu0 0.0
      %7110 = vmatpush1.msra.mxu0 0.0
      %7111 = vmatprep.subr.mxu0 0.0
      %7112 = vmatpush1.msra.mxu0 0.0
      %7113 = vmatprep.subr.mxu0 0.0
      %7114 = vmatpush1.msra.mxu0 0.0
      %7115 = vmatprep.subr.mxu0 0.0
      %7116 = vmatpush1.msra.mxu0 0.0
      %7117 = vmatprep.subr.mxu0 0.0
      %7118 = vmatpush1.msra.mxu0 0.0
      %7119 = vmatprep.subr.mxu0 0.0
      %7120 = vmatpush1.msra.mxu0 0.0
      %7121 = vmatprep.subr.mxu0 0.0
      %7122 = vmatpush1.msra.mxu0 0.0
      %7123 = vmatprep.subr.mxu0 0.0
      %7124 = vmatpush1.msra.mxu0 0.0
      %7125 = vmatprep.subr.mxu0 0.0
      %7126 = vmatpush1.msra.mxu0 0.0
      %7127 = vmatprep.subr.mxu0 0.0
      %7128 = vmatpush1.msra.mxu0 0.0
      %7129 = vmatprep.mubr.f32.mxu0 0.0
      %7130 = vmatmul.mubr.f32.gmra.mrb[0].mxu0 %v7060
      %v7131 = vpop.f32.mrb[0].mxu0
      %v7132 = vadd.f32 0.0, %v7131
      %v7133 = vpop.f32.mrb[0].mxu0
      %7134 = vmatprep.mubr.f32.mxu0 0.0
      %7135 = vmatmul.mubr.f32.gmra.mrb[0].mxu0 %v7063
      %v7136 = vpop.f32.mrb[0].mxu0
      %v7137 = vadd.f32 0.0, %v7136
      %v7138 = vpop.f32.mrb[0].mxu0
      %7139 = vdwg.mxu0
      %7142 = vrot.lane.b32.xlu0 %v4459, 112
      %v7143 = vpop.permute.xlu0 %7142
      %7144 = vrot.lane.b32.xlu0 %v4460, 112
      %v7145 = vpop.permute.xlu0 %7144
      %v7149 = vsel %vm6520, %v6847, 0
      %v7152 = vsel %vm6520, %v6848, 0
      %7154 = vmatprep.subr.mxu0 0.0
      %7155 = vmatpush1.msra.mxu0 %v7143
      %7156 = vmatprep.subr.mxu0 0.0
      %7157 = vmatpush1.msra.mxu0 %v7145
      %7158 = vmatprep.subr.mxu0 0.0
      %7159 = vmatpush1.msra.mxu0 0.0
      %7160 = vmatprep.subr.mxu0 0.0
      %7161 = vmatpush1.msra.mxu0 0.0
      %7162 = vmatprep.subr.mxu0 0.0
      %7163 = vmatpush1.msra.mxu0 0.0
      %7164 = vmatprep.subr.mxu0 0.0
      %7165 = vmatpush1.msra.mxu0 0.0
      %7166 = vmatprep.subr.mxu0 0.0
      %7167 = vmatpush1.msra.mxu0 0.0
      %7168 = vmatprep.subr.mxu0 0.0
      %7169 = vmatpush1.msra.mxu0 0.0
      %7170 = vmatprep.subr.mxu0 0.0
      %7171 = vmatpush1.msra.mxu0 0.0
      %7172 = vmatprep.subr.mxu0 0.0
      %7173 = vmatpush1.msra.mxu0 0.0
      %7174 = vmatprep.subr.mxu0 0.0
      %7175 = vmatpush1.msra.mxu0 0.0
      %7176 = vmatprep.subr.mxu0 0.0
      %7177 = vmatpush1.msra.mxu0 0.0
      %7178 = vmatprep.subr.mxu0 0.0
      %7179 = vmatpush1.msra.mxu0 0.0
      %7180 = vmatprep.subr.mxu0 0.0
      %7181 = vmatpush1.msra.mxu0 0.0
      %7182 = vmatprep.subr.mxu0 0.0
      %7183 = vmatpush1.msra.mxu0 0.0
      %7184 = vmatprep.subr.mxu0 0.0
      %7185 = vmatpush1.msra.mxu0 0.0
      %7186 = vmatprep.subr.mxu0 0.0
      %7187 = vmatpush1.msra.mxu0 0.0
      %7188 = vmatprep.subr.mxu0 0.0
      %7189 = vmatpush1.msra.mxu0 0.0
      %7190 = vmatprep.subr.mxu0 0.0
      %7191 = vmatpush1.msra.mxu0 0.0
      %7192 = vmatprep.subr.mxu0 0.0
      %7193 = vmatpush1.msra.mxu0 0.0
      %7194 = vmatprep.subr.mxu0 0.0
      %7195 = vmatpush1.msra.mxu0 0.0
      %7196 = vmatprep.subr.mxu0 0.0
      %7197 = vmatpush1.msra.mxu0 0.0
      %7198 = vmatprep.subr.mxu0 0.0
      %7199 = vmatpush1.msra.mxu0 0.0
      %7200 = vmatprep.subr.mxu0 0.0
      %7201 = vmatpush1.msra.mxu0 0.0
      %7202 = vmatprep.subr.mxu0 0.0
      %7203 = vmatpush1.msra.mxu0 0.0
      %7204 = vmatprep.subr.mxu0 0.0
      %7205 = vmatpush1.msra.mxu0 0.0
      %7206 = vmatprep.subr.mxu0 0.0
      %7207 = vmatpush1.msra.mxu0 0.0
      %7208 = vmatprep.subr.mxu0 0.0
      %7209 = vmatpush1.msra.mxu0 0.0
      %7210 = vmatprep.subr.mxu0 0.0
      %7211 = vmatpush1.msra.mxu0 0.0
      %7212 = vmatprep.subr.mxu0 0.0
      %7213 = vmatpush1.msra.mxu0 0.0
      %7214 = vmatprep.subr.mxu0 0.0
      %7215 = vmatpush1.msra.mxu0 0.0
      %7216 = vmatprep.subr.mxu0 0.0
      %7217 = vmatpush1.msra.mxu0 0.0
      %7218 = vmatprep.mubr.f32.mxu0 0.0
      %7219 = vmatmul.mubr.f32.gmra.mrb[0].mxu0 %v7149
      %v7220 = vpop.f32.mrb[0].mxu0
      %v7221 = vadd.f32 0.0, %v7220
      %v7222 = vpop.f32.mrb[0].mxu0
      %7223 = vmatprep.mubr.f32.mxu0 0.0
      %7224 = vmatmul.mubr.f32.gmra.mrb[0].mxu0 %v7152
      %v7225 = vpop.f32.mrb[0].mxu0
      %v7226 = vadd.f32 0.0, %v7225
      %v7227 = vpop.f32.mrb[0].mxu0
      %7228 = vdwg.mxu0
      %7231 = vrot.lane.b32.xlu0 %v4461, 112
      %v7232 = vpop.permute.xlu0 %7231
      %7233 = vrot.lane.b32.xlu0 %v4462, 112
      %v7234 = vpop.permute.xlu0 %7233
      %v7238 = vsel %vm6520, %v6849, 0
      %v7241 = vsel %vm6520, %v6850, 0
      %7243 = vmatprep.subr.mxu0 0.0
      %7244 = vmatpush1.msra.mxu0 %v7232
      %7245 = vmatprep.subr.mxu0 0.0
      %7246 = vmatpush1.msra.mxu0 %v7234
      %7247 = vmatprep.subr.mxu0 0.0
      %7248 = vmatpush1.msra.mxu0 0.0
      %7249 = vmatprep.subr.mxu0 0.0
      %7250 = vmatpush1.msra.mxu0 0.0
      %7251 = vmatprep.subr.mxu0 0.0
      %7252 = vmatpush1.msra.mxu0 0.0
      %7253 = vmatprep.subr.mxu0 0.0
      %7254 = vmatpush1.msra.mxu0 0.0
      %7255 = vmatprep.subr.mxu0 0.0
      %7256 = vmatpush1.msra.mxu0 0.0
      %7257 = vmatprep.subr.mxu0 0.0
      %7258 = vmatpush1.msra.mxu0 0.0
      %7259 = vmatprep.subr.mxu0 0.0
      %7260 = vmatpush1.msra.mxu0 0.0
      %7261 = vmatprep.subr.mxu0 0.0
      %7262 = vmatpush1.msra.mxu0 0.0
      %7263 = vmatprep.subr.mxu0 0.0
      %7264 = vmatpush1.msra.mxu0 0.0
      %7265 = vmatprep.subr.mxu0 0.0
      %7266 = vmatpush1.msra.mxu0 0.0
      %7267 = vmatprep.subr.mxu0 0.0
      %7268 = vmatpush1.msra.mxu0 0.0
      %7269 = vmatprep.subr.mxu0 0.0
      %7270 = vmatpush1.msra.mxu0 0.0
      %7271 = vmatprep.subr.mxu0 0.0
      %7272 = vmatpush1.msra.mxu0 0.0
      %7273 = vmatprep.subr.mxu0 0.0
      %7274 = vmatpush1.msra.mxu0 0.0
      %7275 = vmatprep.subr.mxu0 0.0
      %7276 = vmatpush1.msra.mxu0 0.0
      %7277 = vmatprep.subr.mxu0 0.0
      %7278 = vmatpush1.msra.mxu0 0.0
      %7279 = vmatprep.subr.mxu0 0.0
      %7280 = vmatpush1.msra.mxu0 0.0
      %7281 = vmatprep.subr.mxu0 0.0
      %7282 = vmatpush1.msra.mxu0 0.0
      %7283 = vmatprep.subr.mxu0 0.0
      %7284 = vmatpush1.msra.mxu0 0.0
      %7285 = vmatprep.subr.mxu0 0.0
      %7286 = vmatpush1.msra.mxu0 0.0
      %7287 = vmatprep.subr.mxu0 0.0
      %7288 = vmatpush1.msra.mxu0 0.0
      %7289 = vmatprep.subr.mxu0 0.0
      %7290 = vmatpush1.msra.mxu0 0.0
      %7291 = vmatprep.subr.mxu0 0.0
      %7292 = vmatpush1.msra.mxu0 0.0
      %7293 = vmatprep.subr.mxu0 0.0
      %7294 = vmatpush1.msra.mxu0 0.0
      %7295 = vmatprep.subr.mxu0 0.0
      %7296 = vmatpush1.msra.mxu0 0.0
      %7297 = vmatprep.subr.mxu0 0.0
      %7298 = vmatpush1.msra.mxu0 0.0
      %7299 = vmatprep.subr.mxu0 0.0
      %7300 = vmatpush1.msra.mxu0 0.0
      %7301 = vmatprep.subr.mxu0 0.0
      %7302 = vmatpush1.msra.mxu0 0.0
      %7303 = vmatprep.subr.mxu0 0.0
      %7304 = vmatpush1.msra.mxu0 0.0
      %7305 = vmatprep.subr.mxu0 0.0
      %7306 = vmatpush1.msra.mxu0 0.0
      %7307 = vmatprep.mubr.f32.mxu0 0.0
      %7308 = vmatmul.mubr.f32.gmra.mrb[0].mxu0 %v7238
      %v7309 = vpop.f32.mrb[0].mxu0
      %v7310 = vadd.f32 0.0, %v7309
      %v7311 = vpop.f32.mrb[0].mxu0
      %7312 = vmatprep.mubr.f32.mxu0 0.0
      %7313 = vmatmul.mubr.f32.gmra.mrb[0].mxu0 %v7241
      %v7314 = vpop.f32.mrb[0].mxu0
      %v7315 = vadd.f32 0.0, %v7314
      %v7316 = vpop.f32.mrb[0].mxu0
      %7317 = vdwg.mxu0
      %7320 = vrot.lane.b32.xlu0 %v4463, 112
      %v7321 = vpop.permute.xlu0 %7320
      %7322 = vrot.lane.b32.xlu0 %v4464, 112
      %v7323 = vpop.permute.xlu0 %7322
      %v7327 = vsel %vm6520, %v6851, 0
      %v7330 = vsel %vm6520, %v6852, 0
      %7332 = vmatprep.subr.mxu0 0.0
      %7333 = vmatpush1.msra.mxu0 %v7321
      %7334 = vmatprep.subr.mxu0 0.0
      %7335 = vmatpush1.msra.mxu0 %v7323
      %7336 = vmatprep.subr.mxu0 0.0
      %7337 = vmatpush1.msra.mxu0 0.0
      %7338 = vmatprep.subr.mxu0 0.0
      %7339 = vmatpush1.msra.mxu0 0.0
      %7340 = vmatprep.subr.mxu0 0.0
      %7341 = vmatpush1.msra.mxu0 0.0
      %7342 = vmatprep.subr.mxu0 0.0
      %7343 = vmatpush1.msra.mxu0 0.0
      %7344 = vmatprep.subr.mxu0 0.0
      %7345 = vmatpush1.msra.mxu0 0.0
      %7346 = vmatprep.subr.mxu0 0.0
      %7347 = vmatpush1.msra.mxu0 0.0
      %7348 = vmatprep.subr.mxu0 0.0
      %7349 = vmatpush1.msra.mxu0 0.0
      %7350 = vmatprep.subr.mxu0 0.0
      %7351 = vmatpush1.msra.mxu0 0.0
      %7352 = vmatprep.subr.mxu0 0.0
      %7353 = vmatpush1.msra.mxu0 0.0
      %7354 = vmatprep.subr.mxu0 0.0
      %7355 = vmatpush1.msra.mxu0 0.0
      %7356 = vmatprep.subr.mxu0 0.0
      %7357 = vmatpush1.msra.mxu0 0.0
      %7358 = vmatprep.subr.mxu0 0.0
      %7359 = vmatpush1.msra.mxu0 0.0
      %7360 = vmatprep.subr.mxu0 0.0
      %7361 = vmatpush1.msra.mxu0 0.0
      %7362 = vmatprep.subr.mxu0 0.0
      %7363 = vmatpush1.msra.mxu0 0.0
      %7364 = vmatprep.subr.mxu0 0.0
      %7365 = vmatpush1.msra.mxu0 0.0
      %7366 = vmatprep.subr.mxu0 0.0
      %7367 = vmatpush1.msra.mxu0 0.0
      %7368 = vmatprep.subr.mxu0 0.0
      %7369 = vmatpush1.msra.mxu0 0.0
      %7370 = vmatprep.subr.mxu0 0.0
      %7371 = vmatpush1.msra.mxu0 0.0
      %7372 = vmatprep.subr.mxu0 0.0
      %7373 = vmatpush1.msra.mxu0 0.0
      %7374 = vmatprep.subr.mxu0 0.0
      %7375 = vmatpush1.msra.mxu0 0.0
      %7376 = vmatprep.subr.mxu0 0.0
      %7377 = vmatpush1.msra.mxu0 0.0
      %7378 = vmatprep.subr.mxu0 0.0
      %7379 = vmatpush1.msra.mxu0 0.0
      %7380 = vmatprep.subr.mxu0 0.0
      %7381 = vmatpush1.msra.mxu0 0.0
      %7382 = vmatprep.subr.mxu0 0.0
      %7383 = vmatpush1.msra.mxu0 0.0
      %7384 = vmatprep.subr.mxu0 0.0
      %7385 = vmatpush1.msra.mxu0 0.0
      %7386 = vmatprep.subr.mxu0 0.0
      %7387 = vmatpush1.msra.mxu0 0.0
      %7388 = vmatprep.subr.mxu0 0.0
      %7389 = vmatpush1.msra.mxu0 0.0
      %7390 = vmatprep.subr.mxu0 0.0
      %7391 = vmatpush1.msra.mxu0 0.0
      %7392 = vmatprep.subr.mxu0 0.0
      %7393 = vmatpush1.msra.mxu0 0.0
      %7394 = vmatprep.subr.mxu0 0.0
      %7395 = vmatpush1.msra.mxu0 0.0
      %7396 = vmatprep.mubr.f32.mxu0 0.0
      %7397 = vmatmul.mubr.f32.gmra.mrb[0].mxu0 %v7327
      %v7398 = vpop.f32.mrb[0].mxu0
      %v7399 = vadd.f32 0.0, %v7398
      %v7400 = vpop.f32.mrb[0].mxu0
      %7401 = vmatprep.mubr.f32.mxu0 0.0
      %7402 = vmatmul.mubr.f32.gmra.mrb[0].mxu0 %v7330
      %v7403 = vpop.f32.mrb[0].mxu0
      %v7404 = vadd.f32 0.0, %v7403
      %v7405 = vpop.f32.mrb[0].mxu0
      %7406 = vdwg.mxu0
      %7409 = vrot.lane.b32.xlu0 %v4465, 112
      %v7410 = vpop.permute.xlu0 %7409
      %7411 = vrot.lane.b32.xlu0 %v4466, 112
      %v7412 = vpop.permute.xlu0 %7411
      %v7416 = vsel %vm6520, %v6853, 0
      %v7419 = vsel %vm6520, %v6854, 0
      %7421 = vmatprep.subr.mxu0 0.0
      %7422 = vmatpush1.msra.mxu0 %v7410
      %7423 = vmatprep.subr.mxu0 0.0
      %7424 = vmatpush1.msra.mxu0 %v7412
      %7425 = vmatprep.subr.mxu0 0.0
      %7426 = vmatpush1.msra.mxu0 0.0
      %7427 = vmatprep.subr.mxu0 0.0
      %7428 = vmatpush1.msra.mxu0 0.0
      %7429 = vmatprep.subr.mxu0 0.0
      %7430 = vmatpush1.msra.mxu0 0.0
      %7431 = vmatprep.subr.mxu0 0.0
      %7432 = vmatpush1.msra.mxu0 0.0
      %7433 = vmatprep.subr.mxu0 0.0
      %7434 = vmatpush1.msra.mxu0 0.0
      %7435 = vmatprep.subr.mxu0 0.0
      %7436 = vmatpush1.msra.mxu0 0.0
      %7437 = vmatprep.subr.mxu0 0.0
      %7438 = vmatpush1.msra.mxu0 0.0
      %7439 = vmatprep.subr.mxu0 0.0
      %7440 = vmatpush1.msra.mxu0 0.0
      %7441 = vmatprep.subr.mxu0 0.0
      %7442 = vmatpush1.msra.mxu0 0.0
      %7443 = vmatprep.subr.mxu0 0.0
      %7444 = vmatpush1.msra.mxu0 0.0
      %7445 = vmatprep.subr.mxu0 0.0
      %7446 = vmatpush1.msra.mxu0 0.0
      %7447 = vmatprep.subr.mxu0 0.0
      %7448 = vmatpush1.msra.mxu0 0.0
      %7449 = vmatprep.subr.mxu0 0.0
      %7450 = vmatpush1.msra.mxu0 0.0
      %7451 = vmatprep.subr.mxu0 0.0
      %7452 = vmatpush1.msra.mxu0 0.0
      %7453 = vmatprep.subr.mxu0 0.0
      %7454 = vmatpush1.msra.mxu0 0.0
      %7455 = vmatprep.subr.mxu0 0.0
      %7456 = vmatpush1.msra.mxu0 0.0
      %7457 = vmatprep.subr.mxu0 0.0
      %7458 = vmatpush1.msra.mxu0 0.0
      %7459 = vmatprep.subr.mxu0 0.0
      %7460 = vmatpush1.msra.mxu0 0.0
      %7461 = vmatprep.subr.mxu0 0.0
      %7462 = vmatpush1.msra.mxu0 0.0
      %7463 = vmatprep.subr.mxu0 0.0
      %7464 = vmatpush1.msra.mxu0 0.0
      %7465 = vmatprep.subr.mxu0 0.0
      %7466 = vmatpush1.msra.mxu0 0.0
      %7467 = vmatprep.subr.mxu0 0.0
      %7468 = vmatpush1.msra.mxu0 0.0
      %7469 = vmatprep.subr.mxu0 0.0
      %7470 = vmatpush1.msra.mxu0 0.0
      %7471 = vmatprep.subr.mxu0 0.0
      %7472 = vmatpush1.msra.mxu0 0.0
      %7473 = vmatprep.subr.mxu0 0.0
      %7474 = vmatpush1.msra.mxu0 0.0
      %7475 = vmatprep.subr.mxu0 0.0
      %7476 = vmatpush1.msra.mxu0 0.0
      %7477 = vmatprep.subr.mxu0 0.0
      %7478 = vmatpush1.msra.mxu0 0.0
      %7479 = vmatprep.subr.mxu0 0.0
      %7480 = vmatpush1.msra.mxu0 0.0
      %7481 = vmatprep.subr.mxu0 0.0
      %7482 = vmatpush1.msra.mxu0 0.0
      %7483 = vmatprep.subr.mxu0 0.0
      %7484 = vmatpush1.msra.mxu0 0.0
      %7485 = vmatprep.mubr.f32.mxu0 0.0
      %7486 = vmatmul.mubr.f32.gmra.mrb[0].mxu0 %v7416
      %v7487 = vpop.f32.mrb[0].mxu0
      %v7488 = vadd.f32 0.0, %v7487
      %v7489 = vpop.f32.mrb[0].mxu0
      %7490 = vmatprep.mubr.f32.mxu0 0.0
      %7491 = vmatmul.mubr.f32.gmra.mrb[0].mxu0 %v7419
      %v7492 = vpop.f32.mrb[0].mxu0
      %v7493 = vadd.f32 0.0, %v7492
      %v7494 = vpop.f32.mrb[0].mxu0
      %7495 = vdwg.mxu0
      %7498 = vrot.lane.b32.xlu0 %v4467, 112
      %v7499 = vpop.permute.xlu0 %7498
      %7500 = vrot.lane.b32.xlu0 %v4468, 112
      %v7501 = vpop.permute.xlu0 %7500
      %v7505 = vsel %vm6520, %v6855, 0
      %v7508 = vsel %vm6520, %v6856, 0
      %7510 = vmatprep.subr.mxu0 0.0
      %7511 = vmatpush1.msra.mxu0 %v7499
      %7512 = vmatprep.subr.mxu0 0.0
      %7513 = vmatpush1.msra.mxu0 %v7501
      %7514 = vmatprep.subr.mxu0 0.0
      %7515 = vmatpush1.msra.mxu0 0.0
      %7516 = vmatprep.subr.mxu0 0.0
      %7517 = vmatpush1.msra.mxu0 0.0
      %7518 = vmatprep.subr.mxu0 0.0
      %7519 = vmatpush1.msra.mxu0 0.0
      %7520 = vmatprep.subr.mxu0 0.0
      %7521 = vmatpush1.msra.mxu0 0.0
      %7522 = vmatprep.subr.mxu0 0.0
      %7523 = vmatpush1.msra.mxu0 0.0
      %7524 = vmatprep.subr.mxu0 0.0
      %7525 = vmatpush1.msra.mxu0 0.0
      %7526 = vmatprep.subr.mxu0 0.0
      %7527 = vmatpush1.msra.mxu0 0.0
      %7528 = vmatprep.subr.mxu0 0.0
      %7529 = vmatpush1.msra.mxu0 0.0
      %7530 = vmatprep.subr.mxu0 0.0
      %7531 = vmatpush1.msra.mxu0 0.0
      %7532 = vmatprep.subr.mxu0 0.0
      %7533 = vmatpush1.msra.mxu0 0.0
      %7534 = vmatprep.subr.mxu0 0.0
      %7535 = vmatpush1.msra.mxu0 0.0
      %7536 = vmatprep.subr.mxu0 0.0
      %7537 = vmatpush1.msra.mxu0 0.0
      %7538 = vmatprep.subr.mxu0 0.0
      %7539 = vmatpush1.msra.mxu0 0.0
      %7540 = vmatprep.subr.mxu0 0.0
      %7541 = vmatpush1.msra.mxu0 0.0
      %7542 = vmatprep.subr.mxu0 0.0
      %7543 = vmatpush1.msra.mxu0 0.0
      %7544 = vmatprep.subr.mxu0 0.0
      %7545 = vmatpush1.msra.mxu0 0.0
      %7546 = vmatprep.subr.mxu0 0.0
      %7547 = vmatpush1.msra.mxu0 0.0
      %7548 = vmatprep.subr.mxu0 0.0
      %7549 = vmatpush1.msra.mxu0 0.0
      %7550 = vmatprep.subr.mxu0 0.0
      %7551 = vmatpush1.msra.mxu0 0.0
      %7552 = vmatprep.subr.mxu0 0.0
      %7553 = vmatpush1.msra.mxu0 0.0
      %7554 = vmatprep.subr.mxu0 0.0
      %7555 = vmatpush1.msra.mxu0 0.0
      %7556 = vmatprep.subr.mxu0 0.0
      %7557 = vmatpush1.msra.mxu0 0.0
      %7558 = vmatprep.subr.mxu0 0.0
      %7559 = vmatpush1.msra.mxu0 0.0
      %7560 = vmatprep.subr.mxu0 0.0
      %7561 = vmatpush1.msra.mxu0 0.0
      %7562 = vmatprep.subr.mxu0 0.0
      %7563 = vmatpush1.msra.mxu0 0.0
      %7564 = vmatprep.subr.mxu0 0.0
      %7565 = vmatpush1.msra.mxu0 0.0
      %7566 = vmatprep.subr.mxu0 0.0
      %7567 = vmatpush1.msra.mxu0 0.0
      %7568 = vmatprep.subr.mxu0 0.0
      %7569 = vmatpush1.msra.mxu0 0.0
      %7570 = vmatprep.subr.mxu0 0.0
      %7571 = vmatpush1.msra.mxu0 0.0
      %7572 = vmatprep.subr.mxu0 0.0
      %7573 = vmatpush1.msra.mxu0 0.0
      %7574 = vmatprep.mubr.f32.mxu0 0.0
      %7575 = vmatmul.mubr.f32.gmra.mrb[0].mxu0 %v7505
      %v7576 = vpop.f32.mrb[0].mxu0
      %v7577 = vadd.f32 0.0, %v7576
      %v7578 = vpop.f32.mrb[0].mxu0
      %7579 = vmatprep.mubr.f32.mxu0 0.0
      %7580 = vmatmul.mubr.f32.gmra.mrb[0].mxu0 %v7508
      %v7581 = vpop.f32.mrb[0].mxu0
      %v7582 = vadd.f32 0.0, %v7581
      %v7583 = vpop.f32.mrb[0].mxu0
      %7584 = vdwg.mxu0
      %7587 = vrot.lane.b32.xlu0 %v4469, 112
      %v7588 = vpop.permute.xlu0 %7587
      %7589 = vrot.lane.b32.xlu0 %v4470, 112
      %v7590 = vpop.permute.xlu0 %7589
      %v7594 = vsel %vm6520, %v6857, 0
      %v7597 = vsel %vm6520, %v6858, 0
      %7599 = vmatprep.subr.mxu0 0.0
      %7600 = vmatpush1.msra.mxu0 %v7588
      %7601 = vmatprep.subr.mxu0 0.0
      %7602 = vmatpush1.msra.mxu0 %v7590
      %7603 = vmatprep.subr.mxu0 0.0
      %7604 = vmatpush1.msra.mxu0 0.0
      %7605 = vmatprep.subr.mxu0 0.0
      %7606 = vmatpush1.msra.mxu0 0.0
      %7607 = vmatprep.subr.mxu0 0.0
      %7608 = vmatpush1.msra.mxu0 0.0
      %7609 = vmatprep.subr.mxu0 0.0
      %7610 = vmatpush1.msra.mxu0 0.0
      %7611 = vmatprep.subr.mxu0 0.0
      %7612 = vmatpush1.msra.mxu0 0.0
      %7613 = vmatprep.subr.mxu0 0.0
      %7614 = vmatpush1.msra.mxu0 0.0
      %7615 = vmatprep.subr.mxu0 0.0
      %7616 = vmatpush1.msra.mxu0 0.0
      %7617 = vmatprep.subr.mxu0 0.0
      %7618 = vmatpush1.msra.mxu0 0.0
      %7619 = vmatprep.subr.mxu0 0.0
      %7620 = vmatpush1.msra.mxu0 0.0
      %7621 = vmatprep.subr.mxu0 0.0
      %7622 = vmatpush1.msra.mxu0 0.0
      %7623 = vmatprep.subr.mxu0 0.0
      %7624 = vmatpush1.msra.mxu0 0.0
      %7625 = vmatprep.subr.mxu0 0.0
      %7626 = vmatpush1.msra.mxu0 0.0
      %7627 = vmatprep.subr.mxu0 0.0
      %7628 = vmatpush1.msra.mxu0 0.0
      %7629 = vmatprep.subr.mxu0 0.0
      %7630 = vmatpush1.msra.mxu0 0.0
      %7631 = vmatprep.subr.mxu0 0.0
      %7632 = vmatpush1.msra.mxu0 0.0
      %7633 = vmatprep.subr.mxu0 0.0
      %7634 = vmatpush1.msra.mxu0 0.0
      %7635 = vmatprep.subr.mxu0 0.0
      %7636 = vmatpush1.msra.mxu0 0.0
      %7637 = vmatprep.subr.mxu0 0.0
      %7638 = vmatpush1.msra.mxu0 0.0
      %7639 = vmatprep.subr.mxu0 0.0
      %7640 = vmatpush1.msra.mxu0 0.0
      %7641 = vmatprep.subr.mxu0 0.0
      %7642 = vmatpush1.msra.mxu0 0.0
      %7643 = vmatprep.subr.mxu0 0.0
      %7644 = vmatpush1.msra.mxu0 0.0
      %7645 = vmatprep.subr.mxu0 0.0
      %7646 = vmatpush1.msra.mxu0 0.0
      %7647 = vmatprep.subr.mxu0 0.0
      %7648 = vmatpush1.msra.mxu0 0.0
      %7649 = vmatprep.subr.mxu0 0.0
      %7650 = vmatpush1.msra.mxu0 0.0
      %7651 = vmatprep.subr.mxu0 0.0
      %7652 = vmatpush1.msra.mxu0 0.0
      %7653 = vmatprep.subr.mxu0 0.0
      %7654 = vmatpush1.msra.mxu0 0.0
      %7655 = vmatprep.subr.mxu0 0.0
      %7656 = vmatpush1.msra.mxu0 0.0
      %7657 = vmatprep.subr.mxu0 0.0
      %7658 = vmatpush1.msra.mxu0 0.0
      %7659 = vmatprep.subr.mxu0 0.0
      %7660 = vmatpush1.msra.mxu0 0.0
      %7661 = vmatprep.subr.mxu0 0.0
      %7662 = vmatpush1.msra.mxu0 0.0
      %7663 = vmatprep.mubr.f32.mxu0 0.0
      %7664 = vmatmul.mubr.f32.gmra.mrb[0].mxu0 %v7594
      %v7665 = vpop.f32.mrb[0].mxu0
      %v7666 = vadd.f32 0.0, %v7665
      %v7667 = vpop.f32.mrb[0].mxu0
      %7668 = vmatprep.mubr.f32.mxu0 0.0
      %7669 = vmatmul.mubr.f32.gmra.mrb[0].mxu0 %v7597
      %v7670 = vpop.f32.mrb[0].mxu0
      %v7671 = vadd.f32 0.0, %v7670
      %v7672 = vpop.f32.mrb[0].mxu0
      %7673 = vdwg.mxu0
      %7676 = vrot.lane.b32.xlu0 %v4471, 112
      %v7677 = vpop.permute.xlu0 %7676
      %7678 = vrot.lane.b32.xlu0 %v4472, 112
      %v7679 = vpop.permute.xlu0 %7678
      %v7683 = vsel %vm6520, %v6859, 0
      %v7686 = vsel %vm6520, %v6860, 0
      %7688 = vmatprep.subr.mxu0 0.0
      %7689 = vmatpush1.msra.mxu0 %v7677
      %7690 = vmatprep.subr.mxu0 0.0
      %7691 = vmatpush1.msra.mxu0 %v7679
      %7692 = vmatprep.subr.mxu0 0.0
      %7693 = vmatpush1.msra.mxu0 0.0
      %7694 = vmatprep.subr.mxu0 0.0
      %7695 = vmatpush1.msra.mxu0 0.0
      %7696 = vmatprep.subr.mxu0 0.0
      %7697 = vmatpush1.msra.mxu0 0.0
      %7698 = vmatprep.subr.mxu0 0.0
      %7699 = vmatpush1.msra.mxu0 0.0
      %7700 = vmatprep.subr.mxu0 0.0
      %7701 = vmatpush1.msra.mxu0 0.0
      %7702 = vmatprep.subr.mxu0 0.0
      %7703 = vmatpush1.msra.mxu0 0.0
      %7704 = vmatprep.subr.mxu0 0.0
      %7705 = vmatpush1.msra.mxu0 0.0
      %7706 = vmatprep.subr.mxu0 0.0
      %7707 = vmatpush1.msra.mxu0 0.0
      %7708 = vmatprep.subr.mxu0 0.0
      %7709 = vmatpush1.msra.mxu0 0.0
      %7710 = vmatprep.subr.mxu0 0.0
      %7711 = vmatpush1.msra.mxu0 0.0
      %7712 = vmatprep.subr.mxu0 0.0
      %7713 = vmatpush1.msra.mxu0 0.0
      %7714 = vmatprep.subr.mxu0 0.0
      %7715 = vmatpush1.msra.mxu0 0.0
      %7716 = vmatprep.subr.mxu0 0.0
      %7717 = vmatpush1.msra.mxu0 0.0
      %7718 = vmatprep.subr.mxu0 0.0
      %7719 = vmatpush1.msra.mxu0 0.0
      %7720 = vmatprep.subr.mxu0 0.0
      %7721 = vmatpush1.msra.mxu0 0.0
      %7722 = vmatprep.subr.mxu0 0.0
      %7723 = vmatpush1.msra.mxu0 0.0
      %7724 = vmatprep.subr.mxu0 0.0
      %7725 = vmatpush1.msra.mxu0 0.0
      %7726 = vmatprep.subr.mxu0 0.0
      %7727 = vmatpush1.msra.mxu0 0.0
      %7728 = vmatprep.subr.mxu0 0.0
      %7729 = vmatpush1.msra.mxu0 0.0
      %7730 = vmatprep.subr.mxu0 0.0
      %7731 = vmatpush1.msra.mxu0 0.0
      %7732 = vmatprep.subr.mxu0 0.0
      %7733 = vmatpush1.msra.mxu0 0.0
      %7734 = vmatprep.subr.mxu0 0.0
      %7735 = vmatpush1.msra.mxu0 0.0
      %7736 = vmatprep.subr.mxu0 0.0
      %7737 = vmatpush1.msra.mxu0 0.0
      %7738 = vmatprep.subr.mxu0 0.0
      %7739 = vmatpush1.msra.mxu0 0.0
      %7740 = vmatprep.subr.mxu0 0.0
      %7741 = vmatpush1.msra.mxu0 0.0
      %7742 = vmatprep.subr.mxu0 0.0
      %7743 = vmatpush1.msra.mxu0 0.0
      %7744 = vmatprep.subr.mxu0 0.0
      %7745 = vmatpush1.msra.mxu0 0.0
      %7746 = vmatprep.subr.mxu0 0.0
      %7747 = vmatpush1.msra.mxu0 0.0
      %7748 = vmatprep.subr.mxu0 0.0
      %7749 = vmatpush1.msra.mxu0 0.0
      %7750 = vmatprep.subr.mxu0 0.0
      %7751 = vmatpush1.msra.mxu0 0.0
      %7752 = vmatprep.mubr.f32.mxu0 0.0
      %7753 = vmatmul.mubr.f32.gmra.mrb[0].mxu0 %v7683
      %v7754 = vpop.f32.mrb[0].mxu0
      %v7755 = vadd.f32 0.0, %v7754
      %v7756 = vpop.f32.mrb[0].mxu0
      %7757 = vmatprep.mubr.f32.mxu0 0.0
      %7758 = vmatmul.mubr.f32.gmra.mrb[0].mxu0 %v7686
      %v7759 = vpop.f32.mrb[0].mxu0
      %v7760 = vadd.f32 0.0, %v7759
      %v7761 = vpop.f32.mrb[0].mxu0
      %7762 = vdwg.mxu0
      %7765 = vrot.lane.b32.xlu0 %v4473, 112
      %v7766 = vpop.permute.xlu0 %7765
      %7767 = vrot.lane.b32.xlu0 %v4474, 112
      %v7768 = vpop.permute.xlu0 %7767
      %v7772 = vsel %vm6520, %v6861, 0
      %v7775 = vsel %vm6520, %v6862, 0
      %7777 = vmatprep.subr.mxu0 0.0
      %7778 = vmatpush1.msra.mxu0 %v7766
      %7779 = vmatprep.subr.mxu0 0.0
      %7780 = vmatpush1.msra.mxu0 %v7768
      %7781 = vmatprep.subr.mxu0 0.0
      %7782 = vmatpush1.msra.mxu0 0.0
      %7783 = vmatprep.subr.mxu0 0.0
      %7784 = vmatpush1.msra.mxu0 0.0
      %7785 = vmatprep.subr.mxu0 0.0
      %7786 = vmatpush1.msra.mxu0 0.0
      %7787 = vmatprep.subr.mxu0 0.0
      %7788 = vmatpush1.msra.mxu0 0.0
      %7789 = vmatprep.subr.mxu0 0.0
      %7790 = vmatpush1.msra.mxu0 0.0
      %7791 = vmatprep.subr.mxu0 0.0
      %7792 = vmatpush1.msra.mxu0 0.0
      %7793 = vmatprep.subr.mxu0 0.0
      %7794 = vmatpush1.msra.mxu0 0.0
      %7795 = vmatprep.subr.mxu0 0.0
      %7796 = vmatpush1.msra.mxu0 0.0
      %7797 = vmatprep.subr.mxu0 0.0
      %7798 = vmatpush1.msra.mxu0 0.0
      %7799 = vmatprep.subr.mxu0 0.0
      %7800 = vmatpush1.msra.mxu0 0.0
      %7801 = vmatprep.subr.mxu0 0.0
      %7802 = vmatpush1.msra.mxu0 0.0
      %7803 = vmatprep.subr.mxu0 0.0
      %7804 = vmatpush1.msra.mxu0 0.0
      %7805 = vmatprep.subr.mxu0 0.0
      %7806 = vmatpush1.msra.mxu0 0.0
      %7807 = vmatprep.subr.mxu0 0.0
      %7808 = vmatpush1.msra.mxu0 0.0
      %7809 = vmatprep.subr.mxu0 0.0
      %7810 = vmatpush1.msra.mxu0 0.0
      %7811 = vmatprep.subr.mxu0 0.0
      %7812 = vmatpush1.msra.mxu0 0.0
      %7813 = vmatprep.subr.mxu0 0.0
      %7814 = vmatpush1.msra.mxu0 0.0
      %7815 = vmatprep.subr.mxu0 0.0
      %7816 = vmatpush1.msra.mxu0 0.0
      %7817 = vmatprep.subr.mxu0 0.0
      %7818 = vmatpush1.msra.mxu0 0.0
      %7819 = vmatprep.subr.mxu0 0.0
      %7820 = vmatpush1.msra.mxu0 0.0
      %7821 = vmatprep.subr.mxu0 0.0
      %7822 = vmatpush1.msra.mxu0 0.0
      %7823 = vmatprep.subr.mxu0 0.0
      %7824 = vmatpush1.msra.mxu0 0.0
      %7825 = vmatprep.subr.mxu0 0.0
      %7826 = vmatpush1.msra.mxu0 0.0
      %7827 = vmatprep.subr.mxu0 0.0
      %7828 = vmatpush1.msra.mxu0 0.0
      %7829 = vmatprep.subr.mxu0 0.0
      %7830 = vmatpush1.msra.mxu0 0.0
      %7831 = vmatprep.subr.mxu0 0.0
      %7832 = vmatpush1.msra.mxu0 0.0
      %7833 = vmatprep.subr.mxu0 0.0
      %7834 = vmatpush1.msra.mxu0 0.0
      %7835 = vmatprep.subr.mxu0 0.0
      %7836 = vmatpush1.msra.mxu0 0.0
      %7837 = vmatprep.subr.mxu0 0.0
      %7838 = vmatpush1.msra.mxu0 0.0
      %7839 = vmatprep.subr.mxu0 0.0
      %7840 = vmatpush1.msra.mxu0 0.0
      %7841 = vmatprep.mubr.f32.mxu0 0.0
      %7842 = vmatmul.mubr.f32.gmra.mrb[0].mxu0 %v7772
      %v7843 = vpop.f32.mrb[0].mxu0
      %v7844 = vadd.f32 0.0, %v7843
      %v7845 = vpop.f32.mrb[0].mxu0
      %7846 = vmatprep.mubr.f32.mxu0 0.0
      %7847 = vmatmul.mubr.f32.gmra.mrb[0].mxu0 %v7775
      %v7848 = vpop.f32.mrb[0].mxu0
      %v7849 = vadd.f32 0.0, %v7848
      %v7850 = vpop.f32.mrb[0].mxu0
      %7851 = vdwg.mxu0
      %7854 = vrot.lane.b32.xlu0 %v4475, 112
      %v7855 = vpop.permute.xlu0 %7854
      %7856 = vrot.lane.b32.xlu0 %v4476, 112
      %v7857 = vpop.permute.xlu0 %7856
      %v7861 = vsel %vm6520, %v6863, 0
      %v7864 = vsel %vm6520, %v6864, 0
      %7866 = vmatprep.subr.mxu0 0.0
      %7867 = vmatpush1.msra.mxu0 %v7855
      %7868 = vmatprep.subr.mxu0 0.0
      %7869 = vmatpush1.msra.mxu0 %v7857
      %7870 = vmatprep.subr.mxu0 0.0
      %7871 = vmatpush1.msra.mxu0 0.0
      %7872 = vmatprep.subr.mxu0 0.0
      %7873 = vmatpush1.msra.mxu0 0.0
      %7874 = vmatprep.subr.mxu0 0.0
      %7875 = vmatpush1.msra.mxu0 0.0
      %7876 = vmatprep.subr.mxu0 0.0
      %7877 = vmatpush1.msra.mxu0 0.0
      %7878 = vmatprep.subr.mxu0 0.0
      %7879 = vmatpush1.msra.mxu0 0.0
      %7880 = vmatprep.subr.mxu0 0.0
      %7881 = vmatpush1.msra.mxu0 0.0
      %7882 = vmatprep.subr.mxu0 0.0
      %7883 = vmatpush1.msra.mxu0 0.0
      %7884 = vmatprep.subr.mxu0 0.0
      %7885 = vmatpush1.msra.mxu0 0.0
      %7886 = vmatprep.subr.mxu0 0.0
      %7887 = vmatpush1.msra.mxu0 0.0
      %7888 = vmatprep.subr.mxu0 0.0
      %7889 = vmatpush1.msra.mxu0 0.0
      %7890 = vmatprep.subr.mxu0 0.0
      %7891 = vmatpush1.msra.mxu0 0.0
      %7892 = vmatprep.subr.mxu0 0.0
      %7893 = vmatpush1.msra.mxu0 0.0
      %7894 = vmatprep.subr.mxu0 0.0
      %7895 = vmatpush1.msra.mxu0 0.0
      %7896 = vmatprep.subr.mxu0 0.0
      %7897 = vmatpush1.msra.mxu0 0.0
      %7898 = vmatprep.subr.mxu0 0.0
      %7899 = vmatpush1.msra.mxu0 0.0
      %7900 = vmatprep.subr.mxu0 0.0
      %7901 = vmatpush1.msra.mxu0 0.0
      %7902 = vmatprep.subr.mxu0 0.0
      %7903 = vmatpush1.msra.mxu0 0.0
      %7904 = vmatprep.subr.mxu0 0.0
      %7905 = vmatpush1.msra.mxu0 0.0
      %7906 = vmatprep.subr.mxu0 0.0
      %7907 = vmatpush1.msra.mxu0 0.0
      %7908 = vmatprep.subr.mxu0 0.0
      %7909 = vmatpush1.msra.mxu0 0.0
      %7910 = vmatprep.subr.mxu0 0.0
      %7911 = vmatpush1.msra.mxu0 0.0
      %7912 = vmatprep.subr.mxu0 0.0
      %7913 = vmatpush1.msra.mxu0 0.0
      %7914 = vmatprep.subr.mxu0 0.0
      %7915 = vmatpush1.msra.mxu0 0.0
      %7916 = vmatprep.subr.mxu0 0.0
      %7917 = vmatpush1.msra.mxu0 0.0
      %7918 = vmatprep.subr.mxu0 0.0
      %7919 = vmatpush1.msra.mxu0 0.0
      %7920 = vmatprep.subr.mxu0 0.0
      %7921 = vmatpush1.msra.mxu0 0.0
      %7922 = vmatprep.subr.mxu0 0.0
      %7923 = vmatpush1.msra.mxu0 0.0
      %7924 = vmatprep.subr.mxu0 0.0
      %7925 = vmatpush1.msra.mxu0 0.0
      %7926 = vmatprep.subr.mxu0 0.0
      %7927 = vmatpush1.msra.mxu0 0.0
      %7928 = vmatprep.subr.mxu0 0.0
      %7929 = vmatpush1.msra.mxu0 0.0
      %7930 = vmatprep.mubr.f32.mxu0 0.0
      %7931 = vmatmul.mubr.f32.gmra.mrb[0].mxu0 %v7861
      %v7932 = vpop.f32.mrb[0].mxu0
      %v7933 = vadd.f32 0.0, %v7932
      %v7934 = vpop.f32.mrb[0].mxu0
      %7935 = vmatprep.mubr.f32.mxu0 0.0
      %7936 = vmatmul.mubr.f32.gmra.mrb[0].mxu0 %v7864
      %v7937 = vpop.f32.mrb[0].mxu0
      %v7938 = vadd.f32 0.0, %v7937
      %v7939 = vpop.f32.mrb[0].mxu0
      %7940 = vdwg.mxu0
      %7943 = vrot.lane.b32.xlu0 %v4477, 112
      %v7944 = vpop.permute.xlu0 %7943
      %7945 = vrot.lane.b32.xlu0 %v4478, 112
      %v7946 = vpop.permute.xlu0 %7945
      %v7950 = vsel %vm6520, %v6865, 0
      %v7953 = vsel %vm6520, %v6866, 0
      %7955 = vmatprep.subr.mxu0 0.0
      %7956 = vmatpush1.msra.mxu0 %v7944
      %7957 = vmatprep.subr.mxu0 0.0
      %7958 = vmatpush1.msra.mxu0 %v7946
      %7959 = vmatprep.subr.mxu0 0.0
      %7960 = vmatpush1.msra.mxu0 0.0
      %7961 = vmatprep.subr.mxu0 0.0
      %7962 = vmatpush1.msra.mxu0 0.0
      %7963 = vmatprep.subr.mxu0 0.0
      %7964 = vmatpush1.msra.mxu0 0.0
      %7965 = vmatprep.subr.mxu0 0.0
      %7966 = vmatpush1.msra.mxu0 0.0
      %7967 = vmatprep.subr.mxu0 0.0
      %7968 = vmatpush1.msra.mxu0 0.0
      %7969 = vmatprep.subr.mxu0 0.0
      %7970 = vmatpush1.msra.mxu0 0.0
      %7971 = vmatprep.subr.mxu0 0.0
      %7972 = vmatpush1.msra.mxu0 0.0
      %7973 = vmatprep.subr.mxu0 0.0
      %7974 = vmatpush1.msra.mxu0 0.0
      %7975 = vmatprep.subr.mxu0 0.0
      %7976 = vmatpush1.msra.mxu0 0.0
      %7977 = vmatprep.subr.mxu0 0.0
      %7978 = vmatpush1.msra.mxu0 0.0
      %7979 = vmatprep.subr.mxu0 0.0
      %7980 = vmatpush1.msra.mxu0 0.0
      %7981 = vmatprep.subr.mxu0 0.0
      %7982 = vmatpush1.msra.mxu0 0.0
      %7983 = vmatprep.subr.mxu0 0.0
      %7984 = vmatpush1.msra.mxu0 0.0
      %7985 = vmatprep.subr.mxu0 0.0
      %7986 = vmatpush1.msra.mxu0 0.0
      %7987 = vmatprep.subr.mxu0 0.0
      %7988 = vmatpush1.msra.mxu0 0.0
      %7989 = vmatprep.subr.mxu0 0.0
      %7990 = vmatpush1.msra.mxu0 0.0
      %7991 = vmatprep.subr.mxu0 0.0
      %7992 = vmatpush1.msra.mxu0 0.0
      %7993 = vmatprep.subr.mxu0 0.0
      %7994 = vmatpush1.msra.mxu0 0.0
      %7995 = vmatprep.subr.mxu0 0.0
      %7996 = vmatpush1.msra.mxu0 0.0
      %7997 = vmatprep.subr.mxu0 0.0
      %7998 = vmatpush1.msra.mxu0 0.0
      %7999 = vmatprep.subr.mxu0 0.0
      %8000 = vmatpush1.msra.mxu0 0.0
      %8001 = vmatprep.subr.mxu0 0.0
      %8002 = vmatpush1.msra.mxu0 0.0
      %8003 = vmatprep.subr.mxu0 0.0
      %8004 = vmatpush1.msra.mxu0 0.0
      %8005 = vmatprep.subr.mxu0 0.0
      %8006 = vmatpush1.msra.mxu0 0.0
      %8007 = vmatprep.subr.mxu0 0.0
      %8008 = vmatpush1.msra.mxu0 0.0
      %8009 = vmatprep.subr.mxu0 0.0
      %8010 = vmatpush1.msra.mxu0 0.0
      %8011 = vmatprep.subr.mxu0 0.0
      %8012 = vmatpush1.msra.mxu0 0.0
      %8013 = vmatprep.subr.mxu0 0.0
      %8014 = vmatpush1.msra.mxu0 0.0
      %8015 = vmatprep.subr.mxu0 0.0
      %8016 = vmatpush1.msra.mxu0 0.0
      %8017 = vmatprep.subr.mxu0 0.0
      %8018 = vmatpush1.msra.mxu0 0.0
      %8019 = vmatprep.mubr.f32.mxu0 0.0
      %8020 = vmatmul.mubr.f32.gmra.mrb[0].mxu0 %v7950
      %v8021 = vpop.f32.mrb[0].mxu0
      %v8022 = vadd.f32 0.0, %v8021
      %v8023 = vpop.f32.mrb[0].mxu0
      %8024 = vmatprep.mubr.f32.mxu0 0.0
      %8025 = vmatmul.mubr.f32.gmra.mrb[0].mxu0 %v7953
      %v8026 = vpop.f32.mrb[0].mxu0
      %v8027 = vadd.f32 0.0, %v8026
      %v8028 = vpop.f32.mrb[0].mxu0
      %8029 = vdwg.mxu0
      %8032 = vrot.lane.b32.xlu0 %v4479, 112
      %v8033 = vpop.permute.xlu0 %8032
      %8034 = vrot.lane.b32.xlu0 %v4480, 112
      %v8035 = vpop.permute.xlu0 %8034
      %v8039 = vsel %vm6520, %v6867, 0
      %v8042 = vsel %vm6520, %v6868, 0
      %8044 = vmatprep.subr.mxu0 0.0
      %8045 = vmatpush1.msra.mxu0 %v8033
      %8046 = vmatprep.subr.mxu0 0.0
      %8047 = vmatpush1.msra.mxu0 %v8035
      %8048 = vmatprep.subr.mxu0 0.0
      %8049 = vmatpush1.msra.mxu0 0.0
      %8050 = vmatprep.subr.mxu0 0.0
      %8051 = vmatpush1.msra.mxu0 0.0
      %8052 = vmatprep.subr.mxu0 0.0
      %8053 = vmatpush1.msra.mxu0 0.0
      %8054 = vmatprep.subr.mxu0 0.0
      %8055 = vmatpush1.msra.mxu0 0.0
      %8056 = vmatprep.subr.mxu0 0.0
      %8057 = vmatpush1.msra.mxu0 0.0
      %8058 = vmatprep.subr.mxu0 0.0
      %8059 = vmatpush1.msra.mxu0 0.0
      %8060 = vmatprep.subr.mxu0 0.0
      %8061 = vmatpush1.msra.mxu0 0.0
      %8062 = vmatprep.subr.mxu0 0.0
      %8063 = vmatpush1.msra.mxu0 0.0
      %8064 = vmatprep.subr.mxu0 0.0
      %8065 = vmatpush1.msra.mxu0 0.0
      %8066 = vmatprep.subr.mxu0 0.0
      %8067 = vmatpush1.msra.mxu0 0.0
      %8068 = vmatprep.subr.mxu0 0.0
      %8069 = vmatpush1.msra.mxu0 0.0
      %8070 = vmatprep.subr.mxu0 0.0
      %8071 = vmatpush1.msra.mxu0 0.0
      %8072 = vmatprep.subr.mxu0 0.0
      %8073 = vmatpush1.msra.mxu0 0.0
      %8074 = vmatprep.subr.mxu0 0.0
      %8075 = vmatpush1.msra.mxu0 0.0
      %8076 = vmatprep.subr.mxu0 0.0
      %8077 = vmatpush1.msra.mxu0 0.0
      %8078 = vmatprep.subr.mxu0 0.0
      %8079 = vmatpush1.msra.mxu0 0.0
      %8080 = vmatprep.subr.mxu0 0.0
      %8081 = vmatpush1.msra.mxu0 0.0
      %8082 = vmatprep.subr.mxu0 0.0
      %8083 = vmatpush1.msra.mxu0 0.0
      %8084 = vmatprep.subr.mxu0 0.0
      %8085 = vmatpush1.msra.mxu0 0.0
      %8086 = vmatprep.subr.mxu0 0.0
      %8087 = vmatpush1.msra.mxu0 0.0
      %8088 = vmatprep.subr.mxu0 0.0
      %8089 = vmatpush1.msra.mxu0 0.0
      %8090 = vmatprep.subr.mxu0 0.0
      %8091 = vmatpush1.msra.mxu0 0.0
      %8092 = vmatprep.subr.mxu0 0.0
      %8093 = vmatpush1.msra.mxu0 0.0
      %8094 = vmatprep.subr.mxu0 0.0
      %8095 = vmatpush1.msra.mxu0 0.0
      %8096 = vmatprep.subr.mxu0 0.0
      %8097 = vmatpush1.msra.mxu0 0.0
      %8098 = vmatprep.subr.mxu0 0.0
      %8099 = vmatpush1.msra.mxu0 0.0
      %8100 = vmatprep.subr.mxu0 0.0
      %8101 = vmatpush1.msra.mxu0 0.0
      %8102 = vmatprep.subr.mxu0 0.0
      %8103 = vmatpush1.msra.mxu0 0.0
      %8104 = vmatprep.subr.mxu0 0.0
      %8105 = vmatpush1.msra.mxu0 0.0
      %8106 = vmatprep.subr.mxu0 0.0
      %8107 = vmatpush1.msra.mxu0 0.0
      %8108 = vmatprep.mubr.f32.mxu0 0.0
      %8109 = vmatmul.mubr.f32.gmra.mrb[0].mxu0 %v8039
      %v8110 = vpop.f32.mrb[0].mxu0
      %v8111 = vadd.f32 0.0, %v8110
      %v8112 = vpop.f32.mrb[0].mxu0
      %8113 = vmatprep.mubr.f32.mxu0 0.0
      %8114 = vmatmul.mubr.f32.gmra.mrb[0].mxu0 %v8042
      %v8115 = vpop.f32.mrb[0].mxu0
      %v8116 = vadd.f32 0.0, %v8115
      %v8117 = vpop.f32.mrb[0].mxu0
      %8118 = vdwg.mxu0
      %8121 = vrot.lane.b32.xlu0 %v4481, 112
      %v8122 = vpop.permute.xlu0 %8121
      %8123 = vrot.lane.b32.xlu0 %v4482, 112
      %v8124 = vpop.permute.xlu0 %8123
      %v8128 = vsel %vm6520, %v6869, 0
      %v8131 = vsel %vm6520, %v6870, 0
      %8133 = vmatprep.subr.mxu0 0.0
      %8134 = vmatpush1.msra.mxu0 %v8122
      %8135 = vmatprep.subr.mxu0 0.0
      %8136 = vmatpush1.msra.mxu0 %v8124
      %8137 = vmatprep.subr.mxu0 0.0
      %8138 = vmatpush1.msra.mxu0 0.0
      %8139 = vmatprep.subr.mxu0 0.0
      %8140 = vmatpush1.msra.mxu0 0.0
      %8141 = vmatprep.subr.mxu0 0.0
      %8142 = vmatpush1.msra.mxu0 0.0
      %8143 = vmatprep.subr.mxu0 0.0
      %8144 = vmatpush1.msra.mxu0 0.0
      %8145 = vmatprep.subr.mxu0 0.0
      %8146 = vmatpush1.msra.mxu0 0.0
      %8147 = vmatprep.subr.mxu0 0.0
      %8148 = vmatpush1.msra.mxu0 0.0
      %8149 = vmatprep.subr.mxu0 0.0
      %8150 = vmatpush1.msra.mxu0 0.0
      %8151 = vmatprep.subr.mxu0 0.0
      %8152 = vmatpush1.msra.mxu0 0.0
      %8153 = vmatprep.subr.mxu0 0.0
      %8154 = vmatpush1.msra.mxu0 0.0
      %8155 = vmatprep.subr.mxu0 0.0
      %8156 = vmatpush1.msra.mxu0 0.0
      %8157 = vmatprep.subr.mxu0 0.0
      %8158 = vmatpush1.msra.mxu0 0.0
      %8159 = vmatprep.subr.mxu0 0.0
      %8160 = vmatpush1.msra.mxu0 0.0
      %8161 = vmatprep.subr.mxu0 0.0
      %8162 = vmatpush1.msra.mxu0 0.0
      %8163 = vmatprep.subr.mxu0 0.0
      %8164 = vmatpush1.msra.mxu0 0.0
      %8165 = vmatprep.subr.mxu0 0.0
      %8166 = vmatpush1.msra.mxu0 0.0
      %8167 = vmatprep.subr.mxu0 0.0
      %8168 = vmatpush1.msra.mxu0 0.0
      %8169 = vmatprep.subr.mxu0 0.0
      %8170 = vmatpush1.msra.mxu0 0.0
      %8171 = vmatprep.subr.mxu0 0.0
      %8172 = vmatpush1.msra.mxu0 0.0
      %8173 = vmatprep.subr.mxu0 0.0
      %8174 = vmatpush1.msra.mxu0 0.0
      %8175 = vmatprep.subr.mxu0 0.0
      %8176 = vmatpush1.msra.mxu0 0.0
      %8177 = vmatprep.subr.mxu0 0.0
      %8178 = vmatpush1.msra.mxu0 0.0
      %8179 = vmatprep.subr.mxu0 0.0
      %8180 = vmatpush1.msra.mxu0 0.0
      %8181 = vmatprep.subr.mxu0 0.0
      %8182 = vmatpush1.msra.mxu0 0.0
      %8183 = vmatprep.subr.mxu0 0.0
      %8184 = vmatpush1.msra.mxu0 0.0
      %8185 = vmatprep.subr.mxu0 0.0
      %8186 = vmatpush1.msra.mxu0 0.0
      %8187 = vmatprep.subr.mxu0 0.0
      %8188 = vmatpush1.msra.mxu0 0.0
      %8189 = vmatprep.subr.mxu0 0.0
      %8190 = vmatpush1.msra.mxu0 0.0
      %8191 = vmatprep.subr.mxu0 0.0
      %8192 = vmatpush1.msra.mxu0 0.0
      %8193 = vmatprep.subr.mxu0 0.0
      %8194 = vmatpush1.msra.mxu0 0.0
      %8195 = vmatprep.subr.mxu0 0.0
      %8196 = vmatpush1.msra.mxu0 0.0
      %8197 = vmatprep.mubr.f32.mxu0 0.0
      %8198 = vmatmul.mubr.f32.gmra.mrb[0].mxu0 %v8128
      %v8199 = vpop.f32.mrb[0].mxu0
      %v8200 = vadd.f32 0.0, %v8199
      %v8201 = vpop.f32.mrb[0].mxu0
      %8202 = vmatprep.mubr.f32.mxu0 0.0
      %8203 = vmatmul.mubr.f32.gmra.mrb[0].mxu0 %v8131
      %v8204 = vpop.f32.mrb[0].mxu0
      %v8205 = vadd.f32 0.0, %v8204
      %v8206 = vpop.f32.mrb[0].mxu0
      %8207 = vdwg.mxu0
      %8210 = vrot.lane.b32.xlu0 %v4483, 112
      %v8211 = vpop.permute.xlu0 %8210
      %8212 = vrot.lane.b32.xlu0 %v4484, 112
      %v8213 = vpop.permute.xlu0 %8212
      %v8217 = vsel %vm6520, %v6871, 0
      %v8220 = vsel %vm6520, %v6872, 0
      %8222 = vmatprep.subr.mxu0 0.0
      %8223 = vmatpush1.msra.mxu0 %v8211
      %8224 = vmatprep.subr.mxu0 0.0
      %8225 = vmatpush1.msra.mxu0 %v8213
      %8226 = vmatprep.subr.mxu0 0.0
      %8227 = vmatpush1.msra.mxu0 0.0
      %8228 = vmatprep.subr.mxu0 0.0
      %8229 = vmatpush1.msra.mxu0 0.0
      %8230 = vmatprep.subr.mxu0 0.0
      %8231 = vmatpush1.msra.mxu0 0.0
      %8232 = vmatprep.subr.mxu0 0.0
      %8233 = vmatpush1.msra.mxu0 0.0
      %8234 = vmatprep.subr.mxu0 0.0
      %8235 = vmatpush1.msra.mxu0 0.0
      %8236 = vmatprep.subr.mxu0 0.0
      %8237 = vmatpush1.msra.mxu0 0.0
      %8238 = vmatprep.subr.mxu0 0.0
      %8239 = vmatpush1.msra.mxu0 0.0
      %8240 = vmatprep.subr.mxu0 0.0
      %8241 = vmatpush1.msra.mxu0 0.0
      %8242 = vmatprep.subr.mxu0 0.0
      %8243 = vmatpush1.msra.mxu0 0.0
      %8244 = vmatprep.subr.mxu0 0.0
      %8245 = vmatpush1.msra.mxu0 0.0
      %8246 = vmatprep.subr.mxu0 0.0
      %8247 = vmatpush1.msra.mxu0 0.0
      %8248 = vmatprep.subr.mxu0 0.0
      %8249 = vmatpush1.msra.mxu0 0.0
      %8250 = vmatprep.subr.mxu0 0.0
      %8251 = vmatpush1.msra.mxu0 0.0
      %8252 = vmatprep.subr.mxu0 0.0
      %8253 = vmatpush1.msra.mxu0 0.0
      %8254 = vmatprep.subr.mxu0 0.0
      %8255 = vmatpush1.msra.mxu0 0.0
      %8256 = vmatprep.subr.mxu0 0.0
      %8257 = vmatpush1.msra.mxu0 0.0
      %8258 = vmatprep.subr.mxu0 0.0
      %8259 = vmatpush1.msra.mxu0 0.0
      %8260 = vmatprep.subr.mxu0 0.0
      %8261 = vmatpush1.msra.mxu0 0.0
      %8262 = vmatprep.subr.mxu0 0.0
      %8263 = vmatpush1.msra.mxu0 0.0
      %8264 = vmatprep.subr.mxu0 0.0
      %8265 = vmatpush1.msra.mxu0 0.0
      %8266 = vmatprep.subr.mxu0 0.0
      %8267 = vmatpush1.msra.mxu0 0.0
      %8268 = vmatprep.subr.mxu0 0.0
      %8269 = vmatpush1.msra.mxu0 0.0
      %8270 = vmatprep.subr.mxu0 0.0
      %8271 = vmatpush1.msra.mxu0 0.0
      %8272 = vmatprep.subr.mxu0 0.0
      %8273 = vmatpush1.msra.mxu0 0.0
      %8274 = vmatprep.subr.mxu0 0.0
      %8275 = vmatpush1.msra.mxu0 0.0
      %8276 = vmatprep.subr.mxu0 0.0
      %8277 = vmatpush1.msra.mxu0 0.0
      %8278 = vmatprep.subr.mxu0 0.0
      %8279 = vmatpush1.msra.mxu0 0.0
      %8280 = vmatprep.subr.mxu0 0.0
      %8281 = vmatpush1.msra.mxu0 0.0
      %8282 = vmatprep.subr.mxu0 0.0
      %8283 = vmatpush1.msra.mxu0 0.0
      %8284 = vmatprep.subr.mxu0 0.0
      %8285 = vmatpush1.msra.mxu0 0.0
      %8286 = vmatprep.mubr.f32.mxu0 0.0
      %8287 = vmatmul.mubr.f32.gmra.mrb[0].mxu0 %v8217
      %v8288 = vpop.f32.mrb[0].mxu0
      %v8289 = vadd.f32 0.0, %v8288
      %v8290 = vpop.f32.mrb[0].mxu0
      %8291 = vmatprep.mubr.f32.mxu0 0.0
      %8292 = vmatmul.mubr.f32.gmra.mrb[0].mxu0 %v8220
      %v8293 = vpop.f32.mrb[0].mxu0
      %v8294 = vadd.f32 0.0, %v8293
      %v8295 = vpop.f32.mrb[0].mxu0
      %8296 = vdwg.mxu0
      %8297 = vrot.lane.b32.xlu0 %v4486, 124
      %v8298 = vpop.permute.xlu0 %8297
      %8299 = vrot.lane.b32.xlu0 %v4487, 124
      %v8300 = vpop.permute.xlu0 %8299
      %8301 = vrot.lane.b32.xlu0 %v4488, 124
      %v8302 = vpop.permute.xlu0 %8301
      %8303 = vrot.lane.b32.xlu0 %v4489, 124
      %v8304 = vpop.permute.xlu0 %8303
      %8305 = vrot.lane.b32.xlu0 %v4490, 124
      %v8306 = vpop.permute.xlu0 %8305
      %8307 = vrot.lane.b32.xlu0 %v4491, 124
      %v8308 = vpop.permute.xlu0 %8307
      %8309 = vrot.lane.b32.xlu0 %v4492, 124
      %v8310 = vpop.permute.xlu0 %8309
      %8311 = vrot.lane.b32.xlu0 %v4493, 124
      %v8312 = vpop.permute.xlu0 %8311
      %8313 = vrot.lane.b32.xlu0 %v4494, 124
      %v8314 = vpop.permute.xlu0 %8313
      %8315 = vrot.lane.b32.xlu0 %v4495, 124
      %v8316 = vpop.permute.xlu0 %8315
      %8317 = vrot.lane.b32.xlu0 %v4496, 124
      %v8318 = vpop.permute.xlu0 %8317
      %8319 = vrot.lane.b32.xlu0 %v4497, 124
      %v8320 = vpop.permute.xlu0 %8319
      %8321 = vrot.lane.b32.xlu0 %v4498, 124
      %v8322 = vpop.permute.xlu0 %8321
      %8323 = vrot.lane.b32.xlu0 %v4499, 124
      %v8324 = vpop.permute.xlu0 %8323
      %8325 = vrot.lane.b32.xlu0 %v4500, 124
      %v8326 = vpop.permute.xlu0 %8325
      %8327 = vrot.lane.b32.xlu0 %v4501, 124
      %v8328 = vpop.permute.xlu0 %8327
      %8329 = vrot.lane.b32.xlu0 %v4502, 124
      %v8330 = vpop.permute.xlu0 %8329
      %8331 = vrot.lane.b32.xlu0 %v4503, 124
      %v8332 = vpop.permute.xlu0 %8331
      %8333 = vrot.lane.b32.xlu0 %v4504, 124
      %v8334 = vpop.permute.xlu0 %8333
      %8335 = vrot.lane.b32.xlu0 %v4505, 124
      %v8336 = vpop.permute.xlu0 %8335
      %8337 = vrot.lane.b32.xlu0 %v4506, 124
      %v8338 = vpop.permute.xlu0 %8337
      %8339 = vrot.lane.b32.xlu0 %v4507, 124
      %v8340 = vpop.permute.xlu0 %8339
      %8341 = vrot.lane.b32.xlu0 %v4508, 124
      %v8342 = vpop.permute.xlu0 %8341
      %8343 = vrot.lane.b32.xlu0 %v4509, 124
      %v8344 = vpop.permute.xlu0 %8343
      %8345 = vrot.lane.b32.xlu0 %v4510, 124
      %v8346 = vpop.permute.xlu0 %8345
      %8347 = vrot.lane.b32.xlu0 %v4511, 124
      %v8348 = vpop.permute.xlu0 %8347
      %8349 = vrot.lane.b32.xlu0 %v4512, 124
      %v8350 = vpop.permute.xlu0 %8349
      %8351 = vrot.lane.b32.xlu0 %v4513, 124
      %v8352 = vpop.permute.xlu0 %8351
      %8353 = vrot.lane.b32.xlu0 %v4514, 124
      %v8354 = vpop.permute.xlu0 %8353
      %8355 = vrot.lane.b32.xlu0 %v4515, 124
      %v8356 = vpop.permute.xlu0 %8355
      %8357 = vrot.lane.b32.xlu0 %v4516, 124
      %v8358 = vpop.permute.xlu0 %8357
      %8359 = vrot.lane.b32.xlu0 %v4517, 124
      %v8360 = vpop.permute.xlu0 %8359
      %v8393 = vsel %vm4518, %v8298, 0.0
      %8394 = vadd.xlane.f32.xlu0 %v8393
      %v8395 = vpop.xlane.xlu0 %8394
      %v8396 = vsel %vm4518, %v8300, 0.0
      %8397 = vadd.xlane.f32.xlu0 %v8396
      %v8398 = vpop.xlane.xlu0 %8397
      %v8399 = vsel %vm4518, %v8302, 0.0
      %8400 = vadd.xlane.f32.xlu0 %v8399
      %v8401 = vpop.xlane.xlu0 %8400
      %v8402 = vsel %vm4518, %v8304, 0.0
      %8403 = vadd.xlane.f32.xlu0 %v8402
      %v8404 = vpop.xlane.xlu0 %8403
      %v8405 = vsel %vm4518, %v8306, 0.0
      %8406 = vadd.xlane.f32.xlu0 %v8405
      %v8407 = vpop.xlane.xlu0 %8406
      %v8408 = vsel %vm4518, %v8308, 0.0
      %8409 = vadd.xlane.f32.xlu0 %v8408
      %v8410 = vpop.xlane.xlu0 %8409
      %v8411 = vsel %vm4518, %v8310, 0.0
      %8412 = vadd.xlane.f32.xlu0 %v8411
      %v8413 = vpop.xlane.xlu0 %8412
      %v8414 = vsel %vm4518, %v8312, 0.0
      %8415 = vadd.xlane.f32.xlu0 %v8414
      %v8416 = vpop.xlane.xlu0 %8415
      %v8417 = vsel %vm4518, %v8314, 0.0
      %8418 = vadd.xlane.f32.xlu0 %v8417
      %v8419 = vpop.xlane.xlu0 %8418
      %v8420 = vsel %vm4518, %v8316, 0.0
      %8421 = vadd.xlane.f32.xlu0 %v8420
      %v8422 = vpop.xlane.xlu0 %8421
      %v8423 = vsel %vm4518, %v8318, 0.0
      %8424 = vadd.xlane.f32.xlu0 %v8423
      %v8425 = vpop.xlane.xlu0 %8424
      %v8426 = vsel %vm4518, %v8320, 0.0
      %8427 = vadd.xlane.f32.xlu0 %v8426
      %v8428 = vpop.xlane.xlu0 %8427
      %v8429 = vsel %vm4518, %v8322, 0.0
      %8430 = vadd.xlane.f32.xlu0 %v8429
      %v8431 = vpop.xlane.xlu0 %8430
      %v8432 = vsel %vm4518, %v8324, 0.0
      %8433 = vadd.xlane.f32.xlu0 %v8432
      %v8434 = vpop.xlane.xlu0 %8433
      %v8435 = vsel %vm4518, %v8326, 0.0
      %8436 = vadd.xlane.f32.xlu0 %v8435
      %v8437 = vpop.xlane.xlu0 %8436
      %v8438 = vsel %vm4518, %v8328, 0.0
      %8439 = vadd.xlane.f32.xlu0 %v8438
      %v8440 = vpop.xlane.xlu0 %8439
      %v8441 = vsel %vm4518, %v8330, 0.0
      %8442 = vadd.xlane.f32.xlu0 %v8441
      %v8443 = vpop.xlane.xlu0 %8442
      %v8444 = vsel %vm4518, %v8332, 0.0
      %8445 = vadd.xlane.f32.xlu0 %v8444
      %v8446 = vpop.xlane.xlu0 %8445
      %v8447 = vsel %vm4518, %v8334, 0.0
      %8448 = vadd.xlane.f32.xlu0 %v8447
      %v8449 = vpop.xlane.xlu0 %8448
      %v8450 = vsel %vm4518, %v8336, 0.0
      %8451 = vadd.xlane.f32.xlu0 %v8450
      %v8452 = vpop.xlane.xlu0 %8451
      %v8453 = vsel %vm4518, %v8338, 0.0
      %8454 = vadd.xlane.f32.xlu0 %v8453
      %v8455 = vpop.xlane.xlu0 %8454
      %v8456 = vsel %vm4518, %v8340, 0.0
      %8457 = vadd.xlane.f32.xlu0 %v8456
      %v8458 = vpop.xlane.xlu0 %8457
      %v8459 = vsel %vm4518, %v8342, 0.0
      %8460 = vadd.xlane.f32.xlu0 %v8459
      %v8461 = vpop.xlane.xlu0 %8460
      %v8462 = vsel %vm4518, %v8344, 0.0
      %8463 = vadd.xlane.f32.xlu0 %v8462
      %v8464 = vpop.xlane.xlu0 %8463
      %v8465 = vsel %vm4518, %v8346, 0.0
      %8466 = vadd.xlane.f32.xlu0 %v8465
      %v8467 = vpop.xlane.xlu0 %8466
      %v8468 = vsel %vm4518, %v8348, 0.0
      %8469 = vadd.xlane.f32.xlu0 %v8468
      %v8470 = vpop.xlane.xlu0 %8469
      %v8471 = vsel %vm4518, %v8350, 0.0
      %8472 = vadd.xlane.f32.xlu0 %v8471
      %v8473 = vpop.xlane.xlu0 %8472
      %v8474 = vsel %vm4518, %v8352, 0.0
      %8475 = vadd.xlane.f32.xlu0 %v8474
      %v8476 = vpop.xlane.xlu0 %8475
      %v8477 = vsel %vm4518, %v8354, 0.0
      %8478 = vadd.xlane.f32.xlu0 %v8477
      %v8479 = vpop.xlane.xlu0 %8478
      %v8480 = vsel %vm4518, %v8356, 0.0
      %8481 = vadd.xlane.f32.xlu0 %v8480
      %v8482 = vpop.xlane.xlu0 %8481
      %v8483 = vsel %vm4518, %v8358, 0.0
      %8484 = vadd.xlane.f32.xlu0 %v8483
      %v8485 = vpop.xlane.xlu0 %8484
      %v8486 = vsel %vm4518, %v8360, 0.0
      %8487 = vadd.xlane.f32.xlu0 %v8486
      %v8488 = vpop.xlane.xlu0 %8487
      %v8489 = vmax.f32 %v8395, 1e-24
      %v8490 = vmax.f32 %v8398, 1e-24
      %v8491 = vmax.f32 %v8401, 1e-24
      %v8492 = vmax.f32 %v8404, 1e-24
      %v8493 = vmax.f32 %v8407, 1e-24
      %v8494 = vmax.f32 %v8410, 1e-24
      %v8495 = vmax.f32 %v8413, 1e-24
      %v8496 = vmax.f32 %v8416, 1e-24
      %v8497 = vmax.f32 %v8419, 1e-24
      %v8498 = vmax.f32 %v8422, 1e-24
      %v8499 = vmax.f32 %v8425, 1e-24
      %v8500 = vmax.f32 %v8428, 1e-24
      %v8501 = vmax.f32 %v8431, 1e-24
      %v8502 = vmax.f32 %v8434, 1e-24
      %v8503 = vmax.f32 %v8437, 1e-24
      %v8504 = vmax.f32 %v8440, 1e-24
      %v8505 = vmax.f32 %v8443, 1e-24
      %v8506 = vmax.f32 %v8446, 1e-24
      %v8507 = vmax.f32 %v8449, 1e-24
      %v8508 = vmax.f32 %v8452, 1e-24
      %v8509 = vmax.f32 %v8455, 1e-24
      %v8510 = vmax.f32 %v8458, 1e-24
      %v8511 = vmax.f32 %v8461, 1e-24
      %v8512 = vmax.f32 %v8464, 1e-24
      %v8513 = vmax.f32 %v8467, 1e-24
      %v8514 = vmax.f32 %v8470, 1e-24
      %v8515 = vmax.f32 %v8473, 1e-24
      %v8516 = vmax.f32 %v8476, 1e-24
      %v8517 = vmax.f32 %v8479, 1e-24
      %v8518 = vmax.f32 %v8482, 1e-24
      %v8519 = vmax.f32 %v8485, 1e-24
      %v8520 = vmax.f32 %v8488, 1e-24
      %v8521 = vrsqrt.pop %v8489
      %v8522 = vrsqrt.pop %v8490
      %v8523 = vrsqrt.pop %v8491
      %v8524 = vrsqrt.pop %v8492
      %v8525 = vrsqrt.pop %v8493
      %v8526 = vrsqrt.pop %v8494
      %v8527 = vrsqrt.pop %v8495
      %v8528 = vrsqrt.pop %v8496
      %v8529 = vrsqrt.pop %v8497
      %v8530 = vrsqrt.pop %v8498
      %v8531 = vrsqrt.pop %v8499
      %v8532 = vrsqrt.pop %v8500
      %v8533 = vrsqrt.pop %v8501
      %v8534 = vrsqrt.pop %v8502
      %v8535 = vrsqrt.pop %v8503
      %v8536 = vrsqrt.pop %v8504
      %v8537 = vrsqrt.pop %v8505
      %v8538 = vrsqrt.pop %v8506
      %v8539 = vrsqrt.pop %v8507
      %v8540 = vrsqrt.pop %v8508
      %v8541 = vrsqrt.pop %v8509
      %v8542 = vrsqrt.pop %v8510
      %v8543 = vrsqrt.pop %v8511
      %v8544 = vrsqrt.pop %v8512
      %v8545 = vrsqrt.pop %v8513
      %v8546 = vrsqrt.pop %v8514
      %v8547 = vrsqrt.pop %v8515
      %v8548 = vrsqrt.pop %v8516
      %v8549 = vrsqrt.pop %v8517
      %v8550 = vrsqrt.pop %v8518
      %v8551 = vrsqrt.pop %v8519
      %v8552 = vrsqrt.pop %v8520
      %v8553 = vmul.f32 %v4453, %v8521
      %v8554 = vmul.f32 %v4454, %v8522
      %v8555 = vmul.f32 %v4455, %v8523
      %v8556 = vmul.f32 %v4456, %v8524
      %v8557 = vmul.f32 %v4457, %v8525
      %v8558 = vmul.f32 %v4458, %v8526
      %v8559 = vmul.f32 %v4459, %v8527
      %v8560 = vmul.f32 %v4460, %v8528
      %v8561 = vmul.f32 %v4461, %v8529
      %v8562 = vmul.f32 %v4462, %v8530
      %v8563 = vmul.f32 %v4463, %v8531
      %v8564 = vmul.f32 %v4464, %v8532
      %v8565 = vmul.f32 %v4465, %v8533
      %v8566 = vmul.f32 %v4466, %v8534
      %v8567 = vmul.f32 %v4467, %v8535
      %v8568 = vmul.f32 %v4468, %v8536
      %v8569 = vmul.f32 %v4469, %v8537
      %v8570 = vmul.f32 %v4470, %v8538
      %v8571 = vmul.f32 %v4471, %v8539
      %v8572 = vmul.f32 %v4472, %v8540
      %v8573 = vmul.f32 %v4473, %v8541
      %v8574 = vmul.f32 %v4474, %v8542
      %v8575 = vmul.f32 %v4475, %v8543
      %v8576 = vmul.f32 %v4476, %v8544
      %v8577 = vmul.f32 %v4477, %v8545
      %v8578 = vmul.f32 %v4478, %v8546
      %v8579 = vmul.f32 %v4479, %v8547
      %v8580 = vmul.f32 %v4480, %v8548
      %v8581 = vmul.f32 %v4481, %v8549
      %v8582 = vmul.f32 %v4482, %v8550
      %v8583 = vmul.f32 %v4483, %v8551
      %v8584 = vmul.f32 %v4484, %v8552
      %8585 = vrot.lane.b32.xlu0 %v4486, 116
      %v8586 = vpop.permute.xlu0 %8585
      %8587 = vrot.lane.b32.xlu0 %v4487, 116
      %v8588 = vpop.permute.xlu0 %8587
      %8589 = vrot.lane.b32.xlu0 %v4488, 116
      %v8590 = vpop.permute.xlu0 %8589
      %8591 = vrot.lane.b32.xlu0 %v4489, 116
      %v8592 = vpop.permute.xlu0 %8591
      %8593 = vrot.lane.b32.xlu0 %v4490, 116
      %v8594 = vpop.permute.xlu0 %8593
      %8595 = vrot.lane.b32.xlu0 %v4491, 116
      %v8596 = vpop.permute.xlu0 %8595
      %8597 = vrot.lane.b32.xlu0 %v4492, 116
      %v8598 = vpop.permute.xlu0 %8597
      %8599 = vrot.lane.b32.xlu0 %v4493, 116
      %v8600 = vpop.permute.xlu0 %8599
      %8601 = vrot.lane.b32.xlu0 %v4494, 116
      %v8602 = vpop.permute.xlu0 %8601
      %8603 = vrot.lane.b32.xlu0 %v4495, 116
      %v8604 = vpop.permute.xlu0 %8603
      %8605 = vrot.lane.b32.xlu0 %v4496, 116
      %v8606 = vpop.permute.xlu0 %8605
      %8607 = vrot.lane.b32.xlu0 %v4497, 116
      %v8608 = vpop.permute.xlu0 %8607
      %8609 = vrot.lane.b32.xlu0 %v4498, 116
      %v8610 = vpop.permute.xlu0 %8609
      %8611 = vrot.lane.b32.xlu0 %v4499, 116
      %v8612 = vpop.permute.xlu0 %8611
      %8613 = vrot.lane.b32.xlu0 %v4500, 116
      %v8614 = vpop.permute.xlu0 %8613
      %8615 = vrot.lane.b32.xlu0 %v4501, 116
      %v8616 = vpop.permute.xlu0 %8615
      %8617 = vrot.lane.b32.xlu0 %v4502, 116
      %v8618 = vpop.permute.xlu0 %8617
      %8619 = vrot.lane.b32.xlu0 %v4503, 116
      %v8620 = vpop.permute.xlu0 %8619
      %8621 = vrot.lane.b32.xlu0 %v4504, 116
      %v8622 = vpop.permute.xlu0 %8621
      %8623 = vrot.lane.b32.xlu0 %v4505, 116
      %v8624 = vpop.permute.xlu0 %8623
      %8625 = vrot.lane.b32.xlu0 %v4506, 116
      %v8626 = vpop.permute.xlu0 %8625
      %8627 = vrot.lane.b32.xlu0 %v4507, 116
      %v8628 = vpop.permute.xlu0 %8627
      %8629 = vrot.lane.b32.xlu0 %v4508, 116
      %v8630 = vpop.permute.xlu0 %8629
      %8631 = vrot.lane.b32.xlu0 %v4509, 116
      %v8632 = vpop.permute.xlu0 %8631
      %8633 = vrot.lane.b32.xlu0 %v4510, 116
      %v8634 = vpop.permute.xlu0 %8633
      %8635 = vrot.lane.b32.xlu0 %v4511, 116
      %v8636 = vpop.permute.xlu0 %8635
      %8637 = vrot.lane.b32.xlu0 %v4512, 116
      %v8638 = vpop.permute.xlu0 %8637
      %8639 = vrot.lane.b32.xlu0 %v4513, 116
      %v8640 = vpop.permute.xlu0 %8639
      %8641 = vrot.lane.b32.xlu0 %v4514, 116
      %v8642 = vpop.permute.xlu0 %8641
      %8643 = vrot.lane.b32.xlu0 %v4515, 116
      %v8644 = vpop.permute.xlu0 %8643
      %8645 = vrot.lane.b32.xlu0 %v4516, 116
      %v8646 = vpop.permute.xlu0 %8645
      %8647 = vrot.lane.b32.xlu0 %v4517, 116
      %v8648 = vpop.permute.xlu0 %8647
      %v8681 = vsel %vm4518, %v8586, 0.0
      %8682 = vadd.xlane.f32.xlu0 %v8681
      %v8683 = vpop.xlane.xlu0 %8682
      %v8684 = vsel %vm4518, %v8588, 0.0
      %8685 = vadd.xlane.f32.xlu0 %v8684
      %v8686 = vpop.xlane.xlu0 %8685
      %v8687 = vsel %vm4518, %v8590, 0.0
      %8688 = vadd.xlane.f32.xlu0 %v8687
      %v8689 = vpop.xlane.xlu0 %8688
      %v8690 = vsel %vm4518, %v8592, 0.0
      %8691 = vadd.xlane.f32.xlu0 %v8690
      %v8692 = vpop.xlane.xlu0 %8691
      %v8693 = vsel %vm4518, %v8594, 0.0
      %8694 = vadd.xlane.f32.xlu0 %v8693
      %v8695 = vpop.xlane.xlu0 %8694
      %v8696 = vsel %vm4518, %v8596, 0.0
      %8697 = vadd.xlane.f32.xlu0 %v8696
      %v8698 = vpop.xlane.xlu0 %8697
      %v8699 = vsel %vm4518, %v8598, 0.0
      %8700 = vadd.xlane.f32.xlu0 %v8699
      %v8701 = vpop.xlane.xlu0 %8700
      %v8702 = vsel %vm4518, %v8600, 0.0
      %8703 = vadd.xlane.f32.xlu0 %v8702
      %v8704 = vpop.xlane.xlu0 %8703
      %v8705 = vsel %vm4518, %v8602, 0.0
      %8706 = vadd.xlane.f32.xlu0 %v8705
      %v8707 = vpop.xlane.xlu0 %8706
      %v8708 = vsel %vm4518, %v8604, 0.0
      %8709 = vadd.xlane.f32.xlu0 %v8708
      %v8710 = vpop.xlane.xlu0 %8709
      %v8711 = vsel %vm4518, %v8606, 0.0
      %8712 = vadd.xlane.f32.xlu0 %v8711
      %v8713 = vpop.xlane.xlu0 %8712
      %v8714 = vsel %vm4518, %v8608, 0.0
      %8715 = vadd.xlane.f32.xlu0 %v8714
      %v8716 = vpop.xlane.xlu0 %8715
      %v8717 = vsel %vm4518, %v8610, 0.0
      %8718 = vadd.xlane.f32.xlu0 %v8717
      %v8719 = vpop.xlane.xlu0 %8718
      %v8720 = vsel %vm4518, %v8612, 0.0
      %8721 = vadd.xlane.f32.xlu0 %v8720
      %v8722 = vpop.xlane.xlu0 %8721
      %v8723 = vsel %vm4518, %v8614, 0.0
      %8724 = vadd.xlane.f32.xlu0 %v8723
      %v8725 = vpop.xlane.xlu0 %8724
      %v8726 = vsel %vm4518, %v8616, 0.0
      %8727 = vadd.xlane.f32.xlu0 %v8726
      %v8728 = vpop.xlane.xlu0 %8727
      %v8729 = vsel %vm4518, %v8618, 0.0
      %8730 = vadd.xlane.f32.xlu0 %v8729
      %v8731 = vpop.xlane.xlu0 %8730
      %v8732 = vsel %vm4518, %v8620, 0.0
      %8733 = vadd.xlane.f32.xlu0 %v8732
      %v8734 = vpop.xlane.xlu0 %8733
      %v8735 = vsel %vm4518, %v8622, 0.0
      %8736 = vadd.xlane.f32.xlu0 %v8735
      %v8737 = vpop.xlane.xlu0 %8736
      %v8738 = vsel %vm4518, %v8624, 0.0
      %8739 = vadd.xlane.f32.xlu0 %v8738
      %v8740 = vpop.xlane.xlu0 %8739
      %v8741 = vsel %vm4518, %v8626, 0.0
      %8742 = vadd.xlane.f32.xlu0 %v8741
      %v8743 = vpop.xlane.xlu0 %8742
      %v8744 = vsel %vm4518, %v8628, 0.0
      %8745 = vadd.xlane.f32.xlu0 %v8744
      %v8746 = vpop.xlane.xlu0 %8745
      %v8747 = vsel %vm4518, %v8630, 0.0
      %8748 = vadd.xlane.f32.xlu0 %v8747
      %v8749 = vpop.xlane.xlu0 %8748
      %v8750 = vsel %vm4518, %v8632, 0.0
      %8751 = vadd.xlane.f32.xlu0 %v8750
      %v8752 = vpop.xlane.xlu0 %8751
      %v8753 = vsel %vm4518, %v8634, 0.0
      %8754 = vadd.xlane.f32.xlu0 %v8753
      %v8755 = vpop.xlane.xlu0 %8754
      %v8756 = vsel %vm4518, %v8636, 0.0
      %8757 = vadd.xlane.f32.xlu0 %v8756
      %v8758 = vpop.xlane.xlu0 %8757
      %v8759 = vsel %vm4518, %v8638, 0.0
      %8760 = vadd.xlane.f32.xlu0 %v8759
      %v8761 = vpop.xlane.xlu0 %8760
      %v8762 = vsel %vm4518, %v8640, 0.0
      %8763 = vadd.xlane.f32.xlu0 %v8762
      %v8764 = vpop.xlane.xlu0 %8763
      %v8765 = vsel %vm4518, %v8642, 0.0
      %8766 = vadd.xlane.f32.xlu0 %v8765
      %v8767 = vpop.xlane.xlu0 %8766
      %v8768 = vsel %vm4518, %v8644, 0.0
      %8769 = vadd.xlane.f32.xlu0 %v8768
      %v8770 = vpop.xlane.xlu0 %8769
      %v8771 = vsel %vm4518, %v8646, 0.0
      %8772 = vadd.xlane.f32.xlu0 %v8771
      %v8773 = vpop.xlane.xlu0 %8772
      %v8774 = vsel %vm4518, %v8648, 0.0
      %8775 = vadd.xlane.f32.xlu0 %v8774
      %v8776 = vpop.xlane.xlu0 %8775
      %v8777 = vmax.f32 %v8683, 1e-24
      %v8778 = vmax.f32 %v8686, 1e-24
      %v8779 = vmax.f32 %v8689, 1e-24
      %v8780 = vmax.f32 %v8692, 1e-24
      %v8781 = vmax.f32 %v8695, 1e-24
      %v8782 = vmax.f32 %v8698, 1e-24
      %v8783 = vmax.f32 %v8701, 1e-24
      %v8784 = vmax.f32 %v8704, 1e-24
      %v8785 = vmax.f32 %v8707, 1e-24
      %v8786 = vmax.f32 %v8710, 1e-24
      %v8787 = vmax.f32 %v8713, 1e-24
      %v8788 = vmax.f32 %v8716, 1e-24
      %v8789 = vmax.f32 %v8719, 1e-24
      %v8790 = vmax.f32 %v8722, 1e-24
      %v8791 = vmax.f32 %v8725, 1e-24
      %v8792 = vmax.f32 %v8728, 1e-24
      %v8793 = vmax.f32 %v8731, 1e-24
      %v8794 = vmax.f32 %v8734, 1e-24
      %v8795 = vmax.f32 %v8737, 1e-24
      %v8796 = vmax.f32 %v8740, 1e-24
      %v8797 = vmax.f32 %v8743, 1e-24
      %v8798 = vmax.f32 %v8746, 1e-24
      %v8799 = vmax.f32 %v8749, 1e-24
      %v8800 = vmax.f32 %v8752, 1e-24
      %v8801 = vmax.f32 %v8755, 1e-24
      %v8802 = vmax.f32 %v8758, 1e-24
      %v8803 = vmax.f32 %v8761, 1e-24
      %v8804 = vmax.f32 %v8764, 1e-24
      %v8805 = vmax.f32 %v8767, 1e-24
      %v8806 = vmax.f32 %v8770, 1e-24
      %v8807 = vmax.f32 %v8773, 1e-24
      %v8808 = vmax.f32 %v8776, 1e-24
      %v8809 = vrsqrt.pop %v8777
      %v8810 = vrsqrt.pop %v8778
      %v8811 = vrsqrt.pop %v8779
      %v8812 = vrsqrt.pop %v8780
      %v8813 = vrsqrt.pop %v8781
      %v8814 = vrsqrt.pop %v8782
      %v8815 = vrsqrt.pop %v8783
      %v8816 = vrsqrt.pop %v8784
      %v8817 = vrsqrt.pop %v8785
      %v8818 = vrsqrt.pop %v8786
      %v8819 = vrsqrt.pop %v8787
      %v8820 = vrsqrt.pop %v8788
      %v8821 = vrsqrt.pop %v8789
      %v8822 = vrsqrt.pop %v8790
      %v8823 = vrsqrt.pop %v8791
      %v8824 = vrsqrt.pop %v8792
      %v8825 = vrsqrt.pop %v8793
      %v8826 = vrsqrt.pop %v8794
      %v8827 = vrsqrt.pop %v8795
      %v8828 = vrsqrt.pop %v8796
      %v8829 = vrsqrt.pop %v8797
      %v8830 = vrsqrt.pop %v8798
      %v8831 = vrsqrt.pop %v8799
      %v8832 = vrsqrt.pop %v8800
      %v8833 = vrsqrt.pop %v8801
      %v8834 = vrsqrt.pop %v8802
      %v8835 = vrsqrt.pop %v8803
      %v8836 = vrsqrt.pop %v8804
      %v8837 = vrsqrt.pop %v8805
      %v8838 = vrsqrt.pop %v8806
      %v8839 = vrsqrt.pop %v8807
      %v8840 = vrsqrt.pop %v8808
      %v8841 = vmul.f32 %v4453, %v8809
      %v8842 = vmul.f32 %v4454, %v8810
      %v8843 = vmul.f32 %v4455, %v8811
      %v8844 = vmul.f32 %v4456, %v8812
      %v8845 = vmul.f32 %v4457, %v8813
      %v8846 = vmul.f32 %v4458, %v8814
      %v8847 = vmul.f32 %v4459, %v8815
      %v8848 = vmul.f32 %v4460, %v8816
      %v8849 = vmul.f32 %v4461, %v8817
      %v8850 = vmul.f32 %v4462, %v8818
      %v8851 = vmul.f32 %v4463, %v8819
      %v8852 = vmul.f32 %v4464, %v8820
      %v8853 = vmul.f32 %v4465, %v8821
      %v8854 = vmul.f32 %v4466, %v8822
      %v8855 = vmul.f32 %v4467, %v8823
      %v8856 = vmul.f32 %v4468, %v8824
      %v8857 = vmul.f32 %v4469, %v8825
      %v8858 = vmul.f32 %v4470, %v8826
      %v8859 = vmul.f32 %v4471, %v8827
      %v8860 = vmul.f32 %v4472, %v8828
      %v8861 = vmul.f32 %v4473, %v8829
      %v8862 = vmul.f32 %v4474, %v8830
      %v8863 = vmul.f32 %v4475, %v8831
      %v8864 = vmul.f32 %v4476, %v8832
      %v8865 = vmul.f32 %v4477, %v8833
      %v8866 = vmul.f32 %v4478, %v8834
      %v8867 = vmul.f32 %v4479, %v8835
      %v8868 = vmul.f32 %v4480, %v8836
      %v8869 = vmul.f32 %v4481, %v8837
      %v8870 = vmul.f32 %v4482, %v8838
      %v8871 = vmul.f32 %v4483, %v8839
      %v8872 = vmul.f32 %v4484, %v8840
      %8875 = vrot.lane.b32.xlu0 %v8553, 124
      %v8876 = vpop.permute.xlu0 %8875
      %8877 = vrot.lane.b32.xlu0 %v8554, 124
      %v8878 = vpop.permute.xlu0 %8877
      %8881 = vrot.lane.b32.xlu0 %v8841, 116
      %v8882 = vpop.permute.xlu0 %8881
      %8883 = vrot.lane.b32.xlu0 %v8842, 116
      %v8884 = vpop.permute.xlu0 %8883
      %v8885 = vsel %vm4518, %v8876, 0
      %v8887 = vsel %vm4518, %v8878, 0
      %v8889 = vsel %vm4518, %v8882, 0
      %v8891 = vsel %vm4518, %v8884, 0
      %8893 = vmatprep.subr.mxu0 0.0
      %8894 = vmatpush1.xpose.msra.mxu0 %v8889
      %8895 = vmatprep.subr.mxu0 0.0
      %8896 = vmatpush1.xpose.msra.mxu0 %v8891
      %8897 = vmatprep.subr.mxu0 0.0
      %8898 = vmatpush1.xpose.msra.mxu0 0.0
      %8899 = vmatprep.subr.mxu0 0.0
      %8900 = vmatpush1.xpose.msra.mxu0 0.0
      %8901 = vmatprep.subr.mxu0 0.0
      %8902 = vmatpush1.xpose.msra.mxu0 0.0
      %8903 = vmatprep.subr.mxu0 0.0
      %8904 = vmatpush1.xpose.msra.mxu0 0.0
      %8905 = vmatprep.subr.mxu0 0.0
      %8906 = vmatpush1.xpose.msra.mxu0 0.0
      %8907 = vmatprep.subr.mxu0 0.0
      %8908 = vmatpush1.xpose.msra.mxu0 0.0
      %8909 = vmatprep.subr.mxu0 0.0
      %8910 = vmatpush1.xpose.msra.mxu0 0.0
      %8911 = vmatprep.subr.mxu0 0.0
      %8912 = vmatpush1.xpose.msra.mxu0 0.0
      %8913 = vmatprep.subr.mxu0 0.0
      %8914 = vmatpush1.xpose.msra.mxu0 0.0
      %8915 = vmatprep.subr.mxu0 0.0
      %8916 = vmatpush1.xpose.msra.mxu0 0.0
      %8917 = vmatprep.subr.mxu0 0.0
      %8918 = vmatpush1.xpose.msra.mxu0 0.0
      %8919 = vmatprep.subr.mxu0 0.0
      %8920 = vmatpush1.xpose.msra.mxu0 0.0
      %8921 = vmatprep.subr.mxu0 0.0
      %8922 = vmatpush1.xpose.msra.mxu0 0.0
      %8923 = vmatprep.subr.mxu0 0.0
      %8924 = vmatpush1.xpose.msra.mxu0 0.0
      %8925 = vmatprep.subr.mxu0 0.0
      %8926 = vmatpush1.xpose.msra.mxu0 0.0
      %8927 = vmatprep.subr.mxu0 0.0
      %8928 = vmatpush1.xpose.msra.mxu0 0.0
      %8929 = vmatprep.subr.mxu0 0.0
      %8930 = vmatpush1.xpose.msra.mxu0 0.0
      %8931 = vmatprep.subr.mxu0 0.0
      %8932 = vmatpush1.xpose.msra.mxu0 0.0
      %8933 = vmatprep.subr.mxu0 0.0
      %8934 = vmatpush1.xpose.msra.mxu0 0.0
      %8935 = vmatprep.subr.mxu0 0.0
      %8936 = vmatpush1.xpose.msra.mxu0 0.0
      %8937 = vmatprep.subr.mxu0 0.0
      %8938 = vmatpush1.xpose.msra.mxu0 0.0
      %8939 = vmatprep.subr.mxu0 0.0
      %8940 = vmatpush1.xpose.msra.mxu0 0.0
      %8941 = vmatprep.subr.mxu0 0.0
      %8942 = vmatpush1.xpose.msra.mxu0 0.0
      %8943 = vmatprep.subr.mxu0 0.0
      %8944 = vmatpush1.xpose.msra.mxu0 0.0
      %8945 = vmatprep.subr.mxu0 0.0
      %8946 = vmatpush1.xpose.msra.mxu0 0.0
      %8947 = vmatprep.subr.mxu0 0.0
      %8948 = vmatpush1.xpose.msra.mxu0 0.0
      %8949 = vmatprep.subr.mxu0 0.0
      %8950 = vmatpush1.xpose.msra.mxu0 0.0
      %8951 = vmatprep.subr.mxu0 0.0
      %8952 = vmatpush1.xpose.msra.mxu0 0.0
      %8953 = vmatprep.subr.mxu0 0.0
      %8954 = vmatpush1.xpose.msra.mxu0 0.0
      %8955 = vmatprep.subr.mxu0 0.0
      %8956 = vmatpush1.xpose.msra.mxu0 0.0
      %8957 = vmatprep.mubr.f32.mxu0 0.0
      %8958 = vmatmul.mubr.f32.gmra.mrb[0].mxu0 %v8885
      %v8959 = vpop.f32.mrb[0].mxu0
      %v8960 = vadd.f32 0.0, %v8959
      %v8961 = vpop.f32.mrb[0].mxu0
      %8962 = vmatprep.mubr.f32.mxu0 0.0
      %8963 = vmatmul.mubr.f32.gmra.mrb[0].mxu0 %v8887
      %v8964 = vpop.f32.mrb[0].mxu0
      %v8965 = vadd.f32 0.0, %v8964
      %v8966 = vpop.f32.mrb[0].mxu0
      %8967 = vdwg.mxu0
      %8970 = vrot.lane.b32.xlu0 %v8555, 124
      %v8971 = vpop.permute.xlu0 %8970
      %8972 = vrot.lane.b32.xlu0 %v8556, 124
      %v8973 = vpop.permute.xlu0 %8972
      %8976 = vrot.lane.b32.xlu0 %v8843, 116
      %v8977 = vpop.permute.xlu0 %8976
      %8978 = vrot.lane.b32.xlu0 %v8844, 116
      %v8979 = vpop.permute.xlu0 %8978
      %v8980 = vsel %vm4518, %v8971, 0
      %v8982 = vsel %vm4518, %v8973, 0
      %v8984 = vsel %vm4518, %v8977, 0
      %v8986 = vsel %vm4518, %v8979, 0
      %8988 = vmatprep.subr.mxu0 0.0
      %8989 = vmatpush1.xpose.msra.mxu0 %v8984
      %8990 = vmatprep.subr.mxu0 0.0
      %8991 = vmatpush1.xpose.msra.mxu0 %v8986
      %8992 = vmatprep.subr.mxu0 0.0
      %8993 = vmatpush1.xpose.msra.mxu0 0.0
      %8994 = vmatprep.subr.mxu0 0.0
      %8995 = vmatpush1.xpose.msra.mxu0 0.0
      %8996 = vmatprep.subr.mxu0 0.0
      %8997 = vmatpush1.xpose.msra.mxu0 0.0
      %8998 = vmatprep.subr.mxu0 0.0
      %8999 = vmatpush1.xpose.msra.mxu0 0.0
      %9000 = vmatprep.subr.mxu0 0.0
      %9001 = vmatpush1.xpose.msra.mxu0 0.0
      %9002 = vmatprep.subr.mxu0 0.0
      %9003 = vmatpush1.xpose.msra.mxu0 0.0
      %9004 = vmatprep.subr.mxu0 0.0
      %9005 = vmatpush1.xpose.msra.mxu0 0.0
      %9006 = vmatprep.subr.mxu0 0.0
      %9007 = vmatpush1.xpose.msra.mxu0 0.0
      %9008 = vmatprep.subr.mxu0 0.0
      %9009 = vmatpush1.xpose.msra.mxu0 0.0
      %9010 = vmatprep.subr.mxu0 0.0
      %9011 = vmatpush1.xpose.msra.mxu0 0.0
      %9012 = vmatprep.subr.mxu0 0.0
      %9013 = vmatpush1.xpose.msra.mxu0 0.0
      %9014 = vmatprep.subr.mxu0 0.0
      %9015 = vmatpush1.xpose.msra.mxu0 0.0
      %9016 = vmatprep.subr.mxu0 0.0
      %9017 = vmatpush1.xpose.msra.mxu0 0.0
      %9018 = vmatprep.subr.mxu0 0.0
      %9019 = vmatpush1.xpose.msra.mxu0 0.0
      %9020 = vmatprep.subr.mxu0 0.0
      %9021 = vmatpush1.xpose.msra.mxu0 0.0
      %9022 = vmatprep.subr.mxu0 0.0
      %9023 = vmatpush1.xpose.msra.mxu0 0.0
      %9024 = vmatprep.subr.mxu0 0.0
      %9025 = vmatpush1.xpose.msra.mxu0 0.0
      %9026 = vmatprep.subr.mxu0 0.0
      %9027 = vmatpush1.xpose.msra.mxu0 0.0
      %9028 = vmatprep.subr.mxu0 0.0
      %9029 = vmatpush1.xpose.msra.mxu0 0.0
      %9030 = vmatprep.subr.mxu0 0.0
      %9031 = vmatpush1.xpose.msra.mxu0 0.0
      %9032 = vmatprep.subr.mxu0 0.0
      %9033 = vmatpush1.xpose.msra.mxu0 0.0
      %9034 = vmatprep.subr.mxu0 0.0
      %9035 = vmatpush1.xpose.msra.mxu0 0.0
      %9036 = vmatprep.subr.mxu0 0.0
      %9037 = vmatpush1.xpose.msra.mxu0 0.0
      %9038 = vmatprep.subr.mxu0 0.0
      %9039 = vmatpush1.xpose.msra.mxu0 0.0
      %9040 = vmatprep.subr.mxu0 0.0
      %9041 = vmatpush1.xpose.msra.mxu0 0.0
      %9042 = vmatprep.subr.mxu0 0.0
      %9043 = vmatpush1.xpose.msra.mxu0 0.0
      %9044 = vmatprep.subr.mxu0 0.0
      %9045 = vmatpush1.xpose.msra.mxu0 0.0
      %9046 = vmatprep.subr.mxu0 0.0
      %9047 = vmatpush1.xpose.msra.mxu0 0.0
      %9048 = vmatprep.subr.mxu0 0.0
      %9049 = vmatpush1.xpose.msra.mxu0 0.0
      %9050 = vmatprep.subr.mxu0 0.0
      %9051 = vmatpush1.xpose.msra.mxu0 0.0
      %9052 = vmatprep.mubr.f32.mxu0 0.0
      %9053 = vmatmul.mubr.f32.gmra.mrb[0].mxu0 %v8980
      %v9054 = vpop.f32.mrb[0].mxu0
      %v9055 = vadd.f32 0.0, %v9054
      %v9056 = vpop.f32.mrb[0].mxu0
      %9057 = vmatprep.mubr.f32.mxu0 0.0
      %9058 = vmatmul.mubr.f32.gmra.mrb[0].mxu0 %v8982
      %v9059 = vpop.f32.mrb[0].mxu0
      %v9060 = vadd.f32 0.0, %v9059
      %v9061 = vpop.f32.mrb[0].mxu0
      %9062 = vdwg.mxu0
      %9065 = vrot.lane.b32.xlu0 %v8557, 124
      %v9066 = vpop.permute.xlu0 %9065
      %9067 = vrot.lane.b32.xlu0 %v8558, 124
      %v9068 = vpop.permute.xlu0 %9067
      %9071 = vrot.lane.b32.xlu0 %v8845, 116
      %v9072 = vpop.permute.xlu0 %9071
      %9073 = vrot.lane.b32.xlu0 %v8846, 116
      %v9074 = vpop.permute.xlu0 %9073
      %v9075 = vsel %vm4518, %v9066, 0
      %v9077 = vsel %vm4518, %v9068, 0
      %v9079 = vsel %vm4518, %v9072, 0
      %v9081 = vsel %vm4518, %v9074, 0
      %9083 = vmatprep.subr.mxu0 0.0
      %9084 = vmatpush1.xpose.msra.mxu0 %v9079
      %9085 = vmatprep.subr.mxu0 0.0
      %9086 = vmatpush1.xpose.msra.mxu0 %v9081
      %9087 = vmatprep.subr.mxu0 0.0
      %9088 = vmatpush1.xpose.msra.mxu0 0.0
      %9089 = vmatprep.subr.mxu0 0.0
      %9090 = vmatpush1.xpose.msra.mxu0 0.0
      %9091 = vmatprep.subr.mxu0 0.0
      %9092 = vmatpush1.xpose.msra.mxu0 0.0
      %9093 = vmatprep.subr.mxu0 0.0
      %9094 = vmatpush1.xpose.msra.mxu0 0.0
      %9095 = vmatprep.subr.mxu0 0.0
      %9096 = vmatpush1.xpose.msra.mxu0 0.0
      %9097 = vmatprep.subr.mxu0 0.0
      %9098 = vmatpush1.xpose.msra.mxu0 0.0
      %9099 = vmatprep.subr.mxu0 0.0
      %9100 = vmatpush1.xpose.msra.mxu0 0.0
      %9101 = vmatprep.subr.mxu0 0.0
      %9102 = vmatpush1.xpose.msra.mxu0 0.0
      %9103 = vmatprep.subr.mxu0 0.0
      %9104 = vmatpush1.xpose.msra.mxu0 0.0
      %9105 = vmatprep.subr.mxu0 0.0
      %9106 = vmatpush1.xpose.msra.mxu0 0.0
      %9107 = vmatprep.subr.mxu0 0.0
      %9108 = vmatpush1.xpose.msra.mxu0 0.0
      %9109 = vmatprep.subr.mxu0 0.0
      %9110 = vmatpush1.xpose.msra.mxu0 0.0
      %9111 = vmatprep.subr.mxu0 0.0
      %9112 = vmatpush1.xpose.msra.mxu0 0.0
      %9113 = vmatprep.subr.mxu0 0.0
      %9114 = vmatpush1.xpose.msra.mxu0 0.0
      %9115 = vmatprep.subr.mxu0 0.0
      %9116 = vmatpush1.xpose.msra.mxu0 0.0
      %9117 = vmatprep.subr.mxu0 0.0
      %9118 = vmatpush1.xpose.msra.mxu0 0.0
      %9119 = vmatprep.subr.mxu0 0.0
      %9120 = vmatpush1.xpose.msra.mxu0 0.0
      %9121 = vmatprep.subr.mxu0 0.0
      %9122 = vmatpush1.xpose.msra.mxu0 0.0
      %9123 = vmatprep.subr.mxu0 0.0
      %9124 = vmatpush1.xpose.msra.mxu0 0.0
      %9125 = vmatprep.subr.mxu0 0.0
      %9126 = vmatpush1.xpose.msra.mxu0 0.0
      %9127 = vmatprep.subr.mxu0 0.0
      %9128 = vmatpush1.xpose.msra.mxu0 0.0
      %9129 = vmatprep.subr.mxu0 0.0
      %9130 = vmatpush1.xpose.msra.mxu0 0.0
      %9131 = vmatprep.subr.mxu0 0.0
      %9132 = vmatpush1.xpose.msra.mxu0 0.0
      %9133 = vmatprep.subr.mxu0 0.0
      %9134 = vmatpush1.xpose.msra.mxu0 0.0
      %9135 = vmatprep.subr.mxu0 0.0
      %9136 = vmatpush1.xpose.msra.mxu0 0.0
      %9137 = vmatprep.subr.mxu0 0.0
      %9138 = vmatpush1.xpose.msra.mxu0 0.0
      %9139 = vmatprep.subr.mxu0 0.0
      %9140 = vmatpush1.xpose.msra.mxu0 0.0
      %9141 = vmatprep.subr.mxu0 0.0
      %9142 = vmatpush1.xpose.msra.mxu0 0.0
      %9143 = vmatprep.subr.mxu0 0.0
      %9144 = vmatpush1.xpose.msra.mxu0 0.0
      %9145 = vmatprep.subr.mxu0 0.0
      %9146 = vmatpush1.xpose.msra.mxu0 0.0
      %9147 = vmatprep.mubr.f32.mxu0 0.0
      %9148 = vmatmul.mubr.f32.gmra.mrb[0].mxu0 %v9075
      %v9149 = vpop.f32.mrb[0].mxu0
      %v9150 = vadd.f32 0.0, %v9149
      %v9151 = vpop.f32.mrb[0].mxu0
      %9152 = vmatprep.mubr.f32.mxu0 0.0
      %9153 = vmatmul.mubr.f32.gmra.mrb[0].mxu0 %v9077
      %v9154 = vpop.f32.mrb[0].mxu0
      %v9155 = vadd.f32 0.0, %v9154
      %v9156 = vpop.f32.mrb[0].mxu0
      %9157 = vdwg.mxu0
      %9160 = vrot.lane.b32.xlu0 %v8559, 124
      %v9161 = vpop.permute.xlu0 %9160
      %9162 = vrot.lane.b32.xlu0 %v8560, 124
      %v9163 = vpop.permute.xlu0 %9162
      %9166 = vrot.lane.b32.xlu0 %v8847, 116
      %v9167 = vpop.permute.xlu0 %9166
      %9168 = vrot.lane.b32.xlu0 %v8848, 116
      %v9169 = vpop.permute.xlu0 %9168
      %v9170 = vsel %vm4518, %v9161, 0
      %v9172 = vsel %vm4518, %v9163, 0
      %v9174 = vsel %vm4518, %v9167, 0
      %v9176 = vsel %vm4518, %v9169, 0
      %9178 = vmatprep.subr.mxu0 0.0
      %9179 = vmatpush1.xpose.msra.mxu0 %v9174
      %9180 = vmatprep.subr.mxu0 0.0
      %9181 = vmatpush1.xpose.msra.mxu0 %v9176
      %9182 = vmatprep.subr.mxu0 0.0
      %9183 = vmatpush1.xpose.msra.mxu0 0.0
      %9184 = vmatprep.subr.mxu0 0.0
      %9185 = vmatpush1.xpose.msra.mxu0 0.0
      %9186 = vmatprep.subr.mxu0 0.0
      %9187 = vmatpush1.xpose.msra.mxu0 0.0
      %9188 = vmatprep.subr.mxu0 0.0
      %9189 = vmatpush1.xpose.msra.mxu0 0.0
      %9190 = vmatprep.subr.mxu0 0.0
      %9191 = vmatpush1.xpose.msra.mxu0 0.0
      %9192 = vmatprep.subr.mxu0 0.0
      %9193 = vmatpush1.xpose.msra.mxu0 0.0
      %9194 = vmatprep.subr.mxu0 0.0
      %9195 = vmatpush1.xpose.msra.mxu0 0.0
      %9196 = vmatprep.subr.mxu0 0.0
      %9197 = vmatpush1.xpose.msra.mxu0 0.0
      %9198 = vmatprep.subr.mxu0 0.0
      %9199 = vmatpush1.xpose.msra.mxu0 0.0
      %9200 = vmatprep.subr.mxu0 0.0
      %9201 = vmatpush1.xpose.msra.mxu0 0.0
      %9202 = vmatprep.subr.mxu0 0.0
      %9203 = vmatpush1.xpose.msra.mxu0 0.0
      %9204 = vmatprep.subr.mxu0 0.0
      %9205 = vmatpush1.xpose.msra.mxu0 0.0
      %9206 = vmatprep.subr.mxu0 0.0
      %9207 = vmatpush1.xpose.msra.mxu0 0.0
      %9208 = vmatprep.subr.mxu0 0.0
      %9209 = vmatpush1.xpose.msra.mxu0 0.0
      %9210 = vmatprep.subr.mxu0 0.0
      %9211 = vmatpush1.xpose.msra.mxu0 0.0
      %9212 = vmatprep.subr.mxu0 0.0
      %9213 = vmatpush1.xpose.msra.mxu0 0.0
      %9214 = vmatprep.subr.mxu0 0.0
      %9215 = vmatpush1.xpose.msra.mxu0 0.0
      %9216 = vmatprep.subr.mxu0 0.0
      %9217 = vmatpush1.xpose.msra.mxu0 0.0
      %9218 = vmatprep.subr.mxu0 0.0
      %9219 = vmatpush1.xpose.msra.mxu0 0.0
      %9220 = vmatprep.subr.mxu0 0.0
      %9221 = vmatpush1.xpose.msra.mxu0 0.0
      %9222 = vmatprep.subr.mxu0 0.0
      %9223 = vmatpush1.xpose.msra.mxu0 0.0
      %9224 = vmatprep.subr.mxu0 0.0
      %9225 = vmatpush1.xpose.msra.mxu0 0.0
      %9226 = vmatprep.subr.mxu0 0.0
      %9227 = vmatpush1.xpose.msra.mxu0 0.0
      %9228 = vmatprep.subr.mxu0 0.0
      %9229 = vmatpush1.xpose.msra.mxu0 0.0
      %9230 = vmatprep.subr.mxu0 0.0
      %9231 = vmatpush1.xpose.msra.mxu0 0.0
      %9232 = vmatprep.subr.mxu0 0.0
      %9233 = vmatpush1.xpose.msra.mxu0 0.0
      %9234 = vmatprep.subr.mxu0 0.0
      %9235 = vmatpush1.xpose.msra.mxu0 0.0
      %9236 = vmatprep.subr.mxu0 0.0
      %9237 = vmatpush1.xpose.msra.mxu0 0.0
      %9238 = vmatprep.subr.mxu0 0.0
      %9239 = vmatpush1.xpose.msra.mxu0 0.0
      %9240 = vmatprep.subr.mxu0 0.0
      %9241 = vmatpush1.xpose.msra.mxu0 0.0
      %9242 = vmatprep.mubr.f32.mxu0 0.0
      %9243 = vmatmul.mubr.f32.gmra.mrb[0].mxu0 %v9170
      %v9244 = vpop.f32.mrb[0].mxu0
      %v9245 = vadd.f32 0.0, %v9244
      %v9246 = vpop.f32.mrb[0].mxu0
      %9247 = vmatprep.mubr.f32.mxu0 0.0
      %9248 = vmatmul.mubr.f32.gmra.mrb[0].mxu0 %v9172
      %v9249 = vpop.f32.mrb[0].mxu0
      %v9250 = vadd.f32 0.0, %v9249
      %v9251 = vpop.f32.mrb[0].mxu0
      %9252 = vdwg.mxu0
      %9255 = vrot.lane.b32.xlu0 %v8561, 124
      %v9256 = vpop.permute.xlu0 %9255
      %9257 = vrot.lane.b32.xlu0 %v8562, 124
      %v9258 = vpop.permute.xlu0 %9257
      %9261 = vrot.lane.b32.xlu0 %v8849, 116
      %v9262 = vpop.permute.xlu0 %9261
      %9263 = vrot.lane.b32.xlu0 %v8850, 116
      %v9264 = vpop.permute.xlu0 %9263
      %v9265 = vsel %vm4518, %v9256, 0
      %v9267 = vsel %vm4518, %v9258, 0
      %v9269 = vsel %vm4518, %v9262, 0
      %v9271 = vsel %vm4518, %v9264, 0
      %9273 = vmatprep.subr.mxu0 0.0
      %9274 = vmatpush1.xpose.msra.mxu0 %v9269
      %9275 = vmatprep.subr.mxu0 0.0
      %9276 = vmatpush1.xpose.msra.mxu0 %v9271
      %9277 = vmatprep.subr.mxu0 0.0
      %9278 = vmatpush1.xpose.msra.mxu0 0.0
      %9279 = vmatprep.subr.mxu0 0.0
      %9280 = vmatpush1.xpose.msra.mxu0 0.0
      %9281 = vmatprep.subr.mxu0 0.0
      %9282 = vmatpush1.xpose.msra.mxu0 0.0
      %9283 = vmatprep.subr.mxu0 0.0
      %9284 = vmatpush1.xpose.msra.mxu0 0.0
      %9285 = vmatprep.subr.mxu0 0.0
      %9286 = vmatpush1.xpose.msra.mxu0 0.0
      %9287 = vmatprep.subr.mxu0 0.0
      %9288 = vmatpush1.xpose.msra.mxu0 0.0
      %9289 = vmatprep.subr.mxu0 0.0
      %9290 = vmatpush1.xpose.msra.mxu0 0.0
      %9291 = vmatprep.subr.mxu0 0.0
      %9292 = vmatpush1.xpose.msra.mxu0 0.0
      %9293 = vmatprep.subr.mxu0 0.0
      %9294 = vmatpush1.xpose.msra.mxu0 0.0
      %9295 = vmatprep.subr.mxu0 0.0
      %9296 = vmatpush1.xpose.msra.mxu0 0.0
      %9297 = vmatprep.subr.mxu0 0.0
      %9298 = vmatpush1.xpose.msra.mxu0 0.0
      %9299 = vmatprep.subr.mxu0 0.0
      %9300 = vmatpush1.xpose.msra.mxu0 0.0
      %9301 = vmatprep.subr.mxu0 0.0
      %9302 = vmatpush1.xpose.msra.mxu0 0.0
      %9303 = vmatprep.subr.mxu0 0.0
      %9304 = vmatpush1.xpose.msra.mxu0 0.0
      %9305 = vmatprep.subr.mxu0 0.0
      %9306 = vmatpush1.xpose.msra.mxu0 0.0
      %9307 = vmatprep.subr.mxu0 0.0
      %9308 = vmatpush1.xpose.msra.mxu0 0.0
      %9309 = vmatprep.subr.mxu0 0.0
      %9310 = vmatpush1.xpose.msra.mxu0 0.0
      %9311 = vmatprep.subr.mxu0 0.0
      %9312 = vmatpush1.xpose.msra.mxu0 0.0
      %9313 = vmatprep.subr.mxu0 0.0
      %9314 = vmatpush1.xpose.msra.mxu0 0.0
      %9315 = vmatprep.subr.mxu0 0.0
      %9316 = vmatpush1.xpose.msra.mxu0 0.0
      %9317 = vmatprep.subr.mxu0 0.0
      %9318 = vmatpush1.xpose.msra.mxu0 0.0
      %9319 = vmatprep.subr.mxu0 0.0
      %9320 = vmatpush1.xpose.msra.mxu0 0.0
      %9321 = vmatprep.subr.mxu0 0.0
      %9322 = vmatpush1.xpose.msra.mxu0 0.0
      %9323 = vmatprep.subr.mxu0 0.0
      %9324 = vmatpush1.xpose.msra.mxu0 0.0
      %9325 = vmatprep.subr.mxu0 0.0
      %9326 = vmatpush1.xpose.msra.mxu0 0.0
      %9327 = vmatprep.subr.mxu0 0.0
      %9328 = vmatpush1.xpose.msra.mxu0 0.0
      %9329 = vmatprep.subr.mxu0 0.0
      %9330 = vmatpush1.xpose.msra.mxu0 0.0
      %9331 = vmatprep.subr.mxu0 0.0
      %9332 = vmatpush1.xpose.msra.mxu0 0.0
      %9333 = vmatprep.subr.mxu0 0.0
      %9334 = vmatpush1.xpose.msra.mxu0 0.0
      %9335 = vmatprep.subr.mxu0 0.0
      %9336 = vmatpush1.xpose.msra.mxu0 0.0
      %9337 = vmatprep.mubr.f32.mxu0 0.0
      %9338 = vmatmul.mubr.f32.gmra.mrb[0].mxu0 %v9265
      %v9339 = vpop.f32.mrb[0].mxu0
      %v9340 = vadd.f32 0.0, %v9339
      %v9341 = vpop.f32.mrb[0].mxu0
      %9342 = vmatprep.mubr.f32.mxu0 0.0
      %9343 = vmatmul.mubr.f32.gmra.mrb[0].mxu0 %v9267
      %v9344 = vpop.f32.mrb[0].mxu0
      %v9345 = vadd.f32 0.0, %v9344
      %v9346 = vpop.f32.mrb[0].mxu0
      %9347 = vdwg.mxu0
      %9350 = vrot.lane.b32.xlu0 %v8563, 124
      %v9351 = vpop.permute.xlu0 %9350
      %9352 = vrot.lane.b32.xlu0 %v8564, 124
      %v9353 = vpop.permute.xlu0 %9352
      %9356 = vrot.lane.b32.xlu0 %v8851, 116
      %v9357 = vpop.permute.xlu0 %9356
      %9358 = vrot.lane.b32.xlu0 %v8852, 116
      %v9359 = vpop.permute.xlu0 %9358
      %v9360 = vsel %vm4518, %v9351, 0
      %v9362 = vsel %vm4518, %v9353, 0
      %v9364 = vsel %vm4518, %v9357, 0
      %v9366 = vsel %vm4518, %v9359, 0
      %9368 = vmatprep.subr.mxu0 0.0
      %9369 = vmatpush1.xpose.msra.mxu0 %v9364
      %9370 = vmatprep.subr.mxu0 0.0
      %9371 = vmatpush1.xpose.msra.mxu0 %v9366
      %9372 = vmatprep.subr.mxu0 0.0
      %9373 = vmatpush1.xpose.msra.mxu0 0.0
      %9374 = vmatprep.subr.mxu0 0.0
      %9375 = vmatpush1.xpose.msra.mxu0 0.0
      %9376 = vmatprep.subr.mxu0 0.0
      %9377 = vmatpush1.xpose.msra.mxu0 0.0
      %9378 = vmatprep.subr.mxu0 0.0
      %9379 = vmatpush1.xpose.msra.mxu0 0.0
      %9380 = vmatprep.subr.mxu0 0.0
      %9381 = vmatpush1.xpose.msra.mxu0 0.0
      %9382 = vmatprep.subr.mxu0 0.0
      %9383 = vmatpush1.xpose.msra.mxu0 0.0
      %9384 = vmatprep.subr.mxu0 0.0
      %9385 = vmatpush1.xpose.msra.mxu0 0.0
      %9386 = vmatprep.subr.mxu0 0.0
      %9387 = vmatpush1.xpose.msra.mxu0 0.0
      %9388 = vmatprep.subr.mxu0 0.0
      %9389 = vmatpush1.xpose.msra.mxu0 0.0
      %9390 = vmatprep.subr.mxu0 0.0
      %9391 = vmatpush1.xpose.msra.mxu0 0.0
      %9392 = vmatprep.subr.mxu0 0.0
      %9393 = vmatpush1.xpose.msra.mxu0 0.0
      %9394 = vmatprep.subr.mxu0 0.0
      %9395 = vmatpush1.xpose.msra.mxu0 0.0
      %9396 = vmatprep.subr.mxu0 0.0
      %9397 = vmatpush1.xpose.msra.mxu0 0.0
      %9398 = vmatprep.subr.mxu0 0.0
      %9399 = vmatpush1.xpose.msra.mxu0 0.0
      %9400 = vmatprep.subr.mxu0 0.0
      %9401 = vmatpush1.xpose.msra.mxu0 0.0
      %9402 = vmatprep.subr.mxu0 0.0
      %9403 = vmatpush1.xpose.msra.mxu0 0.0
      %9404 = vmatprep.subr.mxu0 0.0
      %9405 = vmatpush1.xpose.msra.mxu0 0.0
      %9406 = vmatprep.subr.mxu0 0.0
      %9407 = vmatpush1.xpose.msra.mxu0 0.0
      %9408 = vmatprep.subr.mxu0 0.0
      %9409 = vmatpush1.xpose.msra.mxu0 0.0
      %9410 = vmatprep.subr.mxu0 0.0
      %9411 = vmatpush1.xpose.msra.mxu0 0.0
      %9412 = vmatprep.subr.mxu0 0.0
      %9413 = vmatpush1.xpose.msra.mxu0 0.0
      %9414 = vmatprep.subr.mxu0 0.0
      %9415 = vmatpush1.xpose.msra.mxu0 0.0
      %9416 = vmatprep.subr.mxu0 0.0
      %9417 = vmatpush1.xpose.msra.mxu0 0.0
      %9418 = vmatprep.subr.mxu0 0.0
      %9419 = vmatpush1.xpose.msra.mxu0 0.0
      %9420 = vmatprep.subr.mxu0 0.0
      %9421 = vmatpush1.xpose.msra.mxu0 0.0
      %9422 = vmatprep.subr.mxu0 0.0
      %9423 = vmatpush1.xpose.msra.mxu0 0.0
      %9424 = vmatprep.subr.mxu0 0.0
      %9425 = vmatpush1.xpose.msra.mxu0 0.0
      %9426 = vmatprep.subr.mxu0 0.0
      %9427 = vmatpush1.xpose.msra.mxu0 0.0
      %9428 = vmatprep.subr.mxu0 0.0
      %9429 = vmatpush1.xpose.msra.mxu0 0.0
      %9430 = vmatprep.subr.mxu0 0.0
      %9431 = vmatpush1.xpose.msra.mxu0 0.0
      %9432 = vmatprep.mubr.f32.mxu0 0.0
      %9433 = vmatmul.mubr.f32.gmra.mrb[0].mxu0 %v9360
      %v9434 = vpop.f32.mrb[0].mxu0
      %v9435 = vadd.f32 0.0, %v9434
      %v9436 = vpop.f32.mrb[0].mxu0
      %9437 = vmatprep.mubr.f32.mxu0 0.0
      %9438 = vmatmul.mubr.f32.gmra.mrb[0].mxu0 %v9362
      %v9439 = vpop.f32.mrb[0].mxu0
      %v9440 = vadd.f32 0.0, %v9439
      %v9441 = vpop.f32.mrb[0].mxu0
      %9442 = vdwg.mxu0
      %9445 = vrot.lane.b32.xlu0 %v8565, 124
      %v9446 = vpop.permute.xlu0 %9445
      %9447 = vrot.lane.b32.xlu0 %v8566, 124
      %v9448 = vpop.permute.xlu0 %9447
      %9451 = vrot.lane.b32.xlu0 %v8853, 116
      %v9452 = vpop.permute.xlu0 %9451
      %9453 = vrot.lane.b32.xlu0 %v8854, 116
      %v9454 = vpop.permute.xlu0 %9453
      %v9455 = vsel %vm4518, %v9446, 0
      %v9457 = vsel %vm4518, %v9448, 0
      %v9459 = vsel %vm4518, %v9452, 0
      %v9461 = vsel %vm4518, %v9454, 0
      %9463 = vmatprep.subr.mxu0 0.0
      %9464 = vmatpush1.xpose.msra.mxu0 %v9459
      %9465 = vmatprep.subr.mxu0 0.0
      %9466 = vmatpush1.xpose.msra.mxu0 %v9461
      %9467 = vmatprep.subr.mxu0 0.0
      %9468 = vmatpush1.xpose.msra.mxu0 0.0
      %9469 = vmatprep.subr.mxu0 0.0
      %9470 = vmatpush1.xpose.msra.mxu0 0.0
      %9471 = vmatprep.subr.mxu0 0.0
      %9472 = vmatpush1.xpose.msra.mxu0 0.0
      %9473 = vmatprep.subr.mxu0 0.0
      %9474 = vmatpush1.xpose.msra.mxu0 0.0
      %9475 = vmatprep.subr.mxu0 0.0
      %9476 = vmatpush1.xpose.msra.mxu0 0.0
      %9477 = vmatprep.subr.mxu0 0.0
      %9478 = vmatpush1.xpose.msra.mxu0 0.0
      %9479 = vmatprep.subr.mxu0 0.0
      %9480 = vmatpush1.xpose.msra.mxu0 0.0
      %9481 = vmatprep.subr.mxu0 0.0
      %9482 = vmatpush1.xpose.msra.mxu0 0.0
      %9483 = vmatprep.subr.mxu0 0.0
      %9484 = vmatpush1.xpose.msra.mxu0 0.0
      %9485 = vmatprep.subr.mxu0 0.0
      %9486 = vmatpush1.xpose.msra.mxu0 0.0
      %9487 = vmatprep.subr.mxu0 0.0
      %9488 = vmatpush1.xpose.msra.mxu0 0.0
      %9489 = vmatprep.subr.mxu0 0.0
      %9490 = vmatpush1.xpose.msra.mxu0 0.0
      %9491 = vmatprep.subr.mxu0 0.0
      %9492 = vmatpush1.xpose.msra.mxu0 0.0
      %9493 = vmatprep.subr.mxu0 0.0
      %9494 = vmatpush1.xpose.msra.mxu0 0.0
      %9495 = vmatprep.subr.mxu0 0.0
      %9496 = vmatpush1.xpose.msra.mxu0 0.0
      %9497 = vmatprep.subr.mxu0 0.0
      %9498 = vmatpush1.xpose.msra.mxu0 0.0
      %9499 = vmatprep.subr.mxu0 0.0
      %9500 = vmatpush1.xpose.msra.mxu0 0.0
      %9501 = vmatprep.subr.mxu0 0.0
      %9502 = vmatpush1.xpose.msra.mxu0 0.0
      %9503 = vmatprep.subr.mxu0 0.0
      %9504 = vmatpush1.xpose.msra.mxu0 0.0
      %9505 = vmatprep.subr.mxu0 0.0
      %9506 = vmatpush1.xpose.msra.mxu0 0.0
      %9507 = vmatprep.subr.mxu0 0.0
      %9508 = vmatpush1.xpose.msra.mxu0 0.0
      %9509 = vmatprep.subr.mxu0 0.0
      %9510 = vmatpush1.xpose.msra.mxu0 0.0
      %9511 = vmatprep.subr.mxu0 0.0
      %9512 = vmatpush1.xpose.msra.mxu0 0.0
      %9513 = vmatprep.subr.mxu0 0.0
      %9514 = vmatpush1.xpose.msra.mxu0 0.0
      %9515 = vmatprep.subr.mxu0 0.0
      %9516 = vmatpush1.xpose.msra.mxu0 0.0
      %9517 = vmatprep.subr.mxu0 0.0
      %9518 = vmatpush1.xpose.msra.mxu0 0.0
      %9519 = vmatprep.subr.mxu0 0.0
      %9520 = vmatpush1.xpose.msra.mxu0 0.0
      %9521 = vmatprep.subr.mxu0 0.0
      %9522 = vmatpush1.xpose.msra.mxu0 0.0
      %9523 = vmatprep.subr.mxu0 0.0
      %9524 = vmatpush1.xpose.msra.mxu0 0.0
      %9525 = vmatprep.subr.mxu0 0.0
      %9526 = vmatpush1.xpose.msra.mxu0 0.0
      %9527 = vmatprep.mubr.f32.mxu0 0.0
      %9528 = vmatmul.mubr.f32.gmra.mrb[0].mxu0 %v9455
      %v9529 = vpop.f32.mrb[0].mxu0
      %v9530 = vadd.f32 0.0, %v9529
      %v9531 = vpop.f32.mrb[0].mxu0
      %9532 = vmatprep.mubr.f32.mxu0 0.0
      %9533 = vmatmul.mubr.f32.gmra.mrb[0].mxu0 %v9457
      %v9534 = vpop.f32.mrb[0].mxu0
      %v9535 = vadd.f32 0.0, %v9534
      %v9536 = vpop.f32.mrb[0].mxu0
      %9537 = vdwg.mxu0
      %9540 = vrot.lane.b32.xlu0 %v8567, 124
      %v9541 = vpop.permute.xlu0 %9540
      %9542 = vrot.lane.b32.xlu0 %v8568, 124
      %v9543 = vpop.permute.xlu0 %9542
      %9546 = vrot.lane.b32.xlu0 %v8855, 116
      %v9547 = vpop.permute.xlu0 %9546
      %9548 = vrot.lane.b32.xlu0 %v8856, 116
      %v9549 = vpop.permute.xlu0 %9548
      %v9550 = vsel %vm4518, %v9541, 0
      %v9552 = vsel %vm4518, %v9543, 0
      %v9554 = vsel %vm4518, %v9547, 0
      %v9556 = vsel %vm4518, %v9549, 0
      %9558 = vmatprep.subr.mxu0 0.0
      %9559 = vmatpush1.xpose.msra.mxu0 %v9554
      %9560 = vmatprep.subr.mxu0 0.0
      %9561 = vmatpush1.xpose.msra.mxu0 %v9556
      %9562 = vmatprep.subr.mxu0 0.0
      %9563 = vmatpush1.xpose.msra.mxu0 0.0
      %9564 = vmatprep.subr.mxu0 0.0
      %9565 = vmatpush1.xpose.msra.mxu0 0.0
      %9566 = vmatprep.subr.mxu0 0.0
      %9567 = vmatpush1.xpose.msra.mxu0 0.0
      %9568 = vmatprep.subr.mxu0 0.0
      %9569 = vmatpush1.xpose.msra.mxu0 0.0
      %9570 = vmatprep.subr.mxu0 0.0
      %9571 = vmatpush1.xpose.msra.mxu0 0.0
      %9572 = vmatprep.subr.mxu0 0.0
      %9573 = vmatpush1.xpose.msra.mxu0 0.0
      %9574 = vmatprep.subr.mxu0 0.0
      %9575 = vmatpush1.xpose.msra.mxu0 0.0
      %9576 = vmatprep.subr.mxu0 0.0
      %9577 = vmatpush1.xpose.msra.mxu0 0.0
      %9578 = vmatprep.subr.mxu0 0.0
      %9579 = vmatpush1.xpose.msra.mxu0 0.0
      %9580 = vmatprep.subr.mxu0 0.0
      %9581 = vmatpush1.xpose.msra.mxu0 0.0
      %9582 = vmatprep.subr.mxu0 0.0
      %9583 = vmatpush1.xpose.msra.mxu0 0.0
      %9584 = vmatprep.subr.mxu0 0.0
      %9585 = vmatpush1.xpose.msra.mxu0 0.0
      %9586 = vmatprep.subr.mxu0 0.0
      %9587 = vmatpush1.xpose.msra.mxu0 0.0
      %9588 = vmatprep.subr.mxu0 0.0
      %9589 = vmatpush1.xpose.msra.mxu0 0.0
      %9590 = vmatprep.subr.mxu0 0.0
      %9591 = vmatpush1.xpose.msra.mxu0 0.0
      %9592 = vmatprep.subr.mxu0 0.0
      %9593 = vmatpush1.xpose.msra.mxu0 0.0
      %9594 = vmatprep.subr.mxu0 0.0
      %9595 = vmatpush1.xpose.msra.mxu0 0.0
      %9596 = vmatprep.subr.mxu0 0.0
      %9597 = vmatpush1.xpose.msra.mxu0 0.0
      %9598 = vmatprep.subr.mxu0 0.0
      %9599 = vmatpush1.xpose.msra.mxu0 0.0
      %9600 = vmatprep.subr.mxu0 0.0
      %9601 = vmatpush1.xpose.msra.mxu0 0.0
      %9602 = vmatprep.subr.mxu0 0.0
      %9603 = vmatpush1.xpose.msra.mxu0 0.0
      %9604 = vmatprep.subr.mxu0 0.0
      %9605 = vmatpush1.xpose.msra.mxu0 0.0
      %9606 = vmatprep.subr.mxu0 0.0
      %9607 = vmatpush1.xpose.msra.mxu0 0.0
      %9608 = vmatprep.subr.mxu0 0.0
      %9609 = vmatpush1.xpose.msra.mxu0 0.0
      %9610 = vmatprep.subr.mxu0 0.0
      %9611 = vmatpush1.xpose.msra.mxu0 0.0
      %9612 = vmatprep.subr.mxu0 0.0
      %9613 = vmatpush1.xpose.msra.mxu0 0.0
      %9614 = vmatprep.subr.mxu0 0.0
      %9615 = vmatpush1.xpose.msra.mxu0 0.0
      %9616 = vmatprep.subr.mxu0 0.0
      %9617 = vmatpush1.xpose.msra.mxu0 0.0
      %9618 = vmatprep.subr.mxu0 0.0
      %9619 = vmatpush1.xpose.msra.mxu0 0.0
      %9620 = vmatprep.subr.mxu0 0.0
      %9621 = vmatpush1.xpose.msra.mxu0 0.0
      %9622 = vmatprep.mubr.f32.mxu0 0.0
      %9623 = vmatmul.mubr.f32.gmra.mrb[0].mxu0 %v9550
      %v9624 = vpop.f32.mrb[0].mxu0
      %v9625 = vadd.f32 0.0, %v9624
      %v9626 = vpop.f32.mrb[0].mxu0
      %9627 = vmatprep.mubr.f32.mxu0 0.0
      %9628 = vmatmul.mubr.f32.gmra.mrb[0].mxu0 %v9552
      %v9629 = vpop.f32.mrb[0].mxu0
      %v9630 = vadd.f32 0.0, %v9629
      %v9631 = vpop.f32.mrb[0].mxu0
      %9632 = vdwg.mxu0
      %9635 = vrot.lane.b32.xlu0 %v8569, 124
      %v9636 = vpop.permute.xlu0 %9635
      %9637 = vrot.lane.b32.xlu0 %v8570, 124
      %v9638 = vpop.permute.xlu0 %9637
      %9641 = vrot.lane.b32.xlu0 %v8857, 116
      %v9642 = vpop.permute.xlu0 %9641
      %9643 = vrot.lane.b32.xlu0 %v8858, 116
      %v9644 = vpop.permute.xlu0 %9643
      %v9645 = vsel %vm4518, %v9636, 0
      %v9647 = vsel %vm4518, %v9638, 0
      %v9649 = vsel %vm4518, %v9642, 0
      %v9651 = vsel %vm4518, %v9644, 0
      %9653 = vmatprep.subr.mxu0 0.0
      %9654 = vmatpush1.xpose.msra.mxu0 %v9649
      %9655 = vmatprep.subr.mxu0 0.0
      %9656 = vmatpush1.xpose.msra.mxu0 %v9651
      %9657 = vmatprep.subr.mxu0 0.0
      %9658 = vmatpush1.xpose.msra.mxu0 0.0
      %9659 = vmatprep.subr.mxu0 0.0
      %9660 = vmatpush1.xpose.msra.mxu0 0.0
      %9661 = vmatprep.subr.mxu0 0.0
      %9662 = vmatpush1.xpose.msra.mxu0 0.0
      %9663 = vmatprep.subr.mxu0 0.0
      %9664 = vmatpush1.xpose.msra.mxu0 0.0
      %9665 = vmatprep.subr.mxu0 0.0
      %9666 = vmatpush1.xpose.msra.mxu0 0.0
      %9667 = vmatprep.subr.mxu0 0.0
      %9668 = vmatpush1.xpose.msra.mxu0 0.0
      %9669 = vmatprep.subr.mxu0 0.0
      %9670 = vmatpush1.xpose.msra.mxu0 0.0
      %9671 = vmatprep.subr.mxu0 0.0
      %9672 = vmatpush1.xpose.msra.mxu0 0.0
      %9673 = vmatprep.subr.mxu0 0.0
      %9674 = vmatpush1.xpose.msra.mxu0 0.0
      %9675 = vmatprep.subr.mxu0 0.0
      %9676 = vmatpush1.xpose.msra.mxu0 0.0
      %9677 = vmatprep.subr.mxu0 0.0
      %9678 = vmatpush1.xpose.msra.mxu0 0.0
      %9679 = vmatprep.subr.mxu0 0.0
      %9680 = vmatpush1.xpose.msra.mxu0 0.0
      %9681 = vmatprep.subr.mxu0 0.0
      %9682 = vmatpush1.xpose.msra.mxu0 0.0
      %9683 = vmatprep.subr.mxu0 0.0
      %9684 = vmatpush1.xpose.msra.mxu0 0.0
      %9685 = vmatprep.subr.mxu0 0.0
      %9686 = vmatpush1.xpose.msra.mxu0 0.0
      %9687 = vmatprep.subr.mxu0 0.0
      %9688 = vmatpush1.xpose.msra.mxu0 0.0
      %9689 = vmatprep.subr.mxu0 0.0
      %9690 = vmatpush1.xpose.msra.mxu0 0.0
      %9691 = vmatprep.subr.mxu0 0.0
      %9692 = vmatpush1.xpose.msra.mxu0 0.0
      %9693 = vmatprep.subr.mxu0 0.0
      %9694 = vmatpush1.xpose.msra.mxu0 0.0
      %9695 = vmatprep.subr.mxu0 0.0
      %9696 = vmatpush1.xpose.msra.mxu0 0.0
      %9697 = vmatprep.subr.mxu0 0.0
      %9698 = vmatpush1.xpose.msra.mxu0 0.0
      %9699 = vmatprep.subr.mxu0 0.0
      %9700 = vmatpush1.xpose.msra.mxu0 0.0
      %9701 = vmatprep.subr.mxu0 0.0
      %9702 = vmatpush1.xpose.msra.mxu0 0.0
      %9703 = vmatprep.subr.mxu0 0.0
      %9704 = vmatpush1.xpose.msra.mxu0 0.0
      %9705 = vmatprep.subr.mxu0 0.0
      %9706 = vmatpush1.xpose.msra.mxu0 0.0
      %9707 = vmatprep.subr.mxu0 0.0
      %9708 = vmatpush1.xpose.msra.mxu0 0.0
      %9709 = vmatprep.subr.mxu0 0.0
      %9710 = vmatpush1.xpose.msra.mxu0 0.0
      %9711 = vmatprep.subr.mxu0 0.0
      %9712 = vmatpush1.xpose.msra.mxu0 0.0
      %9713 = vmatprep.subr.mxu0 0.0
      %9714 = vmatpush1.xpose.msra.mxu0 0.0
      %9715 = vmatprep.subr.mxu0 0.0
      %9716 = vmatpush1.xpose.msra.mxu0 0.0
      %9717 = vmatprep.mubr.f32.mxu0 0.0
      %9718 = vmatmul.mubr.f32.gmra.mrb[0].mxu0 %v9645
      %v9719 = vpop.f32.mrb[0].mxu0
      %v9720 = vadd.f32 0.0, %v9719
      %v9721 = vpop.f32.mrb[0].mxu0
      %9722 = vmatprep.mubr.f32.mxu0 0.0
      %9723 = vmatmul.mubr.f32.gmra.mrb[0].mxu0 %v9647
      %v9724 = vpop.f32.mrb[0].mxu0
      %v9725 = vadd.f32 0.0, %v9724
      %v9726 = vpop.f32.mrb[0].mxu0
      %9727 = vdwg.mxu0
      %9730 = vrot.lane.b32.xlu0 %v8571, 124
      %v9731 = vpop.permute.xlu0 %9730
      %9732 = vrot.lane.b32.xlu0 %v8572, 124
      %v9733 = vpop.permute.xlu0 %9732
      %9736 = vrot.lane.b32.xlu0 %v8859, 116
      %v9737 = vpop.permute.xlu0 %9736
      %9738 = vrot.lane.b32.xlu0 %v8860, 116
      %v9739 = vpop.permute.xlu0 %9738
      %v9740 = vsel %vm4518, %v9731, 0
      %v9742 = vsel %vm4518, %v9733, 0
      %v9744 = vsel %vm4518, %v9737, 0
      %v9746 = vsel %vm4518, %v9739, 0
      %9748 = vmatprep.subr.mxu0 0.0
      %9749 = vmatpush1.xpose.msra.mxu0 %v9744
      %9750 = vmatprep.subr.mxu0 0.0
      %9751 = vmatpush1.xpose.msra.mxu0 %v9746
      %9752 = vmatprep.subr.mxu0 0.0
      %9753 = vmatpush1.xpose.msra.mxu0 0.0
      %9754 = vmatprep.subr.mxu0 0.0
      %9755 = vmatpush1.xpose.msra.mxu0 0.0
      %9756 = vmatprep.subr.mxu0 0.0
      %9757 = vmatpush1.xpose.msra.mxu0 0.0
      %9758 = vmatprep.subr.mxu0 0.0
      %9759 = vmatpush1.xpose.msra.mxu0 0.0
      %9760 = vmatprep.subr.mxu0 0.0
      %9761 = vmatpush1.xpose.msra.mxu0 0.0
      %9762 = vmatprep.subr.mxu0 0.0
      %9763 = vmatpush1.xpose.msra.mxu0 0.0
      %9764 = vmatprep.subr.mxu0 0.0
      %9765 = vmatpush1.xpose.msra.mxu0 0.0
      %9766 = vmatprep.subr.mxu0 0.0
      %9767 = vmatpush1.xpose.msra.mxu0 0.0
      %9768 = vmatprep.subr.mxu0 0.0
      %9769 = vmatpush1.xpose.msra.mxu0 0.0
      %9770 = vmatprep.subr.mxu0 0.0
      %9771 = vmatpush1.xpose.msra.mxu0 0.0
      %9772 = vmatprep.subr.mxu0 0.0
      %9773 = vmatpush1.xpose.msra.mxu0 0.0
      %9774 = vmatprep.subr.mxu0 0.0
      %9775 = vmatpush1.xpose.msra.mxu0 0.0
      %9776 = vmatprep.subr.mxu0 0.0
      %9777 = vmatpush1.xpose.msra.mxu0 0.0
      %9778 = vmatprep.subr.mxu0 0.0
      %9779 = vmatpush1.xpose.msra.mxu0 0.0
      %9780 = vmatprep.subr.mxu0 0.0
      %9781 = vmatpush1.xpose.msra.mxu0 0.0
      %9782 = vmatprep.subr.mxu0 0.0
      %9783 = vmatpush1.xpose.msra.mxu0 0.0
      %9784 = vmatprep.subr.mxu0 0.0
      %9785 = vmatpush1.xpose.msra.mxu0 0.0
      %9786 = vmatprep.subr.mxu0 0.0
      %9787 = vmatpush1.xpose.msra.mxu0 0.0
      %9788 = vmatprep.subr.mxu0 0.0
      %9789 = vmatpush1.xpose.msra.mxu0 0.0
      %9790 = vmatprep.subr.mxu0 0.0
      %9791 = vmatpush1.xpose.msra.mxu0 0.0
      %9792 = vmatprep.subr.mxu0 0.0
      %9793 = vmatpush1.xpose.msra.mxu0 0.0
      %9794 = vmatprep.subr.mxu0 0.0
      %9795 = vmatpush1.xpose.msra.mxu0 0.0
      %9796 = vmatprep.subr.mxu0 0.0
      %9797 = vmatpush1.xpose.msra.mxu0 0.0
      %9798 = vmatprep.subr.mxu0 0.0
      %9799 = vmatpush1.xpose.msra.mxu0 0.0
      %9800 = vmatprep.subr.mxu0 0.0
      %9801 = vmatpush1.xpose.msra.mxu0 0.0
      %9802 = vmatprep.subr.mxu0 0.0
      %9803 = vmatpush1.xpose.msra.mxu0 0.0
      %9804 = vmatprep.subr.mxu0 0.0
      %9805 = vmatpush1.xpose.msra.mxu0 0.0
      %9806 = vmatprep.subr.mxu0 0.0
      %9807 = vmatpush1.xpose.msra.mxu0 0.0
      %9808 = vmatprep.subr.mxu0 0.0
      %9809 = vmatpush1.xpose.msra.mxu0 0.0
      %9810 = vmatprep.subr.mxu0 0.0
      %9811 = vmatpush1.xpose.msra.mxu0 0.0
      %9812 = vmatprep.mubr.f32.mxu0 0.0
      %9813 = vmatmul.mubr.f32.gmra.mrb[0].mxu0 %v9740
      %v9814 = vpop.f32.mrb[0].mxu0
      %v9815 = vadd.f32 0.0, %v9814
      %v9816 = vpop.f32.mrb[0].mxu0
      %9817 = vmatprep.mubr.f32.mxu0 0.0
      %9818 = vmatmul.mubr.f32.gmra.mrb[0].mxu0 %v9742
      %v9819 = vpop.f32.mrb[0].mxu0
      %v9820 = vadd.f32 0.0, %v9819
      %v9821 = vpop.f32.mrb[0].mxu0
      %9822 = vdwg.mxu0
      %9825 = vrot.lane.b32.xlu0 %v8573, 124
      %v9826 = vpop.permute.xlu0 %9825
      %9827 = vrot.lane.b32.xlu0 %v8574, 124
      %v9828 = vpop.permute.xlu0 %9827
      %9831 = vrot.lane.b32.xlu0 %v8861, 116
      %v9832 = vpop.permute.xlu0 %9831
      %9833 = vrot.lane.b32.xlu0 %v8862, 116
      %v9834 = vpop.permute.xlu0 %9833
      %v9835 = vsel %vm4518, %v9826, 0
      %v9837 = vsel %vm4518, %v9828, 0
      %v9839 = vsel %vm4518, %v9832, 0
      %v9841 = vsel %vm4518, %v9834, 0
      %9843 = vmatprep.subr.mxu0 0.0
      %9844 = vmatpush1.xpose.msra.mxu0 %v9839
      %9845 = vmatprep.subr.mxu0 0.0
      %9846 = vmatpush1.xpose.msra.mxu0 %v9841
      %9847 = vmatprep.subr.mxu0 0.0
      %9848 = vmatpush1.xpose.msra.mxu0 0.0
      %9849 = vmatprep.subr.mxu0 0.0
      %9850 = vmatpush1.xpose.msra.mxu0 0.0
      %9851 = vmatprep.subr.mxu0 0.0
      %9852 = vmatpush1.xpose.msra.mxu0 0.0
      %9853 = vmatprep.subr.mxu0 0.0
      %9854 = vmatpush1.xpose.msra.mxu0 0.0
      %9855 = vmatprep.subr.mxu0 0.0
      %9856 = vmatpush1.xpose.msra.mxu0 0.0
      %9857 = vmatprep.subr.mxu0 0.0
      %9858 = vmatpush1.xpose.msra.mxu0 0.0
      %9859 = vmatprep.subr.mxu0 0.0
      %9860 = vmatpush1.xpose.msra.mxu0 0.0
      %9861 = vmatprep.subr.mxu0 0.0
      %9862 = vmatpush1.xpose.msra.mxu0 0.0
      %9863 = vmatprep.subr.mxu0 0.0
      %9864 = vmatpush1.xpose.msra.mxu0 0.0
      %9865 = vmatprep.subr.mxu0 0.0
      %9866 = vmatpush1.xpose.msra.mxu0 0.0
      %9867 = vmatprep.subr.mxu0 0.0
      %9868 = vmatpush1.xpose.msra.mxu0 0.0
      %9869 = vmatprep.subr.mxu0 0.0
      %9870 = vmatpush1.xpose.msra.mxu0 0.0
      %9871 = vmatprep.subr.mxu0 0.0
      %9872 = vmatpush1.xpose.msra.mxu0 0.0
      %9873 = vmatprep.subr.mxu0 0.0
      %9874 = vmatpush1.xpose.msra.mxu0 0.0
      %9875 = vmatprep.subr.mxu0 0.0
      %9876 = vmatpush1.xpose.msra.mxu0 0.0
      %9877 = vmatprep.subr.mxu0 0.0
      %9878 = vmatpush1.xpose.msra.mxu0 0.0
      %9879 = vmatprep.subr.mxu0 0.0
      %9880 = vmatpush1.xpose.msra.mxu0 0.0
      %9881 = vmatprep.subr.mxu0 0.0
      %9882 = vmatpush1.xpose.msra.mxu0 0.0
      %9883 = vmatprep.subr.mxu0 0.0
      %9884 = vmatpush1.xpose.msra.mxu0 0.0
      %9885 = vmatprep.subr.mxu0 0.0
      %9886 = vmatpush1.xpose.msra.mxu0 0.0
      %9887 = vmatprep.subr.mxu0 0.0
      %9888 = vmatpush1.xpose.msra.mxu0 0.0
      %9889 = vmatprep.subr.mxu0 0.0
      %9890 = vmatpush1.xpose.msra.mxu0 0.0
      %9891 = vmatprep.subr.mxu0 0.0
      %9892 = vmatpush1.xpose.msra.mxu0 0.0
      %9893 = vmatprep.subr.mxu0 0.0
      %9894 = vmatpush1.xpose.msra.mxu0 0.0
      %9895 = vmatprep.subr.mxu0 0.0
      %9896 = vmatpush1.xpose.msra.mxu0 0.0
      %9897 = vmatprep.subr.mxu0 0.0
      %9898 = vmatpush1.xpose.msra.mxu0 0.0
      %9899 = vmatprep.subr.mxu0 0.0
      %9900 = vmatpush1.xpose.msra.mxu0 0.0
      %9901 = vmatprep.subr.mxu0 0.0
      %9902 = vmatpush1.xpose.msra.mxu0 0.0
      %9903 = vmatprep.subr.mxu0 0.0
      %9904 = vmatpush1.xpose.msra.mxu0 0.0
      %9905 = vmatprep.subr.mxu0 0.0
      %9906 = vmatpush1.xpose.msra.mxu0 0.0
      %9907 = vmatprep.mubr.f32.mxu0 0.0
      %9908 = vmatmul.mubr.f32.gmra.mrb[0].mxu0 %v9835
      %v9909 = vpop.f32.mrb[0].mxu0
      %v9910 = vadd.f32 0.0, %v9909
      %v9911 = vpop.f32.mrb[0].mxu0
      %9912 = vmatprep.mubr.f32.mxu0 0.0
      %9913 = vmatmul.mubr.f32.gmra.mrb[0].mxu0 %v9837
      %v9914 = vpop.f32.mrb[0].mxu0
      %v9915 = vadd.f32 0.0, %v9914
      %v9916 = vpop.f32.mrb[0].mxu0
      %9917 = vdwg.mxu0
      %9920 = vrot.lane.b32.xlu0 %v8575, 124
      %v9921 = vpop.permute.xlu0 %9920
      %9922 = vrot.lane.b32.xlu0 %v8576, 124
      %v9923 = vpop.permute.xlu0 %9922
      %9926 = vrot.lane.b32.xlu0 %v8863, 116
      %v9927 = vpop.permute.xlu0 %9926
      %9928 = vrot.lane.b32.xlu0 %v8864, 116
      %v9929 = vpop.permute.xlu0 %9928
      %v9930 = vsel %vm4518, %v9921, 0
      %v9932 = vsel %vm4518, %v9923, 0
      %v9934 = vsel %vm4518, %v9927, 0
      %v9936 = vsel %vm4518, %v9929, 0
      %9938 = vmatprep.subr.mxu0 0.0
      %9939 = vmatpush1.xpose.msra.mxu0 %v9934
      %9940 = vmatprep.subr.mxu0 0.0
      %9941 = vmatpush1.xpose.msra.mxu0 %v9936
      %9942 = vmatprep.subr.mxu0 0.0
      %9943 = vmatpush1.xpose.msra.mxu0 0.0
      %9944 = vmatprep.subr.mxu0 0.0
      %9945 = vmatpush1.xpose.msra.mxu0 0.0
      %9946 = vmatprep.subr.mxu0 0.0
      %9947 = vmatpush1.xpose.msra.mxu0 0.0
      %9948 = vmatprep.subr.mxu0 0.0
      %9949 = vmatpush1.xpose.msra.mxu0 0.0
      %9950 = vmatprep.subr.mxu0 0.0
      %9951 = vmatpush1.xpose.msra.mxu0 0.0
      %9952 = vmatprep.subr.mxu0 0.0
      %9953 = vmatpush1.xpose.msra.mxu0 0.0
      %9954 = vmatprep.subr.mxu0 0.0
      %9955 = vmatpush1.xpose.msra.mxu0 0.0
      %9956 = vmatprep.subr.mxu0 0.0
      %9957 = vmatpush1.xpose.msra.mxu0 0.0
      %9958 = vmatprep.subr.mxu0 0.0
      %9959 = vmatpush1.xpose.msra.mxu0 0.0
      %9960 = vmatprep.subr.mxu0 0.0
      %9961 = vmatpush1.xpose.msra.mxu0 0.0
      %9962 = vmatprep.subr.mxu0 0.0
      %9963 = vmatpush1.xpose.msra.mxu0 0.0
      %9964 = vmatprep.subr.mxu0 0.0
      %9965 = vmatpush1.xpose.msra.mxu0 0.0
      %9966 = vmatprep.subr.mxu0 0.0
      %9967 = vmatpush1.xpose.msra.mxu0 0.0
      %9968 = vmatprep.subr.mxu0 0.0
      %9969 = vmatpush1.xpose.msra.mxu0 0.0
      %9970 = vmatprep.subr.mxu0 0.0
      %9971 = vmatpush1.xpose.msra.mxu0 0.0
      %9972 = vmatprep.subr.mxu0 0.0
      %9973 = vmatpush1.xpose.msra.mxu0 0.0
      %9974 = vmatprep.subr.mxu0 0.0
      %9975 = vmatpush1.xpose.msra.mxu0 0.0
      %9976 = vmatprep.subr.mxu0 0.0
      %9977 = vmatpush1.xpose.msra.mxu0 0.0
      %9978 = vmatprep.subr.mxu0 0.0
      %9979 = vmatpush1.xpose.msra.mxu0 0.0
      %9980 = vmatprep.subr.mxu0 0.0
      %9981 = vmatpush1.xpose.msra.mxu0 0.0
      %9982 = vmatprep.subr.mxu0 0.0
      %9983 = vmatpush1.xpose.msra.mxu0 0.0
      %9984 = vmatprep.subr.mxu0 0.0
      %9985 = vmatpush1.xpose.msra.mxu0 0.0
      %9986 = vmatprep.subr.mxu0 0.0
      %9987 = vmatpush1.xpose.msra.mxu0 0.0
      %9988 = vmatprep.subr.mxu0 0.0
      %9989 = vmatpush1.xpose.msra.mxu0 0.0
      %9990 = vmatprep.subr.mxu0 0.0
      %9991 = vmatpush1.xpose.msra.mxu0 0.0
      %9992 = vmatprep.subr.mxu0 0.0
      %9993 = vmatpush1.xpose.msra.mxu0 0.0
      %9994 = vmatprep.subr.mxu0 0.0
      %9995 = vmatpush1.xpose.msra.mxu0 0.0
      %9996 = vmatprep.subr.mxu0 0.0
      %9997 = vmatpush1.xpose.msra.mxu0 0.0
      %9998 = vmatprep.subr.mxu0 0.0
      %9999 = vmatpush1.xpose.msra.mxu0 0.0
      %10000 = vmatprep.subr.mxu0 0.0
      %10001 = vmatpush1.xpose.msra.mxu0 0.0
      %10002 = vmatprep.mubr.f32.mxu0 0.0
      %10003 = vmatmul.mubr.f32.gmra.mrb[0].mxu0 %v9930
      %v10004 = vpop.f32.mrb[0].mxu0
      %v10005 = vadd.f32 0.0, %v10004
      %v10006 = vpop.f32.mrb[0].mxu0
      %10007 = vmatprep.mubr.f32.mxu0 0.0
      %10008 = vmatmul.mubr.f32.gmra.mrb[0].mxu0 %v9932
      %v10009 = vpop.f32.mrb[0].mxu0
      %v10010 = vadd.f32 0.0, %v10009
      %v10011 = vpop.f32.mrb[0].mxu0
      %10012 = vdwg.mxu0
      %10015 = vrot.lane.b32.xlu0 %v8577, 124
      %v10016 = vpop.permute.xlu0 %10015
      %10017 = vrot.lane.b32.xlu0 %v8578, 124
      %v10018 = vpop.permute.xlu0 %10017
      %10021 = vrot.lane.b32.xlu0 %v8865, 116
      %v10022 = vpop.permute.xlu0 %10021
      %10023 = vrot.lane.b32.xlu0 %v8866, 116
      %v10024 = vpop.permute.xlu0 %10023
      %v10025 = vsel %vm4518, %v10016, 0
      %v10027 = vsel %vm4518, %v10018, 0
      %v10029 = vsel %vm4518, %v10022, 0
      %v10031 = vsel %vm4518, %v10024, 0
      %10033 = vmatprep.subr.mxu0 0.0
      %10034 = vmatpush1.xpose.msra.mxu0 %v10029
      %10035 = vmatprep.subr.mxu0 0.0
      %10036 = vmatpush1.xpose.msra.mxu0 %v10031
      %10037 = vmatprep.subr.mxu0 0.0
      %10038 = vmatpush1.xpose.msra.mxu0 0.0
      %10039 = vmatprep.subr.mxu0 0.0
      %10040 = vmatpush1.xpose.msra.mxu0 0.0
      %10041 = vmatprep.subr.mxu0 0.0
      %10042 = vmatpush1.xpose.msra.mxu0 0.0
      %10043 = vmatprep.subr.mxu0 0.0
      %10044 = vmatpush1.xpose.msra.mxu0 0.0
      %10045 = vmatprep.subr.mxu0 0.0
      %10046 = vmatpush1.xpose.msra.mxu0 0.0
      %10047 = vmatprep.subr.mxu0 0.0
      %10048 = vmatpush1.xpose.msra.mxu0 0.0
      %10049 = vmatprep.subr.mxu0 0.0
      %10050 = vmatpush1.xpose.msra.mxu0 0.0
      %10051 = vmatprep.subr.mxu0 0.0
      %10052 = vmatpush1.xpose.msra.mxu0 0.0
      %10053 = vmatprep.subr.mxu0 0.0
      %10054 = vmatpush1.xpose.msra.mxu0 0.0
      %10055 = vmatprep.subr.mxu0 0.0
      %10056 = vmatpush1.xpose.msra.mxu0 0.0
      %10057 = vmatprep.subr.mxu0 0.0
      %10058 = vmatpush1.xpose.msra.mxu0 0.0
      %10059 = vmatprep.subr.mxu0 0.0
      %10060 = vmatpush1.xpose.msra.mxu0 0.0
      %10061 = vmatprep.subr.mxu0 0.0
      %10062 = vmatpush1.xpose.msra.mxu0 0.0
      %10063 = vmatprep.subr.mxu0 0.0
      %10064 = vmatpush1.xpose.msra.mxu0 0.0
      %10065 = vmatprep.subr.mxu0 0.0
      %10066 = vmatpush1.xpose.msra.mxu0 0.0
      %10067 = vmatprep.subr.mxu0 0.0
      %10068 = vmatpush1.xpose.msra.mxu0 0.0
      %10069 = vmatprep.subr.mxu0 0.0
      %10070 = vmatpush1.xpose.msra.mxu0 0.0
      %10071 = vmatprep.subr.mxu0 0.0
      %10072 = vmatpush1.xpose.msra.mxu0 0.0
      %10073 = vmatprep.subr.mxu0 0.0
      %10074 = vmatpush1.xpose.msra.mxu0 0.0
      %10075 = vmatprep.subr.mxu0 0.0
      %10076 = vmatpush1.xpose.msra.mxu0 0.0
      %10077 = vmatprep.subr.mxu0 0.0
      %10078 = vmatpush1.xpose.msra.mxu0 0.0
      %10079 = vmatprep.subr.mxu0 0.0
      %10080 = vmatpush1.xpose.msra.mxu0 0.0
      %10081 = vmatprep.subr.mxu0 0.0
      %10082 = vmatpush1.xpose.msra.mxu0 0.0
      %10083 = vmatprep.subr.mxu0 0.0
      %10084 = vmatpush1.xpose.msra.mxu0 0.0
      %10085 = vmatprep.subr.mxu0 0.0
      %10086 = vmatpush1.xpose.msra.mxu0 0.0
      %10087 = vmatprep.subr.mxu0 0.0
      %10088 = vmatpush1.xpose.msra.mxu0 0.0
      %10089 = vmatprep.subr.mxu0 0.0
      %10090 = vmatpush1.xpose.msra.mxu0 0.0
      %10091 = vmatprep.subr.mxu0 0.0
      %10092 = vmatpush1.xpose.msra.mxu0 0.0
      %10093 = vmatprep.subr.mxu0 0.0
      %10094 = vmatpush1.xpose.msra.mxu0 0.0
      %10095 = vmatprep.subr.mxu0 0.0
      %10096 = vmatpush1.xpose.msra.mxu0 0.0
      %10097 = vmatprep.mubr.f32.mxu0 0.0
      %10098 = vmatmul.mubr.f32.gmra.mrb[0].mxu0 %v10025
      %v10099 = vpop.f32.mrb[0].mxu0
      %v10100 = vadd.f32 0.0, %v10099
      %v10101 = vpop.f32.mrb[0].mxu0
      %10102 = vmatprep.mubr.f32.mxu0 0.0
      %10103 = vmatmul.mubr.f32.gmra.mrb[0].mxu0 %v10027
      %v10104 = vpop.f32.mrb[0].mxu0
      %v10105 = vadd.f32 0.0, %v10104
      %v10106 = vpop.f32.mrb[0].mxu0
      %10107 = vdwg.mxu0
      %10110 = vrot.lane.b32.xlu0 %v8579, 124
      %v10111 = vpop.permute.xlu0 %10110
      %10112 = vrot.lane.b32.xlu0 %v8580, 124
      %v10113 = vpop.permute.xlu0 %10112
      %10116 = vrot.lane.b32.xlu0 %v8867, 116
      %v10117 = vpop.permute.xlu0 %10116
      %10118 = vrot.lane.b32.xlu0 %v8868, 116
      %v10119 = vpop.permute.xlu0 %10118
      %v10120 = vsel %vm4518, %v10111, 0
      %v10122 = vsel %vm4518, %v10113, 0
      %v10124 = vsel %vm4518, %v10117, 0
      %v10126 = vsel %vm4518, %v10119, 0
      %10128 = vmatprep.subr.mxu0 0.0
      %10129 = vmatpush1.xpose.msra.mxu0 %v10124
      %10130 = vmatprep.subr.mxu0 0.0
      %10131 = vmatpush1.xpose.msra.mxu0 %v10126
      %10132 = vmatprep.subr.mxu0 0.0
      %10133 = vmatpush1.xpose.msra.mxu0 0.0
      %10134 = vmatprep.subr.mxu0 0.0
      %10135 = vmatpush1.xpose.msra.mxu0 0.0
      %10136 = vmatprep.subr.mxu0 0.0
      %10137 = vmatpush1.xpose.msra.mxu0 0.0
      %10138 = vmatprep.subr.mxu0 0.0
      %10139 = vmatpush1.xpose.msra.mxu0 0.0
      %10140 = vmatprep.subr.mxu0 0.0
      %10141 = vmatpush1.xpose.msra.mxu0 0.0
      %10142 = vmatprep.subr.mxu0 0.0
      %10143 = vmatpush1.xpose.msra.mxu0 0.0
      %10144 = vmatprep.subr.mxu0 0.0
      %10145 = vmatpush1.xpose.msra.mxu0 0.0
      %10146 = vmatprep.subr.mxu0 0.0
      %10147 = vmatpush1.xpose.msra.mxu0 0.0
      %10148 = vmatprep.subr.mxu0 0.0
      %10149 = vmatpush1.xpose.msra.mxu0 0.0
      %10150 = vmatprep.subr.mxu0 0.0
      %10151 = vmatpush1.xpose.msra.mxu0 0.0
      %10152 = vmatprep.subr.mxu0 0.0
      %10153 = vmatpush1.xpose.msra.mxu0 0.0
      %10154 = vmatprep.subr.mxu0 0.0
      %10155 = vmatpush1.xpose.msra.mxu0 0.0
      %10156 = vmatprep.subr.mxu0 0.0
      %10157 = vmatpush1.xpose.msra.mxu0 0.0
      %10158 = vmatprep.subr.mxu0 0.0
      %10159 = vmatpush1.xpose.msra.mxu0 0.0
      %10160 = vmatprep.subr.mxu0 0.0
      %10161 = vmatpush1.xpose.msra.mxu0 0.0
      %10162 = vmatprep.subr.mxu0 0.0
      %10163 = vmatpush1.xpose.msra.mxu0 0.0
      %10164 = vmatprep.subr.mxu0 0.0
      %10165 = vmatpush1.xpose.msra.mxu0 0.0
      %10166 = vmatprep.subr.mxu0 0.0
      %10167 = vmatpush1.xpose.msra.mxu0 0.0
      %10168 = vmatprep.subr.mxu0 0.0
      %10169 = vmatpush1.xpose.msra.mxu0 0.0
      %10170 = vmatprep.subr.mxu0 0.0
      %10171 = vmatpush1.xpose.msra.mxu0 0.0
      %10172 = vmatprep.subr.mxu0 0.0
      %10173 = vmatpush1.xpose.msra.mxu0 0.0
      %10174 = vmatprep.subr.mxu0 0.0
      %10175 = vmatpush1.xpose.msra.mxu0 0.0
      %10176 = vmatprep.subr.mxu0 0.0
      %10177 = vmatpush1.xpose.msra.mxu0 0.0
      %10178 = vmatprep.subr.mxu0 0.0
      %10179 = vmatpush1.xpose.msra.mxu0 0.0
      %10180 = vmatprep.subr.mxu0 0.0
      %10181 = vmatpush1.xpose.msra.mxu0 0.0
      %10182 = vmatprep.subr.mxu0 0.0
      %10183 = vmatpush1.xpose.msra.mxu0 0.0
      %10184 = vmatprep.subr.mxu0 0.0
      %10185 = vmatpush1.xpose.msra.mxu0 0.0
      %10186 = vmatprep.subr.mxu0 0.0
      %10187 = vmatpush1.xpose.msra.mxu0 0.0
      %10188 = vmatprep.subr.mxu0 0.0
      %10189 = vmatpush1.xpose.msra.mxu0 0.0
      %10190 = vmatprep.subr.mxu0 0.0
      %10191 = vmatpush1.xpose.msra.mxu0 0.0
      %10192 = vmatprep.mubr.f32.mxu0 0.0
      %10193 = vmatmul.mubr.f32.gmra.mrb[0].mxu0 %v10120
      %v10194 = vpop.f32.mrb[0].mxu0
      %v10195 = vadd.f32 0.0, %v10194
      %v10196 = vpop.f32.mrb[0].mxu0
      %10197 = vmatprep.mubr.f32.mxu0 0.0
      %10198 = vmatmul.mubr.f32.gmra.mrb[0].mxu0 %v10122
      %v10199 = vpop.f32.mrb[0].mxu0
      %v10200 = vadd.f32 0.0, %v10199
      %v10201 = vpop.f32.mrb[0].mxu0
      %10202 = vdwg.mxu0
      %10205 = vrot.lane.b32.xlu0 %v8581, 124
      %v10206 = vpop.permute.xlu0 %10205
      %10207 = vrot.lane.b32.xlu0 %v8582, 124
      %v10208 = vpop.permute.xlu0 %10207
      %10211 = vrot.lane.b32.xlu0 %v8869, 116
      %v10212 = vpop.permute.xlu0 %10211
      %10213 = vrot.lane.b32.xlu0 %v8870, 116
      %v10214 = vpop.permute.xlu0 %10213
      %v10215 = vsel %vm4518, %v10206, 0
      %v10217 = vsel %vm4518, %v10208, 0
      %v10219 = vsel %vm4518, %v10212, 0
      %v10221 = vsel %vm4518, %v10214, 0
      %10223 = vmatprep.subr.mxu0 0.0
      %10224 = vmatpush1.xpose.msra.mxu0 %v10219
      %10225 = vmatprep.subr.mxu0 0.0
      %10226 = vmatpush1.xpose.msra.mxu0 %v10221
      %10227 = vmatprep.subr.mxu0 0.0
      %10228 = vmatpush1.xpose.msra.mxu0 0.0
      %10229 = vmatprep.subr.mxu0 0.0
      %10230 = vmatpush1.xpose.msra.mxu0 0.0
      %10231 = vmatprep.subr.mxu0 0.0
      %10232 = vmatpush1.xpose.msra.mxu0 0.0
      %10233 = vmatprep.subr.mxu0 0.0
      %10234 = vmatpush1.xpose.msra.mxu0 0.0
      %10235 = vmatprep.subr.mxu0 0.0
      %10236 = vmatpush1.xpose.msra.mxu0 0.0
      %10237 = vmatprep.subr.mxu0 0.0
      %10238 = vmatpush1.xpose.msra.mxu0 0.0
      %10239 = vmatprep.subr.mxu0 0.0
      %10240 = vmatpush1.xpose.msra.mxu0 0.0
      %10241 = vmatprep.subr.mxu0 0.0
      %10242 = vmatpush1.xpose.msra.mxu0 0.0
      %10243 = vmatprep.subr.mxu0 0.0
      %10244 = vmatpush1.xpose.msra.mxu0 0.0
      %10245 = vmatprep.subr.mxu0 0.0
      %10246 = vmatpush1.xpose.msra.mxu0 0.0
      %10247 = vmatprep.subr.mxu0 0.0
      %10248 = vmatpush1.xpose.msra.mxu0 0.0
      %10249 = vmatprep.subr.mxu0 0.0
      %10250 = vmatpush1.xpose.msra.mxu0 0.0
      %10251 = vmatprep.subr.mxu0 0.0
      %10252 = vmatpush1.xpose.msra.mxu0 0.0
      %10253 = vmatprep.subr.mxu0 0.0
      %10254 = vmatpush1.xpose.msra.mxu0 0.0
      %10255 = vmatprep.subr.mxu0 0.0
      %10256 = vmatpush1.xpose.msra.mxu0 0.0
      %10257 = vmatprep.subr.mxu0 0.0
      %10258 = vmatpush1.xpose.msra.mxu0 0.0
      %10259 = vmatprep.subr.mxu0 0.0
      %10260 = vmatpush1.xpose.msra.mxu0 0.0
      %10261 = vmatprep.subr.mxu0 0.0
      %10262 = vmatpush1.xpose.msra.mxu0 0.0
      %10263 = vmatprep.subr.mxu0 0.0
      %10264 = vmatpush1.xpose.msra.mxu0 0.0
      %10265 = vmatprep.subr.mxu0 0.0
      %10266 = vmatpush1.xpose.msra.mxu0 0.0
      %10267 = vmatprep.subr.mxu0 0.0
      %10268 = vmatpush1.xpose.msra.mxu0 0.0
      %10269 = vmatprep.subr.mxu0 0.0
      %10270 = vmatpush1.xpose.msra.mxu0 0.0
      %10271 = vmatprep.subr.mxu0 0.0
      %10272 = vmatpush1.xpose.msra.mxu0 0.0
      %10273 = vmatprep.subr.mxu0 0.0
      %10274 = vmatpush1.xpose.msra.mxu0 0.0
      %10275 = vmatprep.subr.mxu0 0.0
      %10276 = vmatpush1.xpose.msra.mxu0 0.0
      %10277 = vmatprep.subr.mxu0 0.0
      %10278 = vmatpush1.xpose.msra.mxu0 0.0
      %10279 = vmatprep.subr.mxu0 0.0
      %10280 = vmatpush1.xpose.msra.mxu0 0.0
      %10281 = vmatprep.subr.mxu0 0.0
      %10282 = vmatpush1.xpose.msra.mxu0 0.0
      %10283 = vmatprep.subr.mxu0 0.0
      %10284 = vmatpush1.xpose.msra.mxu0 0.0
      %10285 = vmatprep.subr.mxu0 0.0
      %10286 = vmatpush1.xpose.msra.mxu0 0.0
      %10287 = vmatprep.mubr.f32.mxu0 0.0
      %10288 = vmatmul.mubr.f32.gmra.mrb[0].mxu0 %v10215
      %v10289 = vpop.f32.mrb[0].mxu0
      %v10290 = vadd.f32 0.0, %v10289
      %v10291 = vpop.f32.mrb[0].mxu0
      %10292 = vmatprep.mubr.f32.mxu0 0.0
      %10293 = vmatmul.mubr.f32.gmra.mrb[0].mxu0 %v10217
      %v10294 = vpop.f32.mrb[0].mxu0
      %v10295 = vadd.f32 0.0, %v10294
      %v10296 = vpop.f32.mrb[0].mxu0
      %10297 = vdwg.mxu0
      %10300 = vrot.lane.b32.xlu0 %v8583, 124
      %v10301 = vpop.permute.xlu0 %10300
      %10302 = vrot.lane.b32.xlu0 %v8584, 124
      %v10303 = vpop.permute.xlu0 %10302
      %10306 = vrot.lane.b32.xlu0 %v8871, 116
      %v10307 = vpop.permute.xlu0 %10306
      %10308 = vrot.lane.b32.xlu0 %v8872, 116
      %v10309 = vpop.permute.xlu0 %10308
      %v10310 = vsel %vm4518, %v10301, 0
      %v10312 = vsel %vm4518, %v10303, 0
      %v10314 = vsel %vm4518, %v10307, 0
      %v10316 = vsel %vm4518, %v10309, 0
      %10318 = vmatprep.subr.mxu0 0.0
      %10319 = vmatpush1.xpose.msra.mxu0 %v10314
      %10320 = vmatprep.subr.mxu0 0.0
      %10321 = vmatpush1.xpose.msra.mxu0 %v10316
      %10322 = vmatprep.subr.mxu0 0.0
      %10323 = vmatpush1.xpose.msra.mxu0 0.0
      %10324 = vmatprep.subr.mxu0 0.0
      %10325 = vmatpush1.xpose.msra.mxu0 0.0
      %10326 = vmatprep.subr.mxu0 0.0
      %10327 = vmatpush1.xpose.msra.mxu0 0.0
      %10328 = vmatprep.subr.mxu0 0.0
      %10329 = vmatpush1.xpose.msra.mxu0 0.0
      %10330 = vmatprep.subr.mxu0 0.0
      %10331 = vmatpush1.xpose.msra.mxu0 0.0
      %10332 = vmatprep.subr.mxu0 0.0
      %10333 = vmatpush1.xpose.msra.mxu0 0.0
      %10334 = vmatprep.subr.mxu0 0.0
      %10335 = vmatpush1.xpose.msra.mxu0 0.0
      %10336 = vmatprep.subr.mxu0 0.0
      %10337 = vmatpush1.xpose.msra.mxu0 0.0
      %10338 = vmatprep.subr.mxu0 0.0
      %10339 = vmatpush1.xpose.msra.mxu0 0.0
      %10340 = vmatprep.subr.mxu0 0.0
      %10341 = vmatpush1.xpose.msra.mxu0 0.0
      %10342 = vmatprep.subr.mxu0 0.0
      %10343 = vmatpush1.xpose.msra.mxu0 0.0
      %10344 = vmatprep.subr.mxu0 0.0
      %10345 = vmatpush1.xpose.msra.mxu0 0.0
      %10346 = vmatprep.subr.mxu0 0.0
      %10347 = vmatpush1.xpose.msra.mxu0 0.0
      %10348 = vmatprep.subr.mxu0 0.0
      %10349 = vmatpush1.xpose.msra.mxu0 0.0
      %10350 = vmatprep.subr.mxu0 0.0
      %10351 = vmatpush1.xpose.msra.mxu0 0.0
      %10352 = vmatprep.subr.mxu0 0.0
      %10353 = vmatpush1.xpose.msra.mxu0 0.0
      %10354 = vmatprep.subr.mxu0 0.0
      %10355 = vmatpush1.xpose.msra.mxu0 0.0
      %10356 = vmatprep.subr.mxu0 0.0
      %10357 = vmatpush1.xpose.msra.mxu0 0.0
      %10358 = vmatprep.subr.mxu0 0.0
      %10359 = vmatpush1.xpose.msra.mxu0 0.0
      %10360 = vmatprep.subr.mxu0 0.0
      %10361 = vmatpush1.xpose.msra.mxu0 0.0
      %10362 = vmatprep.subr.mxu0 0.0
      %10363 = vmatpush1.xpose.msra.mxu0 0.0
      %10364 = vmatprep.subr.mxu0 0.0
      %10365 = vmatpush1.xpose.msra.mxu0 0.0
      %10366 = vmatprep.subr.mxu0 0.0
      %10367 = vmatpush1.xpose.msra.mxu0 0.0
      %10368 = vmatprep.subr.mxu0 0.0
      %10369 = vmatpush1.xpose.msra.mxu0 0.0
      %10370 = vmatprep.subr.mxu0 0.0
      %10371 = vmatpush1.xpose.msra.mxu0 0.0
      %10372 = vmatprep.subr.mxu0 0.0
      %10373 = vmatpush1.xpose.msra.mxu0 0.0
      %10374 = vmatprep.subr.mxu0 0.0
      %10375 = vmatpush1.xpose.msra.mxu0 0.0
      %10376 = vmatprep.subr.mxu0 0.0
      %10377 = vmatpush1.xpose.msra.mxu0 0.0
      %10378 = vmatprep.subr.mxu0 0.0
      %10379 = vmatpush1.xpose.msra.mxu0 0.0
      %10380 = vmatprep.subr.mxu0 0.0
      %10381 = vmatpush1.xpose.msra.mxu0 0.0
      %10382 = vmatprep.mubr.f32.mxu0 0.0
      %10383 = vmatmul.mubr.f32.gmra.mrb[0].mxu0 %v10310
      %v10384 = vpop.f32.mrb[0].mxu0
      %v10385 = vadd.f32 0.0, %v10384
      %v10386 = vpop.f32.mrb[0].mxu0
      %10387 = vmatprep.mubr.f32.mxu0 0.0
      %10388 = vmatmul.mubr.f32.gmra.mrb[0].mxu0 %v10312
      %v10389 = vpop.f32.mrb[0].mxu0
      %v10390 = vadd.f32 0.0, %v10389
      %v10391 = vpop.f32.mrb[0].mxu0
      %10392 = vdwg.mxu0
      %v10393 = vmul.f32 %v8960, %v6487
      %v10394 = vmul.f32 %v8965, %v6487
      %v10395 = vmul.f32 %v9055, %v6487
      %v10396 = vmul.f32 %v9060, %v6487
      %v10397 = vmul.f32 %v9150, %v6487
      %v10398 = vmul.f32 %v9155, %v6487
      %v10399 = vmul.f32 %v9245, %v6487
      %v10400 = vmul.f32 %v9250, %v6487
      %v10401 = vmul.f32 %v9340, %v6487
      %v10402 = vmul.f32 %v9345, %v6487
      %v10403 = vmul.f32 %v9435, %v6487
      %v10404 = vmul.f32 %v9440, %v6487
      %v10405 = vmul.f32 %v9530, %v6487
      %v10406 = vmul.f32 %v9535, %v6487
      %v10407 = vmul.f32 %v9625, %v6487
      %v10408 = vmul.f32 %v9630, %v6487
      %v10409 = vmul.f32 %v9720, %v6487
      %v10410 = vmul.f32 %v9725, %v6487
      %v10411 = vmul.f32 %v9815, %v6487
      %v10412 = vmul.f32 %v9820, %v6487
      %v10413 = vmul.f32 %v9910, %v6487
      %v10414 = vmul.f32 %v9915, %v6487
      %v10415 = vmul.f32 %v10005, %v6487
      %v10416 = vmul.f32 %v10010, %v6487
      %v10417 = vmul.f32 %v10100, %v6487
      %v10418 = vmul.f32 %v10105, %v6487
      %v10419 = vmul.f32 %v10195, %v6487
      %v10420 = vmul.f32 %v10200, %v6487
      %v10421 = vmul.f32 %v10290, %v6487
      %v10422 = vmul.f32 %v10295, %v6487
      %v10423 = vmul.f32 %v10385, %v6487
      %v10424 = vmul.f32 %v10390, %v6487
      %v10425 = vsel %vm6520, %v10393, -inf
      %10426 = vmax.xlane.f32.xlu0 %v10425
      %v10427 = vpop.xlane.xlu0 %10426
      %v10428 = vsel %vm6520, %v10394, -inf
      %10429 = vmax.xlane.f32.xlu0 %v10428
      %v10430 = vpop.xlane.xlu0 %10429
      %v10431 = vsel %vm6520, %v10395, -inf
      %10432 = vmax.xlane.f32.xlu0 %v10431
      %v10433 = vpop.xlane.xlu0 %10432
      %v10434 = vsel %vm6520, %v10396, -inf
      %10435 = vmax.xlane.f32.xlu0 %v10434
      %v10436 = vpop.xlane.xlu0 %10435
      %v10437 = vsel %vm6520, %v10397, -inf
      %10438 = vmax.xlane.f32.xlu0 %v10437
      %v10439 = vpop.xlane.xlu0 %10438
      %v10440 = vsel %vm6520, %v10398, -inf
      %10441 = vmax.xlane.f32.xlu0 %v10440
      %v10442 = vpop.xlane.xlu0 %10441
      %v10443 = vsel %vm6520, %v10399, -inf
      %10444 = vmax.xlane.f32.xlu0 %v10443
      %v10445 = vpop.xlane.xlu0 %10444
      %v10446 = vsel %vm6520, %v10400, -inf
      %10447 = vmax.xlane.f32.xlu0 %v10446
      %v10448 = vpop.xlane.xlu0 %10447
      %v10449 = vsel %vm6520, %v10401, -inf
      %10450 = vmax.xlane.f32.xlu0 %v10449
      %v10451 = vpop.xlane.xlu0 %10450
      %v10452 = vsel %vm6520, %v10402, -inf
      %10453 = vmax.xlane.f32.xlu0 %v10452
      %v10454 = vpop.xlane.xlu0 %10453
      %v10455 = vsel %vm6520, %v10403, -inf
      %10456 = vmax.xlane.f32.xlu0 %v10455
      %v10457 = vpop.xlane.xlu0 %10456
      %v10458 = vsel %vm6520, %v10404, -inf
      %10459 = vmax.xlane.f32.xlu0 %v10458
      %v10460 = vpop.xlane.xlu0 %10459
      %v10461 = vsel %vm6520, %v10405, -inf
      %10462 = vmax.xlane.f32.xlu0 %v10461
      %v10463 = vpop.xlane.xlu0 %10462
      %v10464 = vsel %vm6520, %v10406, -inf
      %10465 = vmax.xlane.f32.xlu0 %v10464
      %v10466 = vpop.xlane.xlu0 %10465
      %v10467 = vsel %vm6520, %v10407, -inf
      %10468 = vmax.xlane.f32.xlu0 %v10467
      %v10469 = vpop.xlane.xlu0 %10468
      %v10470 = vsel %vm6520, %v10408, -inf
      %10471 = vmax.xlane.f32.xlu0 %v10470
      %v10472 = vpop.xlane.xlu0 %10471
      %v10473 = vsel %vm6520, %v10409, -inf
      %10474 = vmax.xlane.f32.xlu0 %v10473
      %v10475 = vpop.xlane.xlu0 %10474
      %v10476 = vsel %vm6520, %v10410, -inf
      %10477 = vmax.xlane.f32.xlu0 %v10476
      %v10478 = vpop.xlane.xlu0 %10477
      %v10479 = vsel %vm6520, %v10411, -inf
      %10480 = vmax.xlane.f32.xlu0 %v10479
      %v10481 = vpop.xlane.xlu0 %10480
      %v10482 = vsel %vm6520, %v10412, -inf
      %10483 = vmax.xlane.f32.xlu0 %v10482
      %v10484 = vpop.xlane.xlu0 %10483
      %v10485 = vsel %vm6520, %v10413, -inf
      %10486 = vmax.xlane.f32.xlu0 %v10485
      %v10487 = vpop.xlane.xlu0 %10486
      %v10488 = vsel %vm6520, %v10414, -inf
      %10489 = vmax.xlane.f32.xlu0 %v10488
      %v10490 = vpop.xlane.xlu0 %10489
      %v10491 = vsel %vm6520, %v10415, -inf
      %10492 = vmax.xlane.f32.xlu0 %v10491
      %v10493 = vpop.xlane.xlu0 %10492
      %v10494 = vsel %vm6520, %v10416, -inf
      %10495 = vmax.xlane.f32.xlu0 %v10494
      %v10496 = vpop.xlane.xlu0 %10495
      %v10497 = vsel %vm6520, %v10417, -inf
      %10498 = vmax.xlane.f32.xlu0 %v10497
      %v10499 = vpop.xlane.xlu0 %10498
      %v10500 = vsel %vm6520, %v10418, -inf
      %10501 = vmax.xlane.f32.xlu0 %v10500
      %v10502 = vpop.xlane.xlu0 %10501
      %v10503 = vsel %vm6520, %v10419, -inf
      %10504 = vmax.xlane.f32.xlu0 %v10503
      %v10505 = vpop.xlane.xlu0 %10504
      %v10506 = vsel %vm6520, %v10420, -inf
      %10507 = vmax.xlane.f32.xlu0 %v10506
      %v10508 = vpop.xlane.xlu0 %10507
      %v10509 = vsel %vm6520, %v10421, -inf
      %10510 = vmax.xlane.f32.xlu0 %v10509
      %v10511 = vpop.xlane.xlu0 %10510
      %v10512 = vsel %vm6520, %v10422, -inf
      %10513 = vmax.xlane.f32.xlu0 %v10512
      %v10514 = vpop.xlane.xlu0 %10513
      %v10515 = vsel %vm6520, %v10423, -inf
      %10516 = vmax.xlane.f32.xlu0 %v10515
      %v10517 = vpop.xlane.xlu0 %10516
      %v10518 = vsel %vm6520, %v10424, -inf
      %10519 = vmax.xlane.f32.xlu0 %v10518
      %v10520 = vpop.xlane.xlu0 %10519
      %v10521 = vsub.f32 %v10393, %v10427
      %v10522 = vsub.f32 %v10394, %v10430
      %v10523 = vsub.f32 %v10395, %v10433
      %v10524 = vsub.f32 %v10396, %v10436
      %v10525 = vsub.f32 %v10397, %v10439
      %v10526 = vsub.f32 %v10398, %v10442
      %v10527 = vsub.f32 %v10399, %v10445
      %v10528 = vsub.f32 %v10400, %v10448
      %v10529 = vsub.f32 %v10401, %v10451
      %v10530 = vsub.f32 %v10402, %v10454
      %v10531 = vsub.f32 %v10403, %v10457
      %v10532 = vsub.f32 %v10404, %v10460
      %v10533 = vsub.f32 %v10405, %v10463
      %v10534 = vsub.f32 %v10406, %v10466
      %v10535 = vsub.f32 %v10407, %v10469
      %v10536 = vsub.f32 %v10408, %v10472
      %v10537 = vsub.f32 %v10409, %v10475
      %v10538 = vsub.f32 %v10410, %v10478
      %v10539 = vsub.f32 %v10411, %v10481
      %v10540 = vsub.f32 %v10412, %v10484
      %v10541 = vsub.f32 %v10413, %v10487
      %v10542 = vsub.f32 %v10414, %v10490
      %v10543 = vsub.f32 %v10415, %v10493
      %v10544 = vsub.f32 %v10416, %v10496
      %v10545 = vsub.f32 %v10417, %v10499
      %v10546 = vsub.f32 %v10418, %v10502
      %v10547 = vsub.f32 %v10419, %v10505
      %v10548 = vsub.f32 %v10420, %v10508
      %v10549 = vsub.f32 %v10421, %v10511
      %v10550 = vsub.f32 %v10422, %v10514
      %v10551 = vsub.f32 %v10423, %v10517
      %v10552 = vsub.f32 %v10424, %v10520
      %v10553 = vmul.f32 %v10521, 1.442695
      %v10554 = vpow.pop %v10553
      %v10555 = vmul.f32 %v10522, 1.442695
      %v10556 = vpow.pop %v10555
      %v10557 = vmul.f32 %v10523, 1.442695
      %v10558 = vpow.pop %v10557
      %v10559 = vmul.f32 %v10524, 1.442695
      %v10560 = vpow.pop %v10559
      %v10561 = vmul.f32 %v10525, 1.442695
      %v10562 = vpow.pop %v10561
      %v10563 = vmul.f32 %v10526, 1.442695
      %v10564 = vpow.pop %v10563
      %v10565 = vmul.f32 %v10527, 1.442695
      %v10566 = vpow.pop %v10565
      %v10567 = vmul.f32 %v10528, 1.442695
      %v10568 = vpow.pop %v10567
      %v10569 = vmul.f32 %v10529, 1.442695
      %v10570 = vpow.pop %v10569
      %v10571 = vmul.f32 %v10530, 1.442695
      %v10572 = vpow.pop %v10571
      %v10573 = vmul.f32 %v10531, 1.442695
      %v10574 = vpow.pop %v10573
      %v10575 = vmul.f32 %v10532, 1.442695
      %v10576 = vpow.pop %v10575
      %v10577 = vmul.f32 %v10533, 1.442695
      %v10578 = vpow.pop %v10577
      %v10579 = vmul.f32 %v10534, 1.442695
      %v10580 = vpow.pop %v10579
      %v10581 = vmul.f32 %v10535, 1.442695
      %v10582 = vpow.pop %v10581
      %v10583 = vmul.f32 %v10536, 1.442695
      %v10584 = vpow.pop %v10583
      %v10585 = vmul.f32 %v10537, 1.442695
      %v10586 = vpow.pop %v10585
      %v10587 = vmul.f32 %v10538, 1.442695
      %v10588 = vpow.pop %v10587
      %v10589 = vmul.f32 %v10539, 1.442695
      %v10590 = vpow.pop %v10589
      %v10591 = vmul.f32 %v10540, 1.442695
      %v10592 = vpow.pop %v10591
      %v10593 = vmul.f32 %v10541, 1.442695
      %v10594 = vpow.pop %v10593
      %v10595 = vmul.f32 %v10542, 1.442695
      %v10596 = vpow.pop %v10595
      %v10597 = vmul.f32 %v10543, 1.442695
      %v10598 = vpow.pop %v10597
      %v10599 = vmul.f32 %v10544, 1.442695
      %v10600 = vpow.pop %v10599
      %v10601 = vmul.f32 %v10545, 1.442695
      %v10602 = vpow.pop %v10601
      %v10603 = vmul.f32 %v10546, 1.442695
      %v10604 = vpow.pop %v10603
      %v10605 = vmul.f32 %v10547, 1.442695
      %v10606 = vpow.pop %v10605
      %v10607 = vmul.f32 %v10548, 1.442695
      %v10608 = vpow.pop %v10607
      %v10609 = vmul.f32 %v10549, 1.442695
      %v10610 = vpow.pop %v10609
      %v10611 = vmul.f32 %v10550, 1.442695
      %v10612 = vpow.pop %v10611
      %v10613 = vmul.f32 %v10551, 1.442695
      %v10614 = vpow.pop %v10613
      %v10615 = vmul.f32 %v10552, 1.442695
      %v10616 = vpow.pop %v10615
      %v10617 = vsel %vm6520, %v10554, 0.0
      %10618 = vadd.xlane.f32.xlu0 %v10617
      %v10619 = vpop.xlane.xlu0 %10618
      %v10620 = vsel %vm6520, %v10556, 0.0
      %10621 = vadd.xlane.f32.xlu0 %v10620
      %v10622 = vpop.xlane.xlu0 %10621
      %v10623 = vsel %vm6520, %v10558, 0.0
      %10624 = vadd.xlane.f32.xlu0 %v10623
      %v10625 = vpop.xlane.xlu0 %10624
      %v10626 = vsel %vm6520, %v10560, 0.0
      %10627 = vadd.xlane.f32.xlu0 %v10626
      %v10628 = vpop.xlane.xlu0 %10627
      %v10629 = vsel %vm6520, %v10562, 0.0
      %10630 = vadd.xlane.f32.xlu0 %v10629
      %v10631 = vpop.xlane.xlu0 %10630
      %v10632 = vsel %vm6520, %v10564, 0.0
      %10633 = vadd.xlane.f32.xlu0 %v10632
      %v10634 = vpop.xlane.xlu0 %10633
      %v10635 = vsel %vm6520, %v10566, 0.0
      %10636 = vadd.xlane.f32.xlu0 %v10635
      %v10637 = vpop.xlane.xlu0 %10636
      %v10638 = vsel %vm6520, %v10568, 0.0
      %10639 = vadd.xlane.f32.xlu0 %v10638
      %v10640 = vpop.xlane.xlu0 %10639
      %v10641 = vsel %vm6520, %v10570, 0.0
      %10642 = vadd.xlane.f32.xlu0 %v10641
      %v10643 = vpop.xlane.xlu0 %10642
      %v10644 = vsel %vm6520, %v10572, 0.0
      %10645 = vadd.xlane.f32.xlu0 %v10644
      %v10646 = vpop.xlane.xlu0 %10645
      %v10647 = vsel %vm6520, %v10574, 0.0
      %10648 = vadd.xlane.f32.xlu0 %v10647
      %v10649 = vpop.xlane.xlu0 %10648
      %v10650 = vsel %vm6520, %v10576, 0.0
      %10651 = vadd.xlane.f32.xlu0 %v10650
      %v10652 = vpop.xlane.xlu0 %10651
      %v10653 = vsel %vm6520, %v10578, 0.0
      %10654 = vadd.xlane.f32.xlu0 %v10653
      %v10655 = vpop.xlane.xlu0 %10654
      %v10656 = vsel %vm6520, %v10580, 0.0
      %10657 = vadd.xlane.f32.xlu0 %v10656
      %v10658 = vpop.xlane.xlu0 %10657
      %v10659 = vsel %vm6520, %v10582, 0.0
      %10660 = vadd.xlane.f32.xlu0 %v10659
      %v10661 = vpop.xlane.xlu0 %10660
      %v10662 = vsel %vm6520, %v10584, 0.0
      %10663 = vadd.xlane.f32.xlu0 %v10662
      %v10664 = vpop.xlane.xlu0 %10663
      %v10665 = vsel %vm6520, %v10586, 0.0
      %10666 = vadd.xlane.f32.xlu0 %v10665
      %v10667 = vpop.xlane.xlu0 %10666
      %v10668 = vsel %vm6520, %v10588, 0.0
      %10669 = vadd.xlane.f32.xlu0 %v10668
      %v10670 = vpop.xlane.xlu0 %10669
      %v10671 = vsel %vm6520, %v10590, 0.0
      %10672 = vadd.xlane.f32.xlu0 %v10671
      %v10673 = vpop.xlane.xlu0 %10672
      %v10674 = vsel %vm6520, %v10592, 0.0
      %10675 = vadd.xlane.f32.xlu0 %v10674
      %v10676 = vpop.xlane.xlu0 %10675
      %v10677 = vsel %vm6520, %v10594, 0.0
      %10678 = vadd.xlane.f32.xlu0 %v10677
      %v10679 = vpop.xlane.xlu0 %10678
      %v10680 = vsel %vm6520, %v10596, 0.0
      %10681 = vadd.xlane.f32.xlu0 %v10680
      %v10682 = vpop.xlane.xlu0 %10681
      %v10683 = vsel %vm6520, %v10598, 0.0
      %10684 = vadd.xlane.f32.xlu0 %v10683
      %v10685 = vpop.xlane.xlu0 %10684
      %v10686 = vsel %vm6520, %v10600, 0.0
      %10687 = vadd.xlane.f32.xlu0 %v10686
      %v10688 = vpop.xlane.xlu0 %10687
      %v10689 = vsel %vm6520, %v10602, 0.0
      %10690 = vadd.xlane.f32.xlu0 %v10689
      %v10691 = vpop.xlane.xlu0 %10690
      %v10692 = vsel %vm6520, %v10604, 0.0
      %10693 = vadd.xlane.f32.xlu0 %v10692
      %v10694 = vpop.xlane.xlu0 %10693
      %v10695 = vsel %vm6520, %v10606, 0.0
      %10696 = vadd.xlane.f32.xlu0 %v10695
      %v10697 = vpop.xlane.xlu0 %10696
      %v10698 = vsel %vm6520, %v10608, 0.0
      %10699 = vadd.xlane.f32.xlu0 %v10698
      %v10700 = vpop.xlane.xlu0 %10699
      %v10701 = vsel %vm6520, %v10610, 0.0
      %10702 = vadd.xlane.f32.xlu0 %v10701
      %v10703 = vpop.xlane.xlu0 %10702
      %v10704 = vsel %vm6520, %v10612, 0.0
      %10705 = vadd.xlane.f32.xlu0 %v10704
      %v10706 = vpop.xlane.xlu0 %10705
      %v10707 = vsel %vm6520, %v10614, 0.0
      %10708 = vadd.xlane.f32.xlu0 %v10707
      %v10709 = vpop.xlane.xlu0 %10708
      %v10710 = vsel %vm6520, %v10616, 0.0
      %10711 = vadd.xlane.f32.xlu0 %v10710
      %v10712 = vpop.xlane.xlu0 %10711
      %v10713 = vrcp.pop %v10619
      %v10714 = vrcp.pop %v10622
      %v10715 = vrcp.pop %v10625
      %v10716 = vrcp.pop %v10628
      %v10717 = vrcp.pop %v10631
      %v10718 = vrcp.pop %v10634
      %v10719 = vrcp.pop %v10637
      %v10720 = vrcp.pop %v10640
      %v10721 = vrcp.pop %v10643
      %v10722 = vrcp.pop %v10646
      %v10723 = vrcp.pop %v10649
      %v10724 = vrcp.pop %v10652
      %v10725 = vrcp.pop %v10655
      %v10726 = vrcp.pop %v10658
      %v10727 = vrcp.pop %v10661
      %v10728 = vrcp.pop %v10664
      %v10729 = vrcp.pop %v10667
      %v10730 = vrcp.pop %v10670
      %v10731 = vrcp.pop %v10673
      %v10732 = vrcp.pop %v10676
      %v10733 = vrcp.pop %v10679
      %v10734 = vrcp.pop %v10682
      %v10735 = vrcp.pop %v10685
      %v10736 = vrcp.pop %v10688
      %v10737 = vrcp.pop %v10691
      %v10738 = vrcp.pop %v10694
      %v10739 = vrcp.pop %v10697
      %v10740 = vrcp.pop %v10700
      %v10741 = vrcp.pop %v10703
      %v10742 = vrcp.pop %v10706
      %v10743 = vrcp.pop %v10709
      %v10744 = vrcp.pop %v10712
      %v10745 = vmul.f32 %v10554, %v10713
      %v10746 = vmul.f32 %v10556, %v10714
      %v10747 = vmul.f32 %v10558, %v10715
      %v10748 = vmul.f32 %v10560, %v10716
      %v10749 = vmul.f32 %v10562, %v10717
      %v10750 = vmul.f32 %v10564, %v10718
      %v10751 = vmul.f32 %v10566, %v10719
      %v10752 = vmul.f32 %v10568, %v10720
      %v10753 = vmul.f32 %v10570, %v10721
      %v10754 = vmul.f32 %v10572, %v10722
      %v10755 = vmul.f32 %v10574, %v10723
      %v10756 = vmul.f32 %v10576, %v10724
      %v10757 = vmul.f32 %v10578, %v10725
      %v10758 = vmul.f32 %v10580, %v10726
      %v10759 = vmul.f32 %v10582, %v10727
      %v10760 = vmul.f32 %v10584, %v10728
      %v10761 = vmul.f32 %v10586, %v10729
      %v10762 = vmul.f32 %v10588, %v10730
      %v10763 = vmul.f32 %v10590, %v10731
      %v10764 = vmul.f32 %v10592, %v10732
      %v10765 = vmul.f32 %v10594, %v10733
      %v10766 = vmul.f32 %v10596, %v10734
      %v10767 = vmul.f32 %v10598, %v10735
      %v10768 = vmul.f32 %v10600, %v10736
      %v10769 = vmul.f32 %v10602, %v10737
      %v10770 = vmul.f32 %v10604, %v10738
      %v10771 = vmul.f32 %v10606, %v10739
      %v10772 = vmul.f32 %v10608, %v10740
      %v10773 = vmul.f32 %v10610, %v10741
      %v10774 = vmul.f32 %v10612, %v10742
      %v10775 = vmul.f32 %v10614, %v10743
      %v10776 = vmul.f32 %v10616, %v10744
      %10777 = vrot.lane.b32.xlu0 %v4453, 108
      %v10778 = vpop.permute.xlu0 %10777
      %10779 = vrot.lane.b32.xlu0 %v4454, 108
      %v10780 = vpop.permute.xlu0 %10779
      %v10784 = vsel %vm6520, %v10745, 0
      %v10787 = vsel %vm6520, %v10746, 0
      %10789 = vmatprep.subr.mxu0 0.0
      %10790 = vmatpush1.msra.mxu0 %v10778
      %10791 = vmatprep.subr.mxu0 0.0
      %10792 = vmatpush1.msra.mxu0 %v10780
      %10793 = vmatprep.subr.mxu0 0.0
      %10794 = vmatpush1.msra.mxu0 0.0
      %10795 = vmatprep.subr.mxu0 0.0
      %10796 = vmatpush1.msra.mxu0 0.0
      %10797 = vmatprep.subr.mxu0 0.0
      %10798 = vmatpush1.msra.mxu0 0.0
      %10799 = vmatprep.subr.mxu0 0.0
      %10800 = vmatpush1.msra.mxu0 0.0
      %10801 = vmatprep.subr.mxu0 0.0
      %10802 = vmatpush1.msra.mxu0 0.0
      %10803 = vmatprep.subr.mxu0 0.0
      %10804 = vmatpush1.msra.mxu0 0.0
      %10805 = vmatprep.subr.mxu0 0.0
      %10806 = vmatpush1.msra.mxu0 0.0
      %10807 = vmatprep.subr.mxu0 0.0
      %10808 = vmatpush1.msra.mxu0 0.0
      %10809 = vmatprep.subr.mxu0 0.0
      %10810 = vmatpush1.msra.mxu0 0.0
      %10811 = vmatprep.subr.mxu0 0.0
      %10812 = vmatpush1.msra.mxu0 0.0
      %10813 = vmatprep.subr.mxu0 0.0
      %10814 = vmatpush1.msra.mxu0 0.0
      %10815 = vmatprep.subr.mxu0 0.0
      %10816 = vmatpush1.msra.mxu0 0.0
      %10817 = vmatprep.subr.mxu0 0.0
      %10818 = vmatpush1.msra.mxu0 0.0
      %10819 = vmatprep.subr.mxu0 0.0
      %10820 = vmatpush1.msra.mxu0 0.0
      %10821 = vmatprep.subr.mxu0 0.0
      %10822 = vmatpush1.msra.mxu0 0.0
      %10823 = vmatprep.subr.mxu0 0.0
      %10824 = vmatpush1.msra.mxu0 0.0
      %10825 = vmatprep.subr.mxu0 0.0
      %10826 = vmatpush1.msra.mxu0 0.0
      %10827 = vmatprep.subr.mxu0 0.0
      %10828 = vmatpush1.msra.mxu0 0.0
      %10829 = vmatprep.subr.mxu0 0.0
      %10830 = vmatpush1.msra.mxu0 0.0
      %10831 = vmatprep.subr.mxu0 0.0
      %10832 = vmatpush1.msra.mxu0 0.0
      %10833 = vmatprep.subr.mxu0 0.0
      %10834 = vmatpush1.msra.mxu0 0.0
      %10835 = vmatprep.subr.mxu0 0.0
      %10836 = vmatpush1.msra.mxu0 0.0
      %10837 = vmatprep.subr.mxu0 0.0
      %10838 = vmatpush1.msra.mxu0 0.0
      %10839 = vmatprep.subr.mxu0 0.0
      %10840 = vmatpush1.msra.mxu0 0.0
      %10841 = vmatprep.subr.mxu0 0.0
      %10842 = vmatpush1.msra.mxu0 0.0
      %10843 = vmatprep.subr.mxu0 0.0
      %10844 = vmatpush1.msra.mxu0 0.0
      %10845 = vmatprep.subr.mxu0 0.0
      %10846 = vmatpush1.msra.mxu0 0.0
      %10847 = vmatprep.subr.mxu0 0.0
      %10848 = vmatpush1.msra.mxu0 0.0
      %10849 = vmatprep.subr.mxu0 0.0
      %10850 = vmatpush1.msra.mxu0 0.0
      %10851 = vmatprep.subr.mxu0 0.0
      %10852 = vmatpush1.msra.mxu0 0.0
      %10853 = vmatprep.mubr.f32.mxu0 0.0
      %10854 = vmatmul.mubr.f32.gmra.mrb[0].mxu0 %v10784
      %v10855 = vpop.f32.mrb[0].mxu0
      %v10856 = vadd.f32 0.0, %v10855
      %v10857 = vpop.f32.mrb[0].mxu0
      %10858 = vmatprep.mubr.f32.mxu0 0.0
      %10859 = vmatmul.mubr.f32.gmra.mrb[0].mxu0 %v10787
      %v10860 = vpop.f32.mrb[0].mxu0
      %v10861 = vadd.f32 0.0, %v10860
      %v10862 = vpop.f32.mrb[0].mxu0
      %10863 = vdwg.mxu0
      %10864 = vrot.lane.b32.xlu0 %v4455, 108
      %v10865 = vpop.permute.xlu0 %10864
      %10866 = vrot.lane.b32.xlu0 %v4456, 108
      %v10867 = vpop.permute.xlu0 %10866
      %v10871 = vsel %vm6520, %v10747, 0
      %v10874 = vsel %vm6520, %v10748, 0
      %10876 = vmatprep.subr.mxu0 0.0
      %10877 = vmatpush1.msra.mxu0 %v10865
      %10878 = vmatprep.subr.mxu0 0.0
      %10879 = vmatpush1.msra.mxu0 %v10867
      %10880 = vmatprep.subr.mxu0 0.0
      %10881 = vmatpush1.msra.mxu0 0.0
      %10882 = vmatprep.subr.mxu0 0.0
      %10883 = vmatpush1.msra.mxu0 0.0
      %10884 = vmatprep.subr.mxu0 0.0
      %10885 = vmatpush1.msra.mxu0 0.0
      %10886 = vmatprep.subr.mxu0 0.0
      %10887 = vmatpush1.msra.mxu0 0.0
      %10888 = vmatprep.subr.mxu0 0.0
      %10889 = vmatpush1.msra.mxu0 0.0
      %10890 = vmatprep.subr.mxu0 0.0
      %10891 = vmatpush1.msra.mxu0 0.0
      %10892 = vmatprep.subr.mxu0 0.0
      %10893 = vmatpush1.msra.mxu0 0.0
      %10894 = vmatprep.subr.mxu0 0.0
      %10895 = vmatpush1.msra.mxu0 0.0
      %10896 = vmatprep.subr.mxu0 0.0
      %10897 = vmatpush1.msra.mxu0 0.0
      %10898 = vmatprep.subr.mxu0 0.0
      %10899 = vmatpush1.msra.mxu0 0.0
      %10900 = vmatprep.subr.mxu0 0.0
      %10901 = vmatpush1.msra.mxu0 0.0
      %10902 = vmatprep.subr.mxu0 0.0
      %10903 = vmatpush1.msra.mxu0 0.0
      %10904 = vmatprep.subr.mxu0 0.0
      %10905 = vmatpush1.msra.mxu0 0.0
      %10906 = vmatprep.subr.mxu0 0.0
      %10907 = vmatpush1.msra.mxu0 0.0
      %10908 = vmatprep.subr.mxu0 0.0
      %10909 = vmatpush1.msra.mxu0 0.0
      %10910 = vmatprep.subr.mxu0 0.0
      %10911 = vmatpush1.msra.mxu0 0.0
      %10912 = vmatprep.subr.mxu0 0.0
      %10913 = vmatpush1.msra.mxu0 0.0
      %10914 = vmatprep.subr.mxu0 0.0
      %10915 = vmatpush1.msra.mxu0 0.0
      %10916 = vmatprep.subr.mxu0 0.0
      %10917 = vmatpush1.msra.mxu0 0.0
      %10918 = vmatprep.subr.mxu0 0.0
      %10919 = vmatpush1.msra.mxu0 0.0
      %10920 = vmatprep.subr.mxu0 0.0
      %10921 = vmatpush1.msra.mxu0 0.0
      %10922 = vmatprep.subr.mxu0 0.0
      %10923 = vmatpush1.msra.mxu0 0.0
      %10924 = vmatprep.subr.mxu0 0.0
      %10925 = vmatpush1.msra.mxu0 0.0
      %10926 = vmatprep.subr.mxu0 0.0
      %10927 = vmatpush1.msra.mxu0 0.0
      %10928 = vmatprep.subr.mxu0 0.0
      %10929 = vmatpush1.msra.mxu0 0.0
      %10930 = vmatprep.subr.mxu0 0.0
      %10931 = vmatpush1.msra.mxu0 0.0
      %10932 = vmatprep.subr.mxu0 0.0
      %10933 = vmatpush1.msra.mxu0 0.0
      %10934 = vmatprep.subr.mxu0 0.0
      %10935 = vmatpush1.msra.mxu0 0.0
      %10936 = vmatprep.subr.mxu0 0.0
      %10937 = vmatpush1.msra.mxu0 0.0
      %10938 = vmatprep.subr.mxu0 0.0
      %10939 = vmatpush1.msra.mxu0 0.0
      %10940 = vmatprep.mubr.f32.mxu0 0.0
      %10941 = vmatmul.mubr.f32.gmra.mrb[0].mxu0 %v10871
      %v10942 = vpop.f32.mrb[0].mxu0
      %v10943 = vadd.f32 0.0, %v10942
      %v10944 = vpop.f32.mrb[0].mxu0
      %10945 = vmatprep.mubr.f32.mxu0 0.0
      %10946 = vmatmul.mubr.f32.gmra.mrb[0].mxu0 %v10874
      %v10947 = vpop.f32.mrb[0].mxu0
      %v10948 = vadd.f32 0.0, %v10947
      %v10949 = vpop.f32.mrb[0].mxu0
      %10950 = vdwg.mxu0
      %10951 = vrot.lane.b32.xlu0 %v4457, 108
      %v10952 = vpop.permute.xlu0 %10951
      %10953 = vrot.lane.b32.xlu0 %v4458, 108
      %v10954 = vpop.permute.xlu0 %10953
      %v10958 = vsel %vm6520, %v10749, 0
      %v10961 = vsel %vm6520, %v10750, 0
      %10963 = vmatprep.subr.mxu0 0.0
      %10964 = vmatpush1.msra.mxu0 %v10952
      %10965 = vmatprep.subr.mxu0 0.0
      %10966 = vmatpush1.msra.mxu0 %v10954
      %10967 = vmatprep.subr.mxu0 0.0
      %10968 = vmatpush1.msra.mxu0 0.0
      %10969 = vmatprep.subr.mxu0 0.0
      %10970 = vmatpush1.msra.mxu0 0.0
      %10971 = vmatprep.subr.mxu0 0.0
      %10972 = vmatpush1.msra.mxu0 0.0
      %10973 = vmatprep.subr.mxu0 0.0
      %10974 = vmatpush1.msra.mxu0 0.0
      %10975 = vmatprep.subr.mxu0 0.0
      %10976 = vmatpush1.msra.mxu0 0.0
      %10977 = vmatprep.subr.mxu0 0.0
      %10978 = vmatpush1.msra.mxu0 0.0
      %10979 = vmatprep.subr.mxu0 0.0
      %10980 = vmatpush1.msra.mxu0 0.0
      %10981 = vmatprep.subr.mxu0 0.0
      %10982 = vmatpush1.msra.mxu0 0.0
      %10983 = vmatprep.subr.mxu0 0.0
      %10984 = vmatpush1.msra.mxu0 0.0
      %10985 = vmatprep.subr.mxu0 0.0
      %10986 = vmatpush1.msra.mxu0 0.0
      %10987 = vmatprep.subr.mxu0 0.0
      %10988 = vmatpush1.msra.mxu0 0.0
      %10989 = vmatprep.subr.mxu0 0.0
      %10990 = vmatpush1.msra.mxu0 0.0
      %10991 = vmatprep.subr.mxu0 0.0
      %10992 = vmatpush1.msra.mxu0 0.0
      %10993 = vmatprep.subr.mxu0 0.0
      %10994 = vmatpush1.msra.mxu0 0.0
      %10995 = vmatprep.subr.mxu0 0.0
      %10996 = vmatpush1.msra.mxu0 0.0
      %10997 = vmatprep.subr.mxu0 0.0
      %10998 = vmatpush1.msra.mxu0 0.0
      %10999 = vmatprep.subr.mxu0 0.0
      %11000 = vmatpush1.msra.mxu0 0.0
      %11001 = vmatprep.subr.mxu0 0.0
      %11002 = vmatpush1.msra.mxu0 0.0
      %11003 = vmatprep.subr.mxu0 0.0
      %11004 = vmatpush1.msra.mxu0 0.0
      %11005 = vmatprep.subr.mxu0 0.0
      %11006 = vmatpush1.msra.mxu0 0.0
      %11007 = vmatprep.subr.mxu0 0.0
      %11008 = vmatpush1.msra.mxu0 0.0
      %11009 = vmatprep.subr.mxu0 0.0
      %11010 = vmatpush1.msra.mxu0 0.0
      %11011 = vmatprep.subr.mxu0 0.0
      %11012 = vmatpush1.msra.mxu0 0.0
      %11013 = vmatprep.subr.mxu0 0.0
      %11014 = vmatpush1.msra.mxu0 0.0
      %11015 = vmatprep.subr.mxu0 0.0
      %11016 = vmatpush1.msra.mxu0 0.0
      %11017 = vmatprep.subr.mxu0 0.0
      %11018 = vmatpush1.msra.mxu0 0.0
      %11019 = vmatprep.subr.mxu0 0.0
      %11020 = vmatpush1.msra.mxu0 0.0
      %11021 = vmatprep.subr.mxu0 0.0
      %11022 = vmatpush1.msra.mxu0 0.0
      %11023 = vmatprep.subr.mxu0 0.0
      %11024 = vmatpush1.msra.mxu0 0.0
      %11025 = vmatprep.subr.mxu0 0.0
      %11026 = vmatpush1.msra.mxu0 0.0
      %11027 = vmatprep.mubr.f32.mxu0 0.0
      %11028 = vmatmul.mubr.f32.gmra.mrb[0].mxu0 %v10958
      %v11029 = vpop.f32.mrb[0].mxu0
      %v11030 = vadd.f32 0.0, %v11029
      %v11031 = vpop.f32.mrb[0].mxu0
      %11032 = vmatprep.mubr.f32.mxu0 0.0
      %11033 = vmatmul.mubr.f32.gmra.mrb[0].mxu0 %v10961
      %v11034 = vpop.f32.mrb[0].mxu0
      %v11035 = vadd.f32 0.0, %v11034
      %v11036 = vpop.f32.mrb[0].mxu0
      %11037 = vdwg.mxu0
      %11038 = vrot.lane.b32.xlu0 %v4459, 108
      %v11039 = vpop.permute.xlu0 %11038
      %11040 = vrot.lane.b32.xlu0 %v4460, 108
      %v11041 = vpop.permute.xlu0 %11040
      %v11045 = vsel %vm6520, %v10751, 0
      %v11048 = vsel %vm6520, %v10752, 0
      %11050 = vmatprep.subr.mxu0 0.0
      %11051 = vmatpush1.msra.mxu0 %v11039
      %11052 = vmatprep.subr.mxu0 0.0
      %11053 = vmatpush1.msra.mxu0 %v11041
      %11054 = vmatprep.subr.mxu0 0.0
      %11055 = vmatpush1.msra.mxu0 0.0
      %11056 = vmatprep.subr.mxu0 0.0
      %11057 = vmatpush1.msra.mxu0 0.0
      %11058 = vmatprep.subr.mxu0 0.0
      %11059 = vmatpush1.msra.mxu0 0.0
      %11060 = vmatprep.subr.mxu0 0.0
      %11061 = vmatpush1.msra.mxu0 0.0
      %11062 = vmatprep.subr.mxu0 0.0
      %11063 = vmatpush1.msra.mxu0 0.0
      %11064 = vmatprep.subr.mxu0 0.0
      %11065 = vmatpush1.msra.mxu0 0.0
      %11066 = vmatprep.subr.mxu0 0.0
      %11067 = vmatpush1.msra.mxu0 0.0
      %11068 = vmatprep.subr.mxu0 0.0
      %11069 = vmatpush1.msra.mxu0 0.0
      %11070 = vmatprep.subr.mxu0 0.0
      %11071 = vmatpush1.msra.mxu0 0.0
      %11072 = vmatprep.subr.mxu0 0.0
      %11073 = vmatpush1.msra.mxu0 0.0
      %11074 = vmatprep.subr.mxu0 0.0
      %11075 = vmatpush1.msra.mxu0 0.0
      %11076 = vmatprep.subr.mxu0 0.0
      %11077 = vmatpush1.msra.mxu0 0.0
      %11078 = vmatprep.subr.mxu0 0.0
      %11079 = vmatpush1.msra.mxu0 0.0
      %11080 = vmatprep.subr.mxu0 0.0
      %11081 = vmatpush1.msra.mxu0 0.0
      %11082 = vmatprep.subr.mxu0 0.0
      %11083 = vmatpush1.msra.mxu0 0.0
      %11084 = vmatprep.subr.mxu0 0.0
      %11085 = vmatpush1.msra.mxu0 0.0
      %11086 = vmatprep.subr.mxu0 0.0
      %11087 = vmatpush1.msra.mxu0 0.0
      %11088 = vmatprep.subr.mxu0 0.0
      %11089 = vmatpush1.msra.mxu0 0.0
      %11090 = vmatprep.subr.mxu0 0.0
      %11091 = vmatpush1.msra.mxu0 0.0
      %11092 = vmatprep.subr.mxu0 0.0
      %11093 = vmatpush1.msra.mxu0 0.0
      %11094 = vmatprep.subr.mxu0 0.0
      %11095 = vmatpush1.msra.mxu0 0.0
      %11096 = vmatprep.subr.mxu0 0.0
      %11097 = vmatpush1.msra.mxu0 0.0
      %11098 = vmatprep.subr.mxu0 0.0
      %11099 = vmatpush1.msra.mxu0 0.0
      %11100 = vmatprep.subr.mxu0 0.0
      %11101 = vmatpush1.msra.mxu0 0.0
      %11102 = vmatprep.subr.mxu0 0.0
      %11103 = vmatpush1.msra.mxu0 0.0
      %11104 = vmatprep.subr.mxu0 0.0
      %11105 = vmatpush1.msra.mxu0 0.0
      %11106 = vmatprep.subr.mxu0 0.0
      %11107 = vmatpush1.msra.mxu0 0.0
      %11108 = vmatprep.subr.mxu0 0.0
      %11109 = vmatpush1.msra.mxu0 0.0
      %11110 = vmatprep.subr.mxu0 0.0
      %11111 = vmatpush1.msra.mxu0 0.0
      %11112 = vmatprep.subr.mxu0 0.0
      %11113 = vmatpush1.msra.mxu0 0.0
      %11114 = vmatprep.mubr.f32.mxu0 0.0
      %11115 = vmatmul.mubr.f32.gmra.mrb[0].mxu0 %v11045
      %v11116 = vpop.f32.mrb[0].mxu0
      %v11117 = vadd.f32 0.0, %v11116
      %v11118 = vpop.f32.mrb[0].mxu0
      %11119 = vmatprep.mubr.f32.mxu0 0.0
      %11120 = vmatmul.mubr.f32.gmra.mrb[0].mxu0 %v11048
      %v11121 = vpop.f32.mrb[0].mxu0
      %v11122 = vadd.f32 0.0, %v11121
      %v11123 = vpop.f32.mrb[0].mxu0
      %11124 = vdwg.mxu0
      %11125 = vrot.lane.b32.xlu0 %v4461, 108
      %v11126 = vpop.permute.xlu0 %11125
      %11127 = vrot.lane.b32.xlu0 %v4462, 108
      %v11128 = vpop.permute.xlu0 %11127
      %v11132 = vsel %vm6520, %v10753, 0
      %v11135 = vsel %vm6520, %v10754, 0
      %11137 = vmatprep.subr.mxu0 0.0
      %11138 = vmatpush1.msra.mxu0 %v11126
      %11139 = vmatprep.subr.mxu0 0.0
      %11140 = vmatpush1.msra.mxu0 %v11128
      %11141 = vmatprep.subr.mxu0 0.0
      %11142 = vmatpush1.msra.mxu0 0.0
      %11143 = vmatprep.subr.mxu0 0.0
      %11144 = vmatpush1.msra.mxu0 0.0
      %11145 = vmatprep.subr.mxu0 0.0
      %11146 = vmatpush1.msra.mxu0 0.0
      %11147 = vmatprep.subr.mxu0 0.0
      %11148 = vmatpush1.msra.mxu0 0.0
      %11149 = vmatprep.subr.mxu0 0.0
      %11150 = vmatpush1.msra.mxu0 0.0
      %11151 = vmatprep.subr.mxu0 0.0
      %11152 = vmatpush1.msra.mxu0 0.0
      %11153 = vmatprep.subr.mxu0 0.0
      %11154 = vmatpush1.msra.mxu0 0.0
      %11155 = vmatprep.subr.mxu0 0.0
      %11156 = vmatpush1.msra.mxu0 0.0
      %11157 = vmatprep.subr.mxu0 0.0
      %11158 = vmatpush1.msra.mxu0 0.0
      %11159 = vmatprep.subr.mxu0 0.0
      %11160 = vmatpush1.msra.mxu0 0.0
      %11161 = vmatprep.subr.mxu0 0.0
      %11162 = vmatpush1.msra.mxu0 0.0
      %11163 = vmatprep.subr.mxu0 0.0
      %11164 = vmatpush1.msra.mxu0 0.0
      %11165 = vmatprep.subr.mxu0 0.0
      %11166 = vmatpush1.msra.mxu0 0.0
      %11167 = vmatprep.subr.mxu0 0.0
      %11168 = vmatpush1.msra.mxu0 0.0
      %11169 = vmatprep.subr.mxu0 0.0
      %11170 = vmatpush1.msra.mxu0 0.0
      %11171 = vmatprep.subr.mxu0 0.0
      %11172 = vmatpush1.msra.mxu0 0.0
      %11173 = vmatprep.subr.mxu0 0.0
      %11174 = vmatpush1.msra.mxu0 0.0
      %11175 = vmatprep.subr.mxu0 0.0
      %11176 = vmatpush1.msra.mxu0 0.0
      %11177 = vmatprep.subr.mxu0 0.0
      %11178 = vmatpush1.msra.mxu0 0.0
      %11179 = vmatprep.subr.mxu0 0.0
      %11180 = vmatpush1.msra.mxu0 0.0
      %11181 = vmatprep.subr.mxu0 0.0
      %11182 = vmatpush1.msra.mxu0 0.0
      %11183 = vmatprep.subr.mxu0 0.0
      %11184 = vmatpush1.msra.mxu0 0.0
      %11185 = vmatprep.subr.mxu0 0.0
      %11186 = vmatpush1.msra.mxu0 0.0
      %11187 = vmatprep.subr.mxu0 0.0
      %11188 = vmatpush1.msra.mxu0 0.0
      %11189 = vmatprep.subr.mxu0 0.0
      %11190 = vmatpush1.msra.mxu0 0.0
      %11191 = vmatprep.subr.mxu0 0.0
      %11192 = vmatpush1.msra.mxu0 0.0
      %11193 = vmatprep.subr.mxu0 0.0
      %11194 = vmatpush1.msra.mxu0 0.0
      %11195 = vmatprep.subr.mxu0 0.0
      %11196 = vmatpush1.msra.mxu0 0.0
      %11197 = vmatprep.subr.mxu0 0.0
      %11198 = vmatpush1.msra.mxu0 0.0
      %11199 = vmatprep.subr.mxu0 0.0
      %11200 = vmatpush1.msra.mxu0 0.0
      %11201 = vmatprep.mubr.f32.mxu0 0.0
      %11202 = vmatmul.mubr.f32.gmra.mrb[0].mxu0 %v11132
      %v11203 = vpop.f32.mrb[0].mxu0
      %v11204 = vadd.f32 0.0, %v11203
      %v11205 = vpop.f32.mrb[0].mxu0
      %11206 = vmatprep.mubr.f32.mxu0 0.0
      %11207 = vmatmul.mubr.f32.gmra.mrb[0].mxu0 %v11135
      %v11208 = vpop.f32.mrb[0].mxu0
      %v11209 = vadd.f32 0.0, %v11208
      %v11210 = vpop.f32.mrb[0].mxu0
      %11211 = vdwg.mxu0
      %11212 = vrot.lane.b32.xlu0 %v4463, 108
      %v11213 = vpop.permute.xlu0 %11212
      %11214 = vrot.lane.b32.xlu0 %v4464, 108
      %v11215 = vpop.permute.xlu0 %11214
      %v11219 = vsel %vm6520, %v10755, 0
      %v11222 = vsel %vm6520, %v10756, 0
      %11224 = vmatprep.subr.mxu0 0.0
      %11225 = vmatpush1.msra.mxu0 %v11213
      %11226 = vmatprep.subr.mxu0 0.0
      %11227 = vmatpush1.msra.mxu0 %v11215
      %11228 = vmatprep.subr.mxu0 0.0
      %11229 = vmatpush1.msra.mxu0 0.0
      %11230 = vmatprep.subr.mxu0 0.0
      %11231 = vmatpush1.msra.mxu0 0.0
      %11232 = vmatprep.subr.mxu0 0.0
      %11233 = vmatpush1.msra.mxu0 0.0
      %11234 = vmatprep.subr.mxu0 0.0
      %11235 = vmatpush1.msra.mxu0 0.0
      %11236 = vmatprep.subr.mxu0 0.0
      %11237 = vmatpush1.msra.mxu0 0.0
      %11238 = vmatprep.subr.mxu0 0.0
      %11239 = vmatpush1.msra.mxu0 0.0
      %11240 = vmatprep.subr.mxu0 0.0
      %11241 = vmatpush1.msra.mxu0 0.0
      %11242 = vmatprep.subr.mxu0 0.0
      %11243 = vmatpush1.msra.mxu0 0.0
      %11244 = vmatprep.subr.mxu0 0.0
      %11245 = vmatpush1.msra.mxu0 0.0
      %11246 = vmatprep.subr.mxu0 0.0
      %11247 = vmatpush1.msra.mxu0 0.0
      %11248 = vmatprep.subr.mxu0 0.0
      %11249 = vmatpush1.msra.mxu0 0.0
      %11250 = vmatprep.subr.mxu0 0.0
      %11251 = vmatpush1.msra.mxu0 0.0
      %11252 = vmatprep.subr.mxu0 0.0
      %11253 = vmatpush1.msra.mxu0 0.0
      %11254 = vmatprep.subr.mxu0 0.0
      %11255 = vmatpush1.msra.mxu0 0.0
      %11256 = vmatprep.subr.mxu0 0.0
      %11257 = vmatpush1.msra.mxu0 0.0
      %11258 = vmatprep.subr.mxu0 0.0
      %11259 = vmatpush1.msra.mxu0 0.0
      %11260 = vmatprep.subr.mxu0 0.0
      %11261 = vmatpush1.msra.mxu0 0.0
      %11262 = vmatprep.subr.mxu0 0.0
      %11263 = vmatpush1.msra.mxu0 0.0
      %11264 = vmatprep.subr.mxu0 0.0
      %11265 = vmatpush1.msra.mxu0 0.0
      %11266 = vmatprep.subr.mxu0 0.0
      %11267 = vmatpush1.msra.mxu0 0.0
      %11268 = vmatprep.subr.mxu0 0.0
      %11269 = vmatpush1.msra.mxu0 0.0
      %11270 = vmatprep.subr.mxu0 0.0
      %11271 = vmatpush1.msra.mxu0 0.0
      %11272 = vmatprep.subr.mxu0 0.0
      %11273 = vmatpush1.msra.mxu0 0.0
      %11274 = vmatprep.subr.mxu0 0.0
      %11275 = vmatpush1.msra.mxu0 0.0
      %11276 = vmatprep.subr.mxu0 0.0
      %11277 = vmatpush1.msra.mxu0 0.0
      %11278 = vmatprep.subr.mxu0 0.0
      %11279 = vmatpush1.msra.mxu0 0.0
      %11280 = vmatprep.subr.mxu0 0.0
      %11281 = vmatpush1.msra.mxu0 0.0
      %11282 = vmatprep.subr.mxu0 0.0
      %11283 = vmatpush1.msra.mxu0 0.0
      %11284 = vmatprep.subr.mxu0 0.0
      %11285 = vmatpush1.msra.mxu0 0.0
      %11286 = vmatprep.subr.mxu0 0.0
      %11287 = vmatpush1.msra.mxu0 0.0
      %11288 = vmatprep.mubr.f32.mxu0 0.0
      %11289 = vmatmul.mubr.f32.gmra.mrb[0].mxu0 %v11219
      %v11290 = vpop.f32.mrb[0].mxu0
      %v11291 = vadd.f32 0.0, %v11290
      %v11292 = vpop.f32.mrb[0].mxu0
      %11293 = vmatprep.mubr.f32.mxu0 0.0
      %11294 = vmatmul.mubr.f32.gmra.mrb[0].mxu0 %v11222
      %v11295 = vpop.f32.mrb[0].mxu0
      %v11296 = vadd.f32 0.0, %v11295
      %v11297 = vpop.f32.mrb[0].mxu0
      %11298 = vdwg.mxu0
      %11299 = vrot.lane.b32.xlu0 %v4465, 108
      %v11300 = vpop.permute.xlu0 %11299
      %11301 = vrot.lane.b32.xlu0 %v4466, 108
      %v11302 = vpop.permute.xlu0 %11301
      %v11306 = vsel %vm6520, %v10757, 0
      %v11309 = vsel %vm6520, %v10758, 0
      %11311 = vmatprep.subr.mxu0 0.0
      %11312 = vmatpush1.msra.mxu0 %v11300
      %11313 = vmatprep.subr.mxu0 0.0
      %11314 = vmatpush1.msra.mxu0 %v11302
      %11315 = vmatprep.subr.mxu0 0.0
      %11316 = vmatpush1.msra.mxu0 0.0
      %11317 = vmatprep.subr.mxu0 0.0
      %11318 = vmatpush1.msra.mxu0 0.0
      %11319 = vmatprep.subr.mxu0 0.0
      %11320 = vmatpush1.msra.mxu0 0.0
      %11321 = vmatprep.subr.mxu0 0.0
      %11322 = vmatpush1.msra.mxu0 0.0
      %11323 = vmatprep.subr.mxu0 0.0
      %11324 = vmatpush1.msra.mxu0 0.0
      %11325 = vmatprep.subr.mxu0 0.0
      %11326 = vmatpush1.msra.mxu0 0.0
      %11327 = vmatprep.subr.mxu0 0.0
      %11328 = vmatpush1.msra.mxu0 0.0
      %11329 = vmatprep.subr.mxu0 0.0
      %11330 = vmatpush1.msra.mxu0 0.0
      %11331 = vmatprep.subr.mxu0 0.0
      %11332 = vmatpush1.msra.mxu0 0.0
      %11333 = vmatprep.subr.mxu0 0.0
      %11334 = vmatpush1.msra.mxu0 0.0
      %11335 = vmatprep.subr.mxu0 0.0
      %11336 = vmatpush1.msra.mxu0 0.0
      %11337 = vmatprep.subr.mxu0 0.0
      %11338 = vmatpush1.msra.mxu0 0.0
      %11339 = vmatprep.subr.mxu0 0.0
      %11340 = vmatpush1.msra.mxu0 0.0
      %11341 = vmatprep.subr.mxu0 0.0
      %11342 = vmatpush1.msra.mxu0 0.0
      %11343 = vmatprep.subr.mxu0 0.0
      %11344 = vmatpush1.msra.mxu0 0.0
      %11345 = vmatprep.subr.mxu0 0.0
      %11346 = vmatpush1.msra.mxu0 0.0
      %11347 = vmatprep.subr.mxu0 0.0
      %11348 = vmatpush1.msra.mxu0 0.0
      %11349 = vmatprep.subr.mxu0 0.0
      %11350 = vmatpush1.msra.mxu0 0.0
      %11351 = vmatprep.subr.mxu0 0.0
      %11352 = vmatpush1.msra.mxu0 0.0
      %11353 = vmatprep.subr.mxu0 0.0
      %11354 = vmatpush1.msra.mxu0 0.0
      %11355 = vmatprep.subr.mxu0 0.0
      %11356 = vmatpush1.msra.mxu0 0.0
      %11357 = vmatprep.subr.mxu0 0.0
      %11358 = vmatpush1.msra.mxu0 0.0
      %11359 = vmatprep.subr.mxu0 0.0
      %11360 = vmatpush1.msra.mxu0 0.0
      %11361 = vmatprep.subr.mxu0 0.0
      %11362 = vmatpush1.msra.mxu0 0.0
      %11363 = vmatprep.subr.mxu0 0.0
      %11364 = vmatpush1.msra.mxu0 0.0
      %11365 = vmatprep.subr.mxu0 0.0
      %11366 = vmatpush1.msra.mxu0 0.0
      %11367 = vmatprep.subr.mxu0 0.0
      %11368 = vmatpush1.msra.mxu0 0.0
      %11369 = vmatprep.subr.mxu0 0.0
      %11370 = vmatpush1.msra.mxu0 0.0
      %11371 = vmatprep.subr.mxu0 0.0
      %11372 = vmatpush1.msra.mxu0 0.0
      %11373 = vmatprep.subr.mxu0 0.0
      %11374 = vmatpush1.msra.mxu0 0.0
      %11375 = vmatprep.mubr.f32.mxu0 0.0
      %11376 = vmatmul.mubr.f32.gmra.mrb[0].mxu0 %v11306
      %v11377 = vpop.f32.mrb[0].mxu0
      %v11378 = vadd.f32 0.0, %v11377
      %v11379 = vpop.f32.mrb[0].mxu0
      %11380 = vmatprep.mubr.f32.mxu0 0.0
      %11381 = vmatmul.mubr.f32.gmra.mrb[0].mxu0 %v11309
      %v11382 = vpop.f32.mrb[0].mxu0
      %v11383 = vadd.f32 0.0, %v11382
      %v11384 = vpop.f32.mrb[0].mxu0
      %11385 = vdwg.mxu0
      %11386 = vrot.lane.b32.xlu0 %v4467, 108
      %v11387 = vpop.permute.xlu0 %11386
      %11388 = vrot.lane.b32.xlu0 %v4468, 108
      %v11389 = vpop.permute.xlu0 %11388
      %v11393 = vsel %vm6520, %v10759, 0
      %v11396 = vsel %vm6520, %v10760, 0
      %11398 = vmatprep.subr.mxu0 0.0
      %11399 = vmatpush1.msra.mxu0 %v11387
      %11400 = vmatprep.subr.mxu0 0.0
      %11401 = vmatpush1.msra.mxu0 %v11389
      %11402 = vmatprep.subr.mxu0 0.0
      %11403 = vmatpush1.msra.mxu0 0.0
      %11404 = vmatprep.subr.mxu0 0.0
      %11405 = vmatpush1.msra.mxu0 0.0
      %11406 = vmatprep.subr.mxu0 0.0
      %11407 = vmatpush1.msra.mxu0 0.0
      %11408 = vmatprep.subr.mxu0 0.0
      %11409 = vmatpush1.msra.mxu0 0.0
      %11410 = vmatprep.subr.mxu0 0.0
      %11411 = vmatpush1.msra.mxu0 0.0
      %11412 = vmatprep.subr.mxu0 0.0
      %11413 = vmatpush1.msra.mxu0 0.0
      %11414 = vmatprep.subr.mxu0 0.0
      %11415 = vmatpush1.msra.mxu0 0.0
      %11416 = vmatprep.subr.mxu0 0.0
      %11417 = vmatpush1.msra.mxu0 0.0
      %11418 = vmatprep.subr.mxu0 0.0
      %11419 = vmatpush1.msra.mxu0 0.0
      %11420 = vmatprep.subr.mxu0 0.0
      %11421 = vmatpush1.msra.mxu0 0.0
      %11422 = vmatprep.subr.mxu0 0.0
      %11423 = vmatpush1.msra.mxu0 0.0
      %11424 = vmatprep.subr.mxu0 0.0
      %11425 = vmatpush1.msra.mxu0 0.0
      %11426 = vmatprep.subr.mxu0 0.0
      %11427 = vmatpush1.msra.mxu0 0.0
      %11428 = vmatprep.subr.mxu0 0.0
      %11429 = vmatpush1.msra.mxu0 0.0
      %11430 = vmatprep.subr.mxu0 0.0
      %11431 = vmatpush1.msra.mxu0 0.0
      %11432 = vmatprep.subr.mxu0 0.0
      %11433 = vmatpush1.msra.mxu0 0.0
      %11434 = vmatprep.subr.mxu0 0.0
      %11435 = vmatpush1.msra.mxu0 0.0
      %11436 = vmatprep.subr.mxu0 0.0
      %11437 = vmatpush1.msra.mxu0 0.0
      %11438 = vmatprep.subr.mxu0 0.0
      %11439 = vmatpush1.msra.mxu0 0.0
      %11440 = vmatprep.subr.mxu0 0.0
      %11441 = vmatpush1.msra.mxu0 0.0
      %11442 = vmatprep.subr.mxu0 0.0
      %11443 = vmatpush1.msra.mxu0 0.0
      %11444 = vmatprep.subr.mxu0 0.0
      %11445 = vmatpush1.msra.mxu0 0.0
      %11446 = vmatprep.subr.mxu0 0.0
      %11447 = vmatpush1.msra.mxu0 0.0
      %11448 = vmatprep.subr.mxu0 0.0
      %11449 = vmatpush1.msra.mxu0 0.0
      %11450 = vmatprep.subr.mxu0 0.0
      %11451 = vmatpush1.msra.mxu0 0.0
      %11452 = vmatprep.subr.mxu0 0.0
      %11453 = vmatpush1.msra.mxu0 0.0
      %11454 = vmatprep.subr.mxu0 0.0
      %11455 = vmatpush1.msra.mxu0 0.0
      %11456 = vmatprep.subr.mxu0 0.0
      %11457 = vmatpush1.msra.mxu0 0.0
      %11458 = vmatprep.subr.mxu0 0.0
      %11459 = vmatpush1.msra.mxu0 0.0
      %11460 = vmatprep.subr.mxu0 0.0
      %11461 = vmatpush1.msra.mxu0 0.0
      %11462 = vmatprep.mubr.f32.mxu0 0.0
      %11463 = vmatmul.mubr.f32.gmra.mrb[0].mxu0 %v11393
      %v11464 = vpop.f32.mrb[0].mxu0
      %v11465 = vadd.f32 0.0, %v11464
      %v11466 = vpop.f32.mrb[0].mxu0
      %11467 = vmatprep.mubr.f32.mxu0 0.0
      %11468 = vmatmul.mubr.f32.gmra.mrb[0].mxu0 %v11396
      %v11469 = vpop.f32.mrb[0].mxu0
      %v11470 = vadd.f32 0.0, %v11469
      %v11471 = vpop.f32.mrb[0].mxu0
      %11472 = vdwg.mxu0
      %11473 = vrot.lane.b32.xlu0 %v4469, 108
      %v11474 = vpop.permute.xlu0 %11473
      %11475 = vrot.lane.b32.xlu0 %v4470, 108
      %v11476 = vpop.permute.xlu0 %11475
      %v11480 = vsel %vm6520, %v10761, 0
      %v11483 = vsel %vm6520, %v10762, 0
      %11485 = vmatprep.subr.mxu0 0.0
      %11486 = vmatpush1.msra.mxu0 %v11474
      %11487 = vmatprep.subr.mxu0 0.0
      %11488 = vmatpush1.msra.mxu0 %v11476
      %11489 = vmatprep.subr.mxu0 0.0
      %11490 = vmatpush1.msra.mxu0 0.0
      %11491 = vmatprep.subr.mxu0 0.0
      %11492 = vmatpush1.msra.mxu0 0.0
      %11493 = vmatprep.subr.mxu0 0.0
      %11494 = vmatpush1.msra.mxu0 0.0
      %11495 = vmatprep.subr.mxu0 0.0
      %11496 = vmatpush1.msra.mxu0 0.0
      %11497 = vmatprep.subr.mxu0 0.0
      %11498 = vmatpush1.msra.mxu0 0.0
      %11499 = vmatprep.subr.mxu0 0.0
      %11500 = vmatpush1.msra.mxu0 0.0
      %11501 = vmatprep.subr.mxu0 0.0
      %11502 = vmatpush1.msra.mxu0 0.0
      %11503 = vmatprep.subr.mxu0 0.0
      %11504 = vmatpush1.msra.mxu0 0.0
      %11505 = vmatprep.subr.mxu0 0.0
      %11506 = vmatpush1.msra.mxu0 0.0
      %11507 = vmatprep.subr.mxu0 0.0
      %11508 = vmatpush1.msra.mxu0 0.0
      %11509 = vmatprep.subr.mxu0 0.0
      %11510 = vmatpush1.msra.mxu0 0.0
      %11511 = vmatprep.subr.mxu0 0.0
      %11512 = vmatpush1.msra.mxu0 0.0
      %11513 = vmatprep.subr.mxu0 0.0
      %11514 = vmatpush1.msra.mxu0 0.0
      %11515 = vmatprep.subr.mxu0 0.0
      %11516 = vmatpush1.msra.mxu0 0.0
      %11517 = vmatprep.subr.mxu0 0.0
      %11518 = vmatpush1.msra.mxu0 0.0
      %11519 = vmatprep.subr.mxu0 0.0
      %11520 = vmatpush1.msra.mxu0 0.0
      %11521 = vmatprep.subr.mxu0 0.0
      %11522 = vmatpush1.msra.mxu0 0.0
      %11523 = vmatprep.subr.mxu0 0.0
      %11524 = vmatpush1.msra.mxu0 0.0
      %11525 = vmatprep.subr.mxu0 0.0
      %11526 = vmatpush1.msra.mxu0 0.0
      %11527 = vmatprep.subr.mxu0 0.0
      %11528 = vmatpush1.msra.mxu0 0.0
      %11529 = vmatprep.subr.mxu0 0.0
      %11530 = vmatpush1.msra.mxu0 0.0
      %11531 = vmatprep.subr.mxu0 0.0
      %11532 = vmatpush1.msra.mxu0 0.0
      %11533 = vmatprep.subr.mxu0 0.0
      %11534 = vmatpush1.msra.mxu0 0.0
      %11535 = vmatprep.subr.mxu0 0.0
      %11536 = vmatpush1.msra.mxu0 0.0
      %11537 = vmatprep.subr.mxu0 0.0
      %11538 = vmatpush1.msra.mxu0 0.0
      %11539 = vmatprep.subr.mxu0 0.0
      %11540 = vmatpush1.msra.mxu0 0.0
      %11541 = vmatprep.subr.mxu0 0.0
      %11542 = vmatpush1.msra.mxu0 0.0
      %11543 = vmatprep.subr.mxu0 0.0
      %11544 = vmatpush1.msra.mxu0 0.0
      %11545 = vmatprep.subr.mxu0 0.0
      %11546 = vmatpush1.msra.mxu0 0.0
      %11547 = vmatprep.subr.mxu0 0.0
      %11548 = vmatpush1.msra.mxu0 0.0
      %11549 = vmatprep.mubr.f32.mxu0 0.0
      %11550 = vmatmul.mubr.f32.gmra.mrb[0].mxu0 %v11480
      %v11551 = vpop.f32.mrb[0].mxu0
      %v11552 = vadd.f32 0.0, %v11551
      %v11553 = vpop.f32.mrb[0].mxu0
      %11554 = vmatprep.mubr.f32.mxu0 0.0
      %11555 = vmatmul.mubr.f32.gmra.mrb[0].mxu0 %v11483
      %v11556 = vpop.f32.mrb[0].mxu0
      %v11557 = vadd.f32 0.0, %v11556
      %v11558 = vpop.f32.mrb[0].mxu0
      %11559 = vdwg.mxu0
      %11560 = vrot.lane.b32.xlu0 %v4471, 108
      %v11561 = vpop.permute.xlu0 %11560
      %11562 = vrot.lane.b32.xlu0 %v4472, 108
      %v11563 = vpop.permute.xlu0 %11562
      %v11567 = vsel %vm6520, %v10763, 0
      %v11570 = vsel %vm6520, %v10764, 0
      %11572 = vmatprep.subr.mxu0 0.0
      %11573 = vmatpush1.msra.mxu0 %v11561
      %11574 = vmatprep.subr.mxu0 0.0
      %11575 = vmatpush1.msra.mxu0 %v11563
      %11576 = vmatprep.subr.mxu0 0.0
      %11577 = vmatpush1.msra.mxu0 0.0
      %11578 = vmatprep.subr.mxu0 0.0
      %11579 = vmatpush1.msra.mxu0 0.0
      %11580 = vmatprep.subr.mxu0 0.0
      %11581 = vmatpush1.msra.mxu0 0.0
      %11582 = vmatprep.subr.mxu0 0.0
      %11583 = vmatpush1.msra.mxu0 0.0
      %11584 = vmatprep.subr.mxu0 0.0
      %11585 = vmatpush1.msra.mxu0 0.0
      %11586 = vmatprep.subr.mxu0 0.0
      %11587 = vmatpush1.msra.mxu0 0.0
      %11588 = vmatprep.subr.mxu0 0.0
      %11589 = vmatpush1.msra.mxu0 0.0
      %11590 = vmatprep.subr.mxu0 0.0
      %11591 = vmatpush1.msra.mxu0 0.0
      %11592 = vmatprep.subr.mxu0 0.0
      %11593 = vmatpush1.msra.mxu0 0.0
      %11594 = vmatprep.subr.mxu0 0.0
      %11595 = vmatpush1.msra.mxu0 0.0
      %11596 = vmatprep.subr.mxu0 0.0
      %11597 = vmatpush1.msra.mxu0 0.0
      %11598 = vmatprep.subr.mxu0 0.0
      %11599 = vmatpush1.msra.mxu0 0.0
      %11600 = vmatprep.subr.mxu0 0.0
      %11601 = vmatpush1.msra.mxu0 0.0
      %11602 = vmatprep.subr.mxu0 0.0
      %11603 = vmatpush1.msra.mxu0 0.0
      %11604 = vmatprep.subr.mxu0 0.0
      %11605 = vmatpush1.msra.mxu0 0.0
      %11606 = vmatprep.subr.mxu0 0.0
      %11607 = vmatpush1.msra.mxu0 0.0
      %11608 = vmatprep.subr.mxu0 0.0
      %11609 = vmatpush1.msra.mxu0 0.0
      %11610 = vmatprep.subr.mxu0 0.0
      %11611 = vmatpush1.msra.mxu0 0.0
      %11612 = vmatprep.subr.mxu0 0.0
      %11613 = vmatpush1.msra.mxu0 0.0
      %11614 = vmatprep.subr.mxu0 0.0
      %11615 = vmatpush1.msra.mxu0 0.0
      %11616 = vmatprep.subr.mxu0 0.0
      %11617 = vmatpush1.msra.mxu0 0.0
      %11618 = vmatprep.subr.mxu0 0.0
      %11619 = vmatpush1.msra.mxu0 0.0
      %11620 = vmatprep.subr.mxu0 0.0
      %11621 = vmatpush1.msra.mxu0 0.0
      %11622 = vmatprep.subr.mxu0 0.0
      %11623 = vmatpush1.msra.mxu0 0.0
      %11624 = vmatprep.subr.mxu0 0.0
      %11625 = vmatpush1.msra.mxu0 0.0
      %11626 = vmatprep.subr.mxu0 0.0
      %11627 = vmatpush1.msra.mxu0 0.0
      %11628 = vmatprep.subr.mxu0 0.0
      %11629 = vmatpush1.msra.mxu0 0.0
      %11630 = vmatprep.subr.mxu0 0.0
      %11631 = vmatpush1.msra.mxu0 0.0
      %11632 = vmatprep.subr.mxu0 0.0
      %11633 = vmatpush1.msra.mxu0 0.0
      %11634 = vmatprep.subr.mxu0 0.0
      %11635 = vmatpush1.msra.mxu0 0.0
      %11636 = vmatprep.mubr.f32.mxu0 0.0
      %11637 = vmatmul.mubr.f32.gmra.mrb[0].mxu0 %v11567
      %v11638 = vpop.f32.mrb[0].mxu0
      %v11639 = vadd.f32 0.0, %v11638
      %v11640 = vpop.f32.mrb[0].mxu0
      %11641 = vmatprep.mubr.f32.mxu0 0.0
      %11642 = vmatmul.mubr.f32.gmra.mrb[0].mxu0 %v11570
      %v11643 = vpop.f32.mrb[0].mxu0
      %v11644 = vadd.f32 0.0, %v11643
      %v11645 = vpop.f32.mrb[0].mxu0
      %11646 = vdwg.mxu0
      %11647 = vrot.lane.b32.xlu0 %v4473, 108
      %v11648 = vpop.permute.xlu0 %11647
      %11649 = vrot.lane.b32.xlu0 %v4474, 108
      %v11650 = vpop.permute.xlu0 %11649
      %v11654 = vsel %vm6520, %v10765, 0
      %v11657 = vsel %vm6520, %v10766, 0
      %11659 = vmatprep.subr.mxu0 0.0
      %11660 = vmatpush1.msra.mxu0 %v11648
      %11661 = vmatprep.subr.mxu0 0.0
      %11662 = vmatpush1.msra.mxu0 %v11650
      %11663 = vmatprep.subr.mxu0 0.0
      %11664 = vmatpush1.msra.mxu0 0.0
      %11665 = vmatprep.subr.mxu0 0.0
      %11666 = vmatpush1.msra.mxu0 0.0
      %11667 = vmatprep.subr.mxu0 0.0
      %11668 = vmatpush1.msra.mxu0 0.0
      %11669 = vmatprep.subr.mxu0 0.0
      %11670 = vmatpush1.msra.mxu0 0.0
      %11671 = vmatprep.subr.mxu0 0.0
      %11672 = vmatpush1.msra.mxu0 0.0
      %11673 = vmatprep.subr.mxu0 0.0
      %11674 = vmatpush1.msra.mxu0 0.0
      %11675 = vmatprep.subr.mxu0 0.0
      %11676 = vmatpush1.msra.mxu0 0.0
      %11677 = vmatprep.subr.mxu0 0.0
      %11678 = vmatpush1.msra.mxu0 0.0
      %11679 = vmatprep.subr.mxu0 0.0
      %11680 = vmatpush1.msra.mxu0 0.0
      %11681 = vmatprep.subr.mxu0 0.0
      %11682 = vmatpush1.msra.mxu0 0.0
      %11683 = vmatprep.subr.mxu0 0.0
      %11684 = vmatpush1.msra.mxu0 0.0
      %11685 = vmatprep.subr.mxu0 0.0
      %11686 = vmatpush1.msra.mxu0 0.0
      %11687 = vmatprep.subr.mxu0 0.0
      %11688 = vmatpush1.msra.mxu0 0.0
      %11689 = vmatprep.subr.mxu0 0.0
      %11690 = vmatpush1.msra.mxu0 0.0
      %11691 = vmatprep.subr.mxu0 0.0
      %11692 = vmatpush1.msra.mxu0 0.0
      %11693 = vmatprep.subr.mxu0 0.0
      %11694 = vmatpush1.msra.mxu0 0.0
      %11695 = vmatprep.subr.mxu0 0.0
      %11696 = vmatpush1.msra.mxu0 0.0
      %11697 = vmatprep.subr.mxu0 0.0
      %11698 = vmatpush1.msra.mxu0 0.0
      %11699 = vmatprep.subr.mxu0 0.0
      %11700 = vmatpush1.msra.mxu0 0.0
      %11701 = vmatprep.subr.mxu0 0.0
      %11702 = vmatpush1.msra.mxu0 0.0
      %11703 = vmatprep.subr.mxu0 0.0
      %11704 = vmatpush1.msra.mxu0 0.0
      %11705 = vmatprep.subr.mxu0 0.0
      %11706 = vmatpush1.msra.mxu0 0.0
      %11707 = vmatprep.subr.mxu0 0.0
      %11708 = vmatpush1.msra.mxu0 0.0
      %11709 = vmatprep.subr.mxu0 0.0
      %11710 = vmatpush1.msra.mxu0 0.0
      %11711 = vmatprep.subr.mxu0 0.0
      %11712 = vmatpush1.msra.mxu0 0.0
      %11713 = vmatprep.subr.mxu0 0.0
      %11714 = vmatpush1.msra.mxu0 0.0
      %11715 = vmatprep.subr.mxu0 0.0
      %11716 = vmatpush1.msra.mxu0 0.0
      %11717 = vmatprep.subr.mxu0 0.0
      %11718 = vmatpush1.msra.mxu0 0.0
      %11719 = vmatprep.subr.mxu0 0.0
      %11720 = vmatpush1.msra.mxu0 0.0
      %11721 = vmatprep.subr.mxu0 0.0
      %11722 = vmatpush1.msra.mxu0 0.0
      %11723 = vmatprep.mubr.f32.mxu0 0.0
      %11724 = vmatmul.mubr.f32.gmra.mrb[0].mxu0 %v11654
      %v11725 = vpop.f32.mrb[0].mxu0
      %v11726 = vadd.f32 0.0, %v11725
      %v11727 = vpop.f32.mrb[0].mxu0
      %11728 = vmatprep.mubr.f32.mxu0 0.0
      %11729 = vmatmul.mubr.f32.gmra.mrb[0].mxu0 %v11657
      %v11730 = vpop.f32.mrb[0].mxu0
      %v11731 = vadd.f32 0.0, %v11730
      %v11732 = vpop.f32.mrb[0].mxu0
      %11733 = vdwg.mxu0
      %11734 = vrot.lane.b32.xlu0 %v4475, 108
      %v11735 = vpop.permute.xlu0 %11734
      %11736 = vrot.lane.b32.xlu0 %v4476, 108
      %v11737 = vpop.permute.xlu0 %11736
      %v11741 = vsel %vm6520, %v10767, 0
      %v11744 = vsel %vm6520, %v10768, 0
      %11746 = vmatprep.subr.mxu0 0.0
      %11747 = vmatpush1.msra.mxu0 %v11735
      %11748 = vmatprep.subr.mxu0 0.0
      %11749 = vmatpush1.msra.mxu0 %v11737
      %11750 = vmatprep.subr.mxu0 0.0
      %11751 = vmatpush1.msra.mxu0 0.0
      %11752 = vmatprep.subr.mxu0 0.0
      %11753 = vmatpush1.msra.mxu0 0.0
      %11754 = vmatprep.subr.mxu0 0.0
      %11755 = vmatpush1.msra.mxu0 0.0
      %11756 = vmatprep.subr.mxu0 0.0
      %11757 = vmatpush1.msra.mxu0 0.0
      %11758 = vmatprep.subr.mxu0 0.0
      %11759 = vmatpush1.msra.mxu0 0.0
      %11760 = vmatprep.subr.mxu0 0.0
      %11761 = vmatpush1.msra.mxu0 0.0
      %11762 = vmatprep.subr.mxu0 0.0
      %11763 = vmatpush1.msra.mxu0 0.0
      %11764 = vmatprep.subr.mxu0 0.0
      %11765 = vmatpush1.msra.mxu0 0.0
      %11766 = vmatprep.subr.mxu0 0.0
      %11767 = vmatpush1.msra.mxu0 0.0
      %11768 = vmatprep.subr.mxu0 0.0
      %11769 = vmatpush1.msra.mxu0 0.0
      %11770 = vmatprep.subr.mxu0 0.0
      %11771 = vmatpush1.msra.mxu0 0.0
      %11772 = vmatprep.subr.mxu0 0.0
      %11773 = vmatpush1.msra.mxu0 0.0
      %11774 = vmatprep.subr.mxu0 0.0
      %11775 = vmatpush1.msra.mxu0 0.0
      %11776 = vmatprep.subr.mxu0 0.0
      %11777 = vmatpush1.msra.mxu0 0.0
      %11778 = vmatprep.subr.mxu0 0.0
      %11779 = vmatpush1.msra.mxu0 0.0
      %11780 = vmatprep.subr.mxu0 0.0
      %11781 = vmatpush1.msra.mxu0 0.0
      %11782 = vmatprep.subr.mxu0 0.0
      %11783 = vmatpush1.msra.mxu0 0.0
      %11784 = vmatprep.subr.mxu0 0.0
      %11785 = vmatpush1.msra.mxu0 0.0
      %11786 = vmatprep.subr.mxu0 0.0
      %11787 = vmatpush1.msra.mxu0 0.0
      %11788 = vmatprep.subr.mxu0 0.0
      %11789 = vmatpush1.msra.mxu0 0.0
      %11790 = vmatprep.subr.mxu0 0.0
      %11791 = vmatpush1.msra.mxu0 0.0
      %11792 = vmatprep.subr.mxu0 0.0
      %11793 = vmatpush1.msra.mxu0 0.0
      %11794 = vmatprep.subr.mxu0 0.0
      %11795 = vmatpush1.msra.mxu0 0.0
      %11796 = vmatprep.subr.mxu0 0.0
      %11797 = vmatpush1.msra.mxu0 0.0
      %11798 = vmatprep.subr.mxu0 0.0
      %11799 = vmatpush1.msra.mxu0 0.0
      %11800 = vmatprep.subr.mxu0 0.0
      %11801 = vmatpush1.msra.mxu0 0.0
      %11802 = vmatprep.subr.mxu0 0.0
      %11803 = vmatpush1.msra.mxu0 0.0
      %11804 = vmatprep.subr.mxu0 0.0
      %11805 = vmatpush1.msra.mxu0 0.0
      %11806 = vmatprep.subr.mxu0 0.0
      %11807 = vmatpush1.msra.mxu0 0.0
      %11808 = vmatprep.subr.mxu0 0.0
      %11809 = vmatpush1.msra.mxu0 0.0
      %11810 = vmatprep.mubr.f32.mxu0 0.0
      %11811 = vmatmul.mubr.f32.gmra.mrb[0].mxu0 %v11741
      %v11812 = vpop.f32.mrb[0].mxu0
      %v11813 = vadd.f32 0.0, %v11812
      %v11814 = vpop.f32.mrb[0].mxu0
      %11815 = vmatprep.mubr.f32.mxu0 0.0
      %11816 = vmatmul.mubr.f32.gmra.mrb[0].mxu0 %v11744
      %v11817 = vpop.f32.mrb[0].mxu0
      %v11818 = vadd.f32 0.0, %v11817
      %v11819 = vpop.f32.mrb[0].mxu0
      %11820 = vdwg.mxu0
      %11821 = vrot.lane.b32.xlu0 %v4477, 108
      %v11822 = vpop.permute.xlu0 %11821
      %11823 = vrot.lane.b32.xlu0 %v4478, 108
      %v11824 = vpop.permute.xlu0 %11823
      %v11828 = vsel %vm6520, %v10769, 0
      %v11831 = vsel %vm6520, %v10770, 0
      %11833 = vmatprep.subr.mxu0 0.0
      %11834 = vmatpush1.msra.mxu0 %v11822
      %11835 = vmatprep.subr.mxu0 0.0
      %11836 = vmatpush1.msra.mxu0 %v11824
      %11837 = vmatprep.subr.mxu0 0.0
      %11838 = vmatpush1.msra.mxu0 0.0
      %11839 = vmatprep.subr.mxu0 0.0
      %11840 = vmatpush1.msra.mxu0 0.0
      %11841 = vmatprep.subr.mxu0 0.0
      %11842 = vmatpush1.msra.mxu0 0.0
      %11843 = vmatprep.subr.mxu0 0.0
      %11844 = vmatpush1.msra.mxu0 0.0
      %11845 = vmatprep.subr.mxu0 0.0
      %11846 = vmatpush1.msra.mxu0 0.0
      %11847 = vmatprep.subr.mxu0 0.0
      %11848 = vmatpush1.msra.mxu0 0.0
      %11849 = vmatprep.subr.mxu0 0.0
      %11850 = vmatpush1.msra.mxu0 0.0
      %11851 = vmatprep.subr.mxu0 0.0
      %11852 = vmatpush1.msra.mxu0 0.0
      %11853 = vmatprep.subr.mxu0 0.0
      %11854 = vmatpush1.msra.mxu0 0.0
      %11855 = vmatprep.subr.mxu0 0.0
      %11856 = vmatpush1.msra.mxu0 0.0
      %11857 = vmatprep.subr.mxu0 0.0
      %11858 = vmatpush1.msra.mxu0 0.0
      %11859 = vmatprep.subr.mxu0 0.0
      %11860 = vmatpush1.msra.mxu0 0.0
      %11861 = vmatprep.subr.mxu0 0.0
      %11862 = vmatpush1.msra.mxu0 0.0
      %11863 = vmatprep.subr.mxu0 0.0
      %11864 = vmatpush1.msra.mxu0 0.0
      %11865 = vmatprep.subr.mxu0 0.0
      %11866 = vmatpush1.msra.mxu0 0.0
      %11867 = vmatprep.subr.mxu0 0.0
      %11868 = vmatpush1.msra.mxu0 0.0
      %11869 = vmatprep.subr.mxu0 0.0
      %11870 = vmatpush1.msra.mxu0 0.0
      %11871 = vmatprep.subr.mxu0 0.0
      %11872 = vmatpush1.msra.mxu0 0.0
      %11873 = vmatprep.subr.mxu0 0.0
      %11874 = vmatpush1.msra.mxu0 0.0
      %11875 = vmatprep.subr.mxu0 0.0
      %11876 = vmatpush1.msra.mxu0 0.0
      %11877 = vmatprep.subr.mxu0 0.0
      %11878 = vmatpush1.msra.mxu0 0.0
      %11879 = vmatprep.subr.mxu0 0.0
      %11880 = vmatpush1.msra.mxu0 0.0
      %11881 = vmatprep.subr.mxu0 0.0
      %11882 = vmatpush1.msra.mxu0 0.0
      %11883 = vmatprep.subr.mxu0 0.0
      %11884 = vmatpush1.msra.mxu0 0.0
      %11885 = vmatprep.subr.mxu0 0.0
      %11886 = vmatpush1.msra.mxu0 0.0
      %11887 = vmatprep.subr.mxu0 0.0
      %11888 = vmatpush1.msra.mxu0 0.0
      %11889 = vmatprep.subr.mxu0 0.0
      %11890 = vmatpush1.msra.mxu0 0.0
      %11891 = vmatprep.subr.mxu0 0.0
      %11892 = vmatpush1.msra.mxu0 0.0
      %11893 = vmatprep.subr.mxu0 0.0
      %11894 = vmatpush1.msra.mxu0 0.0
      %11895 = vmatprep.subr.mxu0 0.0
      %11896 = vmatpush1.msra.mxu0 0.0
      %11897 = vmatprep.mubr.f32.mxu0 0.0
      %11898 = vmatmul.mubr.f32.gmra.mrb[0].mxu0 %v11828
      %v11899 = vpop.f32.mrb[0].mxu0
      %v11900 = vadd.f32 0.0, %v11899
      %v11901 = vpop.f32.mrb[0].mxu0
      %11902 = vmatprep.mubr.f32.mxu0 0.0
      %11903 = vmatmul.mubr.f32.gmra.mrb[0].mxu0 %v11831
      %v11904 = vpop.f32.mrb[0].mxu0
      %v11905 = vadd.f32 0.0, %v11904
      %v11906 = vpop.f32.mrb[0].mxu0
      %11907 = vdwg.mxu0
      %11908 = vrot.lane.b32.xlu0 %v4479, 108
      %v11909 = vpop.permute.xlu0 %11908
      %11910 = vrot.lane.b32.xlu0 %v4480, 108
      %v11911 = vpop.permute.xlu0 %11910
      %v11915 = vsel %vm6520, %v10771, 0
      %v11918 = vsel %vm6520, %v10772, 0
      %11920 = vmatprep.subr.mxu0 0.0
      %11921 = vmatpush1.msra.mxu0 %v11909
      %11922 = vmatprep.subr.mxu0 0.0
      %11923 = vmatpush1.msra.mxu0 %v11911
      %11924 = vmatprep.subr.mxu0 0.0
      %11925 = vmatpush1.msra.mxu0 0.0
      %11926 = vmatprep.subr.mxu0 0.0
      %11927 = vmatpush1.msra.mxu0 0.0
      %11928 = vmatprep.subr.mxu0 0.0
      %11929 = vmatpush1.msra.mxu0 0.0
      %11930 = vmatprep.subr.mxu0 0.0
      %11931 = vmatpush1.msra.mxu0 0.0
      %11932 = vmatprep.subr.mxu0 0.0
      %11933 = vmatpush1.msra.mxu0 0.0
      %11934 = vmatprep.subr.mxu0 0.0
      %11935 = vmatpush1.msra.mxu0 0.0
      %11936 = vmatprep.subr.mxu0 0.0
      %11937 = vmatpush1.msra.mxu0 0.0
      %11938 = vmatprep.subr.mxu0 0.0
      %11939 = vmatpush1.msra.mxu0 0.0
      %11940 = vmatprep.subr.mxu0 0.0
      %11941 = vmatpush1.msra.mxu0 0.0
      %11942 = vmatprep.subr.mxu0 0.0
      %11943 = vmatpush1.msra.mxu0 0.0
      %11944 = vmatprep.subr.mxu0 0.0
      %11945 = vmatpush1.msra.mxu0 0.0
      %11946 = vmatprep.subr.mxu0 0.0
      %11947 = vmatpush1.msra.mxu0 0.0
      %11948 = vmatprep.subr.mxu0 0.0
      %11949 = vmatpush1.msra.mxu0 0.0
      %11950 = vmatprep.subr.mxu0 0.0
      %11951 = vmatpush1.msra.mxu0 0.0
      %11952 = vmatprep.subr.mxu0 0.0
      %11953 = vmatpush1.msra.mxu0 0.0
      %11954 = vmatprep.subr.mxu0 0.0
      %11955 = vmatpush1.msra.mxu0 0.0
      %11956 = vmatprep.subr.mxu0 0.0
      %11957 = vmatpush1.msra.mxu0 0.0
      %11958 = vmatprep.subr.mxu0 0.0
      %11959 = vmatpush1.msra.mxu0 0.0
      %11960 = vmatprep.subr.mxu0 0.0
      %11961 = vmatpush1.msra.mxu0 0.0
      %11962 = vmatprep.subr.mxu0 0.0
      %11963 = vmatpush1.msra.mxu0 0.0
      %11964 = vmatprep.subr.mxu0 0.0
      %11965 = vmatpush1.msra.mxu0 0.0
      %11966 = vmatprep.subr.mxu0 0.0
      %11967 = vmatpush1.msra.mxu0 0.0
      %11968 = vmatprep.subr.mxu0 0.0
      %11969 = vmatpush1.msra.mxu0 0.0
      %11970 = vmatprep.subr.mxu0 0.0
      %11971 = vmatpush1.msra.mxu0 0.0
      %11972 = vmatprep.subr.mxu0 0.0
      %11973 = vmatpush1.msra.mxu0 0.0
      %11974 = vmatprep.subr.mxu0 0.0
      %11975 = vmatpush1.msra.mxu0 0.0
      %11976 = vmatprep.subr.mxu0 0.0
      %11977 = vmatpush1.msra.mxu0 0.0
      %11978 = vmatprep.subr.mxu0 0.0
      %11979 = vmatpush1.msra.mxu0 0.0
      %11980 = vmatprep.subr.mxu0 0.0
      %11981 = vmatpush1.msra.mxu0 0.0
      %11982 = vmatprep.subr.mxu0 0.0
      %11983 = vmatpush1.msra.mxu0 0.0
      %11984 = vmatprep.mubr.f32.mxu0 0.0
      %11985 = vmatmul.mubr.f32.gmra.mrb[0].mxu0 %v11915
      %v11986 = vpop.f32.mrb[0].mxu0
      %v11987 = vadd.f32 0.0, %v11986
      %v11988 = vpop.f32.mrb[0].mxu0
      %11989 = vmatprep.mubr.f32.mxu0 0.0
      %11990 = vmatmul.mubr.f32.gmra.mrb[0].mxu0 %v11918
      %v11991 = vpop.f32.mrb[0].mxu0
      %v11992 = vadd.f32 0.0, %v11991
      %v11993 = vpop.f32.mrb[0].mxu0
      %11994 = vdwg.mxu0
      %11995 = vrot.lane.b32.xlu0 %v4481, 108
      %v11996 = vpop.permute.xlu0 %11995
      %11997 = vrot.lane.b32.xlu0 %v4482, 108
      %v11998 = vpop.permute.xlu0 %11997
      %v12002 = vsel %vm6520, %v10773, 0
      %v12005 = vsel %vm6520, %v10774, 0
      %12007 = vmatprep.subr.mxu0 0.0
      %12008 = vmatpush1.msra.mxu0 %v11996
      %12009 = vmatprep.subr.mxu0 0.0
      %12010 = vmatpush1.msra.mxu0 %v11998
      %12011 = vmatprep.subr.mxu0 0.0
      %12012 = vmatpush1.msra.mxu0 0.0
      %12013 = vmatprep.subr.mxu0 0.0
      %12014 = vmatpush1.msra.mxu0 0.0
      %12015 = vmatprep.subr.mxu0 0.0
      %12016 = vmatpush1.msra.mxu0 0.0
      %12017 = vmatprep.subr.mxu0 0.0
      %12018 = vmatpush1.msra.mxu0 0.0
      %12019 = vmatprep.subr.mxu0 0.0
      %12020 = vmatpush1.msra.mxu0 0.0
      %12021 = vmatprep.subr.mxu0 0.0
      %12022 = vmatpush1.msra.mxu0 0.0
      %12023 = vmatprep.subr.mxu0 0.0
      %12024 = vmatpush1.msra.mxu0 0.0
      %12025 = vmatprep.subr.mxu0 0.0
      %12026 = vmatpush1.msra.mxu0 0.0
      %12027 = vmatprep.subr.mxu0 0.0
      %12028 = vmatpush1.msra.mxu0 0.0
      %12029 = vmatprep.subr.mxu0 0.0
      %12030 = vmatpush1.msra.mxu0 0.0
      %12031 = vmatprep.subr.mxu0 0.0
      %12032 = vmatpush1.msra.mxu0 0.0
      %12033 = vmatprep.subr.mxu0 0.0
      %12034 = vmatpush1.msra.mxu0 0.0
      %12035 = vmatprep.subr.mxu0 0.0
      %12036 = vmatpush1.msra.mxu0 0.0
      %12037 = vmatprep.subr.mxu0 0.0
      %12038 = vmatpush1.msra.mxu0 0.0
      %12039 = vmatprep.subr.mxu0 0.0
      %12040 = vmatpush1.msra.mxu0 0.0
      %12041 = vmatprep.subr.mxu0 0.0
      %12042 = vmatpush1.msra.mxu0 0.0
      %12043 = vmatprep.subr.mxu0 0.0
      %12044 = vmatpush1.msra.mxu0 0.0
      %12045 = vmatprep.subr.mxu0 0.0
      %12046 = vmatpush1.msra.mxu0 0.0
      %12047 = vmatprep.subr.mxu0 0.0
      %12048 = vmatpush1.msra.mxu0 0.0
      %12049 = vmatprep.subr.mxu0 0.0
      %12050 = vmatpush1.msra.mxu0 0.0
      %12051 = vmatprep.subr.mxu0 0.0
      %12052 = vmatpush1.msra.mxu0 0.0
      %12053 = vmatprep.subr.mxu0 0.0
      %12054 = vmatpush1.msra.mxu0 0.0
      %12055 = vmatprep.subr.mxu0 0.0
      %12056 = vmatpush1.msra.mxu0 0.0
      %12057 = vmatprep.subr.mxu0 0.0
      %12058 = vmatpush1.msra.mxu0 0.0
      %12059 = vmatprep.subr.mxu0 0.0
      %12060 = vmatpush1.msra.mxu0 0.0
      %12061 = vmatprep.subr.mxu0 0.0
      %12062 = vmatpush1.msra.mxu0 0.0
      %12063 = vmatprep.subr.mxu0 0.0
      %12064 = vmatpush1.msra.mxu0 0.0
      %12065 = vmatprep.subr.mxu0 0.0
      %12066 = vmatpush1.msra.mxu0 0.0
      %12067 = vmatprep.subr.mxu0 0.0
      %12068 = vmatpush1.msra.mxu0 0.0
      %12069 = vmatprep.subr.mxu0 0.0
      %12070 = vmatpush1.msra.mxu0 0.0
      %12071 = vmatprep.mubr.f32.mxu0 0.0
      %12072 = vmatmul.mubr.f32.gmra.mrb[0].mxu0 %v12002
      %v12073 = vpop.f32.mrb[0].mxu0
      %v12074 = vadd.f32 0.0, %v12073
      %v12075 = vpop.f32.mrb[0].mxu0
      %12076 = vmatprep.mubr.f32.mxu0 0.0
      %12077 = vmatmul.mubr.f32.gmra.mrb[0].mxu0 %v12005
      %v12078 = vpop.f32.mrb[0].mxu0
      %v12079 = vadd.f32 0.0, %v12078
      %v12080 = vpop.f32.mrb[0].mxu0
      %12081 = vdwg.mxu0
      %12082 = vrot.lane.b32.xlu0 %v4483, 108
      %v12083 = vpop.permute.xlu0 %12082
      %12084 = vrot.lane.b32.xlu0 %v4484, 108
      %v12085 = vpop.permute.xlu0 %12084
      %v12089 = vsel %vm6520, %v10775, 0
      %v12092 = vsel %vm6520, %v10776, 0
      %12094 = vmatprep.subr.mxu0 0.0
      %12095 = vmatpush1.msra.mxu0 %v12083
      %12096 = vmatprep.subr.mxu0 0.0
      %12097 = vmatpush1.msra.mxu0 %v12085
      %12098 = vmatprep.subr.mxu0 0.0
      %12099 = vmatpush1.msra.mxu0 0.0
      %12100 = vmatprep.subr.mxu0 0.0
      %12101 = vmatpush1.msra.mxu0 0.0
      %12102 = vmatprep.subr.mxu0 0.0
      %12103 = vmatpush1.msra.mxu0 0.0
      %12104 = vmatprep.subr.mxu0 0.0
      %12105 = vmatpush1.msra.mxu0 0.0
      %12106 = vmatprep.subr.mxu0 0.0
      %12107 = vmatpush1.msra.mxu0 0.0
      %12108 = vmatprep.subr.mxu0 0.0
      %12109 = vmatpush1.msra.mxu0 0.0
      %12110 = vmatprep.subr.mxu0 0.0
      %12111 = vmatpush1.msra.mxu0 0.0
      %12112 = vmatprep.subr.mxu0 0.0
      %12113 = vmatpush1.msra.mxu0 0.0
      %12114 = vmatprep.subr.mxu0 0.0
      %12115 = vmatpush1.msra.mxu0 0.0
      %12116 = vmatprep.subr.mxu0 0.0
      %12117 = vmatpush1.msra.mxu0 0.0
      %12118 = vmatprep.subr.mxu0 0.0
      %12119 = vmatpush1.msra.mxu0 0.0
      %12120 = vmatprep.subr.mxu0 0.0
      %12121 = vmatpush1.msra.mxu0 0.0
      %12122 = vmatprep.subr.mxu0 0.0
      %12123 = vmatpush1.msra.mxu0 0.0
      %12124 = vmatprep.subr.mxu0 0.0
      %12125 = vmatpush1.msra.mxu0 0.0
      %12126 = vmatprep.subr.mxu0 0.0
      %12127 = vmatpush1.msra.mxu0 0.0
      %12128 = vmatprep.subr.mxu0 0.0
      %12129 = vmatpush1.msra.mxu0 0.0
      %12130 = vmatprep.subr.mxu0 0.0
      %12131 = vmatpush1.msra.mxu0 0.0
      %12132 = vmatprep.subr.mxu0 0.0
      %12133 = vmatpush1.msra.mxu0 0.0
      %12134 = vmatprep.subr.mxu0 0.0
      %12135 = vmatpush1.msra.mxu0 0.0
      %12136 = vmatprep.subr.mxu0 0.0
      %12137 = vmatpush1.msra.mxu0 0.0
      %12138 = vmatprep.subr.mxu0 0.0
      %12139 = vmatpush1.msra.mxu0 0.0
      %12140 = vmatprep.subr.mxu0 0.0
      %12141 = vmatpush1.msra.mxu0 0.0
      %12142 = vmatprep.subr.mxu0 0.0
      %12143 = vmatpush1.msra.mxu0 0.0
      %12144 = vmatprep.subr.mxu0 0.0
      %12145 = vmatpush1.msra.mxu0 0.0
      %12146 = vmatprep.subr.mxu0 0.0
      %12147 = vmatpush1.msra.mxu0 0.0
      %12148 = vmatprep.subr.mxu0 0.0
      %12149 = vmatpush1.msra.mxu0 0.0
      %12150 = vmatprep.subr.mxu0 0.0
      %12151 = vmatpush1.msra.mxu0 0.0
      %12152 = vmatprep.subr.mxu0 0.0
      %12153 = vmatpush1.msra.mxu0 0.0
      %12154 = vmatprep.subr.mxu0 0.0
      %12155 = vmatpush1.msra.mxu0 0.0
      %12156 = vmatprep.subr.mxu0 0.0
      %12157 = vmatpush1.msra.mxu0 0.0
      %12158 = vmatprep.mubr.f32.mxu0 0.0
      %12159 = vmatmul.mubr.f32.gmra.mrb[0].mxu0 %v12089
      %v12160 = vpop.f32.mrb[0].mxu0
      %v12161 = vadd.f32 0.0, %v12160
      %v12162 = vpop.f32.mrb[0].mxu0
      %12163 = vmatprep.mubr.f32.mxu0 0.0
      %12164 = vmatmul.mubr.f32.gmra.mrb[0].mxu0 %v12092
      %v12165 = vpop.f32.mrb[0].mxu0
      %v12166 = vadd.f32 0.0, %v12165
      %v12167 = vpop.f32.mrb[0].mxu0
      %12168 = vdwg.mxu0
      %12201 = vrot.lane.b32.xlu0 %v10856, 4
      %v12202 = vpop.permute.xlu0 %12201
      %12203 = vrot.lane.b32.xlu0 %v10861, 4
      %v12204 = vpop.permute.xlu0 %12203
      %12205 = vrot.lane.b32.xlu0 %v10943, 4
      %v12206 = vpop.permute.xlu0 %12205
      %12207 = vrot.lane.b32.xlu0 %v10948, 4
      %v12208 = vpop.permute.xlu0 %12207
      %12209 = vrot.lane.b32.xlu0 %v11030, 4
      %v12210 = vpop.permute.xlu0 %12209
      %12211 = vrot.lane.b32.xlu0 %v11035, 4
      %v12212 = vpop.permute.xlu0 %12211
      %12213 = vrot.lane.b32.xlu0 %v11117, 4
      %v12214 = vpop.permute.xlu0 %12213
      %12215 = vrot.lane.b32.xlu0 %v11122, 4
      %v12216 = vpop.permute.xlu0 %12215
      %12217 = vrot.lane.b32.xlu0 %v11204, 4
      %v12218 = vpop.permute.xlu0 %12217
      %12219 = vrot.lane.b32.xlu0 %v11209, 4
      %v12220 = vpop.permute.xlu0 %12219
      %12221 = vrot.lane.b32.xlu0 %v11291, 4
      %v12222 = vpop.permute.xlu0 %12221
      %12223 = vrot.lane.b32.xlu0 %v11296, 4
      %v12224 = vpop.permute.xlu0 %12223
      %12225 = vrot.lane.b32.xlu0 %v11378, 4
      %v12226 = vpop.permute.xlu0 %12225
      %12227 = vrot.lane.b32.xlu0 %v11383, 4
      %v12228 = vpop.permute.xlu0 %12227
      %12229 = vrot.lane.b32.xlu0 %v11465, 4
      %v12230 = vpop.permute.xlu0 %12229
      %12231 = vrot.lane.b32.xlu0 %v11470, 4
      %v12232 = vpop.permute.xlu0 %12231
      %12233 = vrot.lane.b32.xlu0 %v11552, 4
      %v12234 = vpop.permute.xlu0 %12233
      %12235 = vrot.lane.b32.xlu0 %v11557, 4
      %v12236 = vpop.permute.xlu0 %12235
      %12237 = vrot.lane.b32.xlu0 %v11639, 4
      %v12238 = vpop.permute.xlu0 %12237
      %12239 = vrot.lane.b32.xlu0 %v11644, 4
      %v12240 = vpop.permute.xlu0 %12239
      %12241 = vrot.lane.b32.xlu0 %v11726, 4
      %v12242 = vpop.permute.xlu0 %12241
      %12243 = vrot.lane.b32.xlu0 %v11731, 4
      %v12244 = vpop.permute.xlu0 %12243
      %12245 = vrot.lane.b32.xlu0 %v11813, 4
      %v12246 = vpop.permute.xlu0 %12245
      %12247 = vrot.lane.b32.xlu0 %v11818, 4
      %v12248 = vpop.permute.xlu0 %12247
      %12249 = vrot.lane.b32.xlu0 %v11900, 4
      %v12250 = vpop.permute.xlu0 %12249
      %12251 = vrot.lane.b32.xlu0 %v11905, 4
      %v12252 = vpop.permute.xlu0 %12251
      %12253 = vrot.lane.b32.xlu0 %v11987, 4
      %v12254 = vpop.permute.xlu0 %12253
      %12255 = vrot.lane.b32.xlu0 %v11992, 4
      %v12256 = vpop.permute.xlu0 %12255
      %12257 = vrot.lane.b32.xlu0 %v12074, 4
      %v12258 = vpop.permute.xlu0 %12257
      %12259 = vrot.lane.b32.xlu0 %v12079, 4
      %v12260 = vpop.permute.xlu0 %12259
      %12261 = vrot.lane.b32.xlu0 %v12161, 4
      %v12262 = vpop.permute.xlu0 %12261
      %12263 = vrot.lane.b32.xlu0 %v12166, 4
      %v12264 = vpop.permute.xlu0 %12263
      %v12297 = vsel %vm4518, %v6954, %v12202
      %v12298 = vsel %vm4518, %v6959, %v12204
      %v12299 = vsel %vm4518, %v7043, %v12206
      %v12300 = vsel %vm4518, %v7048, %v12208
      %v12301 = vsel %vm4518, %v7132, %v12210
      %v12302 = vsel %vm4518, %v7137, %v12212
      %v12303 = vsel %vm4518, %v7221, %v12214
      %v12304 = vsel %vm4518, %v7226, %v12216
      %v12305 = vsel %vm4518, %v7310, %v12218
      %v12306 = vsel %vm4518, %v7315, %v12220
      %v12307 = vsel %vm4518, %v7399, %v12222
      %v12308 = vsel %vm4518, %v7404, %v12224
      %v12309 = vsel %vm4518, %v7488, %v12226
      %v12310 = vsel %vm4518, %v7493, %v12228
      %v12311 = vsel %vm4518, %v7577, %v12230
      %v12312 = vsel %vm4518, %v7582, %v12232
      %v12313 = vsel %vm4518, %v7666, %v12234
      %v12314 = vsel %vm4518, %v7671, %v12236
      %v12315 = vsel %vm4518, %v7755, %v12238
      %v12316 = vsel %vm4518, %v7760, %v12240
      %v12317 = vsel %vm4518, %v7844, %v12242
      %v12318 = vsel %vm4518, %v7849, %v12244
      %v12319 = vsel %vm4518, %v7933, %v12246
      %v12320 = vsel %vm4518, %v7938, %v12248
      %v12321 = vsel %vm4518, %v8022, %v12250
      %v12322 = vsel %vm4518, %v8027, %v12252
      %v12323 = vsel %vm4518, %v8111, %v12254
      %v12324 = vsel %vm4518, %v8116, %v12256
      %v12325 = vsel %vm4518, %v8200, %v12258
      %v12326 = vsel %vm4518, %v8205, %v12260
      %v12327 = vsel %vm4518, %v8289, %v12262
      %v12328 = vsel %vm4518, %v8294, %v12264
      %v12329 = vld [vmem:[%s7] sm:$0xff]
      %v12330 = vld [vmem:[%s8] sm:$0xff]
      %12332 = vset.pattern.permute.xlu0 0
      %12333 = vperm.xlu0 %12332, %v12330
      %v12334 = vpop.permute.xlu0 %12333
      %v12337 = vsel %vm401, %v12329, 0
      %v12340 = vsel %vm401, %v12297, 0
      %v12343 = vsel %vm401, %v12298, 0
      %v12346 = vsel %vm401, %v12299, 0
      %v12349 = vsel %vm401, %v12300, 0
      %v12352 = vsel %vm401, %v12301, 0
      %v12355 = vsel %vm401, %v12302, 0
      %v12358 = vsel %vm401, %v12303, 0
      %v12361 = vsel %vm401, %v12304, 0
      %v12364 = vsel %vm401, %v12305, 0
      %v12367 = vsel %vm401, %v12306, 0
      %v12370 = vsel %vm401, %v12307, 0
      %v12373 = vsel %vm401, %v12308, 0
      %v12376 = vsel %vm401, %v12309, 0
      %v12379 = vsel %vm401, %v12310, 0
      %v12382 = vsel %vm401, %v12311, 0
      %v12385 = vsel %vm401, %v12312, 0
      %v12388 = vsel %vm401, %v12313, 0
      %v12391 = vsel %vm401, %v12314, 0
      %v12394 = vsel %vm401, %v12315, 0
      %v12397 = vsel %vm401, %v12316, 0
      %v12400 = vsel %vm401, %v12317, 0
      %v12403 = vsel %vm401, %v12318, 0
      %v12406 = vsel %vm401, %v12319, 0
      %v12409 = vsel %vm401, %v12320, 0
      %v12412 = vsel %vm401, %v12321, 0
      %v12415 = vsel %vm401, %v12322, 0
      %v12418 = vsel %vm401, %v12323, 0
      %v12421 = vsel %vm401, %v12324, 0
      %v12424 = vsel %vm401, %v12325, 0
      %v12427 = vsel %vm401, %v12326, 0
      %v12430 = vsel %vm401, %v12327, 0
      %v12433 = vsel %vm401, %v12328, 0
      %12435 = vmatprep.subr.mxu0 0.0
      %12436 = vmatpush1.xpose.msra.mxu0 %v12340
      %12437 = vmatprep.subr.mxu0 0.0
      %12438 = vmatpush1.xpose.msra.mxu0 %v12343
      %12439 = vmatprep.subr.mxu0 0.0
      %12440 = vmatpush1.xpose.msra.mxu0 %v12346
      %12441 = vmatprep.subr.mxu0 0.0
      %12442 = vmatpush1.xpose.msra.mxu0 %v12349
      %12443 = vmatprep.subr.mxu0 0.0
      %12444 = vmatpush1.xpose.msra.mxu0 %v12352
      %12445 = vmatprep.subr.mxu0 0.0
      %12446 = vmatpush1.xpose.msra.mxu0 %v12355
      %12447 = vmatprep.subr.mxu0 0.0
      %12448 = vmatpush1.xpose.msra.mxu0 %v12358
      %12449 = vmatprep.subr.mxu0 0.0
      %12450 = vmatpush1.xpose.msra.mxu0 %v12361
      %12451 = vmatprep.subr.mxu0 0.0
      %12452 = vmatpush1.xpose.msra.mxu0 %v12364
      %12453 = vmatprep.subr.mxu0 0.0
      %12454 = vmatpush1.xpose.msra.mxu0 %v12367
      %12455 = vmatprep.subr.mxu0 0.0
      %12456 = vmatpush1.xpose.msra.mxu0 %v12370
      %12457 = vmatprep.subr.mxu0 0.0
      %12458 = vmatpush1.xpose.msra.mxu0 %v12373
      %12459 = vmatprep.subr.mxu0 0.0
      %12460 = vmatpush1.xpose.msra.mxu0 %v12376
      %12461 = vmatprep.subr.mxu0 0.0
      %12462 = vmatpush1.xpose.msra.mxu0 %v12379
      %12463 = vmatprep.subr.mxu0 0.0
      %12464 = vmatpush1.xpose.msra.mxu0 %v12382
      %12465 = vmatprep.subr.mxu0 0.0
      %12466 = vmatpush1.xpose.msra.mxu0 %v12385
      %12467 = vmatprep.subr.mxu0 0.0
      %12468 = vmatpush1.xpose.msra.mxu0 %v12388
      %12469 = vmatprep.subr.mxu0 0.0
      %12470 = vmatpush1.xpose.msra.mxu0 %v12391
      %12471 = vmatprep.subr.mxu0 0.0
      %12472 = vmatpush1.xpose.msra.mxu0 %v12394
      %12473 = vmatprep.subr.mxu0 0.0
      %12474 = vmatpush1.xpose.msra.mxu0 %v12397
      %12475 = vmatprep.subr.mxu0 0.0
      %12476 = vmatpush1.xpose.msra.mxu0 %v12400
      %12477 = vmatprep.subr.mxu0 0.0
      %12478 = vmatpush1.xpose.msra.mxu0 %v12403
      %12479 = vmatprep.subr.mxu0 0.0
      %12480 = vmatpush1.xpose.msra.mxu0 %v12406
      %12481 = vmatprep.subr.mxu0 0.0
      %12482 = vmatpush1.xpose.msra.mxu0 %v12409
      %12483 = vmatprep.subr.mxu0 0.0
      %12484 = vmatpush1.xpose.msra.mxu0 %v12412
      %12485 = vmatprep.subr.mxu0 0.0
      %12486 = vmatpush1.xpose.msra.mxu0 %v12415
      %12487 = vmatprep.subr.mxu0 0.0
      %12488 = vmatpush1.xpose.msra.mxu0 %v12418
      %12489 = vmatprep.subr.mxu0 0.0
      %12490 = vmatpush1.xpose.msra.mxu0 %v12421
      %12491 = vmatprep.subr.mxu0 0.0
      %12492 = vmatpush1.xpose.msra.mxu0 %v12424
      %12493 = vmatprep.subr.mxu0 0.0
      %12494 = vmatpush1.xpose.msra.mxu0 %v12427
      %12495 = vmatprep.subr.mxu0 0.0
      %12496 = vmatpush1.xpose.msra.mxu0 %v12430
      %12497 = vmatprep.subr.mxu0 0.0
      %12498 = vmatpush1.xpose.msra.mxu0 %v12433
      %12499 = vmatprep.mubr.f32.mxu0 0.0
      %12500 = vmatmul.mubr.f32.gmra.mrb[0].mxu0 %v12337
      %v12501 = vpop.f32.mrb[0].mxu0
      %v12502 = vadd.f32 %v12334, %v12501
      %v12503 = vpop.f32.mrb[0].mxu0
      %v12504 = vadd.f32 %v12334, %v12503
      %12505 = vdwg.mxu0
      %12506 = vst [vmem:[%s360] sm:$0xff] %v12502
      %12507 = vst [vmem:[%s360 + $0x8] sm:$0xff] %v12504
      %p12508 = scmp.lt.s32.totalorder %s22, 1
      %s12509 = scalar_select %p12508, %s22, 1
      %s12510 = smul.addr %s12509, 2
      %s12511 = smul.addr %s12510, 8
      %s12512 = scalar_lea.vmem %s10, %s12511
      // Predicated region
      $region61: #{next_attention_z.1} parent=59 // pred_check
        %p12513 = pneg %p255
      $region62: #{next_attention_z.1} parent=59 // pred_check_branch
        %12515 = sbr.rel (%p12513) target = $region64
      $region63: #{next_attention_z.1} parent=59 // pred_region
        _
      $region64: #{next_attention_z.1} parent=59 // pred_fallthru
        _
    $region60: #{next_attention_z.1} parent=5 // pred_fallthru
      _
    %p12516 = scmp.le.s32.totalorder 2, %s17
    // Predicated region
    $region65: #{next_attention_z.1} parent=5 // pred_check
      %p12517 = pneg %p12516
    $region66: #{next_attention_z.1} parent=5 // pred_check_branch
      %12519 = sbr.rel (%p12517) target = $region68
    $region67: #{next_attention_z.1} parent=5 // pred_region
      %s12520 = ssub.s32 %s17, 2
      // Predicated region
      $region69: #{next_attention_z.1} parent=67 // pred_check
        %p12521 = pneg %p261
      $region70: #{next_attention_z.1} parent=67 // pred_check_branch
        %12523 = sbr.rel (%p12521) target = $region72
      $region71: #{next_attention_z.1} parent=67 // pred_region
        %p12524 = scmp.lt.s32.totalorder %s23, 1
        %s12525 = scalar_select %p12524, %s23, 1
        %s12526 = smul.addr %s12525, 2
        %s12527 = smul.addr %s12526, 8
        %s12528 = scalar_lea.vmem %s10, %s12527
      $region72: #{next_attention_z.1} parent=67 // pred_fallthru
        _
    $region68: #{next_attention_z.1} parent=5 // pred_fallthru
      _
  $region6: #{next_attention_z.1} parent=0 // loop_footer
    %s21 = sadd.s32 1, %s17
  $region7: #{next_attention_z.1} parent=0 // loop_footer_branch
    %16 = sbr.rel target = $region3
  $region8: #{next_attention_z.1} parent=0 // loop_exit
    _

</llo_original>
